<compile_context>
chip_gen: v6e
topology: v6e:2x2x1
jax: 0.10.0
libtpu: 0.0.40
codegen_flags: <defaults>
</compile_context>

<pallas_src>
import math

import jax
import jax.numpy as jnp
from jax.experimental import pallas as pl
from jax.experimental.pallas import tpu as pltpu  # noqa: F401  (not needed by this fused kernel)

# ----------------------------- configuration --------------------------------
B = 2            # batch
L = 8            # sequence length (time steps)
D = 4            # channels
HID = 32         # hid_dim
TE = 16          # te_dim
PATCH = 4        # patch_size  -> d_model = HID // PATCH
NHEAD_TF = 8     # transformer encoder heads
NLAYER_TF = 4
MASK_RATIO = 0.5
NQ = 128         # cls_query = torch.linspace(0, 1, 128)
DM = HID // PATCH            # 8
FF = 4 * DM                  # 32
NEG_INF = -1e9
ALPHA = 0.7

N_SAMP = B * D                       # 8  channel-independent samples
MASK_LEN = int(PATCH * MASK_RATIO)   # 2
N_VIS = PATCH - MASK_LEN             # 2
S_LEN = N_SAMP * N_VIS               # 16 visible patches == one encoder sequence
HS = NHEAD_TF * S_LEN                # 128 all-head flattened key axis

assert DM == NHEAD_TF, "fused attention exploits head_dim == 1 (d_model == nhead)"


# ------------------------------ small helpers -------------------------------
def _layernorm(x, w, b, eps=1e-5):
    mu = jnp.mean(x, axis=-1, keepdims=True)
    xc = x - mu
    var = jnp.mean(xc * xc, axis=-1, keepdims=True)
    return xc * jax.lax.rsqrt(var + eps) * w + b


def _gelu_tanh(x):
    # TODO(synk): PyTorch uses exact (erf) GELU in both the transformer and the
    # decoder; the tanh approximation (~1e-3 abs diff) is used consistently in
    # both places here for Mosaic-safe lowering.
    c = math.sqrt(2.0 / math.pi)
    return 0.5 * x * (1.0 + jnp.tanh(c * (x + 0.044715 * x * x * x)))


# -------------------------- the single fused kernel --------------------------
def _gmae_fused_kernel(
    # --- time attention + query-attention pooling (all samples at once) ---
    qcls_ref,    # (NQ, TE)      hoisted cls-query projection  cls_emb @ Wq^T + bq
    key_ref,     # (N*L, TE)     per-(sample, time) key embeddings
    wk_ref,      # (TE, TE)      Wk^T
    bk_ref,      # (1, TE)
    valr_ref,    # (1, N*L)      values, flattened sample-major
    mskr_ref,    # (1, N*L)      observation mask, flattened sample-major
    seg_ref,     # (N*L, N)      per-sample lane-segment indicator
    c1_ref,      # (1, 1)        dot(query_attention, Wv[:, 0])
    wv_ref,      # (1, HID)      time_att.linears[2].weight[:, 0]
    bv_ref,      # (1, HID)
    eye_ref,     # (N, N)
    rep_ref,     # (PATCH*N, N)  replicates the pooled value per patch slot
    wvrep_ref,   # (PATCH*N, DM) Wv rearranged patch-major
    bvrep_ref,   # (PATCH*N, DM)
    # --- MAE gather / scatter expressed as one-hot matmuls ---
    gvis_ref,    # (S, PATCH*N)  visible-patch gather
    avg_ref,     # (N, S)        per-sample mean of visible encodings
    pvis_ref,    # (PATCH*N, S)  scatter decoded visible patches
    pmsk_ref,    # (PATCH*N, N)  scatter per-sample avg decoding to masked slots
    mpos_ref,    # (PATCH*N, 1)  masked-position indicator (latent loss)
    # --- transformer segmented-attention helpers (head_dim == 1) ---
    emat_ref,    # (DM, HS)
    dmat_ref,    # (S, HS)
    seg2_ref,    # (HS, NHEAD)
    # --- stacked transformer-encoder-layer weights (leading layer axis) ---
    wqkv_ref, bqkv_ref, wo_ref, bo_ref,
    ln1w_ref, ln1b_ref, w1_ref, b1_ref, w2_ref, b2_ref, ln2w_ref, ln2b_ref,
    # --- MAE decoder + signal projector ---
    d1w_ref, d1b_ref, d2w_ref, d2b_ref, spw_ref, spb_ref,
    # --- signal-loss target ---
    valnl_ref,   # (N, L)
    # --- outputs ---
    repr_ref,    # (N, HID)
    sig_ref,     # (N, L)
    loss_ref,    # (1, 1)
):
    f32 = jnp.float32

    # ---------------- ChannelIndependentTimeAttention (all samples fused) ----
    k = jnp.dot(key_ref[...], wk_ref[...], preferred_element_type=f32) + bk_ref[...]
    scores = jax.lax.dot_general(qcls_ref[...], k, (((1,), (1,)), ((), ())),
                                 preferred_element_type=f32) * (1.0 / math.sqrt(TE))
    scores = jnp.where(mskr_ref[...] == 0.0, NEG_INF, scores)          # (NQ, N*L)
    scores = scores - jnp.max(scores, axis=1, keepdims=True)
    e = jnp.exp(scores)
    seg = seg_ref[...]
    den = jnp.dot(e, seg, preferred_element_type=f32)                   # (NQ, N)
    num = jnp.dot(e * valr_ref[...], seg, preferred_element_type=f32)   # (NQ, N)
    # all-observations-masked fallback == torch's uniform softmax over L
    fb = (jnp.dot(valr_ref[...], seg, preferred_element_type=f32) *
          (1.0 / L)) * jnp.ones_like(num)
    ok = den > 0.0
    attn_val = jnp.where(ok, num / jnp.where(ok, den, 1.0), fb)         # (NQ, N)

    # ---------------- query_attention pooling (collapsed algebraically) ------
    logits = attn_val * c1_ref[...]                                     # (NQ, N)
    e0 = jnp.exp(logits - jnp.max(logits, axis=0, keepdims=True))
    ones_row = jnp.ones((1, NQ), f32)
    num0 = jnp.dot(ones_row, e0 * attn_val, preferred_element_type=f32)  # (1, N)
    den0 = jnp.dot(ones_row, e0, preferred_element_type=f32)             # (1, N)
    pooled_row = num0 / den0                                             # (1, N)
    # row -> column with a diag trick (only standard, well-supported ops)
    pooled = jnp.sum(eye_ref[...] * pooled_row, axis=1, keepdims=True)   # (N, 1)

    out_repr = pooled * wv_ref[...] + bv_ref[...]                        # (N, HID)
    repr_ref[...] = out_repr
    # same encodings laid out patch-major: row p*N + s  ->  (PATCH*N, DM)
    tokens_pm = (jnp.dot(rep_ref[...], pooled, preferred_element_type=f32)
                 * wvrep_ref[...] + bvrep_ref[...])

    # ---------------- MAE: gather visible patches ---------------------------
    x = jnp.dot(gvis_ref[...], tokens_pm, preferred_element_type=f32)    # (S, DM)

    # ---------------- 4 fused TransformerEncoderLayers ----------------------
    # nhead == d_model -> head_dim == 1: all-head scores are rank-1 products,
    # computed lane-dense as (S, nhead*S) = (16, 128) with a segmented softmax
    # (no degenerate per-head MXU passes).  Eval mode: dropout omitted.
    e_mat = emat_ref[...]
    d_mat = dmat_ref[...]
    seg2 = seg2_ref[...]
    ones_s = jnp.ones((1, S_LEN), f32)
    for lyr in range(NLAYER_TF):                                         # static unroll
        qkv = jnp.dot(x, wqkv_ref[lyr], preferred_element_type=f32) + bqkv_ref[lyr]
        qh = qkv[:, :DM]
        kh = qkv[:, DM:2 * DM]
        vh = qkv[:, 2 * DM:]
        q_exp = jnp.dot(qh, e_mat, preferred_element_type=f32)           # (S, HS)
        k_row = jnp.dot(ones_s,
                        jnp.dot(kh, e_mat, preferred_element_type=f32) * d_mat,
                        preferred_element_type=f32)                      # (1, HS)
        v_row = jnp.dot(ones_s,
                        jnp.dot(vh, e_mat, preferred_element_type=f32) * d_mat,
                        preferred_element_type=f32)                      # (1, HS)
        sc = q_exp * k_row                                               # scale = 1/sqrt(1)
        ee = jnp.exp(sc - jnp.max(sc, axis=1, keepdims=True))
        a_den = jnp.dot(ee, seg2, preferred_element_type=f32)            # (S, NHEAD)
        ctx = jnp.dot(ee * v_row, seg2, preferred_element_type=f32) / a_den
        attn = jnp.dot(ctx, wo_ref[lyr], preferred_element_type=f32) + bo_ref[lyr]
        x = _layernorm(x + attn, ln1w_ref[lyr], ln1b_ref[lyr])
        h1 = _gelu_tanh(jnp.dot(x, w1_ref[lyr], preferred_element_type=f32) + b1_ref[lyr])
        ff = jnp.dot(h1, w2_ref[lyr], preferred_element_type=f32) + b2_ref[lyr]
        x = _layernorm(x + ff, ln2w_ref[lyr], ln2b_ref[lyr])

    # ---------------- MAE decoder (visible patches + per-sample means) ------
    def _decode(z):
        h = _gelu_tanh(jnp.dot(z, d1w_ref[...], preferred_element_type=f32) + d1b_ref[...])
        return jnp.dot(h, d2w_ref[...], preferred_element_type=f32) + d2b_ref[...]

    dec_vis = _decode(x)                                                  # (S, DM)
    avg_enc = jnp.dot(avg_ref[...], x, preferred_element_type=f32)        # (N, DM)
    dec_avg = _decode(avg_enc)                                            # (N, DM)

    # ---------------- scatter reconstruction (patch-major) ------------------
    recon_pm = (jnp.dot(pvis_ref[...], dec_vis, preferred_element_type=f32) +
                jnp.dot(pmsk_ref[...], dec_avg, preferred_element_type=f32))  # (PATCH*N, DM)

    # ---------------- signal projection (block-wise recon_latent @ Wsp^T) ---
    spw = spw_ref[...]                                                    # (HID, L)
    sig = jnp.zeros((N_SAMP, L), f32)
    for pch in range(PATCH):
        sig = sig + jnp.dot(recon_pm[pch * N_SAMP:(pch + 1) * N_SAMP, :],
                            spw[pch * DM:(pch + 1) * DM, :],
                            preferred_element_type=f32)
    sig = sig + spb_ref[...]
    sig_ref[...] = sig

    # ---------------- losses -------------------------------------------------
    lat_sq = mpos_ref[...] * (recon_pm - tokens_pm) ** 2
    lat = jnp.sum(jnp.sum(lat_sq, axis=1, keepdims=True), axis=0, keepdims=True)
    latent_loss = lat * (1.0 / (N_SAMP * MASK_LEN * DM))
    sig_sq = (sig - valnl_ref[...]) ** 2
    sg = jnp.sum(jnp.sum(sig_sq, axis=1, keepdims=True), axis=0, keepdims=True)
    signal_loss = sg * (1.0 / (N_SAMP * L))
    loss_ref[...] = ALPHA * signal_loss + (1.0 - ALPHA) * latent_loss


# -------------------------------- parameters --------------------------------
def init_params(key):
    keys = jax.random.split(key, 16)

    def linear_init(k, out_f, in_f, scale=0.2):
        kw, kb = jax.random.split(k)
        w = scale * jax.random.normal(kw, (out_f, in_f), jnp.float32)
        b = scale * jax.random.normal(kb, (out_f,), jnp.float32)
        return w, b

    p = {}
    p["lin_w"], p["lin_b"] = linear_init(keys[0], 1, 1)              # self.linear
    p["per_w"], p["per_b"] = linear_init(keys[1], TE - 1, 1)         # self.periodic
    p["wq"], p["bq"] = linear_init(keys[2], TE, TE)                  # time_att.linears[0]
    p["wk"], p["bk"] = linear_init(keys[3], TE, TE)                  # time_att.linears[1]
    p["wv"], p["bv"] = linear_init(keys[4], HID, 1)                  # time_att.linears[2]
    p["query_attention"] = jax.random.normal(keys[5], (HID,), jnp.float32)

    stk = {k: [] for k in ["wqkv_t", "bqkv", "wo_t", "bo", "w1_t", "b1", "w2_t", "b2"]}
    for i in range(NLAYER_TF):
        kk = jax.random.split(keys[6 + i], 4)
        wqkv, bqkv = linear_init(kk[0], 3 * DM, DM)
        wo, bo = linear_init(kk[1], DM, DM)
        w1, b1 = linear_init(kk[2], FF, DM)
        w2, b2 = linear_init(kk[3], DM, FF)
        stk["wqkv_t"].append(wqkv.T); stk["bqkv"].append(bqkv[None, :])
        stk["wo_t"].append(wo.T);     stk["bo"].append(bo[None, :])
        stk["w1_t"].append(w1.T);     stk["b1"].append(b1[None, :])
        stk["w2_t"].append(w2.T);     stk["b2"].append(b2[None, :])
    p["tf"] = {k: jnp.stack(v) for k, v in stk.items()}
    p["tf"]["ln1w"] = jnp.ones((NLAYER_TF, 1, DM), jnp.float32)
    p["tf"]["ln1b"] = jnp.zeros((NLAYER_TF, 1, DM), jnp.float32)
    p["tf"]["ln2w"] = jnp.ones((NLAYER_TF, 1, DM), jnp.float32)
    p["tf"]["ln2b"] = jnp.zeros((NLAYER_TF, 1, DM), jnp.float32)

    p["dec1_w"], p["dec1_b"] = linear_init(keys[10], FF, DM)          # decoder[0]
    p["dec2_w"], p["dec2_b"] = linear_init(keys[11], DM, FF)          # decoder[2]
    # NOTE: the torch module creates nn.Linear(hid_dim, L) freshly every forward;
    # here it is a fixed deterministic parameter.
    p["sp_w"], p["sp_b"] = linear_init(keys[12], L, HID)
    return p


# -------------------------------- forward -----------------------------------
def gmae_forward(p, value, time_steps, obs_mask, mask_key):
    b, l, d = value.shape
    n = b * d
    f32 = jnp.float32

    # channel-independent reshapes (== permute(0,2,1).reshape(-1, L))
    x_value = jnp.transpose(value, (0, 2, 1)).reshape(n, l)             # (n, L)
    mask_r = jnp.transpose(obs_mask, (0, 2, 1)).reshape(n, l).astype(f32)
    t = jnp.broadcast_to(time_steps[:, None, :], (b, d, l)).reshape(n, l)

    # learn_time_embedding: cat([linear(t), sin(periodic(t))], -1)  (tiny XLA glue)
    def time_embed(tt):
        return jnp.concatenate(
            [tt * p["lin_w"][0, 0] + p["lin_b"][0],
             jnp.sin(tt * p["per_w"][:, 0] + p["per_b"])], axis=-1)

    key_emb = time_embed(t.reshape(n * l, 1))                           # (n*L, TE)
    cls_emb = time_embed(jnp.linspace(0.0, 1.0, NQ)[:, None])           # (NQ, TE)
    q_cls = cls_emb @ p["wq"].T + p["bq"]                               # hoisted query proj

    wv = p["wv"][:, 0]                                                  # (HID,)
    c1 = jnp.sum(wv * p["query_attention"]).reshape(1, 1)

    seg = jnp.kron(jnp.eye(n, dtype=f32), jnp.ones((l, 1), f32))        # (n*L, n)
    eye_n = jnp.eye(n, dtype=f32)
    rep_mat = jnp.tile(eye_n, (PATCH, 1))                               # (PATCH*n, n)
    wv_rep = jnp.repeat(wv.reshape(PATCH, 1, DM), n, axis=1).reshape(PATCH * n, DM)
    bv_rep = jnp.repeat(p["bv"].reshape(PATCH, 1, DM), n, axis=1).reshape(PATCH * n, DM)

    # ---------------- MAE random patch masking -> one-hot gather/scatter -----
    rand = jax.random.uniform(mask_key, (n, PATCH))
    perm = jnp.argsort(rand, axis=1)
    masked_idx = jnp.sort(perm[:, :MASK_LEN], axis=1)                   # (n, MASK_LEN)
    visible_idx = jnp.sort(perm[:, MASK_LEN:], axis=1)                  # (n, N_VIS)
    samples = jnp.arange(n)
    vis_pos = visible_idx * n + samples[:, None]                        # patch-major slots
    msk_pos = masked_idx * n + samples[:, None]
    g_vis = jax.nn.one_hot(vis_pos.reshape(-1), PATCH * n, dtype=f32)   # (S, PATCH*n)
    p_vis = g_vis.T                                                     # (PATCH*n, S)
    p_msk = jnp.zeros((PATCH * n, n), f32).at[msk_pos, samples[:, None]].set(1.0)
    m_pos = jnp.sum(p_msk, axis=1, keepdims=True)                       # (PATCH*n, 1)
    a_avg = jnp.kron(eye_n, jnp.ones((1, N_VIS), f32)) / N_VIS          # (n, S)

    # transformer segmented-attention helpers (head_dim == 1)
    e_mat = jnp.kron(jnp.eye(DM, dtype=f32), jnp.ones((1, S_LEN), f32))       # (DM, HS)
    d_mat = jnp.tile(jnp.eye(S_LEN, dtype=f32), (1, NHEAD_TF))                # (S, HS)
    seg2 = jnp.kron(jnp.eye(NHEAD_TF, dtype=f32), jnp.ones((S_LEN, 1), f32))  # (HS, NHEAD)

    tf = p["tf"]
    out_repr, recon_sig, loss11 = pl.pallas_call(
        _gmae_fused_kernel,
        out_shape=(
            jax.ShapeDtypeStruct((n, HID), f32),
            jax.ShapeDtypeStruct((n, l), f32),
            jax.ShapeDtypeStruct((1, 1), f32),
        ),
    )(
        q_cls, key_emb, p["wk"].T, p["bk"][None, :],
        x_value.reshape(1, n * l), mask_r.reshape(1, n * l), seg, c1,
        wv[None, :], p["bv"][None, :], eye_n, rep_mat, wv_rep, bv_rep,
        g_vis, a_avg, p_vis, p_msk, m_pos,
        e_mat, d_mat, seg2,
        tf["wqkv_t"], tf["bqkv"], tf["wo_t"], tf["bo"],
        tf["ln1w"], tf["ln1b"], tf["w1_t"], tf["b1"],
        tf["w2_t"], tf["b2"], tf["ln2w"], tf["ln2b"],
        p["dec1_w"].T, p["dec1_b"][None, :], p["dec2_w"].T, p["dec2_b"][None, :],
        p["sp_w"].T, p["sp_b"][None, :],
        x_value,
    )

    encoded_representation = out_repr.reshape(b, d, HID)
    reconstructed_signals = jnp.transpose(recon_sig.reshape(b, d, l), (0, 2, 1))
    return {"loss": loss11[0, 0],
            "reconstructed_signal": reconstructed_signals,
            "encoded_representation": encoded_representation}


# ----------------------------------- main ------------------------------------
if __name__ == "__main__":
    root = jax.random.PRNGKey(0)
    kp, kv, kt, km, kmask = jax.random.split(root, 5)

    params = init_params(kp)
    value = jax.random.normal(kv, (B, L, D), jnp.float32)
    time_steps = jnp.sort(jax.random.uniform(kt, (B, L)), axis=1)
    obs_mask = (jax.random.uniform(km, (B, L, D)) > 0.2).astype(jnp.float32)

    fwd = jax.jit(gmae_forward)
    out = fwd(params, value, time_steps, obs_mask, kmask)
    jax.block_until_ready(out)

    assert out["reconstructed_signal"].shape == (B, L, D)
    assert out["encoded_representation"].shape == (B, D, HID)
    assert out["loss"].shape == ()
    print("KERNEL_OK")
</pallas_src>

<mosaic_0001>
module attributes {stable_mosaic.version = 11 : i64} {
  func.func @_gmae_fused_kernel(%arg0: memref<128x16xf32, #tpu.memory_space<vmem>>, %arg1: memref<64x16xf32, #tpu.memory_space<vmem>>, %arg2: memref<16x16xf32, #tpu.memory_space<vmem>>, %arg3: memref<1x16xf32, #tpu.memory_space<vmem>>, %arg4: memref<1x64xf32, #tpu.memory_space<vmem>>, %arg5: memref<1x64xf32, #tpu.memory_space<vmem>>, %arg6: memref<64x8xf32, #tpu.memory_space<vmem>>, %arg7: memref<1x1xf32, #tpu.memory_space<vmem>>, %arg8: memref<1x32xf32, #tpu.memory_space<vmem>>, %arg9: memref<1x32xf32, #tpu.memory_space<vmem>>, %arg10: memref<8x8xf32, #tpu.memory_space<vmem>>, %arg11: memref<32x8xf32, #tpu.memory_space<vmem>>, %arg12: memref<32x8xf32, #tpu.memory_space<vmem>>, %arg13: memref<32x8xf32, #tpu.memory_space<vmem>>, %arg14: memref<16x32xf32, #tpu.memory_space<vmem>>, %arg15: memref<8x16xf32, #tpu.memory_space<vmem>>, %arg16: memref<32x16xf32, #tpu.memory_space<vmem>>, %arg17: memref<32x8xf32, #tpu.memory_space<vmem>>, %arg18: memref<32x1xf32, #tpu.memory_space<vmem>>, %arg19: memref<8x128xf32, #tpu.memory_space<vmem>>, %arg20: memref<16x128xf32, #tpu.memory_space<vmem>>, %arg21: memref<128x8xf32, #tpu.memory_space<vmem>>, %arg22: memref<4x8x24xf32, #tpu.memory_space<vmem>>, %arg23: memref<4x1x24xf32, #tpu.memory_space<vmem>>, %arg24: memref<4x8x8xf32, #tpu.memory_space<vmem>>, %arg25: memref<4x1x8xf32, #tpu.memory_space<vmem>>, %arg26: memref<4x1x8xf32, #tpu.memory_space<vmem>>, %arg27: memref<4x1x8xf32, #tpu.memory_space<vmem>>, %arg28: memref<4x8x32xf32, #tpu.memory_space<vmem>>, %arg29: memref<4x1x32xf32, #tpu.memory_space<vmem>>, %arg30: memref<4x32x8xf32, #tpu.memory_space<vmem>>, %arg31: memref<4x1x8xf32, #tpu.memory_space<vmem>>, %arg32: memref<4x1x8xf32, #tpu.memory_space<vmem>>, %arg33: memref<4x1x8xf32, #tpu.memory_space<vmem>>, %arg34: memref<8x32xf32, #tpu.memory_space<vmem>>, %arg35: memref<1x32xf32, #tpu.memory_space<vmem>>, %arg36: memref<32x8xf32, #tpu.memory_space<vmem>>, %arg37: memref<1x8xf32, #tpu.memory_space<vmem>>, %arg38: memref<32x8xf32, #tpu.memory_space<vmem>>, %arg39: memref<1x8xf32, #tpu.memory_space<vmem>>, %arg40: memref<8x8xf32, #tpu.memory_space<vmem>>, %arg41: memref<8x32xf32, #tpu.memory_space<vmem>>, %arg42: memref<8x8xf32, #tpu.memory_space<vmem>>, %arg43: memref<1x1xf32, #tpu.memory_space<vmem>>) attributes {dimension_semantics = [], scalar_prefetch = 0 : i64, scratch_operands = 0 : i64, tpu.core_type = #tpu.core_type<tc>} {
    %c0 = arith.constant 0 : index
    %c0_0 = arith.constant 0 : index
    %0 = vector.load %arg1[%c0, %c0_0] : memref<64x16xf32, #tpu.memory_space<vmem>>, vector<64x16xf32>
    %c0_1 = arith.constant 0 : index
    %c0_2 = arith.constant 0 : index
    %1 = vector.load %arg2[%c0_1, %c0_2] : memref<16x16xf32, #tpu.memory_space<vmem>>, vector<16x16xf32>
    %cst = arith.constant dense<0.000000e+00> : vector<64x16xf32>
    %2 = tpu.matmul %0, %1, %cst {dimension_numbers = #tpu.dot_dimension_numbers<[1], [0], [0], [1], [0, 0, 1, 1], [], []>} : vector<64x16xf32>, vector<16x16xf32>, vector<64x16xf32> -> vector<64x16xf32>
    %c0_3 = arith.constant 0 : index
    %c0_4 = arith.constant 0 : index
    %3 = vector.load %arg3[%c0_3, %c0_4] : memref<1x16xf32, #tpu.memory_space<vmem>>, vector<1x16xf32>
    %4 = vector.broadcast %3 : vector<1x16xf32> to vector<64x16xf32>
    %5 = arith.addf %2, %4 : vector<64x16xf32>
    %c0_5 = arith.constant 0 : index
    %c0_6 = arith.constant 0 : index
    %6 = vector.load %arg0[%c0_5, %c0_6] : memref<128x16xf32, #tpu.memory_space<vmem>>, vector<128x16xf32>
    %cst_7 = arith.constant dense<0.000000e+00> : vector<128x64xf32>
    %7 = tpu.matmul %6, %5, %cst_7 {dimension_numbers = #tpu.dot_dimension_numbers<[1], [1], [0], [0], [0, 0, 1, 0], [], []>} : vector<128x16xf32>, vector<64x16xf32>, vector<128x64xf32> -> vector<128x64xf32>
    %cst_8 = arith.constant 2.500000e-01 : f32
    %8 = vector.broadcast %cst_8 : f32 to vector<128x64xf32>
    %9 = arith.mulf %7, %8 : vector<128x64xf32>
    %c0_9 = arith.constant 0 : index
    %c0_10 = arith.constant 0 : index
    %10 = vector.load %arg5[%c0_9, %c0_10] : memref<1x64xf32, #tpu.memory_space<vmem>>, vector<1x64xf32>
    %cst_11 = arith.constant 0.000000e+00 : f32
    %11 = vector.broadcast %cst_11 : f32 to vector<1x64xf32>
    %12 = arith.cmpf oeq, %10, %11 : vector<1x64xf32>
    %cst_12 = arith.constant -1.000000e+09 : f32
    %13 = vector.shape_cast %12 : vector<1x64xi1> to vector<1x64xi1>
    %14 = vector.broadcast %13 : vector<1x64xi1> to vector<128x64xi1>
    %15 = vector.broadcast %cst_12 : f32 to vector<128x64xf32>
    %16 = arith.select %14, %15, %9 : vector<128x64xi1>, vector<128x64xf32>
    %cst_13 = arith.constant dense<0xFF800000> : vector<128xf32>
    %17 = vector.multi_reduction <maximumf>, %16, %cst_13 [1] : vector<128x64xf32> to vector<128xf32>
    %18 = vector.shape_cast %17 : vector<128xf32> to vector<128x1xf32>
    %19 = vector.broadcast %18 : vector<128x1xf32> to vector<128x64xf32>
    %20 = arith.subf %16, %19 : vector<128x64xf32>
    %21 = math.exp %20 : vector<128x64xf32>
    %c0_14 = arith.constant 0 : index
    %c0_15 = arith.constant 0 : index
    %22 = vector.load %arg6[%c0_14, %c0_15] : memref<64x8xf32, #tpu.memory_space<vmem>>, vector<64x8xf32>
    %cst_16 = arith.constant dense<0.000000e+00> : vector<128x8xf32>
    %23 = tpu.matmul %21, %22, %cst_16 {dimension_numbers = #tpu.dot_dimension_numbers<[1], [0], [0], [1], [0, 0, 1, 1], [], []>} : vector<128x64xf32>, vector<64x8xf32>, vector<128x8xf32> -> vector<128x8xf32>
    %c0_17 = arith.constant 0 : index
    %c0_18 = arith.constant 0 : index
    %24 = vector.load %arg4[%c0_17, %c0_18] : memref<1x64xf32, #tpu.memory_space<vmem>>, vector<1x64xf32>
    %25 = vector.broadcast %24 : vector<1x64xf32> to vector<128x64xf32>
    %26 = arith.mulf %21, %25 : vector<128x64xf32>
    %cst_19 = arith.constant dense<0.000000e+00> : vector<128x8xf32>
    %27 = tpu.matmul %26, %22, %cst_19 {dimension_numbers = #tpu.dot_dimension_numbers<[1], [0], [0], [1], [0, 0, 1, 1], [], []>} : vector<128x64xf32>, vector<64x8xf32>, vector<128x8xf32> -> vector<128x8xf32>
    %c0_20 = arith.constant 0 : index
    %c0_21 = arith.constant 0 : index
    %28 = vector.load %arg4[%c0_20, %c0_21] : memref<1x64xf32, #tpu.memory_space<vmem>>, vector<1x64xf32>
    %cst_22 = arith.constant dense<0.000000e+00> : vector<1x8xf32>
    %29 = tpu.matmul %28, %22, %cst_22 {dimension_numbers = #tpu.dot_dimension_numbers<[1], [0], [0], [1], [0, 0, 1, 1], [], []>} : vector<1x64xf32>, vector<64x8xf32>, vector<1x8xf32> -> vector<1x8xf32>
    %cst_23 = arith.constant 1.250000e-01 : f32
    %30 = vector.broadcast %cst_23 : f32 to vector<1x8xf32>
    %31 = arith.mulf %29, %30 : vector<1x8xf32>
    %cst_24 = arith.constant 1.000000e+00 : f32
    %32 = vector.broadcast %cst_24 : f32 to vector<128x8xf32>
    %33 = vector.broadcast %31 : vector<1x8xf32> to vector<128x8xf32>
    %34 = arith.mulf %33, %32 : vector<128x8xf32>
    %cst_25 = arith.constant 0.000000e+00 : f32
    %35 = vector.broadcast %cst_25 : f32 to vector<128x8xf32>
    %36 = arith.cmpf ogt, %23, %35 : vector<128x8xf32>
    %cst_26 = arith.constant 1.000000e+00 : f32
    %37 = vector.broadcast %cst_26 : f32 to vector<128x8xf32>
    %38 = arith.select %36, %23, %37 : vector<128x8xi1>, vector<128x8xf32>
    %39 = arith.divf %27, %38 : vector<128x8xf32>
    %40 = arith.select %36, %39, %34 : vector<128x8xi1>, vector<128x8xf32>
    %c0_27 = arith.constant 0 : index
    %c0_28 = arith.constant 0 : index
    %41 = vector.load %arg7[%c0_27, %c0_28] : memref<1x1xf32, #tpu.memory_space<vmem>>, vector<1x1xf32>
    %42 = vector.broadcast %41 : vector<1x1xf32> to vector<128x8xf32>
    %43 = arith.mulf %40, %42 : vector<128x8xf32>
    %cst_29 = arith.constant dense<0xFF800000> : vector<8xf32>
    %44 = vector.multi_reduction <maximumf>, %43, %cst_29 [0] : vector<128x8xf32> to vector<8xf32>
    %45 = vector.shape_cast %44 : vector<8xf32> to vector<1x8xf32>
    %46 = vector.broadcast %45 : vector<1x8xf32> to vector<128x8xf32>
    %47 = arith.subf %43, %46 : vector<128x8xf32>
    %48 = math.exp %47 : vector<128x8xf32>
    %cst_30 = arith.constant 1.000000e+00 : f32
    %49 = vector.broadcast %cst_30 : f32 to vector<1x128xf32>
    %50 = arith.mulf %48, %40 : vector<128x8xf32>
    %cst_31 = arith.constant dense<0.000000e+00> : vector<1x8xf32>
    %51 = tpu.matmul %49, %50, %cst_31 {dimension_numbers = #tpu.dot_dimension_numbers<[1], [0], [0], [1], [0, 0, 1, 1], [], []>} : vector<1x128xf32>, vector<128x8xf32>, vector<1x8xf32> -> vector<1x8xf32>
    %cst_32 = arith.constant dense<0.000000e+00> : vector<1x8xf32>
    %52 = tpu.matmul %49, %48, %cst_32 {dimension_numbers = #tpu.dot_dimension_numbers<[1], [0], [0], [1], [0, 0, 1, 1], [], []>} : vector<1x128xf32>, vector<128x8xf32>, vector<1x8xf32> -> vector<1x8xf32>
    %53 = arith.divf %51, %52 : vector<1x8xf32>
    %c0_33 = arith.constant 0 : index
    %c0_34 = arith.constant 0 : index
    %54 = vector.load %arg10[%c0_33, %c0_34] : memref<8x8xf32, #tpu.memory_space<vmem>>, vector<8x8xf32>
    %55 = vector.broadcast %53 : vector<1x8xf32> to vector<8x8xf32>
    %56 = arith.mulf %54, %55 : vector<8x8xf32>
    %cst_35 = arith.constant dense<0.000000e+00> : vector<8xf32>
    %57 = vector.multi_reduction <add>, %56, %cst_35 [1] : vector<8x8xf32> to vector<8xf32>
    %58 = vector.shape_cast %57 : vector<8xf32> to vector<8x1xf32>
    %c0_36 = arith.constant 0 : index
    %c0_37 = arith.constant 0 : index
    %59 = vector.load %arg8[%c0_36, %c0_37] : memref<1x32xf32, #tpu.memory_space<vmem>>, vector<1x32xf32>
    %60 = vector.broadcast %58 : vector<8x1xf32> to vector<8x32xf32>
    %61 = vector.broadcast %59 : vector<1x32xf32> to vector<8x32xf32>
    %62 = arith.mulf %60, %61 : vector<8x32xf32>
    %c0_38 = arith.constant 0 : index
    %c0_39 = arith.constant 0 : index
    %63 = vector.load %arg9[%c0_38, %c0_39] : memref<1x32xf32, #tpu.memory_space<vmem>>, vector<1x32xf32>
    %64 = vector.broadcast %63 : vector<1x32xf32> to vector<8x32xf32>
    %65 = arith.addf %62, %64 : vector<8x32xf32>
    %c0_40 = arith.constant 0 : index
    %c0_41 = arith.constant 0 : index
    %66 = vector.load %arg41[%c0_40, %c0_41] : memref<8x32xf32, #tpu.memory_space<vmem>>, vector<8x32xf32>
    tpu.vector_store %arg41[%c0_40, %c0_41], %65 {strides = array<i32>} : memref<8x32xf32, #tpu.memory_space<vmem>>, vector<8x32xf32>,
    %c0_42 = arith.constant 0 : index
    %c0_43 = arith.constant 0 : index
    %67 = vector.load %arg11[%c0_42, %c0_43] : memref<32x8xf32, #tpu.memory_space<vmem>>, vector<32x8xf32>
    %cst_44 = arith.constant dense<0.000000e+00> : vector<32x1xf32>
    %68 = tpu.matmul %67, %58, %cst_44 {dimension_numbers = #tpu.dot_dimension_numbers<[1], [0], [0], [1], [0, 0, 1, 1], [], []>} : vector<32x8xf32>, vector<8x1xf32>, vector<32x1xf32> -> vector<32x1xf32>
    %c0_45 = arith.constant 0 : index
    %c0_46 = arith.constant 0 : index
    %69 = vector.load %arg12[%c0_45, %c0_46] : memref<32x8xf32, #tpu.memory_space<vmem>>, vector<32x8xf32>
    %70 = vector.broadcast %68 : vector<32x1xf32> to vector<32x8xf32>
    %71 = arith.mulf %70, %69 : vector<32x8xf32>
    %c0_47 = arith.constant 0 : index
    %c0_48 = arith.constant 0 : index
    %72 = vector.load %arg13[%c0_47, %c0_48] : memref<32x8xf32, #tpu.memory_space<vmem>>, vector<32x8xf32>
    %73 = arith.addf %71, %72 : vector<32x8xf32>
    %c0_49 = arith.constant 0 : index
    %c0_50 = arith.constant 0 : index
    %74 = vector.load %arg14[%c0_49, %c0_50] : memref<16x32xf32, #tpu.memory_space<vmem>>, vector<16x32xf32>
    %cst_51 = arith.constant dense<0.000000e+00> : vector<16x8xf32>
    %75 = tpu.matmul %74, %73, %cst_51 {dimension_numbers = #tpu.dot_dimension_numbers<[1], [0], [0], [1], [0, 0, 1, 1], [], []>} : vector<16x32xf32>, vector<32x8xf32>, vector<16x8xf32> -> vector<16x8xf32>
    %c0_52 = arith.constant 0 : index
    %c0_53 = arith.constant 0 : index
    %76 = vector.load %arg19[%c0_52, %c0_53] : memref<8x128xf32, #tpu.memory_space<vmem>>, vector<8x128xf32>
    %c0_54 = arith.constant 0 : index
    %c0_55 = arith.constant 0 : index
    %77 = vector.load %arg20[%c0_54, %c0_55] : memref<16x128xf32, #tpu.memory_space<vmem>>, vector<16x128xf32>
    %c0_56 = arith.constant 0 : index
    %c0_57 = arith.constant 0 : index
    %78 = vector.load %arg21[%c0_56, %c0_57] : memref<128x8xf32, #tpu.memory_space<vmem>>, vector<128x8xf32>
    %cst_58 = arith.constant 1.000000e+00 : f32
    %79 = vector.broadcast %cst_58 : f32 to vector<1x16xf32>
    %c0_59 = arith.constant 0 : index
    %c0_60 = arith.constant 0 : index
    %c0_61 = arith.constant 0 : index
    %80 = vector.load %arg22[%c0_59, %c0_60, %c0_61] : memref<4x8x24xf32, #tpu.memory_space<vmem>>, vector<1x8x24xf32>
    %81 = vector.shape_cast %80 : vector<1x8x24xf32> to vector<8x24xf32>
    %cst_62 = arith.constant dense<0.000000e+00> : vector<16x24xf32>
    %82 = tpu.matmul %75, %81, %cst_62 {dimension_numbers = #tpu.dot_dimension_numbers<[1], [0], [0], [1], [0, 0, 1, 1], [], []>} : vector<16x8xf32>, vector<8x24xf32>, vector<16x24xf32> -> vector<16x24xf32>
    %c0_63 = arith.constant 0 : index
    %c0_64 = arith.constant 0 : index
    %c0_65 = arith.constant 0 : index
    %83 = vector.load %arg23[%c0_63, %c0_64, %c0_65] : memref<4x1x24xf32, #tpu.memory_space<vmem>>, vector<1x1x24xf32>
    %84 = vector.shape_cast %83 : vector<1x1x24xf32> to vector<1x24xf32>
    %85 = vector.broadcast %84 : vector<1x24xf32> to vector<16x24xf32>
    %86 = arith.addf %82, %85 : vector<16x24xf32>
    %87 = vector.extract_strided_slice %86 {offsets = [0, 0], sizes = [16, 8], strides = [1, 1]} : vector<16x24xf32> to vector<16x8xf32>
    %88 = vector.extract_strided_slice %86 {offsets = [0, 8], sizes = [16, 8], strides = [1, 1]} : vector<16x24xf32> to vector<16x8xf32>
    %89 = vector.extract_strided_slice %86 {offsets = [0, 16], sizes = [16, 8], strides = [1, 1]} : vector<16x24xf32> to vector<16x8xf32>
    %cst_66 = arith.constant dense<0.000000e+00> : vector<16x128xf32>
    %90 = tpu.matmul %87, %76, %cst_66 {dimension_numbers = #tpu.dot_dimension_numbers<[1], [0], [0], [1], [0, 0, 1, 1], [], []>} : vector<16x8xf32>, vector<8x128xf32>, vector<16x128xf32> -> vector<16x128xf32>
    %cst_67 = arith.constant dense<0.000000e+00> : vector<16x128xf32>
    %91 = tpu.matmul %88, %76, %cst_67 {dimension_numbers = #tpu.dot_dimension_numbers<[1], [0], [0], [1], [0, 0, 1, 1], [], []>} : vector<16x8xf32>, vector<8x128xf32>, vector<16x128xf32> -> vector<16x128xf32>
    %92 = arith.mulf %91, %77 : vector<16x128xf32>
    %cst_68 = arith.constant dense<0.000000e+00> : vector<1x128xf32>
    %93 = tpu.matmul %79, %92, %cst_68 {dimension_numbers = #tpu.dot_dimension_numbers<[1], [0], [0], [1], [0, 0, 1, 1], [], []>} : vector<1x16xf32>, vector<16x128xf32>, vector<1x128xf32> -> vector<1x128xf32>
    %cst_69 = arith.constant dense<0.000000e+00> : vector<16x128xf32>
    %94 = tpu.matmul %89, %76, %cst_69 {dimension_numbers = #tpu.dot_dimension_numbers<[1], [0], [0], [1], [0, 0, 1, 1], [], []>} : vector<16x8xf32>, vector<8x128xf32>, vector<16x128xf32> -> vector<16x128xf32>
    %95 = arith.mulf %94, %77 : vector<16x128xf32>
    %cst_70 = arith.constant dense<0.000000e+00> : vector<1x128xf32>
    %96 = tpu.matmul %79, %95, %cst_70 {dimension_numbers = #tpu.dot_dimension_numbers<[1], [0], [0], [1], [0, 0, 1, 1], [], []>} : vector<1x16xf32>, vector<16x128xf32>, vector<1x128xf32> -> vector<1x128xf32>
    %97 = vector.broadcast %93 : vector<1x128xf32> to vector<16x128xf32>
    %98 = arith.mulf %90, %97 : vector<16x128xf32>
    %cst_71 = arith.constant dense<0xFF800000> : vector<16xf32>
    %99 = vector.multi_reduction <maximumf>, %98, %cst_71 [1] : vector<16x128xf32> to vector<16xf32>
    %100 = vector.shape_cast %99 : vector<16xf32> to vector<16x1xf32>
    %101 = vector.broadcast %100 : vector<16x1xf32> to vector<16x128xf32>
    %102 = arith.subf %98, %101 : vector<16x128xf32>
    %103 = math.exp %102 : vector<16x128xf32>
    %cst_72 = arith.constant dense<0.000000e+00> : vector<16x8xf32>
    %104 = tpu.matmul %103, %78, %cst_72 {dimension_numbers = #tpu.dot_dimension_numbers<[1], [0], [0], [1], [0, 0, 1, 1], [], []>} : vector<16x128xf32>, vector<128x8xf32>, vector<16x8xf32> -> vector<16x8xf32>
    %105 = vector.broadcast %96 : vector<1x128xf32> to vector<16x128xf32>
    %106 = arith.mulf %103, %105 : vector<16x128xf32>
    %cst_73 = arith.constant dense<0.000000e+00> : vector<16x8xf32>
    %107 = tpu.matmul %106, %78, %cst_73 {dimension_numbers = #tpu.dot_dimension_numbers<[1], [0], [0], [1], [0, 0, 1, 1], [], []>} : vector<16x128xf32>, vector<128x8xf32>, vector<16x8xf32> -> vector<16x8xf32>
    %108 = arith.divf %107, %104 : vector<16x8xf32>
    %c0_74 = arith.constant 0 : index
    %c0_75 = arith.constant 0 : index
    %c0_76 = arith.constant 0 : index
    %109 = vector.load %arg24[%c0_74, %c0_75, %c0_76] : memref<4x8x8xf32, #tpu.memory_space<vmem>>, vector<1x8x8xf32>
    %110 = vector.shape_cast %109 : vector<1x8x8xf32> to vector<8x8xf32>
    %cst_77 = arith.constant dense<0.000000e+00> : vector<16x8xf32>
    %111 = tpu.matmul %108, %110, %cst_77 {dimension_numbers = #tpu.dot_dimension_numbers<[1], [0], [0], [1], [0, 0, 1, 1], [], []>} : vector<16x8xf32>, vector<8x8xf32>, vector<16x8xf32> -> vector<16x8xf32>
    %c0_78 = arith.constant 0 : index
    %c0_79 = arith.constant 0 : index
    %c0_80 = arith.constant 0 : index
    %112 = vector.load %arg25[%c0_78, %c0_79, %c0_80] : memref<4x1x8xf32, #tpu.memory_space<vmem>>, vector<1x1x8xf32>
    %113 = vector.shape_cast %112 : vector<1x1x8xf32> to vector<1x8xf32>
    %114 = vector.broadcast %113 : vector<1x8xf32> to vector<16x8xf32>
    %115 = arith.addf %111, %114 : vector<16x8xf32>
    %116 = arith.addf %75, %115 : vector<16x8xf32>
    %c0_81 = arith.constant 0 : index
    %c0_82 = arith.constant 0 : index
    %c0_83 = arith.constant 0 : index
    %117 = vector.load %arg26[%c0_81, %c0_82, %c0_83] : memref<4x1x8xf32, #tpu.memory_space<vmem>>, vector<1x1x8xf32>
    %118 = vector.shape_cast %117 : vector<1x1x8xf32> to vector<1x8xf32>
    %c0_84 = arith.constant 0 : index
    %c0_85 = arith.constant 0 : index
    %c0_86 = arith.constant 0 : index
    %119 = vector.load %arg27[%c0_84, %c0_85, %c0_86] : memref<4x1x8xf32, #tpu.memory_space<vmem>>, vector<1x1x8xf32>
    %120 = vector.shape_cast %119 : vector<1x1x8xf32> to vector<1x8xf32>
    %cst_87 = arith.constant dense<0.000000e+00> : vector<16xf32>
    %121 = vector.multi_reduction <add>, %116, %cst_87 [1] : vector<16x8xf32> to vector<16xf32>
    %122 = vector.shape_cast %121 : vector<16xf32> to vector<16x1xf32>
    %cst_88 = arith.constant 8.000000e+00 : f32
    %123 = vector.broadcast %cst_88 : f32 to vector<16x1xf32>
    %124 = arith.divf %122, %123 : vector<16x1xf32>
    %125 = vector.broadcast %124 : vector<16x1xf32> to vector<16x8xf32>
    %126 = arith.subf %116, %125 : vector<16x8xf32>
    %127 = arith.mulf %126, %126 : vector<16x8xf32>
    %cst_89 = arith.constant dense<0.000000e+00> : vector<16xf32>
    %128 = vector.multi_reduction <add>, %127, %cst_89 [1] : vector<16x8xf32> to vector<16xf32>
    %129 = vector.shape_cast %128 : vector<16xf32> to vector<16x1xf32>
    %cst_90 = arith.constant 8.000000e+00 : f32
    %130 = vector.broadcast %cst_90 : f32 to vector<16x1xf32>
    %131 = arith.divf %129, %130 : vector<16x1xf32>
    %cst_91 = arith.constant 9.99999974E-6 : f32
    %132 = vector.broadcast %cst_91 : f32 to vector<16x1xf32>
    %133 = arith.addf %131, %132 : vector<16x1xf32>
    %134 = math.rsqrt %133 : vector<16x1xf32>
    %135 = vector.broadcast %134 : vector<16x1xf32> to vector<16x8xf32>
    %136 = arith.mulf %126, %135 : vector<16x8xf32>
    %137 = vector.broadcast %118 : vector<1x8xf32> to vector<16x8xf32>
    %138 = arith.mulf %136, %137 : vector<16x8xf32>
    %139 = vector.broadcast %120 : vector<1x8xf32> to vector<16x8xf32>
    %140 = arith.addf %138, %139 : vector<16x8xf32>
    %c0_92 = arith.constant 0 : index
    %c0_93 = arith.constant 0 : index
    %c0_94 = arith.constant 0 : index
    %141 = vector.load %arg28[%c0_92, %c0_93, %c0_94] : memref<4x8x32xf32, #tpu.memory_space<vmem>>, vector<1x8x32xf32>
    %142 = vector.shape_cast %141 : vector<1x8x32xf32> to vector<8x32xf32>
    %cst_95 = arith.constant dense<0.000000e+00> : vector<16x32xf32>
    %143 = tpu.matmul %140, %142, %cst_95 {dimension_numbers = #tpu.dot_dimension_numbers<[1], [0], [0], [1], [0, 0, 1, 1], [], []>} : vector<16x8xf32>, vector<8x32xf32>, vector<16x32xf32> -> vector<16x32xf32>
    %c0_96 = arith.constant 0 : index
    %c0_97 = arith.constant 0 : index
    %c0_98 = arith.constant 0 : index
    %144 = vector.load %arg29[%c0_96, %c0_97, %c0_98] : memref<4x1x32xf32, #tpu.memory_space<vmem>>, vector<1x1x32xf32>
    %145 = vector.shape_cast %144 : vector<1x1x32xf32> to vector<1x32xf32>
    %146 = vector.broadcast %145 : vector<1x32xf32> to vector<16x32xf32>
    %147 = arith.addf %143, %146 : vector<16x32xf32>
    %cst_99 = arith.constant 5.000000e-01 : f32
    %148 = vector.broadcast %cst_99 : f32 to vector<16x32xf32>
    %149 = arith.mulf %148, %147 : vector<16x32xf32>
    %cst_100 = arith.constant 4.471500e-02 : f32
    %150 = vector.broadcast %cst_100 : f32 to vector<16x32xf32>
    %151 = arith.mulf %150, %147 : vector<16x32xf32>
    %152 = arith.mulf %151, %147 : vector<16x32xf32>
    %153 = arith.mulf %152, %147 : vector<16x32xf32>
    %154 = arith.addf %147, %153 : vector<16x32xf32>
    %cst_101 = arith.constant 0.797884583 : f32
    %155 = vector.broadcast %cst_101 : f32 to vector<16x32xf32>
    %156 = arith.mulf %155, %154 : vector<16x32xf32>
    %157 = math.tanh %156 : vector<16x32xf32>
    %cst_102 = arith.constant 1.000000e+00 : f32
    %158 = vector.broadcast %cst_102 : f32 to vector<16x32xf32>
    %159 = arith.addf %158, %157 : vector<16x32xf32>
    %160 = arith.mulf %149, %159 : vector<16x32xf32>
    %c0_103 = arith.constant 0 : index
    %c0_104 = arith.constant 0 : index
    %c0_105 = arith.constant 0 : index
    %161 = vector.load %arg30[%c0_103, %c0_104, %c0_105] : memref<4x32x8xf32, #tpu.memory_space<vmem>>, vector<1x32x8xf32>
    %162 = vector.shape_cast %161 : vector<1x32x8xf32> to vector<32x8xf32>
    %cst_106 = arith.constant dense<0.000000e+00> : vector<16x8xf32>
    %163 = tpu.matmul %160, %162, %cst_106 {dimension_numbers = #tpu.dot_dimension_numbers<[1], [0], [0], [1], [0, 0, 1, 1], [], []>} : vector<16x32xf32>, vector<32x8xf32>, vector<16x8xf32> -> vector<16x8xf32>
    %c0_107 = arith.constant 0 : index
    %c0_108 = arith.constant 0 : index
    %c0_109 = arith.constant 0 : index
    %164 = vector.load %arg31[%c0_107, %c0_108, %c0_109] : memref<4x1x8xf32, #tpu.memory_space<vmem>>, vector<1x1x8xf32>
    %165 = vector.shape_cast %164 : vector<1x1x8xf32> to vector<1x8xf32>
    %166 = vector.broadcast %165 : vector<1x8xf32> to vector<16x8xf32>
    %167 = arith.addf %163, %166 : vector<16x8xf32>
    %168 = arith.addf %140, %167 : vector<16x8xf32>
    %c0_110 = arith.constant 0 : index
    %c0_111 = arith.constant 0 : index
    %c0_112 = arith.constant 0 : index
    %169 = vector.load %arg32[%c0_110, %c0_111, %c0_112] : memref<4x1x8xf32, #tpu.memory_space<vmem>>, vector<1x1x8xf32>
    %170 = vector.shape_cast %169 : vector<1x1x8xf32> to vector<1x8xf32>
    %c0_113 = arith.constant 0 : index
    %c0_114 = arith.constant 0 : index
    %c0_115 = arith.constant 0 : index
    %171 = vector.load %arg33[%c0_113, %c0_114, %c0_115] : memref<4x1x8xf32, #tpu.memory_space<vmem>>, vector<1x1x8xf32>
    %172 = vector.shape_cast %171 : vector<1x1x8xf32> to vector<1x8xf32>
    %cst_116 = arith.constant dense<0.000000e+00> : vector<16xf32>
    %173 = vector.multi_reduction <add>, %168, %cst_116 [1] : vector<16x8xf32> to vector<16xf32>
    %174 = vector.shape_cast %173 : vector<16xf32> to vector<16x1xf32>
    %cst_117 = arith.constant 8.000000e+00 : f32
    %175 = vector.broadcast %cst_117 : f32 to vector<16x1xf32>
    %176 = arith.divf %174, %175 : vector<16x1xf32>
    %177 = vector.broadcast %176 : vector<16x1xf32> to vector<16x8xf32>
    %178 = arith.subf %168, %177 : vector<16x8xf32>
    %179 = arith.mulf %178, %178 : vector<16x8xf32>
    %cst_118 = arith.constant dense<0.000000e+00> : vector<16xf32>
    %180 = vector.multi_reduction <add>, %179, %cst_118 [1] : vector<16x8xf32> to vector<16xf32>
    %181 = vector.shape_cast %180 : vector<16xf32> to vector<16x1xf32>
    %cst_119 = arith.constant 8.000000e+00 : f32
    %182 = vector.broadcast %cst_119 : f32 to vector<16x1xf32>
    %183 = arith.divf %181, %182 : vector<16x1xf32>
    %cst_120 = arith.constant 9.99999974E-6 : f32
    %184 = vector.broadcast %cst_120 : f32 to vector<16x1xf32>
    %185 = arith.addf %183, %184 : vector<16x1xf32>
    %186 = math.rsqrt %185 : vector<16x1xf32>
    %187 = vector.broadcast %186 : vector<16x1xf32> to vector<16x8xf32>
    %188 = arith.mulf %178, %187 : vector<16x8xf32>
    %189 = vector.broadcast %170 : vector<1x8xf32> to vector<16x8xf32>
    %190 = arith.mulf %188, %189 : vector<16x8xf32>
    %191 = vector.broadcast %172 : vector<1x8xf32> to vector<16x8xf32>
    %192 = arith.addf %190, %191 : vector<16x8xf32>
    %c1 = arith.constant 1 : index
    %c0_121 = arith.constant 0 : index
    %c0_122 = arith.constant 0 : index
    %193 = vector.load %arg22[%c1, %c0_121, %c0_122] : memref<4x8x24xf32, #tpu.memory_space<vmem>>, vector<1x8x24xf32>
    %194 = vector.shape_cast %193 : vector<1x8x24xf32> to vector<8x24xf32>
    %cst_123 = arith.constant dense<0.000000e+00> : vector<16x24xf32>
    %195 = tpu.matmul %192, %194, %cst_123 {dimension_numbers = #tpu.dot_dimension_numbers<[1], [0], [0], [1], [0, 0, 1, 1], [], []>} : vector<16x8xf32>, vector<8x24xf32>, vector<16x24xf32> -> vector<16x24xf32>
    %c1_124 = arith.constant 1 : index
    %c0_125 = arith.constant 0 : index
    %c0_126 = arith.constant 0 : index
    %196 = vector.load %arg23[%c1_124, %c0_125, %c0_126] : memref<4x1x24xf32, #tpu.memory_space<vmem>>, vector<1x1x24xf32>
    %197 = vector.shape_cast %196 : vector<1x1x24xf32> to vector<1x24xf32>
    %198 = vector.broadcast %197 : vector<1x24xf32> to vector<16x24xf32>
    %199 = arith.addf %195, %198 : vector<16x24xf32>
    %200 = vector.extract_strided_slice %199 {offsets = [0, 0], sizes = [16, 8], strides = [1, 1]} : vector<16x24xf32> to vector<16x8xf32>
    %201 = vector.extract_strided_slice %199 {offsets = [0, 8], sizes = [16, 8], strides = [1, 1]} : vector<16x24xf32> to vector<16x8xf32>
    %202 = vector.extract_strided_slice %199 {offsets = [0, 16], sizes = [16, 8], strides = [1, 1]} : vector<16x24xf32> to vector<16x8xf32>
    %cst_127 = arith.constant dense<0.000000e+00> : vector<16x128xf32>
    %203 = tpu.matmul %200, %76, %cst_127 {dimension_numbers = #tpu.dot_dimension_numbers<[1], [0], [0], [1], [0, 0, 1, 1], [], []>} : vector<16x8xf32>, vector<8x128xf32>, vector<16x128xf32> -> vector<16x128xf32>
    %cst_128 = arith.constant dense<0.000000e+00> : vector<16x128xf32>
    %204 = tpu.matmul %201, %76, %cst_128 {dimension_numbers = #tpu.dot_dimension_numbers<[1], [0], [0], [1], [0, 0, 1, 1], [], []>} : vector<16x8xf32>, vector<8x128xf32>, vector<16x128xf32> -> vector<16x128xf32>
    %205 = arith.mulf %204, %77 : vector<16x128xf32>
    %cst_129 = arith.constant dense<0.000000e+00> : vector<1x128xf32>
    %206 = tpu.matmul %79, %205, %cst_129 {dimension_numbers = #tpu.dot_dimension_numbers<[1], [0], [0], [1], [0, 0, 1, 1], [], []>} : vector<1x16xf32>, vector<16x128xf32>, vector<1x128xf32> -> vector<1x128xf32>
    %cst_130 = arith.constant dense<0.000000e+00> : vector<16x128xf32>
    %207 = tpu.matmul %202, %76, %cst_130 {dimension_numbers = #tpu.dot_dimension_numbers<[1], [0], [0], [1], [0, 0, 1, 1], [], []>} : vector<16x8xf32>, vector<8x128xf32>, vector<16x128xf32> -> vector<16x128xf32>
    %208 = arith.mulf %207, %77 : vector<16x128xf32>
    %cst_131 = arith.constant dense<0.000000e+00> : vector<1x128xf32>
    %209 = tpu.matmul %79, %208, %cst_131 {dimension_numbers = #tpu.dot_dimension_numbers<[1], [0], [0], [1], [0, 0, 1, 1], [], []>} : vector<1x16xf32>, vector<16x128xf32>, vector<1x128xf32> -> vector<1x128xf32>
    %210 = vector.broadcast %206 : vector<1x128xf32> to vector<16x128xf32>
    %211 = arith.mulf %203, %210 : vector<16x128xf32>
    %cst_132 = arith.constant dense<0xFF800000> : vector<16xf32>
    %212 = vector.multi_reduction <maximumf>, %211, %cst_132 [1] : vector<16x128xf32> to vector<16xf32>
    %213 = vector.shape_cast %212 : vector<16xf32> to vector<16x1xf32>
    %214 = vector.broadcast %213 : vector<16x1xf32> to vector<16x128xf32>
    %215 = arith.subf %211, %214 : vector<16x128xf32>
    %216 = math.exp %215 : vector<16x128xf32>
    %cst_133 = arith.constant dense<0.000000e+00> : vector<16x8xf32>
    %217 = tpu.matmul %216, %78, %cst_133 {dimension_numbers = #tpu.dot_dimension_numbers<[1], [0], [0], [1], [0, 0, 1, 1], [], []>} : vector<16x128xf32>, vector<128x8xf32>, vector<16x8xf32> -> vector<16x8xf32>
    %218 = vector.broadcast %209 : vector<1x128xf32> to vector<16x128xf32>
    %219 = arith.mulf %216, %218 : vector<16x128xf32>
    %cst_134 = arith.constant dense<0.000000e+00> : vector<16x8xf32>
    %220 = tpu.matmul %219, %78, %cst_134 {dimension_numbers = #tpu.dot_dimension_numbers<[1], [0], [0], [1], [0, 0, 1, 1], [], []>} : vector<16x128xf32>, vector<128x8xf32>, vector<16x8xf32> -> vector<16x8xf32>
    %221 = arith.divf %220, %217 : vector<16x8xf32>
    %c1_135 = arith.constant 1 : index
    %c0_136 = arith.constant 0 : index
    %c0_137 = arith.constant 0 : index
    %222 = vector.load %arg24[%c1_135, %c0_136, %c0_137] : memref<4x8x8xf32, #tpu.memory_space<vmem>>, vector<1x8x8xf32>
    %223 = vector.shape_cast %222 : vector<1x8x8xf32> to vector<8x8xf32>
    %cst_138 = arith.constant dense<0.000000e+00> : vector<16x8xf32>
    %224 = tpu.matmul %221, %223, %cst_138 {dimension_numbers = #tpu.dot_dimension_numbers<[1], [0], [0], [1], [0, 0, 1, 1], [], []>} : vector<16x8xf32>, vector<8x8xf32>, vector<16x8xf32> -> vector<16x8xf32>
    %c1_139 = arith.constant 1 : index
    %c0_140 = arith.constant 0 : index
    %c0_141 = arith.constant 0 : index
    %225 = vector.load %arg25[%c1_139, %c0_140, %c0_141] : memref<4x1x8xf32, #tpu.memory_space<vmem>>, vector<1x1x8xf32>
    %226 = vector.shape_cast %225 : vector<1x1x8xf32> to vector<1x8xf32>
    %227 = vector.broadcast %226 : vector<1x8xf32> to vector<16x8xf32>
    %228 = arith.addf %224, %227 : vector<16x8xf32>
    %229 = arith.addf %192, %228 : vector<16x8xf32>
    %c1_142 = arith.constant 1 : index
    %c0_143 = arith.constant 0 : index
    %c0_144 = arith.constant 0 : index
    %230 = vector.load %arg26[%c1_142, %c0_143, %c0_144] : memref<4x1x8xf32, #tpu.memory_space<vmem>>, vector<1x1x8xf32>
    %231 = vector.shape_cast %230 : vector<1x1x8xf32> to vector<1x8xf32>
    %c1_145 = arith.constant 1 : index
    %c0_146 = arith.constant 0 : index
    %c0_147 = arith.constant 0 : index
    %232 = vector.load %arg27[%c1_145, %c0_146, %c0_147] : memref<4x1x8xf32, #tpu.memory_space<vmem>>, vector<1x1x8xf32>
    %233 = vector.shape_cast %232 : vector<1x1x8xf32> to vector<1x8xf32>
    %cst_148 = arith.constant dense<0.000000e+00> : vector<16xf32>
    %234 = vector.multi_reduction <add>, %229, %cst_148 [1] : vector<16x8xf32> to vector<16xf32>
    %235 = vector.shape_cast %234 : vector<16xf32> to vector<16x1xf32>
    %cst_149 = arith.constant 8.000000e+00 : f32
    %236 = vector.broadcast %cst_149 : f32 to vector<16x1xf32>
    %237 = arith.divf %235, %236 : vector<16x1xf32>
    %238 = vector.broadcast %237 : vector<16x1xf32> to vector<16x8xf32>
    %239 = arith.subf %229, %238 : vector<16x8xf32>
    %240 = arith.mulf %239, %239 : vector<16x8xf32>
    %cst_150 = arith.constant dense<0.000000e+00> : vector<16xf32>
    %241 = vector.multi_reduction <add>, %240, %cst_150 [1] : vector<16x8xf32> to vector<16xf32>
    %242 = vector.shape_cast %241 : vector<16xf32> to vector<16x1xf32>
    %cst_151 = arith.constant 8.000000e+00 : f32
    %243 = vector.broadcast %cst_151 : f32 to vector<16x1xf32>
    %244 = arith.divf %242, %243 : vector<16x1xf32>
    %cst_152 = arith.constant 9.99999974E-6 : f32
    %245 = vector.broadcast %cst_152 : f32 to vector<16x1xf32>
    %246 = arith.addf %244, %245 : vector<16x1xf32>
    %247 = math.rsqrt %246 : vector<16x1xf32>
    %248 = vector.broadcast %247 : vector<16x1xf32> to vector<16x8xf32>
    %249 = arith.mulf %239, %248 : vector<16x8xf32>
    %250 = vector.broadcast %231 : vector<1x8xf32> to vector<16x8xf32>
    %251 = arith.mulf %249, %250 : vector<16x8xf32>
    %252 = vector.broadcast %233 : vector<1x8xf32> to vector<16x8xf32>
    %253 = arith.addf %251, %252 : vector<16x8xf32>
    %c1_153 = arith.constant 1 : index
    %c0_154 = arith.constant 0 : index
    %c0_155 = arith.constant 0 : index
    %254 = vector.load %arg28[%c1_153, %c0_154, %c0_155] : memref<4x8x32xf32, #tpu.memory_space<vmem>>, vector<1x8x32xf32>
    %255 = vector.shape_cast %254 : vector<1x8x32xf32> to vector<8x32xf32>
    %cst_156 = arith.constant dense<0.000000e+00> : vector<16x32xf32>
    %256 = tpu.matmul %253, %255, %cst_156 {dimension_numbers = #tpu.dot_dimension_numbers<[1], [0], [0], [1], [0, 0, 1, 1], [], []>} : vector<16x8xf32>, vector<8x32xf32>, vector<16x32xf32> -> vector<16x32xf32>
    %c1_157 = arith.constant 1 : index
    %c0_158 = arith.constant 0 : index
    %c0_159 = arith.constant 0 : index
    %257 = vector.load %arg29[%c1_157, %c0_158, %c0_159] : memref<4x1x32xf32, #tpu.memory_space<vmem>>, vector<1x1x32xf32>
    %258 = vector.shape_cast %257 : vector<1x1x32xf32> to vector<1x32xf32>
    %259 = vector.broadcast %258 : vector<1x32xf32> to vector<16x32xf32>
    %260 = arith.addf %256, %259 : vector<16x32xf32>
    %cst_160 = arith.constant 5.000000e-01 : f32
    %261 = vector.broadcast %cst_160 : f32 to vector<16x32xf32>
    %262 = arith.mulf %261, %260 : vector<16x32xf32>
    %cst_161 = arith.constant 4.471500e-02 : f32
    %263 = vector.broadcast %cst_161 : f32 to vector<16x32xf32>
    %264 = arith.mulf %263, %260 : vector<16x32xf32>
    %265 = arith.mulf %264, %260 : vector<16x32xf32>
    %266 = arith.mulf %265, %260 : vector<16x32xf32>
    %267 = arith.addf %260, %266 : vector<16x32xf32>
    %cst_162 = arith.constant 0.797884583 : f32
    %268 = vector.broadcast %cst_162 : f32 to vector<16x32xf32>
    %269 = arith.mulf %268, %267 : vector<16x32xf32>
    %270 = math.tanh %269 : vector<16x32xf32>
    %cst_163 = arith.constant 1.000000e+00 : f32
    %271 = vector.broadcast %cst_163 : f32 to vector<16x32xf32>
    %272 = arith.addf %271, %270 : vector<16x32xf32>
    %273 = arith.mulf %262, %272 : vector<16x32xf32>
    %c1_164 = arith.constant 1 : index
    %c0_165 = arith.constant 0 : index
    %c0_166 = arith.constant 0 : index
    %274 = vector.load %arg30[%c1_164, %c0_165, %c0_166] : memref<4x32x8xf32, #tpu.memory_space<vmem>>, vector<1x32x8xf32>
    %275 = vector.shape_cast %274 : vector<1x32x8xf32> to vector<32x8xf32>
    %cst_167 = arith.constant dense<0.000000e+00> : vector<16x8xf32>
    %276 = tpu.matmul %273, %275, %cst_167 {dimension_numbers = #tpu.dot_dimension_numbers<[1], [0], [0], [1], [0, 0, 1, 1], [], []>} : vector<16x32xf32>, vector<32x8xf32>, vector<16x8xf32> -> vector<16x8xf32>
    %c1_168 = arith.constant 1 : index
    %c0_169 = arith.constant 0 : index
    %c0_170 = arith.constant 0 : index
    %277 = vector.load %arg31[%c1_168, %c0_169, %c0_170] : memref<4x1x8xf32, #tpu.memory_space<vmem>>, vector<1x1x8xf32>
    %278 = vector.shape_cast %277 : vector<1x1x8xf32> to vector<1x8xf32>
    %279 = vector.broadcast %278 : vector<1x8xf32> to vector<16x8xf32>
    %280 = arith.addf %276, %279 : vector<16x8xf32>
    %281 = arith.addf %253, %280 : vector<16x8xf32>
    %c1_171 = arith.constant 1 : index
    %c0_172 = arith.constant 0 : index
    %c0_173 = arith.constant 0 : index
    %282 = vector.load %arg32[%c1_171, %c0_172, %c0_173] : memref<4x1x8xf32, #tpu.memory_space<vmem>>, vector<1x1x8xf32>
    %283 = vector.shape_cast %282 : vector<1x1x8xf32> to vector<1x8xf32>
    %c1_174 = arith.constant 1 : index
    %c0_175 = arith.constant 0 : index
    %c0_176 = arith.constant 0 : index
    %284 = vector.load %arg33[%c1_174, %c0_175, %c0_176] : memref<4x1x8xf32, #tpu.memory_space<vmem>>, vector<1x1x8xf32>
    %285 = vector.shape_cast %284 : vector<1x1x8xf32> to vector<1x8xf32>
    %cst_177 = arith.constant dense<0.000000e+00> : vector<16xf32>
    %286 = vector.multi_reduction <add>, %281, %cst_177 [1] : vector<16x8xf32> to vector<16xf32>
    %287 = vector.shape_cast %286 : vector<16xf32> to vector<16x1xf32>
    %cst_178 = arith.constant 8.000000e+00 : f32
    %288 = vector.broadcast %cst_178 : f32 to vector<16x1xf32>
    %289 = arith.divf %287, %288 : vector<16x1xf32>
    %290 = vector.broadcast %289 : vector<16x1xf32> to vector<16x8xf32>
    %291 = arith.subf %281, %290 : vector<16x8xf32>
    %292 = arith.mulf %291, %291 : vector<16x8xf32>
    %cst_179 = arith.constant dense<0.000000e+00> : vector<16xf32>
    %293 = vector.multi_reduction <add>, %292, %cst_179 [1] : vector<16x8xf32> to vector<16xf32>
    %294 = vector.shape_cast %293 : vector<16xf32> to vector<16x1xf32>
    %cst_180 = arith.constant 8.000000e+00 : f32
    %295 = vector.broadcast %cst_180 : f32 to vector<16x1xf32>
    %296 = arith.divf %294, %295 : vector<16x1xf32>
    %cst_181 = arith.constant 9.99999974E-6 : f32
    %297 = vector.broadcast %cst_181 : f32 to vector<16x1xf32>
    %298 = arith.addf %296, %297 : vector<16x1xf32>
    %299 = math.rsqrt %298 : vector<16x1xf32>
    %300 = vector.broadcast %299 : vector<16x1xf32> to vector<16x8xf32>
    %301 = arith.mulf %291, %300 : vector<16x8xf32>
    %302 = vector.broadcast %283 : vector<1x8xf32> to vector<16x8xf32>
    %303 = arith.mulf %301, %302 : vector<16x8xf32>
    %304 = vector.broadcast %285 : vector<1x8xf32> to vector<16x8xf32>
    %305 = arith.addf %303, %304 : vector<16x8xf32>
    %c2 = arith.constant 2 : index
    %c0_182 = arith.constant 0 : index
    %c0_183 = arith.constant 0 : index
    %306 = vector.load %arg22[%c2, %c0_182, %c0_183] : memref<4x8x24xf32, #tpu.memory_space<vmem>>, vector<1x8x24xf32>
    %307 = vector.shape_cast %306 : vector<1x8x24xf32> to vector<8x24xf32>
    %cst_184 = arith.constant dense<0.000000e+00> : vector<16x24xf32>
    %308 = tpu.matmul %305, %307, %cst_184 {dimension_numbers = #tpu.dot_dimension_numbers<[1], [0], [0], [1], [0, 0, 1, 1], [], []>} : vector<16x8xf32>, vector<8x24xf32>, vector<16x24xf32> -> vector<16x24xf32>
    %c2_185 = arith.constant 2 : index
    %c0_186 = arith.constant 0 : index
    %c0_187 = arith.constant 0 : index
    %309 = vector.load %arg23[%c2_185, %c0_186, %c0_187] : memref<4x1x24xf32, #tpu.memory_space<vmem>>, vector<1x1x24xf32>
    %310 = vector.shape_cast %309 : vector<1x1x24xf32> to vector<1x24xf32>
    %311 = vector.broadcast %310 : vector<1x24xf32> to vector<16x24xf32>
    %312 = arith.addf %308, %311 : vector<16x24xf32>
    %313 = vector.extract_strided_slice %312 {offsets = [0, 0], sizes = [16, 8], strides = [1, 1]} : vector<16x24xf32> to vector<16x8xf32>
    %314 = vector.extract_strided_slice %312 {offsets = [0, 8], sizes = [16, 8], strides = [1, 1]} : vector<16x24xf32> to vector<16x8xf32>
    %315 = vector.extract_strided_slice %312 {offsets = [0, 16], sizes = [16, 8], strides = [1, 1]} : vector<16x24xf32> to vector<16x8xf32>
    %cst_188 = arith.constant dense<0.000000e+00> : vector<16x128xf32>
    %316 = tpu.matmul %313, %76, %cst_188 {dimension_numbers = #tpu.dot_dimension_numbers<[1], [0], [0], [1], [0, 0, 1, 1], [], []>} : vector<16x8xf32>, vector<8x128xf32>, vector<16x128xf32> -> vector<16x128xf32>
    %cst_189 = arith.constant dense<0.000000e+00> : vector<16x128xf32>
    %317 = tpu.matmul %314, %76, %cst_189 {dimension_numbers = #tpu.dot_dimension_numbers<[1], [0], [0], [1], [0, 0, 1, 1], [], []>} : vector<16x8xf32>, vector<8x128xf32>, vector<16x128xf32> -> vector<16x128xf32>
    %318 = arith.mulf %317, %77 : vector<16x128xf32>
    %cst_190 = arith.constant dense<0.000000e+00> : vector<1x128xf32>
    %319 = tpu.matmul %79, %318, %cst_190 {dimension_numbers = #tpu.dot_dimension_numbers<[1], [0], [0], [1], [0, 0, 1, 1], [], []>} : vector<1x16xf32>, vector<16x128xf32>, vector<1x128xf32> -> vector<1x128xf32>
    %cst_191 = arith.constant dense<0.000000e+00> : vector<16x128xf32>
    %320 = tpu.matmul %315, %76, %cst_191 {dimension_numbers = #tpu.dot_dimension_numbers<[1], [0], [0], [1], [0, 0, 1, 1], [], []>} : vector<16x8xf32>, vector<8x128xf32>, vector<16x128xf32> -> vector<16x128xf32>
    %321 = arith.mulf %320, %77 : vector<16x128xf32>
    %cst_192 = arith.constant dense<0.000000e+00> : vector<1x128xf32>
    %322 = tpu.matmul %79, %321, %cst_192 {dimension_numbers = #tpu.dot_dimension_numbers<[1], [0], [0], [1], [0, 0, 1, 1], [], []>} : vector<1x16xf32>, vector<16x128xf32>, vector<1x128xf32> -> vector<1x128xf32>
    %323 = vector.broadcast %319 : vector<1x128xf32> to vector<16x128xf32>
    %324 = arith.mulf %316, %323 : vector<16x128xf32>
    %cst_193 = arith.constant dense<0xFF800000> : vector<16xf32>
    %325 = vector.multi_reduction <maximumf>, %324, %cst_193 [1] : vector<16x128xf32> to vector<16xf32>
    %326 = vector.shape_cast %325 : vector<16xf32> to vector<16x1xf32>
    %327 = vector.broadcast %326 : vector<16x1xf32> to vector<16x128xf32>
    %328 = arith.subf %324, %327 : vector<16x128xf32>
    %329 = math.exp %328 : vector<16x128xf32>
    %cst_194 = arith.constant dense<0.000000e+00> : vector<16x8xf32>
    %330 = tpu.matmul %329, %78, %cst_194 {dimension_numbers = #tpu.dot_dimension_numbers<[1], [0], [0], [1], [0, 0, 1, 1], [], []>} : vector<16x128xf32>, vector<128x8xf32>, vector<16x8xf32> -> vector<16x8xf32>
    %331 = vector.broadcast %322 : vector<1x128xf32> to vector<16x128xf32>
    %332 = arith.mulf %329, %331 : vector<16x128xf32>
    %cst_195 = arith.constant dense<0.000000e+00> : vector<16x8xf32>
    %333 = tpu.matmul %332, %78, %cst_195 {dimension_numbers = #tpu.dot_dimension_numbers<[1], [0], [0], [1], [0, 0, 1, 1], [], []>} : vector<16x128xf32>, vector<128x8xf32>, vector<16x8xf32> -> vector<16x8xf32>
    %334 = arith.divf %333, %330 : vector<16x8xf32>
    %c2_196 = arith.constant 2 : index
    %c0_197 = arith.constant 0 : index
    %c0_198 = arith.constant 0 : index
    %335 = vector.load %arg24[%c2_196, %c0_197, %c0_198] : memref<4x8x8xf32, #tpu.memory_space<vmem>>, vector<1x8x8xf32>
    %336 = vector.shape_cast %335 : vector<1x8x8xf32> to vector<8x8xf32>
    %cst_199 = arith.constant dense<0.000000e+00> : vector<16x8xf32>
    %337 = tpu.matmul %334, %336, %cst_199 {dimension_numbers = #tpu.dot_dimension_numbers<[1], [0], [0], [1], [0, 0, 1, 1], [], []>} : vector<16x8xf32>, vector<8x8xf32>, vector<16x8xf32> -> vector<16x8xf32>
    %c2_200 = arith.constant 2 : index
    %c0_201 = arith.constant 0 : index
    %c0_202 = arith.constant 0 : index
    %338 = vector.load %arg25[%c2_200, %c0_201, %c0_202] : memref<4x1x8xf32, #tpu.memory_space<vmem>>, vector<1x1x8xf32>
    %339 = vector.shape_cast %338 : vector<1x1x8xf32> to vector<1x8xf32>
    %340 = vector.broadcast %339 : vector<1x8xf32> to vector<16x8xf32>
    %341 = arith.addf %337, %340 : vector<16x8xf32>
    %342 = arith.addf %305, %341 : vector<16x8xf32>
    %c2_203 = arith.constant 2 : index
    %c0_204 = arith.constant 0 : index
    %c0_205 = arith.constant 0 : index
    %343 = vector.load %arg26[%c2_203, %c0_204, %c0_205] : memref<4x1x8xf32, #tpu.memory_space<vmem>>, vector<1x1x8xf32>
    %344 = vector.shape_cast %343 : vector<1x1x8xf32> to vector<1x8xf32>
    %c2_206 = arith.constant 2 : index
    %c0_207 = arith.constant 0 : index
    %c0_208 = arith.constant 0 : index
    %345 = vector.load %arg27[%c2_206, %c0_207, %c0_208] : memref<4x1x8xf32, #tpu.memory_space<vmem>>, vector<1x1x8xf32>
    %346 = vector.shape_cast %345 : vector<1x1x8xf32> to vector<1x8xf32>
    %cst_209 = arith.constant dense<0.000000e+00> : vector<16xf32>
    %347 = vector.multi_reduction <add>, %342, %cst_209 [1] : vector<16x8xf32> to vector<16xf32>
    %348 = vector.shape_cast %347 : vector<16xf32> to vector<16x1xf32>
    %cst_210 = arith.constant 8.000000e+00 : f32
    %349 = vector.broadcast %cst_210 : f32 to vector<16x1xf32>
    %350 = arith.divf %348, %349 : vector<16x1xf32>
    %351 = vector.broadcast %350 : vector<16x1xf32> to vector<16x8xf32>
    %352 = arith.subf %342, %351 : vector<16x8xf32>
    %353 = arith.mulf %352, %352 : vector<16x8xf32>
    %cst_211 = arith.constant dense<0.000000e+00> : vector<16xf32>
    %354 = vector.multi_reduction <add>, %353, %cst_211 [1] : vector<16x8xf32> to vector<16xf32>
    %355 = vector.shape_cast %354 : vector<16xf32> to vector<16x1xf32>
    %cst_212 = arith.constant 8.000000e+00 : f32
    %356 = vector.broadcast %cst_212 : f32 to vector<16x1xf32>
    %357 = arith.divf %355, %356 : vector<16x1xf32>
    %cst_213 = arith.constant 9.99999974E-6 : f32
    %358 = vector.broadcast %cst_213 : f32 to vector<16x1xf32>
    %359 = arith.addf %357, %358 : vector<16x1xf32>
    %360 = math.rsqrt %359 : vector<16x1xf32>
    %361 = vector.broadcast %360 : vector<16x1xf32> to vector<16x8xf32>
    %362 = arith.mulf %352, %361 : vector<16x8xf32>
    %363 = vector.broadcast %344 : vector<1x8xf32> to vector<16x8xf32>
    %364 = arith.mulf %362, %363 : vector<16x8xf32>
    %365 = vector.broadcast %346 : vector<1x8xf32> to vector<16x8xf32>
    %366 = arith.addf %364, %365 : vector<16x8xf32>
    %c2_214 = arith.constant 2 : index
    %c0_215 = arith.constant 0 : index
    %c0_216 = arith.constant 0 : index
    %367 = vector.load %arg28[%c2_214, %c0_215, %c0_216] : memref<4x8x32xf32, #tpu.memory_space<vmem>>, vector<1x8x32xf32>
    %368 = vector.shape_cast %367 : vector<1x8x32xf32> to vector<8x32xf32>
    %cst_217 = arith.constant dense<0.000000e+00> : vector<16x32xf32>
    %369 = tpu.matmul %366, %368, %cst_217 {dimension_numbers = #tpu.dot_dimension_numbers<[1], [0], [0], [1], [0, 0, 1, 1], [], []>} : vector<16x8xf32>, vector<8x32xf32>, vector<16x32xf32> -> vector<16x32xf32>
    %c2_218 = arith.constant 2 : index
    %c0_219 = arith.constant 0 : index
    %c0_220 = arith.constant 0 : index
    %370 = vector.load %arg29[%c2_218, %c0_219, %c0_220] : memref<4x1x32xf32, #tpu.memory_space<vmem>>, vector<1x1x32xf32>
    %371 = vector.shape_cast %370 : vector<1x1x32xf32> to vector<1x32xf32>
    %372 = vector.broadcast %371 : vector<1x32xf32> to vector<16x32xf32>
    %373 = arith.addf %369, %372 : vector<16x32xf32>
    %cst_221 = arith.constant 5.000000e-01 : f32
    %374 = vector.broadcast %cst_221 : f32 to vector<16x32xf32>
    %375 = arith.mulf %374, %373 : vector<16x32xf32>
    %cst_222 = arith.constant 4.471500e-02 : f32
    %376 = vector.broadcast %cst_222 : f32 to vector<16x32xf32>
    %377 = arith.mulf %376, %373 : vector<16x32xf32>
    %378 = arith.mulf %377, %373 : vector<16x32xf32>
    %379 = arith.mulf %378, %373 : vector<16x32xf32>
    %380 = arith.addf %373, %379 : vector<16x32xf32>
    %cst_223 = arith.constant 0.797884583 : f32
    %381 = vector.broadcast %cst_223 : f32 to vector<16x32xf32>
    %382 = arith.mulf %381, %380 : vector<16x32xf32>
    %383 = math.tanh %382 : vector<16x32xf32>
    %cst_224 = arith.constant 1.000000e+00 : f32
    %384 = vector.broadcast %cst_224 : f32 to vector<16x32xf32>
    %385 = arith.addf %384, %383 : vector<16x32xf32>
    %386 = arith.mulf %375, %385 : vector<16x32xf32>
    %c2_225 = arith.constant 2 : index
    %c0_226 = arith.constant 0 : index
    %c0_227 = arith.constant 0 : index
    %387 = vector.load %arg30[%c2_225, %c0_226, %c0_227] : memref<4x32x8xf32, #tpu.memory_space<vmem>>, vector<1x32x8xf32>
    %388 = vector.shape_cast %387 : vector<1x32x8xf32> to vector<32x8xf32>
    %cst_228 = arith.constant dense<0.000000e+00> : vector<16x8xf32>
    %389 = tpu.matmul %386, %388, %cst_228 {dimension_numbers = #tpu.dot_dimension_numbers<[1], [0], [0], [1], [0, 0, 1, 1], [], []>} : vector<16x32xf32>, vector<32x8xf32>, vector<16x8xf32> -> vector<16x8xf32>
    %c2_229 = arith.constant 2 : index
    %c0_230 = arith.constant 0 : index
    %c0_231 = arith.constant 0 : index
    %390 = vector.load %arg31[%c2_229, %c0_230, %c0_231] : memref<4x1x8xf32, #tpu.memory_space<vmem>>, vector<1x1x8xf32>
    %391 = vector.shape_cast %390 : vector<1x1x8xf32> to vector<1x8xf32>
    %392 = vector.broadcast %391 : vector<1x8xf32> to vector<16x8xf32>
    %393 = arith.addf %389, %392 : vector<16x8xf32>
    %394 = arith.addf %366, %393 : vector<16x8xf32>
    %c2_232 = arith.constant 2 : index
    %c0_233 = arith.constant 0 : index
    %c0_234 = arith.constant 0 : index
    %395 = vector.load %arg32[%c2_232, %c0_233, %c0_234] : memref<4x1x8xf32, #tpu.memory_space<vmem>>, vector<1x1x8xf32>
    %396 = vector.shape_cast %395 : vector<1x1x8xf32> to vector<1x8xf32>
    %c2_235 = arith.constant 2 : index
    %c0_236 = arith.constant 0 : index
    %c0_237 = arith.constant 0 : index
    %397 = vector.load %arg33[%c2_235, %c0_236, %c0_237] : memref<4x1x8xf32, #tpu.memory_space<vmem>>, vector<1x1x8xf32>
    %398 = vector.shape_cast %397 : vector<1x1x8xf32> to vector<1x8xf32>
    %cst_238 = arith.constant dense<0.000000e+00> : vector<16xf32>
    %399 = vector.multi_reduction <add>, %394, %cst_238 [1] : vector<16x8xf32> to vector<16xf32>
    %400 = vector.shape_cast %399 : vector<16xf32> to vector<16x1xf32>
    %cst_239 = arith.constant 8.000000e+00 : f32
    %401 = vector.broadcast %cst_239 : f32 to vector<16x1xf32>
    %402 = arith.divf %400, %401 : vector<16x1xf32>
    %403 = vector.broadcast %402 : vector<16x1xf32> to vector<16x8xf32>
    %404 = arith.subf %394, %403 : vector<16x8xf32>
    %405 = arith.mulf %404, %404 : vector<16x8xf32>
    %cst_240 = arith.constant dense<0.000000e+00> : vector<16xf32>
    %406 = vector.multi_reduction <add>, %405, %cst_240 [1] : vector<16x8xf32> to vector<16xf32>
    %407 = vector.shape_cast %406 : vector<16xf32> to vector<16x1xf32>
    %cst_241 = arith.constant 8.000000e+00 : f32
    %408 = vector.broadcast %cst_241 : f32 to vector<16x1xf32>
    %409 = arith.divf %407, %408 : vector<16x1xf32>
    %cst_242 = arith.constant 9.99999974E-6 : f32
    %410 = vector.broadcast %cst_242 : f32 to vector<16x1xf32>
    %411 = arith.addf %409, %410 : vector<16x1xf32>
    %412 = math.rsqrt %411 : vector<16x1xf32>
    %413 = vector.broadcast %412 : vector<16x1xf32> to vector<16x8xf32>
    %414 = arith.mulf %404, %413 : vector<16x8xf32>
    %415 = vector.broadcast %396 : vector<1x8xf32> to vector<16x8xf32>
    %416 = arith.mulf %414, %415 : vector<16x8xf32>
    %417 = vector.broadcast %398 : vector<1x8xf32> to vector<16x8xf32>
    %418 = arith.addf %416, %417 : vector<16x8xf32>
    %c3 = arith.constant 3 : index
    %c0_243 = arith.constant 0 : index
    %c0_244 = arith.constant 0 : index
    %419 = vector.load %arg22[%c3, %c0_243, %c0_244] : memref<4x8x24xf32, #tpu.memory_space<vmem>>, vector<1x8x24xf32>
    %420 = vector.shape_cast %419 : vector<1x8x24xf32> to vector<8x24xf32>
    %cst_245 = arith.constant dense<0.000000e+00> : vector<16x24xf32>
    %421 = tpu.matmul %418, %420, %cst_245 {dimension_numbers = #tpu.dot_dimension_numbers<[1], [0], [0], [1], [0, 0, 1, 1], [], []>} : vector<16x8xf32>, vector<8x24xf32>, vector<16x24xf32> -> vector<16x24xf32>
    %c3_246 = arith.constant 3 : index
    %c0_247 = arith.constant 0 : index
    %c0_248 = arith.constant 0 : index
    %422 = vector.load %arg23[%c3_246, %c0_247, %c0_248] : memref<4x1x24xf32, #tpu.memory_space<vmem>>, vector<1x1x24xf32>
    %423 = vector.shape_cast %422 : vector<1x1x24xf32> to vector<1x24xf32>
    %424 = vector.broadcast %423 : vector<1x24xf32> to vector<16x24xf32>
    %425 = arith.addf %421, %424 : vector<16x24xf32>
    %426 = vector.extract_strided_slice %425 {offsets = [0, 0], sizes = [16, 8], strides = [1, 1]} : vector<16x24xf32> to vector<16x8xf32>
    %427 = vector.extract_strided_slice %425 {offsets = [0, 8], sizes = [16, 8], strides = [1, 1]} : vector<16x24xf32> to vector<16x8xf32>
    %428 = vector.extract_strided_slice %425 {offsets = [0, 16], sizes = [16, 8], strides = [1, 1]} : vector<16x24xf32> to vector<16x8xf32>
    %cst_249 = arith.constant dense<0.000000e+00> : vector<16x128xf32>
    %429 = tpu.matmul %426, %76, %cst_249 {dimension_numbers = #tpu.dot_dimension_numbers<[1], [0], [0], [1], [0, 0, 1, 1], [], []>} : vector<16x8xf32>, vector<8x128xf32>, vector<16x128xf32> -> vector<16x128xf32>
    %cst_250 = arith.constant dense<0.000000e+00> : vector<16x128xf32>
    %430 = tpu.matmul %427, %76, %cst_250 {dimension_numbers = #tpu.dot_dimension_numbers<[1], [0], [0], [1], [0, 0, 1, 1], [], []>} : vector<16x8xf32>, vector<8x128xf32>, vector<16x128xf32> -> vector<16x128xf32>
    %431 = arith.mulf %430, %77 : vector<16x128xf32>
    %cst_251 = arith.constant dense<0.000000e+00> : vector<1x128xf32>
    %432 = tpu.matmul %79, %431, %cst_251 {dimension_numbers = #tpu.dot_dimension_numbers<[1], [0], [0], [1], [0, 0, 1, 1], [], []>} : vector<1x16xf32>, vector<16x128xf32>, vector<1x128xf32> -> vector<1x128xf32>
    %cst_252 = arith.constant dense<0.000000e+00> : vector<16x128xf32>
    %433 = tpu.matmul %428, %76, %cst_252 {dimension_numbers = #tpu.dot_dimension_numbers<[1], [0], [0], [1], [0, 0, 1, 1], [], []>} : vector<16x8xf32>, vector<8x128xf32>, vector<16x128xf32> -> vector<16x128xf32>
    %434 = arith.mulf %433, %77 : vector<16x128xf32>
    %cst_253 = arith.constant dense<0.000000e+00> : vector<1x128xf32>
    %435 = tpu.matmul %79, %434, %cst_253 {dimension_numbers = #tpu.dot_dimension_numbers<[1], [0], [0], [1], [0, 0, 1, 1], [], []>} : vector<1x16xf32>, vector<16x128xf32>, vector<1x128xf32> -> vector<1x128xf32>
    %436 = vector.broadcast %432 : vector<1x128xf32> to vector<16x128xf32>
    %437 = arith.mulf %429, %436 : vector<16x128xf32>
    %cst_254 = arith.constant dense<0xFF800000> : vector<16xf32>
    %438 = vector.multi_reduction <maximumf>, %437, %cst_254 [1] : vector<16x128xf32> to vector<16xf32>
    %439 = vector.shape_cast %438 : vector<16xf32> to vector<16x1xf32>
    %440 = vector.broadcast %439 : vector<16x1xf32> to vector<16x128xf32>
    %441 = arith.subf %437, %440 : vector<16x128xf32>
    %442 = math.exp %441 : vector<16x128xf32>
    %cst_255 = arith.constant dense<0.000000e+00> : vector<16x8xf32>
    %443 = tpu.matmul %442, %78, %cst_255 {dimension_numbers = #tpu.dot_dimension_numbers<[1], [0], [0], [1], [0, 0, 1, 1], [], []>} : vector<16x128xf32>, vector<128x8xf32>, vector<16x8xf32> -> vector<16x8xf32>
    %444 = vector.broadcast %435 : vector<1x128xf32> to vector<16x128xf32>
    %445 = arith.mulf %442, %444 : vector<16x128xf32>
    %cst_256 = arith.constant dense<0.000000e+00> : vector<16x8xf32>
    %446 = tpu.matmul %445, %78, %cst_256 {dimension_numbers = #tpu.dot_dimension_numbers<[1], [0], [0], [1], [0, 0, 1, 1], [], []>} : vector<16x128xf32>, vector<128x8xf32>, vector<16x8xf32> -> vector<16x8xf32>
    %447 = arith.divf %446, %443 : vector<16x8xf32>
    %c3_257 = arith.constant 3 : index
    %c0_258 = arith.constant 0 : index
    %c0_259 = arith.constant 0 : index
    %448 = vector.load %arg24[%c3_257, %c0_258, %c0_259] : memref<4x8x8xf32, #tpu.memory_space<vmem>>, vector<1x8x8xf32>
    %449 = vector.shape_cast %448 : vector<1x8x8xf32> to vector<8x8xf32>
    %cst_260 = arith.constant dense<0.000000e+00> : vector<16x8xf32>
    %450 = tpu.matmul %447, %449, %cst_260 {dimension_numbers = #tpu.dot_dimension_numbers<[1], [0], [0], [1], [0, 0, 1, 1], [], []>} : vector<16x8xf32>, vector<8x8xf32>, vector<16x8xf32> -> vector<16x8xf32>
    %c3_261 = arith.constant 3 : index
    %c0_262 = arith.constant 0 : index
    %c0_263 = arith.constant 0 : index
    %451 = vector.load %arg25[%c3_261, %c0_262, %c0_263] : memref<4x1x8xf32, #tpu.memory_space<vmem>>, vector<1x1x8xf32>
    %452 = vector.shape_cast %451 : vector<1x1x8xf32> to vector<1x8xf32>
    %453 = vector.broadcast %452 : vector<1x8xf32> to vector<16x8xf32>
    %454 = arith.addf %450, %453 : vector<16x8xf32>
    %455 = arith.addf %418, %454 : vector<16x8xf32>
    %c3_264 = arith.constant 3 : index
    %c0_265 = arith.constant 0 : index
    %c0_266 = arith.constant 0 : index
    %456 = vector.load %arg26[%c3_264, %c0_265, %c0_266] : memref<4x1x8xf32, #tpu.memory_space<vmem>>, vector<1x1x8xf32>
    %457 = vector.shape_cast %456 : vector<1x1x8xf32> to vector<1x8xf32>
    %c3_267 = arith.constant 3 : index
    %c0_268 = arith.constant 0 : index
    %c0_269 = arith.constant 0 : index
    %458 = vector.load %arg27[%c3_267, %c0_268, %c0_269] : memref<4x1x8xf32, #tpu.memory_space<vmem>>, vector<1x1x8xf32>
    %459 = vector.shape_cast %458 : vector<1x1x8xf32> to vector<1x8xf32>
    %cst_270 = arith.constant dense<0.000000e+00> : vector<16xf32>
    %460 = vector.multi_reduction <add>, %455, %cst_270 [1] : vector<16x8xf32> to vector<16xf32>
    %461 = vector.shape_cast %460 : vector<16xf32> to vector<16x1xf32>
    %cst_271 = arith.constant 8.000000e+00 : f32
    %462 = vector.broadcast %cst_271 : f32 to vector<16x1xf32>
    %463 = arith.divf %461, %462 : vector<16x1xf32>
    %464 = vector.broadcast %463 : vector<16x1xf32> to vector<16x8xf32>
    %465 = arith.subf %455, %464 : vector<16x8xf32>
    %466 = arith.mulf %465, %465 : vector<16x8xf32>
    %cst_272 = arith.constant dense<0.000000e+00> : vector<16xf32>
    %467 = vector.multi_reduction <add>, %466, %cst_272 [1] : vector<16x8xf32> to vector<16xf32>
    %468 = vector.shape_cast %467 : vector<16xf32> to vector<16x1xf32>
    %cst_273 = arith.constant 8.000000e+00 : f32
    %469 = vector.broadcast %cst_273 : f32 to vector<16x1xf32>
    %470 = arith.divf %468, %469 : vector<16x1xf32>
    %cst_274 = arith.constant 9.99999974E-6 : f32
    %471 = vector.broadcast %cst_274 : f32 to vector<16x1xf32>
    %472 = arith.addf %470, %471 : vector<16x1xf32>
    %473 = math.rsqrt %472 : vector<16x1xf32>
    %474 = vector.broadcast %473 : vector<16x1xf32> to vector<16x8xf32>
    %475 = arith.mulf %465, %474 : vector<16x8xf32>
    %476 = vector.broadcast %457 : vector<1x8xf32> to vector<16x8xf32>
    %477 = arith.mulf %475, %476 : vector<16x8xf32>
    %478 = vector.broadcast %459 : vector<1x8xf32> to vector<16x8xf32>
    %479 = arith.addf %477, %478 : vector<16x8xf32>
    %c3_275 = arith.constant 3 : index
    %c0_276 = arith.constant 0 : index
    %c0_277 = arith.constant 0 : index
    %480 = vector.load %arg28[%c3_275, %c0_276, %c0_277] : memref<4x8x32xf32, #tpu.memory_space<vmem>>, vector<1x8x32xf32>
    %481 = vector.shape_cast %480 : vector<1x8x32xf32> to vector<8x32xf32>
    %cst_278 = arith.constant dense<0.000000e+00> : vector<16x32xf32>
    %482 = tpu.matmul %479, %481, %cst_278 {dimension_numbers = #tpu.dot_dimension_numbers<[1], [0], [0], [1], [0, 0, 1, 1], [], []>} : vector<16x8xf32>, vector<8x32xf32>, vector<16x32xf32> -> vector<16x32xf32>
    %c3_279 = arith.constant 3 : index
    %c0_280 = arith.constant 0 : index
    %c0_281 = arith.constant 0 : index
    %483 = vector.load %arg29[%c3_279, %c0_280, %c0_281] : memref<4x1x32xf32, #tpu.memory_space<vmem>>, vector<1x1x32xf32>
    %484 = vector.shape_cast %483 : vector<1x1x32xf32> to vector<1x32xf32>
    %485 = vector.broadcast %484 : vector<1x32xf32> to vector<16x32xf32>
    %486 = arith.addf %482, %485 : vector<16x32xf32>
    %cst_282 = arith.constant 5.000000e-01 : f32
    %487 = vector.broadcast %cst_282 : f32 to vector<16x32xf32>
    %488 = arith.mulf %487, %486 : vector<16x32xf32>
    %cst_283 = arith.constant 4.471500e-02 : f32
    %489 = vector.broadcast %cst_283 : f32 to vector<16x32xf32>
    %490 = arith.mulf %489, %486 : vector<16x32xf32>
    %491 = arith.mulf %490, %486 : vector<16x32xf32>
    %492 = arith.mulf %491, %486 : vector<16x32xf32>
    %493 = arith.addf %486, %492 : vector<16x32xf32>
    %cst_284 = arith.constant 0.797884583 : f32
    %494 = vector.broadcast %cst_284 : f32 to vector<16x32xf32>
    %495 = arith.mulf %494, %493 : vector<16x32xf32>
    %496 = math.tanh %495 : vector<16x32xf32>
    %cst_285 = arith.constant 1.000000e+00 : f32
    %497 = vector.broadcast %cst_285 : f32 to vector<16x32xf32>
    %498 = arith.addf %497, %496 : vector<16x32xf32>
    %499 = arith.mulf %488, %498 : vector<16x32xf32>
    %c3_286 = arith.constant 3 : index
    %c0_287 = arith.constant 0 : index
    %c0_288 = arith.constant 0 : index
    %500 = vector.load %arg30[%c3_286, %c0_287, %c0_288] : memref<4x32x8xf32, #tpu.memory_space<vmem>>, vector<1x32x8xf32>
    %501 = vector.shape_cast %500 : vector<1x32x8xf32> to vector<32x8xf32>
    %cst_289 = arith.constant dense<0.000000e+00> : vector<16x8xf32>
    %502 = tpu.matmul %499, %501, %cst_289 {dimension_numbers = #tpu.dot_dimension_numbers<[1], [0], [0], [1], [0, 0, 1, 1], [], []>} : vector<16x32xf32>, vector<32x8xf32>, vector<16x8xf32> -> vector<16x8xf32>
    %c3_290 = arith.constant 3 : index
    %c0_291 = arith.constant 0 : index
    %c0_292 = arith.constant 0 : index
    %503 = vector.load %arg31[%c3_290, %c0_291, %c0_292] : memref<4x1x8xf32, #tpu.memory_space<vmem>>, vector<1x1x8xf32>
    %504 = vector.shape_cast %503 : vector<1x1x8xf32> to vector<1x8xf32>
    %505 = vector.broadcast %504 : vector<1x8xf32> to vector<16x8xf32>
    %506 = arith.addf %502, %505 : vector<16x8xf32>
    %507 = arith.addf %479, %506 : vector<16x8xf32>
    %c3_293 = arith.constant 3 : index
    %c0_294 = arith.constant 0 : index
    %c0_295 = arith.constant 0 : index
    %508 = vector.load %arg32[%c3_293, %c0_294, %c0_295] : memref<4x1x8xf32, #tpu.memory_space<vmem>>, vector<1x1x8xf32>
    %509 = vector.shape_cast %508 : vector<1x1x8xf32> to vector<1x8xf32>
    %c3_296 = arith.constant 3 : index
    %c0_297 = arith.constant 0 : index
    %c0_298 = arith.constant 0 : index
    %510 = vector.load %arg33[%c3_296, %c0_297, %c0_298] : memref<4x1x8xf32, #tpu.memory_space<vmem>>, vector<1x1x8xf32>
    %511 = vector.shape_cast %510 : vector<1x1x8xf32> to vector<1x8xf32>
    %cst_299 = arith.constant dense<0.000000e+00> : vector<16xf32>
    %512 = vector.multi_reduction <add>, %507, %cst_299 [1] : vector<16x8xf32> to vector<16xf32>
    %513 = vector.shape_cast %512 : vector<16xf32> to vector<16x1xf32>
    %cst_300 = arith.constant 8.000000e+00 : f32
    %514 = vector.broadcast %cst_300 : f32 to vector<16x1xf32>
    %515 = arith.divf %513, %514 : vector<16x1xf32>
    %516 = vector.broadcast %515 : vector<16x1xf32> to vector<16x8xf32>
    %517 = arith.subf %507, %516 : vector<16x8xf32>
    %518 = arith.mulf %517, %517 : vector<16x8xf32>
    %cst_301 = arith.constant dense<0.000000e+00> : vector<16xf32>
    %519 = vector.multi_reduction <add>, %518, %cst_301 [1] : vector<16x8xf32> to vector<16xf32>
    %520 = vector.shape_cast %519 : vector<16xf32> to vector<16x1xf32>
    %cst_302 = arith.constant 8.000000e+00 : f32
    %521 = vector.broadcast %cst_302 : f32 to vector<16x1xf32>
    %522 = arith.divf %520, %521 : vector<16x1xf32>
    %cst_303 = arith.constant 9.99999974E-6 : f32
    %523 = vector.broadcast %cst_303 : f32 to vector<16x1xf32>
    %524 = arith.addf %522, %523 : vector<16x1xf32>
    %525 = math.rsqrt %524 : vector<16x1xf32>
    %526 = vector.broadcast %525 : vector<16x1xf32> to vector<16x8xf32>
    %527 = arith.mulf %517, %526 : vector<16x8xf32>
    %528 = vector.broadcast %509 : vector<1x8xf32> to vector<16x8xf32>
    %529 = arith.mulf %527, %528 : vector<16x8xf32>
    %530 = vector.broadcast %511 : vector<1x8xf32> to vector<16x8xf32>
    %531 = arith.addf %529, %530 : vector<16x8xf32>
    %c0_304 = arith.constant 0 : index
    %c0_305 = arith.constant 0 : index
    %532 = vector.load %arg34[%c0_304, %c0_305] : memref<8x32xf32, #tpu.memory_space<vmem>>, vector<8x32xf32>
    %cst_306 = arith.constant dense<0.000000e+00> : vector<16x32xf32>
    %533 = tpu.matmul %531, %532, %cst_306 {dimension_numbers = #tpu.dot_dimension_numbers<[1], [0], [0], [1], [0, 0, 1, 1], [], []>} : vector<16x8xf32>, vector<8x32xf32>, vector<16x32xf32> -> vector<16x32xf32>
    %c0_307 = arith.constant 0 : index
    %c0_308 = arith.constant 0 : index
    %534 = vector.load %arg35[%c0_307, %c0_308] : memref<1x32xf32, #tpu.memory_space<vmem>>, vector<1x32xf32>
    %535 = vector.broadcast %534 : vector<1x32xf32> to vector<16x32xf32>
    %536 = arith.addf %533, %535 : vector<16x32xf32>
    %cst_309 = arith.constant 5.000000e-01 : f32
    %537 = vector.broadcast %cst_309 : f32 to vector<16x32xf32>
    %538 = arith.mulf %537, %536 : vector<16x32xf32>
    %cst_310 = arith.constant 4.471500e-02 : f32
    %539 = vector.broadcast %cst_310 : f32 to vector<16x32xf32>
    %540 = arith.mulf %539, %536 : vector<16x32xf32>
    %541 = arith.mulf %540, %536 : vector<16x32xf32>
    %542 = arith.mulf %541, %536 : vector<16x32xf32>
    %543 = arith.addf %536, %542 : vector<16x32xf32>
    %cst_311 = arith.constant 0.797884583 : f32
    %544 = vector.broadcast %cst_311 : f32 to vector<16x32xf32>
    %545 = arith.mulf %544, %543 : vector<16x32xf32>
    %546 = math.tanh %545 : vector<16x32xf32>
    %cst_312 = arith.constant 1.000000e+00 : f32
    %547 = vector.broadcast %cst_312 : f32 to vector<16x32xf32>
    %548 = arith.addf %547, %546 : vector<16x32xf32>
    %549 = arith.mulf %538, %548 : vector<16x32xf32>
    %c0_313 = arith.constant 0 : index
    %c0_314 = arith.constant 0 : index
    %550 = vector.load %arg36[%c0_313, %c0_314] : memref<32x8xf32, #tpu.memory_space<vmem>>, vector<32x8xf32>
    %cst_315 = arith.constant dense<0.000000e+00> : vector<16x8xf32>
    %551 = tpu.matmul %549, %550, %cst_315 {dimension_numbers = #tpu.dot_dimension_numbers<[1], [0], [0], [1], [0, 0, 1, 1], [], []>} : vector<16x32xf32>, vector<32x8xf32>, vector<16x8xf32> -> vector<16x8xf32>
    %c0_316 = arith.constant 0 : index
    %c0_317 = arith.constant 0 : index
    %552 = vector.load %arg37[%c0_316, %c0_317] : memref<1x8xf32, #tpu.memory_space<vmem>>, vector<1x8xf32>
    %553 = vector.broadcast %552 : vector<1x8xf32> to vector<16x8xf32>
    %554 = arith.addf %551, %553 : vector<16x8xf32>
    %c0_318 = arith.constant 0 : index
    %c0_319 = arith.constant 0 : index
    %555 = vector.load %arg15[%c0_318, %c0_319] : memref<8x16xf32, #tpu.memory_space<vmem>>, vector<8x16xf32>
    %cst_320 = arith.constant dense<0.000000e+00> : vector<8x8xf32>
    %556 = tpu.matmul %555, %531, %cst_320 {dimension_numbers = #tpu.dot_dimension_numbers<[1], [0], [0], [1], [0, 0, 1, 1], [], []>} : vector<8x16xf32>, vector<16x8xf32>, vector<8x8xf32> -> vector<8x8xf32>
    %c0_321 = arith.constant 0 : index
    %c0_322 = arith.constant 0 : index
    %557 = vector.load %arg34[%c0_321, %c0_322] : memref<8x32xf32, #tpu.memory_space<vmem>>, vector<8x32xf32>
    %cst_323 = arith.constant dense<0.000000e+00> : vector<8x32xf32>
    %558 = tpu.matmul %556, %557, %cst_323 {dimension_numbers = #tpu.dot_dimension_numbers<[1], [0], [0], [1], [0, 0, 1, 1], [], []>} : vector<8x8xf32>, vector<8x32xf32>, vector<8x32xf32> -> vector<8x32xf32>
    %c0_324 = arith.constant 0 : index
    %c0_325 = arith.constant 0 : index
    %559 = vector.load %arg35[%c0_324, %c0_325] : memref<1x32xf32, #tpu.memory_space<vmem>>, vector<1x32xf32>
    %560 = vector.broadcast %559 : vector<1x32xf32> to vector<8x32xf32>
    %561 = arith.addf %558, %560 : vector<8x32xf32>
    %cst_326 = arith.constant 5.000000e-01 : f32
    %562 = vector.broadcast %cst_326 : f32 to vector<8x32xf32>
    %563 = arith.mulf %562, %561 : vector<8x32xf32>
    %cst_327 = arith.constant 4.471500e-02 : f32
    %564 = vector.broadcast %cst_327 : f32 to vector<8x32xf32>
    %565 = arith.mulf %564, %561 : vector<8x32xf32>
    %566 = arith.mulf %565, %561 : vector<8x32xf32>
    %567 = arith.mulf %566, %561 : vector<8x32xf32>
    %568 = arith.addf %561, %567 : vector<8x32xf32>
    %cst_328 = arith.constant 0.797884583 : f32
    %569 = vector.broadcast %cst_328 : f32 to vector<8x32xf32>
    %570 = arith.mulf %569, %568 : vector<8x32xf32>
    %571 = math.tanh %570 : vector<8x32xf32>
    %cst_329 = arith.constant 1.000000e+00 : f32
    %572 = vector.broadcast %cst_329 : f32 to vector<8x32xf32>
    %573 = arith.addf %572, %571 : vector<8x32xf32>
    %574 = arith.mulf %563, %573 : vector<8x32xf32>
    %c0_330 = arith.constant 0 : index
    %c0_331 = arith.constant 0 : index
    %575 = vector.load %arg36[%c0_330, %c0_331] : memref<32x8xf32, #tpu.memory_space<vmem>>, vector<32x8xf32>
    %cst_332 = arith.constant dense<0.000000e+00> : vector<8x8xf32>
    %576 = tpu.matmul %574, %575, %cst_332 {dimension_numbers = #tpu.dot_dimension_numbers<[1], [0], [0], [1], [0, 0, 1, 1], [], []>} : vector<8x32xf32>, vector<32x8xf32>, vector<8x8xf32> -> vector<8x8xf32>
    %c0_333 = arith.constant 0 : index
    %c0_334 = arith.constant 0 : index
    %577 = vector.load %arg37[%c0_333, %c0_334] : memref<1x8xf32, #tpu.memory_space<vmem>>, vector<1x8xf32>
    %578 = vector.broadcast %577 : vector<1x8xf32> to vector<8x8xf32>
    %579 = arith.addf %576, %578 : vector<8x8xf32>
    %c0_335 = arith.constant 0 : index
    %c0_336 = arith.constant 0 : index
    %580 = vector.load %arg16[%c0_335, %c0_336] : memref<32x16xf32, #tpu.memory_space<vmem>>, vector<32x16xf32>
    %cst_337 = arith.constant dense<0.000000e+00> : vector<32x8xf32>
    %581 = tpu.matmul %580, %554, %cst_337 {dimension_numbers = #tpu.dot_dimension_numbers<[1], [0], [0], [1], [0, 0, 1, 1], [], []>} : vector<32x16xf32>, vector<16x8xf32>, vector<32x8xf32> -> vector<32x8xf32>
    %c0_338 = arith.constant 0 : index
    %c0_339 = arith.constant 0 : index
    %582 = vector.load %arg17[%c0_338, %c0_339] : memref<32x8xf32, #tpu.memory_space<vmem>>, vector<32x8xf32>
    %cst_340 = arith.constant dense<0.000000e+00> : vector<32x8xf32>
    %583 = tpu.matmul %582, %579, %cst_340 {dimension_numbers = #tpu.dot_dimension_numbers<[1], [0], [0], [1], [0, 0, 1, 1], [], []>} : vector<32x8xf32>, vector<8x8xf32>, vector<32x8xf32> -> vector<32x8xf32>
    %584 = arith.addf %581, %583 : vector<32x8xf32>
    %c0_341 = arith.constant 0 : index
    %c0_342 = arith.constant 0 : index
    %585 = vector.load %arg38[%c0_341, %c0_342] : memref<32x8xf32, #tpu.memory_space<vmem>>, vector<32x8xf32>
    %cst_343 = arith.constant 0.000000e+00 : f32
    %586 = vector.broadcast %cst_343 : f32 to vector<8x8xf32>
    %587 = vector.extract_strided_slice %584 {offsets = [0, 0], sizes = [8, 8], strides = [1, 1]} : vector<32x8xf32> to vector<8x8xf32>
    %588 = vector.extract_strided_slice %585 {offsets = [0, 0], sizes = [8, 8], strides = [1, 1]} : vector<32x8xf32> to vector<8x8xf32>
    %cst_344 = arith.constant dense<0.000000e+00> : vector<8x8xf32>
    %589 = tpu.matmul %587, %588, %cst_344 {dimension_numbers = #tpu.dot_dimension_numbers<[1], [0], [0], [1], [0, 0, 1, 1], [], []>} : vector<8x8xf32>, vector<8x8xf32>, vector<8x8xf32> -> vector<8x8xf32>
    %590 = arith.addf %586, %589 : vector<8x8xf32>
    %591 = vector.extract_strided_slice %584 {offsets = [8, 0], sizes = [8, 8], strides = [1, 1]} : vector<32x8xf32> to vector<8x8xf32>
    %592 = vector.extract_strided_slice %585 {offsets = [8, 0], sizes = [8, 8], strides = [1, 1]} : vector<32x8xf32> to vector<8x8xf32>
    %cst_345 = arith.constant dense<0.000000e+00> : vector<8x8xf32>
    %593 = tpu.matmul %591, %592, %cst_345 {dimension_numbers = #tpu.dot_dimension_numbers<[1], [0], [0], [1], [0, 0, 1, 1], [], []>} : vector<8x8xf32>, vector<8x8xf32>, vector<8x8xf32> -> vector<8x8xf32>
    %594 = arith.addf %590, %593 : vector<8x8xf32>
    %595 = vector.extract_strided_slice %584 {offsets = [16, 0], sizes = [8, 8], strides = [1, 1]} : vector<32x8xf32> to vector<8x8xf32>
    %596 = vector.extract_strided_slice %585 {offsets = [16, 0], sizes = [8, 8], strides = [1, 1]} : vector<32x8xf32> to vector<8x8xf32>
    %cst_346 = arith.constant dense<0.000000e+00> : vector<8x8xf32>
    %597 = tpu.matmul %595, %596, %cst_346 {dimension_numbers = #tpu.dot_dimension_numbers<[1], [0], [0], [1], [0, 0, 1, 1], [], []>} : vector<8x8xf32>, vector<8x8xf32>, vector<8x8xf32> -> vector<8x8xf32>
    %598 = arith.addf %594, %597 : vector<8x8xf32>
    %599 = vector.extract_strided_slice %584 {offsets = [24, 0], sizes = [8, 8], strides = [1, 1]} : vector<32x8xf32> to vector<8x8xf32>
    %600 = vector.extract_strided_slice %585 {offsets = [24, 0], sizes = [8, 8], strides = [1, 1]} : vector<32x8xf32> to vector<8x8xf32>
    %cst_347 = arith.constant dense<0.000000e+00> : vector<8x8xf32>
    %601 = tpu.matmul %599, %600, %cst_347 {dimension_numbers = #tpu.dot_dimension_numbers<[1], [0], [0], [1], [0, 0, 1, 1], [], []>} : vector<8x8xf32>, vector<8x8xf32>, vector<8x8xf32> -> vector<8x8xf32>
    %602 = arith.addf %598, %601 : vector<8x8xf32>
    %c0_348 = arith.constant 0 : index
    %c0_349 = arith.constant 0 : index
    %603 = vector.load %arg39[%c0_348, %c0_349] : memref<1x8xf32, #tpu.memory_space<vmem>>, vector<1x8xf32>
    %604 = vector.broadcast %603 : vector<1x8xf32> to vector<8x8xf32>
    %605 = arith.addf %602, %604 : vector<8x8xf32>
    %c0_350 = arith.constant 0 : index
    %c0_351 = arith.constant 0 : index
    %606 = vector.load %arg42[%c0_350, %c0_351] : memref<8x8xf32, #tpu.memory_space<vmem>>, vector<8x8xf32>
    tpu.vector_store %arg42[%c0_350, %c0_351], %605 {strides = array<i32>} : memref<8x8xf32, #tpu.memory_space<vmem>>, vector<8x8xf32>,
    %c0_352 = arith.constant 0 : index
    %c0_353 = arith.constant 0 : index
    %607 = vector.load %arg18[%c0_352, %c0_353] : memref<32x1xf32, #tpu.memory_space<vmem>>, vector<32x1xf32>
    %608 = arith.subf %584, %73 : vector<32x8xf32>
    %609 = arith.mulf %608, %608 : vector<32x8xf32>
    %610 = vector.broadcast %607 : vector<32x1xf32> to vector<32x8xf32>
    %611 = arith.mulf %610, %609 : vector<32x8xf32>
    %cst_354 = arith.constant dense<0.000000e+00> : vector<32xf32>
    %612 = vector.multi_reduction <add>, %611, %cst_354 [1] : vector<32x8xf32> to vector<32xf32>
    %613 = vector.shape_cast %612 : vector<32xf32> to vector<32x1xf32>
    %cst_355 = arith.constant dense<0.000000e+00> : vector<1xf32>
    %614 = vector.multi_reduction <add>, %613, %cst_355 [0] : vector<32x1xf32> to vector<1xf32>
    %615 = vector.shape_cast %614 : vector<1xf32> to vector<1x1xf32>
    %cst_356 = arith.constant 7.812500e-03 : f32
    %616 = vector.broadcast %cst_356 : f32 to vector<1x1xf32>
    %617 = arith.mulf %615, %616 : vector<1x1xf32>
    %c0_357 = arith.constant 0 : index
    %c0_358 = arith.constant 0 : index
    %618 = vector.load %arg40[%c0_357, %c0_358] : memref<8x8xf32, #tpu.memory_space<vmem>>, vector<8x8xf32>
    %619 = arith.subf %605, %618 : vector<8x8xf32>
    %620 = arith.mulf %619, %619 : vector<8x8xf32>
    %cst_359 = arith.constant dense<0.000000e+00> : vector<8xf32>
    %621 = vector.multi_reduction <add>, %620, %cst_359 [1] : vector<8x8xf32> to vector<8xf32>
    %622 = vector.shape_cast %621 : vector<8xf32> to vector<8x1xf32>
    %cst_360 = arith.constant dense<0.000000e+00> : vector<1xf32>
    %623 = vector.multi_reduction <add>, %622, %cst_360 [0] : vector<8x1xf32> to vector<1xf32>
    %624 = vector.shape_cast %623 : vector<1xf32> to vector<1x1xf32>
    %cst_361 = arith.constant 1.562500e-02 : f32
    %625 = vector.broadcast %cst_361 : f32 to vector<1x1xf32>
    %626 = arith.mulf %624, %625 : vector<1x1xf32>
    %cst_362 = arith.constant 0.699999988 : f32
    %627 = vector.broadcast %cst_362 : f32 to vector<1x1xf32>
    %628 = arith.mulf %627, %626 : vector<1x1xf32>
    %cst_363 = arith.constant 3.000000e-01 : f32
    %629 = vector.broadcast %cst_363 : f32 to vector<1x1xf32>
    %630 = arith.mulf %629, %617 : vector<1x1xf32>
    %631 = arith.addf %628, %630 : vector<1x1xf32>
    %c0_364 = arith.constant 0 : index
    %c0_365 = arith.constant 0 : index
    %632 = vector.load %arg43[%c0_364, %c0_365] : memref<1x1xf32, #tpu.memory_space<vmem>>, vector<1x1xf32>
    tpu.vector_store %arg43[%c0_364, %c0_365], %631 {strides = array<i32>} : memref<1x1xf32, #tpu.memory_space<vmem>>, vector<1x1xf32>,
    return
  }
}

</mosaic_0001>

<llo_original>
// kernel: eq.1
$region0: #{eq.1}
  %s0 = inlined_call_operand.vmem [shape: s32[8,2], index: 0, kind: input, shape index: {}]
  %s1 = inlined_call_operand.vmem [shape: s32[16], index: 1, kind: output, shape index: {}]
  $region1: #{eq.1} parent=0
    #allocation0 [shape = 'u8[4096]{0}', space=vmem, size = 0x1000, scoped, tag = 'scoped mem for output reshape']
    %v2 = vld [vmem:[%s0] sm:$0x1]
    %vm3 = vcmask 15360
    %4 = vst.msk [vmem:[#allocation0] sm:$0x1] %vm3, %v2
    %s5 = scalar_lea.vmem %s0, 7
    %v6 = vld [vmem:[%s5] sm:$0x1]
    %7 = vrot.lane.b32.xlu0 %v6, 14
    %v8 = vpop.permute.xlu0 %7
    %vm9 = vcmask 130160
    %10 = vst.msk [vmem:[#allocation0] sm:$0x1] %vm9, %v8
    %s11 = scalar_lea.vmem %s0, 6
    %v12 = vld [vmem:[%s11] sm:$0x1]
    %13 = vrot.lane.b32.xlu0 %v12, 12
    %v14 = vpop.permute.xlu0 %13
    %vm15 = vcmask 113760
    %16 = vst.msk [vmem:[#allocation0] sm:$0x1] %vm15, %v14
    %s17 = scalar_lea.vmem %s0, 5
    %v18 = vld [vmem:[%s17] sm:$0x1]
    %19 = vrot.lane.b32.xlu0 %v18, 10
    %v20 = vpop.permute.xlu0 %19
    %vm21 = vcmask 97360
    %22 = vst.msk [vmem:[#allocation0] sm:$0x1] %vm21, %v20
    %s23 = scalar_lea.vmem %s0, 4
    %v24 = vld [vmem:[%s23] sm:$0x1]
    %25 = vrot.lane.b32.xlu0 %v24, 8
    %v26 = vpop.permute.xlu0 %25
    %vm27 = vcmask 80960
    %28 = vst.msk [vmem:[#allocation0] sm:$0x1] %vm27, %v26
    %s29 = scalar_lea.vmem %s0, 3
    %v30 = vld [vmem:[%s29] sm:$0x1]
    %31 = vrot.lane.b32.xlu0 %v30, 6
    %v32 = vpop.permute.xlu0 %31
    %vm33 = vcmask 64560
    %34 = vst.msk [vmem:[#allocation0] sm:$0x1] %vm33, %v32
    %s35 = scalar_lea.vmem %s0, 2
    %v36 = vld [vmem:[%s35] sm:$0x1]
    %37 = vrot.lane.b32.xlu0 %v36, 4
    %v38 = vpop.permute.xlu0 %37
    %vm39 = vcmask 48160
    %40 = vst.msk [vmem:[#allocation0] sm:$0x1] %vm39, %v38
    %s41 = scalar_lea.vmem %s0, 1
    %v42 = vld [vmem:[%s41] sm:$0x1]
    %43 = vrot.lane.b32.xlu0 %v42, 2
    %v44 = vpop.permute.xlu0 %43
    %vm45 = vcmask 31760
    %46 = vst.msk [vmem:[#allocation0] sm:$0x1] %vm45, %v44
    %s48 = sshll.u32 1, 1
    %s49 = ssub.s32 %s48, 1
    %v51 = vld [vmem:[#allocation0] sm:%s49]
    %s52 = sshll.u32 1, 1
    %s53 = ssub.s32 %s52, 1
    %54 = vst [vmem:[%s1] sm:%s53] %v51

// kernel: mul.104
$region0: #{mul.104}
  %s0 = inlined_call_operand.vmem [shape: f32[2,4,8], index: 0, kind: input, shape index: {}]
  %s1 = inlined_call_operand.vmem [shape: f32[64], index: 1, kind: output, shape index: {}]
  $region1: #{mul.104} parent=0
    #allocation0 [shape = 'u8[4096]{0}', space=vmem, size = 0x1000, scoped, tag = 'scoped mem for output reshape']
    #allocation1 [shape = 'u8[8192]{0}', space=vmem, size = 0x2000, scoped, tag = 'scoped mem for input reshape']
    %s3 = sshll.u32 1, 4
    %s4 = ssub.s32 %s3, 1
    %s5 = scalar_lea.vmem %s0, 4
    %v6 = vld [vmem:[%s5] sm:%s4]
    %s7 = scalar_lea.vmem [#allocation1], 8
    %8 = vst [vmem:[%s7] sm:%s4] %v6
    %v9 = vld [vmem:[%s0] sm:%s4]
    %10 = vst [vmem:[#allocation1] sm:%s4] %v9
    %v11 = vld [vmem:[#allocation1] sm:$0x1]
    %vm12 = vcmask 64512
    %13 = vst.msk [vmem:[#allocation0] sm:$0x1] %vm12, %v11
    %s14 = scalar_lea.vmem [#allocation1], 11
    %v15 = vld [vmem:[%s14] sm:$0x1]
    %16 = vrot.lane.b32.xlu0 %v15, 56
    %v17 = vpop.permute.xlu0 %16
    %vm18 = vcmask 523712
    %19 = vst.msk [vmem:[#allocation0] sm:$0x1] %vm18, %v17
    %s20 = scalar_lea.vmem [#allocation1], 10
    %v21 = vld [vmem:[%s20] sm:$0x1]
    %22 = vrot.lane.b32.xlu0 %v21, 48
    %v23 = vpop.permute.xlu0 %22
    %vm24 = vcmask 458112
    %25 = vst.msk [vmem:[#allocation0] sm:$0x1] %vm24, %v23
    %s26 = scalar_lea.vmem [#allocation1], 9
    %v27 = vld [vmem:[%s26] sm:$0x1]
    %28 = vrot.lane.b32.xlu0 %v27, 40
    %v29 = vpop.permute.xlu0 %28
    %vm30 = vcmask 392512
    %31 = vst.msk [vmem:[#allocation0] sm:$0x1] %vm30, %v29
    %s32 = scalar_lea.vmem [#allocation1], 8
    %v33 = vld [vmem:[%s32] sm:$0x1]
    %34 = vrot.lane.b32.xlu0 %v33, 32
    %v35 = vpop.permute.xlu0 %34
    %vm36 = vcmask 326912
    %37 = vst.msk [vmem:[#allocation0] sm:$0x1] %vm36, %v35
    %s38 = scalar_lea.vmem [#allocation1], 3
    %v39 = vld [vmem:[%s38] sm:$0x1]
    %40 = vrot.lane.b32.xlu0 %v39, 24
    %v41 = vpop.permute.xlu0 %40
    %vm42 = vcmask 261312
    %43 = vst.msk [vmem:[#allocation0] sm:$0x1] %vm42, %v41
    %s44 = scalar_lea.vmem [#allocation1], 2
    %v45 = vld [vmem:[%s44] sm:$0x1]
    %46 = vrot.lane.b32.xlu0 %v45, 16
    %v47 = vpop.permute.xlu0 %46
    %vm48 = vcmask 195712
    %49 = vst.msk [vmem:[#allocation0] sm:$0x1] %vm48, %v47
    %s50 = scalar_lea.vmem [#allocation1], 1
    %v51 = vld [vmem:[%s50] sm:$0x1]
    %52 = vrot.lane.b32.xlu0 %v51, 8
    %v53 = vpop.permute.xlu0 %52
    %vm54 = vcmask 130112
    %55 = vst.msk [vmem:[#allocation0] sm:$0x1] %vm54, %v53
    %s57 = sshll.u32 1, 1
    %s58 = ssub.s32 %s57, 1
    %v60 = vld [vmem:[#allocation0] sm:%s58]
    %s61 = sshll.u32 1, 1
    %s62 = ssub.s32 %s61, 1
    %63 = vst [vmem:[%s1] sm:%s62] %v60

// kernel: tile.19
$region0: #{tile.19}
  %s0 = inlined_call_operand.vmem [shape: f32[16,8,16], index: 0, kind: input, shape index: {}]
  %s1 = inlined_call_operand.vmem [shape: f32[16,128], index: 1, kind: output, shape index: {}]
  %v2 = vld [vmem:[%s0] ss:$8 sm:$0xf]
  %v3 = vld [vmem:[%s0] ss:$8 sm:$0xf0]
  %vm4 = vcmask 1047556
  %v5 = vsel %vm4, %v3, %v2
  %vm6 = vcmask 130048
  %7 = vst.msk [vmem:[%s1] sm:$0xff] %vm6, %v5
  %s8 = scalar_lea.vmem %s0, 64
  %v9 = vld [vmem:[%s8] ss:$8 sm:$0xf]
  %s10 = scalar_lea.vmem %s0, 64
  %v11 = vld [vmem:[%s10] ss:$8 sm:$0xf0]
  %vm12 = vcmask 1047556
  %v13 = vsel %vm12, %v11, %v9
  %vm14 = vcmask 130048
  %s15 = scalar_lea.vmem %s1, 8
  %16 = vst.msk [vmem:[%s15] sm:$0xff] %vm14, %v13
  %s17 = scalar_lea.vmem %s0, 7
  %v18 = vld [vmem:[%s17] ss:$8 sm:$0xf]
  %s19 = scalar_lea.vmem %s0, 7
  %v20 = vld [vmem:[%s19] ss:$8 sm:$0xf0]
  %vm21 = vcmask 1047556
  %v22 = vsel %vm21, %v20, %v18
  %23 = vrot.lane.b32.xlu0 %v22, 112
  %v24 = vpop.permute.xlu0 %23
  %vm25 = vcmask 1048448
  %26 = vst.msk [vmem:[%s1] sm:$0xff] %vm25, %v24
  %s27 = scalar_lea.vmem %s0, 71
  %v28 = vld [vmem:[%s27] ss:$8 sm:$0xf]
  %s29 = scalar_lea.vmem %s0, 71
  %v30 = vld [vmem:[%s29] ss:$8 sm:$0xf0]
  %vm31 = vcmask 1047556
  %v32 = vsel %vm31, %v30, %v28
  %33 = vrot.lane.b32.xlu0 %v32, 112
  %v34 = vpop.permute.xlu0 %33
  %vm35 = vcmask 1048448
  %s36 = scalar_lea.vmem %s1, 8
  %37 = vst.msk [vmem:[%s36] sm:$0xff] %vm35, %v34
  %s38 = scalar_lea.vmem %s0, 6
  %v39 = vld [vmem:[%s38] ss:$8 sm:$0xf]
  %s40 = scalar_lea.vmem %s0, 6
  %v41 = vld [vmem:[%s40] ss:$8 sm:$0xf0]
  %vm42 = vcmask 1047556
  %v43 = vsel %vm42, %v41, %v39
  %44 = vrot.lane.b32.xlu0 %v43, 96
  %v45 = vpop.permute.xlu0 %44
  %vm46 = vcmask 917248
  %47 = vst.msk [vmem:[%s1] sm:$0xff] %vm46, %v45
  %s48 = scalar_lea.vmem %s0, 70
  %v49 = vld [vmem:[%s48] ss:$8 sm:$0xf]
  %s50 = scalar_lea.vmem %s0, 70
  %v51 = vld [vmem:[%s50] ss:$8 sm:$0xf0]
  %vm52 = vcmask 1047556
  %v53 = vsel %vm52, %v51, %v49
  %54 = vrot.lane.b32.xlu0 %v53, 96
  %v55 = vpop.permute.xlu0 %54
  %vm56 = vcmask 917248
  %s57 = scalar_lea.vmem %s1, 8
  %58 = vst.msk [vmem:[%s57] sm:$0xff] %vm56, %v55
  %s59 = scalar_lea.vmem %s0, 5
  %v60 = vld [vmem:[%s59] ss:$8 sm:$0xf]
  %s61 = scalar_lea.vmem %s0, 5
  %v62 = vld [vmem:[%s61] ss:$8 sm:$0xf0]
  %vm63 = vcmask 1047556
  %v64 = vsel %vm63, %v62, %v60
  %65 = vrot.lane.b32.xlu0 %v64, 80
  %v66 = vpop.permute.xlu0 %65
  %vm67 = vcmask 786048
  %68 = vst.msk [vmem:[%s1] sm:$0xff] %vm67, %v66
  %s69 = scalar_lea.vmem %s0, 69
  %v70 = vld [vmem:[%s69] ss:$8 sm:$0xf]
  %s71 = scalar_lea.vmem %s0, 69
  %v72 = vld [vmem:[%s71] ss:$8 sm:$0xf0]
  %vm73 = vcmask 1047556
  %v74 = vsel %vm73, %v72, %v70
  %75 = vrot.lane.b32.xlu0 %v74, 80
  %v76 = vpop.permute.xlu0 %75
  %vm77 = vcmask 786048
  %s78 = scalar_lea.vmem %s1, 8
  %79 = vst.msk [vmem:[%s78] sm:$0xff] %vm77, %v76
  %s80 = scalar_lea.vmem %s0, 4
  %v81 = vld [vmem:[%s80] ss:$8 sm:$0xf]
  %s82 = scalar_lea.vmem %s0, 4
  %v83 = vld [vmem:[%s82] ss:$8 sm:$0xf0]
  %vm84 = vcmask 1047556
  %v85 = vsel %vm84, %v83, %v81
  %86 = vrot.lane.b32.xlu0 %v85, 64
  %v87 = vpop.permute.xlu0 %86
  %vm88 = vcmask 654848
  %89 = vst.msk [vmem:[%s1] sm:$0xff] %vm88, %v87
  %s90 = scalar_lea.vmem %s0, 68
  %v91 = vld [vmem:[%s90] ss:$8 sm:$0xf]
  %s92 = scalar_lea.vmem %s0, 68
  %v93 = vld [vmem:[%s92] ss:$8 sm:$0xf0]
  %vm94 = vcmask 1047556
  %v95 = vsel %vm94, %v93, %v91
  %96 = vrot.lane.b32.xlu0 %v95, 64
  %v97 = vpop.permute.xlu0 %96
  %vm98 = vcmask 654848
  %s99 = scalar_lea.vmem %s1, 8
  %100 = vst.msk [vmem:[%s99] sm:$0xff] %vm98, %v97
  %s101 = scalar_lea.vmem %s0, 3
  %v102 = vld [vmem:[%s101] ss:$8 sm:$0xf]
  %s103 = scalar_lea.vmem %s0, 3
  %v104 = vld [vmem:[%s103] ss:$8 sm:$0xf0]
  %vm105 = vcmask 1047556
  %v106 = vsel %vm105, %v104, %v102
  %107 = vrot.lane.b32.xlu0 %v106, 48
  %v108 = vpop.permute.xlu0 %107
  %vm109 = vcmask 523648
  %110 = vst.msk [vmem:[%s1] sm:$0xff] %vm109, %v108
  %s111 = scalar_lea.vmem %s0, 67
  %v112 = vld [vmem:[%s111] ss:$8 sm:$0xf]
  %s113 = scalar_lea.vmem %s0, 67
  %v114 = vld [vmem:[%s113] ss:$8 sm:$0xf0]
  %vm115 = vcmask 1047556
  %v116 = vsel %vm115, %v114, %v112
  %117 = vrot.lane.b32.xlu0 %v116, 48
  %v118 = vpop.permute.xlu0 %117
  %vm119 = vcmask 523648
  %s120 = scalar_lea.vmem %s1, 8
  %121 = vst.msk [vmem:[%s120] sm:$0xff] %vm119, %v118
  %s122 = scalar_lea.vmem %s0, 2
  %v123 = vld [vmem:[%s122] ss:$8 sm:$0xf]
  %s124 = scalar_lea.vmem %s0, 2
  %v125 = vld [vmem:[%s124] ss:$8 sm:$0xf0]
  %vm126 = vcmask 1047556
  %v127 = vsel %vm126, %v125, %v123
  %128 = vrot.lane.b32.xlu0 %v127, 32
  %v129 = vpop.permute.xlu0 %128
  %vm130 = vcmask 392448
  %131 = vst.msk [vmem:[%s1] sm:$0xff] %vm130, %v129
  %s132 = scalar_lea.vmem %s0, 66
  %v133 = vld [vmem:[%s132] ss:$8 sm:$0xf]
  %s134 = scalar_lea.vmem %s0, 66
  %v135 = vld [vmem:[%s134] ss:$8 sm:$0xf0]
  %vm136 = vcmask 1047556
  %v137 = vsel %vm136, %v135, %v133
  %138 = vrot.lane.b32.xlu0 %v137, 32
  %v139 = vpop.permute.xlu0 %138
  %vm140 = vcmask 392448
  %s141 = scalar_lea.vmem %s1, 8
  %142 = vst.msk [vmem:[%s141] sm:$0xff] %vm140, %v139
  %s143 = scalar_lea.vmem %s0, 1
  %v144 = vld [vmem:[%s143] ss:$8 sm:$0xf]
  %s145 = scalar_lea.vmem %s0, 1
  %v146 = vld [vmem:[%s145] ss:$8 sm:$0xf0]
  %vm147 = vcmask 1047556
  %v148 = vsel %vm147, %v146, %v144
  %149 = vrot.lane.b32.xlu0 %v148, 16
  %v150 = vpop.permute.xlu0 %149
  %vm151 = vcmask 261248
  %152 = vst.msk [vmem:[%s1] sm:$0xff] %vm151, %v150
  %s153 = scalar_lea.vmem %s0, 65
  %v154 = vld [vmem:[%s153] ss:$8 sm:$0xf]
  %s155 = scalar_lea.vmem %s0, 65
  %v156 = vld [vmem:[%s155] ss:$8 sm:$0xf0]
  %vm157 = vcmask 1047556
  %v158 = vsel %vm157, %v156, %v154
  %159 = vrot.lane.b32.xlu0 %v158, 16
  %v160 = vpop.permute.xlu0 %159
  %vm161 = vcmask 261248
  %s162 = scalar_lea.vmem %s1, 8
  %163 = vst.msk [vmem:[%s162] sm:$0xff] %vm161, %v160

// kernel: gmae_forward.1
$region0: #{gmae_forward.1}
  #allocation0 [shape = 'u32[]', space=smem, size = 0x4, offset = 0x4, fixed_abs, tag = 'smem constant byte address 0x4 - core index']
  #allocation1 [shape = 'u32[144,128]{1,0:T(1,128)}', space=vmem, size = 0x12000, scoped, tag = 'internal scratch']
  #allocation2 [shape = 'f32[1,1]{1,0:T(1,128)S(1)}', space=vmem, size = 0x200, scoped, tag = 'scoped memory for gmae_forward.1']
  %s0 = inlined_call_operand.smem [shape: u32[44], index: -1, kind: input, shape index: {}]
  %s1 = sld [smem:[%s0]]
  %s2 = scalar_lea.smem %s0, 1
  %s3 = sld [smem:[%s2]]
  %s4 = scalar_lea.smem %s0, 2
  %s5 = sld [smem:[%s4]]
  %s6 = scalar_lea.smem %s0, 3
  %s7 = sld [smem:[%s6]]
  %s8 = scalar_lea.smem %s0, 4
  %s9 = sld [smem:[%s8]]
  %s10 = scalar_lea.smem %s0, 5
  %s11 = sld [smem:[%s10]]
  %s12 = scalar_lea.smem %s0, 6
  %s13 = sld [smem:[%s12]]
  %s14 = scalar_lea.smem %s0, 7
  %s15 = sld [smem:[%s14]]
  %s16 = scalar_lea.smem %s0, 8
  %s17 = sld [smem:[%s16]]
  %s18 = scalar_lea.smem %s0, 9
  %s19 = sld [smem:[%s18]]
  %s20 = scalar_lea.smem %s0, 10
  %s21 = sld [smem:[%s20]]
  %s22 = scalar_lea.smem %s0, 11
  %s23 = sld [smem:[%s22]]
  %s24 = scalar_lea.smem %s0, 12
  %s25 = sld [smem:[%s24]]
  %s26 = scalar_lea.smem %s0, 13
  %s27 = sld [smem:[%s26]]
  %s28 = scalar_lea.smem %s0, 14
  %s29 = sld [smem:[%s28]]
  %s30 = scalar_lea.smem %s0, 15
  %s31 = sld [smem:[%s30]]
  %s32 = scalar_lea.smem %s0, 16
  %s33 = sld [smem:[%s32]]
  %s34 = scalar_lea.smem %s0, 17
  %s35 = sld [smem:[%s34]]
  %s36 = scalar_lea.smem %s0, 18
  %s37 = sld [smem:[%s36]]
  %s38 = scalar_lea.smem %s0, 19
  %s39 = sld [smem:[%s38]]
  %s40 = scalar_lea.smem %s0, 20
  %s41 = sld [smem:[%s40]]
  %s42 = scalar_lea.smem %s0, 21
  %s43 = sld [smem:[%s42]]
  %s44 = scalar_lea.smem %s0, 22
  %s45 = sld [smem:[%s44]]
  %s46 = scalar_lea.smem %s0, 23
  %s47 = sld [smem:[%s46]]
  %s48 = scalar_lea.smem %s0, 24
  %s49 = sld [smem:[%s48]]
  %s50 = scalar_lea.smem %s0, 25
  %s51 = sld [smem:[%s50]]
  %s52 = scalar_lea.smem %s0, 26
  %s53 = sld [smem:[%s52]]
  %s54 = scalar_lea.smem %s0, 27
  %s55 = sld [smem:[%s54]]
  %s56 = scalar_lea.smem %s0, 28
  %s57 = sld [smem:[%s56]]
  %s58 = scalar_lea.smem %s0, 29
  %s59 = sld [smem:[%s58]]
  %s60 = scalar_lea.smem %s0, 30
  %s61 = sld [smem:[%s60]]
  %s62 = scalar_lea.smem %s0, 31
  %s63 = sld [smem:[%s62]]
  %s64 = scalar_lea.smem %s0, 32
  %s65 = sld [smem:[%s64]]
  %s66 = scalar_lea.smem %s0, 33
  %s67 = sld [smem:[%s66]]
  %s68 = scalar_lea.smem %s0, 34
  %s69 = sld [smem:[%s68]]
  %s70 = scalar_lea.smem %s0, 35
  %s71 = sld [smem:[%s70]]
  %s72 = scalar_lea.smem %s0, 36
  %s73 = sld [smem:[%s72]]
  %s74 = scalar_lea.smem %s0, 37
  %s75 = sld [smem:[%s74]]
  %s76 = scalar_lea.smem %s0, 38
  %s77 = sld [smem:[%s76]]
  %s78 = scalar_lea.smem %s0, 39
  %s79 = sld [smem:[%s78]]
  %s80 = scalar_lea.smem %s0, 40
  %s81 = sld [smem:[%s80]]
  %s82 = scalar_lea.smem %s0, 41
  %s83 = sld [smem:[%s82]]
  %s84 = scalar_lea.smem %s0, 42
  %s85 = sld [smem:[%s84]]
  %s86 = scalar_lea.smem %s0, 43
  %s87 = sld [smem:[%s86]]
  %88 = xla_tuple %s83, %s85, %s87
  %s89 = sld [smem:[#allocation0]]
  $region190: #{gmae_forward.1} parent=0
    _
  %s91 = ssub.s32 1, %s89
  %s92 = scalar_select 0, %s91, %s89
  %v93 = vstv %s15
  %94 = vst [vmem:[#allocation2] sm:$0x1] %v93
  $region1: #{gmae_forward.1} parent=0
    #allocation3 [shape = 'u8[4096]{0}', space=vmem, size = 0x1000, scoped, tag = 'output window, operand 0, single buffered']
    #allocation4 [shape = 's32[1]{0}', space=sflag, size = 0x4, scoped, tag = 'scoped memory for gmae_forward.1']
    #allocation5 [shape = 'u8[4096]{0}', space=vmem, size = 0x1000, scoped, tag = 'output window, operand 1, single buffered']
    #allocation6 [shape = 's32[1]{0}', space=sflag, size = 0x4, scoped, tag = 'scoped memory for gmae_forward.1']
    #allocation7 [shape = 'u8[512]{0}', space=vmem, size = 0x400, scoped, tag = 'output window, operand 2, single buffered']
    %95 = vsyncpa [#allocation4], 0
    %96 = vsyncpa [#allocation6], 0
    // Predicated region
    $region2: #{gmae_forward.1} parent=1 // pred_check
      _
    $region3: #{gmae_forward.1} parent=1 // pred_check_branch
      %98 = sbr.rel (0) target = $region5
    $region4: #{gmae_forward.1} parent=1 // pred_region
      _
    $region5: #{gmae_forward.1} parent=1 // pred_fallthru
      _
    // Predicated region
    $region6: #{gmae_forward.1} parent=1 // pred_check
      _
    $region7: #{gmae_forward.1} parent=1 // pred_check_branch
      %100 = sbr.rel (0) target = $region9
    $region8: #{gmae_forward.1} parent=1 // pred_region
      _
    $region9: #{gmae_forward.1} parent=1 // pred_fallthru
      _
    // Predicated region
    $region10: #{gmae_forward.1} parent=1 // pred_check
      _
    $region11: #{gmae_forward.1} parent=1 // pred_check_branch
      %102 = sbr.rel (0) target = $region13
    $region12: #{gmae_forward.1} parent=1 // pred_region
      _
    $region13: #{gmae_forward.1} parent=1 // pred_fallthru
      _
    // Predicated region
    $region14: #{gmae_forward.1} parent=1 // pred_check
      _
    $region15: #{gmae_forward.1} parent=1 // pred_check_branch
      %104 = sbr.rel (0) target = $region17
    $region16: #{gmae_forward.1} parent=1 // pred_region
      _
    $region17: #{gmae_forward.1} parent=1 // pred_fallthru
      _
    // Predicated region
    $region18: #{gmae_forward.1} parent=1 // pred_check
      _
    $region19: #{gmae_forward.1} parent=1 // pred_check_branch
      %106 = sbr.rel (0) target = $region21
    $region20: #{gmae_forward.1} parent=1 // pred_region
      _
    $region21: #{gmae_forward.1} parent=1 // pred_fallthru
      _
    // Predicated region
    $region22: #{gmae_forward.1} parent=1 // pred_check
      _
    $region23: #{gmae_forward.1} parent=1 // pred_check_branch
      %108 = sbr.rel (0) target = $region25
    $region24: #{gmae_forward.1} parent=1 // pred_region
      _
    $region25: #{gmae_forward.1} parent=1 // pred_fallthru
      _
    // Predicated region
    $region26: #{gmae_forward.1} parent=1 // pred_check
      _
    $region27: #{gmae_forward.1} parent=1 // pred_check_branch
      %110 = sbr.rel (0) target = $region29
    $region28: #{gmae_forward.1} parent=1 // pred_region
      _
    $region29: #{gmae_forward.1} parent=1 // pred_fallthru
      _
    // Predicated region
    $region30: #{gmae_forward.1} parent=1 // pred_check
      _
    $region31: #{gmae_forward.1} parent=1 // pred_check_branch
      %112 = sbr.rel (0) target = $region33
    $region32: #{gmae_forward.1} parent=1 // pred_region
      _
    $region33: #{gmae_forward.1} parent=1 // pred_fallthru
      _
    // Predicated region
    $region34: #{gmae_forward.1} parent=1 // pred_check
      _
    $region35: #{gmae_forward.1} parent=1 // pred_check_branch
      %114 = sbr.rel (0) target = $region37
    $region36: #{gmae_forward.1} parent=1 // pred_region
      _
    $region37: #{gmae_forward.1} parent=1 // pred_fallthru
      _
    // Predicated region
    $region38: #{gmae_forward.1} parent=1 // pred_check
      _
    $region39: #{gmae_forward.1} parent=1 // pred_check_branch
      %116 = sbr.rel (0) target = $region41
    $region40: #{gmae_forward.1} parent=1 // pred_region
      _
    $region41: #{gmae_forward.1} parent=1 // pred_fallthru
      _
    // Predicated region
    $region42: #{gmae_forward.1} parent=1 // pred_check
      _
    $region43: #{gmae_forward.1} parent=1 // pred_check_branch
      %118 = sbr.rel (0) target = $region45
    $region44: #{gmae_forward.1} parent=1 // pred_region
      _
    $region45: #{gmae_forward.1} parent=1 // pred_fallthru
      _
    // Predicated region
    $region46: #{gmae_forward.1} parent=1 // pred_check
      _
    $region47: #{gmae_forward.1} parent=1 // pred_check_branch
      %120 = sbr.rel (0) target = $region49
    $region48: #{gmae_forward.1} parent=1 // pred_region
      _
    $region49: #{gmae_forward.1} parent=1 // pred_fallthru
      _
    // Predicated region
    $region50: #{gmae_forward.1} parent=1 // pred_check
      _
    $region51: #{gmae_forward.1} parent=1 // pred_check_branch
      %122 = sbr.rel (0) target = $region53
    $region52: #{gmae_forward.1} parent=1 // pred_region
      _
    $region53: #{gmae_forward.1} parent=1 // pred_fallthru
      _
    // Predicated region
    $region54: #{gmae_forward.1} parent=1 // pred_check
      _
    $region55: #{gmae_forward.1} parent=1 // pred_check_branch
      %124 = sbr.rel (0) target = $region57
    $region56: #{gmae_forward.1} parent=1 // pred_region
      _
    $region57: #{gmae_forward.1} parent=1 // pred_fallthru
      _
    // Predicated region
    $region58: #{gmae_forward.1} parent=1 // pred_check
      _
    $region59: #{gmae_forward.1} parent=1 // pred_check_branch
      %126 = sbr.rel (0) target = $region61
    $region60: #{gmae_forward.1} parent=1 // pred_region
      _
    $region61: #{gmae_forward.1} parent=1 // pred_fallthru
      _
    // Predicated region
    $region62: #{gmae_forward.1} parent=1 // pred_check
      _
    $region63: #{gmae_forward.1} parent=1 // pred_check_branch
      %128 = sbr.rel (0) target = $region65
    $region64: #{gmae_forward.1} parent=1 // pred_region
      _
    $region65: #{gmae_forward.1} parent=1 // pred_fallthru
      _
    // Predicated region
    $region66: #{gmae_forward.1} parent=1 // pred_check
      _
    $region67: #{gmae_forward.1} parent=1 // pred_check_branch
      %130 = sbr.rel (0) target = $region69
    $region68: #{gmae_forward.1} parent=1 // pred_region
      _
    $region69: #{gmae_forward.1} parent=1 // pred_fallthru
      _
    // Predicated region
    $region70: #{gmae_forward.1} parent=1 // pred_check
      _
    $region71: #{gmae_forward.1} parent=1 // pred_check_branch
      %132 = sbr.rel (0) target = $region73
    $region72: #{gmae_forward.1} parent=1 // pred_region
      _
    $region73: #{gmae_forward.1} parent=1 // pred_fallthru
      _
    // Predicated region
    $region74: #{gmae_forward.1} parent=1 // pred_check
      _
    $region75: #{gmae_forward.1} parent=1 // pred_check_branch
      %134 = sbr.rel (0) target = $region77
    $region76: #{gmae_forward.1} parent=1 // pred_region
      _
    $region77: #{gmae_forward.1} parent=1 // pred_fallthru
      _
    // Predicated region
    $region78: #{gmae_forward.1} parent=1 // pred_check
      _
    $region79: #{gmae_forward.1} parent=1 // pred_check_branch
      %136 = sbr.rel (0) target = $region81
    $region80: #{gmae_forward.1} parent=1 // pred_region
      _
    $region81: #{gmae_forward.1} parent=1 // pred_fallthru
      _
    // Predicated region
    $region82: #{gmae_forward.1} parent=1 // pred_check
      _
    $region83: #{gmae_forward.1} parent=1 // pred_check_branch
      %138 = sbr.rel (0) target = $region85
    $region84: #{gmae_forward.1} parent=1 // pred_region
      _
    $region85: #{gmae_forward.1} parent=1 // pred_fallthru
      _
    // Predicated region
    $region86: #{gmae_forward.1} parent=1 // pred_check
      _
    $region87: #{gmae_forward.1} parent=1 // pred_check_branch
      %140 = sbr.rel (0) target = $region89
    $region88: #{gmae_forward.1} parent=1 // pred_region
      _
    $region89: #{gmae_forward.1} parent=1 // pred_fallthru
      _
    // Predicated region
    $region90: #{gmae_forward.1} parent=1 // pred_check
      _
    $region91: #{gmae_forward.1} parent=1 // pred_check_branch
      %142 = sbr.rel (0) target = $region93
    $region92: #{gmae_forward.1} parent=1 // pred_region
      _
    $region93: #{gmae_forward.1} parent=1 // pred_fallthru
      _
    // Predicated region
    $region94: #{gmae_forward.1} parent=1 // pred_check
      _
    $region95: #{gmae_forward.1} parent=1 // pred_check_branch
      %144 = sbr.rel (0) target = $region97
    $region96: #{gmae_forward.1} parent=1 // pred_region
      _
    $region97: #{gmae_forward.1} parent=1 // pred_fallthru
      _
    // Predicated region
    $region98: #{gmae_forward.1} parent=1 // pred_check
      _
    $region99: #{gmae_forward.1} parent=1 // pred_check_branch
      %146 = sbr.rel (0) target = $region101
    $region100: #{gmae_forward.1} parent=1 // pred_region
      _
    $region101: #{gmae_forward.1} parent=1 // pred_fallthru
      _
    // Predicated region
    $region102: #{gmae_forward.1} parent=1 // pred_check
      _
    $region103: #{gmae_forward.1} parent=1 // pred_check_branch
      %148 = sbr.rel (0) target = $region105
    $region104: #{gmae_forward.1} parent=1 // pred_region
      _
    $region105: #{gmae_forward.1} parent=1 // pred_fallthru
      _
    // Predicated region
    $region106: #{gmae_forward.1} parent=1 // pred_check
      _
    $region107: #{gmae_forward.1} parent=1 // pred_check_branch
      %150 = sbr.rel (0) target = $region109
    $region108: #{gmae_forward.1} parent=1 // pred_region
      _
    $region109: #{gmae_forward.1} parent=1 // pred_fallthru
      _
    // Predicated region
    $region110: #{gmae_forward.1} parent=1 // pred_check
      _
    $region111: #{gmae_forward.1} parent=1 // pred_check_branch
      %152 = sbr.rel (0) target = $region113
    $region112: #{gmae_forward.1} parent=1 // pred_region
      _
    $region113: #{gmae_forward.1} parent=1 // pred_fallthru
      _
    // Predicated region
    $region114: #{gmae_forward.1} parent=1 // pred_check
      _
    $region115: #{gmae_forward.1} parent=1 // pred_check_branch
      %154 = sbr.rel (0) target = $region117
    $region116: #{gmae_forward.1} parent=1 // pred_region
      _
    $region117: #{gmae_forward.1} parent=1 // pred_fallthru
      _
    // Predicated region
    $region118: #{gmae_forward.1} parent=1 // pred_check
      _
    $region119: #{gmae_forward.1} parent=1 // pred_check_branch
      %156 = sbr.rel (0) target = $region121
    $region120: #{gmae_forward.1} parent=1 // pred_region
      _
    $region121: #{gmae_forward.1} parent=1 // pred_fallthru
      _
    // Predicated region
    $region122: #{gmae_forward.1} parent=1 // pred_check
      _
    $region123: #{gmae_forward.1} parent=1 // pred_check_branch
      %158 = sbr.rel (0) target = $region125
    $region124: #{gmae_forward.1} parent=1 // pred_region
      _
    $region125: #{gmae_forward.1} parent=1 // pred_fallthru
      _
    // Predicated region
    $region126: #{gmae_forward.1} parent=1 // pred_check
      _
    $region127: #{gmae_forward.1} parent=1 // pred_check_branch
      %160 = sbr.rel (0) target = $region129
    $region128: #{gmae_forward.1} parent=1 // pred_region
      _
    $region129: #{gmae_forward.1} parent=1 // pred_fallthru
      _
    // Predicated region
    $region130: #{gmae_forward.1} parent=1 // pred_check
      _
    $region131: #{gmae_forward.1} parent=1 // pred_check_branch
      %162 = sbr.rel (0) target = $region133
    $region132: #{gmae_forward.1} parent=1 // pred_region
      _
    $region133: #{gmae_forward.1} parent=1 // pred_fallthru
      _
    // Predicated region
    $region134: #{gmae_forward.1} parent=1 // pred_check
      _
    $region135: #{gmae_forward.1} parent=1 // pred_check_branch
      %164 = sbr.rel (0) target = $region137
    $region136: #{gmae_forward.1} parent=1 // pred_region
      _
    $region137: #{gmae_forward.1} parent=1 // pred_fallthru
      _
    // Predicated region
    $region138: #{gmae_forward.1} parent=1 // pred_check
      _
    $region139: #{gmae_forward.1} parent=1 // pred_check_branch
      %166 = sbr.rel (0) target = $region141
    $region140: #{gmae_forward.1} parent=1 // pred_region
      _
    $region141: #{gmae_forward.1} parent=1 // pred_fallthru
      _
    // Predicated region
    $region142: #{gmae_forward.1} parent=1 // pred_check
      _
    $region143: #{gmae_forward.1} parent=1 // pred_check_branch
      %168 = sbr.rel (0) target = $region145
    $region144: #{gmae_forward.1} parent=1 // pred_region
      _
    $region145: #{gmae_forward.1} parent=1 // pred_fallthru
      _
    // Predicated region
    $region146: #{gmae_forward.1} parent=1 // pred_check
      _
    $region147: #{gmae_forward.1} parent=1 // pred_check_branch
      %170 = sbr.rel (0) target = $region149
    $region148: #{gmae_forward.1} parent=1 // pred_region
      _
    $region149: #{gmae_forward.1} parent=1 // pred_fallthru
      _
    // Predicated region
    $region150: #{gmae_forward.1} parent=1 // pred_check
      _
    $region151: #{gmae_forward.1} parent=1 // pred_check_branch
      %172 = sbr.rel (0) target = $region153
    $region152: #{gmae_forward.1} parent=1 // pred_region
      _
    $region153: #{gmae_forward.1} parent=1 // pred_fallthru
      _
    // Predicated region
    $region154: #{gmae_forward.1} parent=1 // pred_check
      _
    $region155: #{gmae_forward.1} parent=1 // pred_check_branch
      %174 = sbr.rel (0) target = $region157
    $region156: #{gmae_forward.1} parent=1 // pred_region
      _
    $region157: #{gmae_forward.1} parent=1 // pred_fallthru
      _
    // Predicated region
    $region158: #{gmae_forward.1} parent=1 // pred_check
      _
    $region159: #{gmae_forward.1} parent=1 // pred_check_branch
      %176 = sbr.rel (0) target = $region161
    $region160: #{gmae_forward.1} parent=1 // pred_region
      _
    $region161: #{gmae_forward.1} parent=1 // pred_fallthru
      _
    // Predicated region
    $region162: #{gmae_forward.1} parent=1 // pred_check
      _
    $region163: #{gmae_forward.1} parent=1 // pred_check_branch
      %178 = sbr.rel (0) target = $region165
    $region164: #{gmae_forward.1} parent=1 // pred_region
      _
    $region165: #{gmae_forward.1} parent=1 // pred_fallthru
      _
    %v179 = vld [vmem:[%s3] sm:$0xff]
    %v180 = vld [vmem:[%s3 + $0x8] sm:$0xff]
    %v181 = vld [vmem:[%s3 + $0x10] sm:$0xff]
    %v182 = vld [vmem:[%s3 + $0x18] sm:$0xff]
    %v183 = vld [vmem:[%s3 + $0x20] sm:$0xff]
    %v184 = vld [vmem:[%s3 + $0x28] sm:$0xff]
    %v185 = vld [vmem:[%s3 + $0x30] sm:$0xff]
    %v186 = vld [vmem:[%s3 + $0x38] sm:$0xff]
    %v187 = vld [vmem:[%s5] sm:$0xff]
    %v188 = vld [vmem:[%s5 + $0x8] sm:$0xff]
    %v189 = vld [vmem:[%s7] sm:$0x1]
    %v191 = vlaneseq
    %v192 = vshrl.u32 %v191, 7
    %v193 = vsub.s32 0, %v192
    %v194 = vrot.slane %v189, %v193
    %vm196 = vcmask 130048
    %v198 = vsel %vm196, %v179, 0
    %v201 = vsel %vm196, %v180, 0
    %v204 = vsel %vm196, %v181, 0
    %v207 = vsel %vm196, %v182, 0
    %v210 = vsel %vm196, %v183, 0
    %v213 = vsel %vm196, %v184, 0
    %v216 = vsel %vm196, %v185, 0
    %v219 = vsel %vm196, %v186, 0
    %221 = vmatprep.subr.mxu0 0.0
    %222 = vmatpush1.msra.mxu0 0.0
    %223 = vmatprep.subr.mxu0 0.0
    %224 = vmatpush1.msra.mxu0 0.0
    %225 = vmatprep.subr.mxu0 0.0
    %226 = vmatpush1.msra.mxu0 0.0
    %227 = vmatprep.subr.mxu0 0.0
    %228 = vmatpush1.msra.mxu0 0.0
    %229 = vmatprep.subr.mxu0 0.0
    %230 = vmatpush1.msra.mxu0 0.0
    %231 = vmatprep.subr.mxu0 0.0
    %232 = vmatpush1.msra.mxu0 0.0
    %233 = vmatprep.subr.mxu0 0.0
    %234 = vmatpush1.msra.mxu0 0.0
    %235 = vmatprep.subr.mxu0 0.0
    %236 = vmatpush1.msra.mxu0 0.0
    %237 = vmatprep.subr.mxu0 0.0
    %238 = vmatpush1.msra.mxu0 0.0
    %239 = vmatprep.subr.mxu0 0.0
    %240 = vmatpush1.msra.mxu0 0.0
    %241 = vmatprep.subr.mxu0 0.0
    %242 = vmatpush1.msra.mxu0 0.0
    %243 = vmatprep.subr.mxu0 0.0
    %244 = vmatpush1.msra.mxu0 0.0
    %245 = vmatprep.subr.mxu0 0.0
    %246 = vmatpush1.msra.mxu0 0.0
    %247 = vmatprep.subr.mxu0 0.0
    %248 = vmatpush1.msra.mxu0 0.0
    %249 = vmatprep.subr.mxu0 0.0
    %250 = vmatpush1.msra.mxu0 %v188
    %251 = vmatprep.subr.mxu0 0.0
    %252 = vmatpush1.msra.mxu0 %v187
    %253 = vmatprep.subr.mxu0 0.0
    %254 = vmatpush2.msra.mxu0 0.0
    %255 = vmatprep.subr.mxu0 0.0
    %256 = vmatpush2.msra.mxu0 0.0
    %257 = vmatprep.subr.mxu0 0.0
    %258 = vmatpush2.msra.mxu0 0.0
    %259 = vmatprep.subr.mxu0 0.0
    %260 = vmatpush2.msra.mxu0 0.0
    %261 = vmatprep.subr.mxu0 0.0
    %262 = vmatpush2.msra.mxu0 0.0
    %263 = vmatprep.subr.mxu0 0.0
    %264 = vmatpush2.msra.mxu0 0.0
    %265 = vmatprep.subr.mxu0 0.0
    %266 = vmatpush2.msra.mxu0 0.0
    %267 = vmatprep.subr.mxu0 0.0
    %268 = vmatpush2.msra.mxu0 0.0
    %269 = vmatprep.subr.mxu0 0.0
    %270 = vmatpush2.msra.mxu0 0.0
    %271 = vmatprep.subr.mxu0 0.0
    %272 = vmatpush2.msra.mxu0 0.0
    %273 = vmatprep.subr.mxu0 0.0
    %274 = vmatpush2.msra.mxu0 0.0
    %275 = vmatprep.subr.mxu0 0.0
    %276 = vmatpush2.msra.mxu0 0.0
    %277 = vmatprep.subr.mxu0 0.0
    %278 = vmatpush2.msra.mxu0 0.0
    %279 = vmatprep.subr.mxu0 0.0
    %280 = vmatpush2.msra.mxu0 0.0
    %281 = vmatprep.subr.mxu0 0.0
    %282 = vmatpush2.msra.mxu0 0.0
    %283 = vmatprep.subr.mxu0 0.0
    %284 = vmatpush2.msra.mxu0 0.0
    %285 = vmatprep.mubr.f32.mxu0 0.0
    %286 = vmatmul.mubr.f32.gmra.mxu0 %v198
    %v287 = vpop.f32.mrf.mxu0
    %v288 = vadd.f32 %v194, %v287
    %v289 = vpop.f32.mrf.mxu0
    %290 = vmatprep.mubr.f32.mxu0 0.0
    %291 = vmatmul.mubr.f32.gmra.mxu0 %v201
    %v292 = vpop.f32.mrf.mxu0
    %v293 = vadd.f32 %v194, %v292
    %v294 = vpop.f32.mrf.mxu0
    %295 = vmatprep.mubr.f32.mxu0 0.0
    %296 = vmatmul.mubr.f32.gmra.mxu0 %v204
    %v297 = vpop.f32.mrf.mxu0
    %v298 = vadd.f32 %v194, %v297
    %v299 = vpop.f32.mrf.mxu0
    %300 = vmatprep.mubr.f32.mxu0 0.0
    %301 = vmatmul.mubr.f32.gmra.mxu0 %v207
    %v302 = vpop.f32.mrf.mxu0
    %v303 = vadd.f32 %v194, %v302
    %v304 = vpop.f32.mrf.mxu0
    %305 = vmatprep.mubr.f32.mxu0 0.0
    %306 = vmatmul.mubr.f32.gmra.mxu0 %v210
    %v307 = vpop.f32.mrf.mxu0
    %v308 = vadd.f32 %v194, %v307
    %v309 = vpop.f32.mrf.mxu0
    %310 = vmatprep.mubr.f32.mxu0 0.0
    %311 = vmatmul.mubr.f32.gmra.mxu0 %v213
    %v312 = vpop.f32.mrf.mxu0
    %v313 = vadd.f32 %v194, %v312
    %v314 = vpop.f32.mrf.mxu0
    %315 = vmatprep.mubr.f32.mxu0 0.0
    %316 = vmatmul.mubr.f32.gmra.mxu0 %v216
    %v317 = vpop.f32.mrf.mxu0
    %v318 = vadd.f32 %v194, %v317
    %v319 = vpop.f32.mrf.mxu0
    %320 = vmatprep.mubr.f32.mxu0 0.0
    %321 = vmatmul.mubr.f32.gmra.mxu0 %v219
    %v322 = vpop.f32.mrf.mxu0
    %v323 = vadd.f32 %v194, %v322
    %v324 = vpop.f32.mrf.mxu0
    %325 = vdwg.mxu0
    %v326 = vld [vmem:[%s1] sm:$0xff]
    %v327 = vld [vmem:[%s1 + $0x8] sm:$0xff]
    %v328 = vld [vmem:[%s1 + $0x10] sm:$0xff]
    %v329 = vld [vmem:[%s1 + $0x18] sm:$0xff]
    %v330 = vld [vmem:[%s1 + $0x20] sm:$0xff]
    %v331 = vld [vmem:[%s1 + $0x28] sm:$0xff]
    %v332 = vld [vmem:[%s1 + $0x30] sm:$0xff]
    %v333 = vld [vmem:[%s1 + $0x38] sm:$0xff]
    %v334 = vld [vmem:[%s1 + $0x40] sm:$0xff]
    %v335 = vld [vmem:[%s1 + $0x48] sm:$0xff]
    %v336 = vld [vmem:[%s1 + $0x50] sm:$0xff]
    %v337 = vld [vmem:[%s1 + $0x58] sm:$0xff]
    %v338 = vld [vmem:[%s1 + $0x60] sm:$0xff]
    %v339 = vld [vmem:[%s1 + $0x68] sm:$0xff]
    %v340 = vld [vmem:[%s1 + $0x70] sm:$0xff]
    %v341 = vld [vmem:[%s1 + $0x78] sm:$0xff]
    %v343 = vsel %vm196, %v326, 0
    %v346 = vsel %vm196, %v327, 0
    %v349 = vsel %vm196, %v328, 0
    %v352 = vsel %vm196, %v329, 0
    %v355 = vsel %vm196, %v330, 0
    %v358 = vsel %vm196, %v331, 0
    %v361 = vsel %vm196, %v332, 0
    %v364 = vsel %vm196, %v333, 0
    %v367 = vsel %vm196, %v334, 0
    %v370 = vsel %vm196, %v335, 0
    %v373 = vsel %vm196, %v336, 0
    %v376 = vsel %vm196, %v337, 0
    %v379 = vsel %vm196, %v338, 0
    %v382 = vsel %vm196, %v339, 0
    %v385 = vsel %vm196, %v340, 0
    %v388 = vsel %vm196, %v341, 0
    %v391 = vsel %vm196, %v288, 0
    %v394 = vsel %vm196, %v293, 0
    %v397 = vsel %vm196, %v298, 0
    %v400 = vsel %vm196, %v303, 0
    %v403 = vsel %vm196, %v308, 0
    %v406 = vsel %vm196, %v313, 0
    %v409 = vsel %vm196, %v318, 0
    %v412 = vsel %vm196, %v323, 0
    %414 = vmatprep.subr.mxu0 0.0
    %415 = vmatpush1.xpose.msra.mxu0 0.0
    %416 = vmatprep.subr.mxu0 0.0
    %417 = vmatpush1.xpose.msra.mxu0 0.0
    %418 = vmatprep.subr.mxu0 0.0
    %419 = vmatpush1.xpose.msra.mxu0 0.0
    %420 = vmatprep.subr.mxu0 0.0
    %421 = vmatpush1.xpose.msra.mxu0 0.0
    %422 = vmatprep.subr.mxu0 0.0
    %423 = vmatpush1.xpose.msra.mxu0 0.0
    %424 = vmatprep.subr.mxu0 0.0
    %425 = vmatpush1.xpose.msra.mxu0 0.0
    %426 = vmatprep.subr.mxu0 0.0
    %427 = vmatpush1.xpose.msra.mxu0 0.0
    %428 = vmatprep.subr.mxu0 0.0
    %429 = vmatpush1.xpose.msra.mxu0 0.0
    %430 = vmatprep.subr.mxu0 0.0
    %431 = vmatpush1.xpose.msra.mxu0 %v412
    %432 = vmatprep.subr.mxu0 0.0
    %433 = vmatpush1.xpose.msra.mxu0 %v409
    %434 = vmatprep.subr.mxu0 0.0
    %435 = vmatpush1.xpose.msra.mxu0 %v406
    %436 = vmatprep.subr.mxu0 0.0
    %437 = vmatpush1.xpose.msra.mxu0 %v403
    %438 = vmatprep.subr.mxu0 0.0
    %439 = vmatpush1.xpose.msra.mxu0 %v400
    %440 = vmatprep.subr.mxu0 0.0
    %441 = vmatpush1.xpose.msra.mxu0 %v397
    %442 = vmatprep.subr.mxu0 0.0
    %443 = vmatpush1.xpose.msra.mxu0 %v394
    %444 = vmatprep.subr.mxu0 0.0
    %445 = vmatpush1.xpose.msra.mxu0 %v391
    %446 = vmatprep.subr.mxu0 0.0
    %447 = vmatpush2.xpose.msra.mxu0 0.0
    %448 = vmatprep.subr.mxu0 0.0
    %449 = vmatpush2.xpose.msra.mxu0 0.0
    %450 = vmatprep.subr.mxu0 0.0
    %451 = vmatpush2.xpose.msra.mxu0 0.0
    %452 = vmatprep.subr.mxu0 0.0
    %453 = vmatpush2.xpose.msra.mxu0 0.0
    %454 = vmatprep.subr.mxu0 0.0
    %455 = vmatpush2.xpose.msra.mxu0 0.0
    %456 = vmatprep.subr.mxu0 0.0
    %457 = vmatpush2.xpose.msra.mxu0 0.0
    %458 = vmatprep.subr.mxu0 0.0
    %459 = vmatpush2.xpose.msra.mxu0 0.0
    %460 = vmatprep.subr.mxu0 0.0
    %461 = vmatpush2.xpose.msra.mxu0 0.0
    %462 = vmatprep.subr.mxu0 0.0
    %463 = vmatpush2.xpose.msra.mxu0 0.0
    %464 = vmatprep.subr.mxu0 0.0
    %465 = vmatpush2.xpose.msra.mxu0 0.0
    %466 = vmatprep.subr.mxu0 0.0
    %467 = vmatpush2.xpose.msra.mxu0 0.0
    %468 = vmatprep.subr.mxu0 0.0
    %469 = vmatpush2.xpose.msra.mxu0 0.0
    %470 = vmatprep.subr.mxu0 0.0
    %471 = vmatpush2.xpose.msra.mxu0 0.0
    %472 = vmatprep.subr.mxu0 0.0
    %473 = vmatpush2.xpose.msra.mxu0 0.0
    %474 = vmatprep.subr.mxu0 0.0
    %475 = vmatpush2.xpose.msra.mxu0 0.0
    %476 = vmatprep.subr.mxu0 0.0
    %477 = vmatpush2.xpose.msra.mxu0 0.0
    %478 = vmatprep.mubr.f32.mxu0 0.0
    %479 = vmatmul.mubr.f32.gmra.mxu0 %v343
    %v480 = vpop.f32.mrf.mxu0
    %v481 = vadd.f32 0.0, %v480
    %v482 = vpop.f32.mrf.mxu0
    %483 = vmatprep.mubr.f32.mxu0 0.0
    %484 = vmatmul.mubr.f32.gmra.mxu0 %v346
    %v485 = vpop.f32.mrf.mxu0
    %v486 = vadd.f32 0.0, %v485
    %v487 = vpop.f32.mrf.mxu0
    %488 = vmatprep.mubr.f32.mxu0 0.0
    %489 = vmatmul.mubr.f32.gmra.mxu0 %v349
    %v490 = vpop.f32.mrf.mxu0
    %v491 = vadd.f32 0.0, %v490
    %v492 = vpop.f32.mrf.mxu0
    %493 = vmatprep.mubr.f32.mxu0 0.0
    %494 = vmatmul.mubr.f32.gmra.mxu0 %v352
    %v495 = vpop.f32.mrf.mxu0
    %v496 = vadd.f32 0.0, %v495
    %v497 = vpop.f32.mrf.mxu0
    %498 = vmatprep.mubr.f32.mxu0 0.0
    %499 = vmatmul.mubr.f32.gmra.mxu0 %v355
    %v500 = vpop.f32.mrf.mxu0
    %v501 = vadd.f32 0.0, %v500
    %v502 = vpop.f32.mrf.mxu0
    %503 = vmatprep.mubr.f32.mxu0 0.0
    %504 = vmatmul.mubr.f32.gmra.mxu0 %v358
    %v505 = vpop.f32.mrf.mxu0
    %v506 = vadd.f32 0.0, %v505
    %v507 = vpop.f32.mrf.mxu0
    %508 = vmatprep.mubr.f32.mxu0 0.0
    %509 = vmatmul.mubr.f32.gmra.mxu0 %v361
    %v510 = vpop.f32.mrf.mxu0
    %v511 = vadd.f32 0.0, %v510
    %v512 = vpop.f32.mrf.mxu0
    %513 = vmatprep.mubr.f32.mxu0 0.0
    %514 = vmatmul.mubr.f32.gmra.mxu0 %v364
    %v515 = vpop.f32.mrf.mxu0
    %v516 = vadd.f32 0.0, %v515
    %v517 = vpop.f32.mrf.mxu0
    %518 = vmatprep.mubr.f32.mxu0 0.0
    %519 = vmatmul.mubr.f32.gmra.mxu0 %v367
    %v520 = vpop.f32.mrf.mxu0
    %v521 = vadd.f32 0.0, %v520
    %v522 = vpop.f32.mrf.mxu0
    %523 = vmatprep.mubr.f32.mxu0 0.0
    %524 = vmatmul.mubr.f32.gmra.mxu0 %v370
    %v525 = vpop.f32.mrf.mxu0
    %v526 = vadd.f32 0.0, %v525
    %v527 = vpop.f32.mrf.mxu0
    %528 = vmatprep.mubr.f32.mxu0 0.0
    %529 = vmatmul.mubr.f32.gmra.mxu0 %v373
    %v530 = vpop.f32.mrf.mxu0
    %v531 = vadd.f32 0.0, %v530
    %v532 = vpop.f32.mrf.mxu0
    %533 = vmatprep.mubr.f32.mxu0 0.0
    %534 = vmatmul.mubr.f32.gmra.mxu0 %v376
    %v535 = vpop.f32.mrf.mxu0
    %v536 = vadd.f32 0.0, %v535
    %v537 = vpop.f32.mrf.mxu0
    %538 = vmatprep.mubr.f32.mxu0 0.0
    %539 = vmatmul.mubr.f32.gmra.mxu0 %v379
    %v540 = vpop.f32.mrf.mxu0
    %v541 = vadd.f32 0.0, %v540
    %v542 = vpop.f32.mrf.mxu0
    %543 = vmatprep.mubr.f32.mxu0 0.0
    %544 = vmatmul.mubr.f32.gmra.mxu0 %v382
    %v545 = vpop.f32.mrf.mxu0
    %v546 = vadd.f32 0.0, %v545
    %v547 = vpop.f32.mrf.mxu0
    %548 = vmatprep.mubr.f32.mxu0 0.0
    %549 = vmatmul.mubr.f32.gmra.mxu0 %v385
    %v550 = vpop.f32.mrf.mxu0
    %v551 = vadd.f32 0.0, %v550
    %v552 = vpop.f32.mrf.mxu0
    %553 = vmatprep.mubr.f32.mxu0 0.0
    %554 = vmatmul.mubr.f32.gmra.mxu0 %v388
    %v555 = vpop.f32.mrf.mxu0
    %v556 = vadd.f32 0.0, %v555
    %v557 = vpop.f32.mrf.mxu0
    %558 = vdwg.mxu0
    %v559 = vmul.f32 %v481, 0.25
    %v560 = vmul.f32 %v486, 0.25
    %v561 = vmul.f32 %v491, 0.25
    %v562 = vmul.f32 %v496, 0.25
    %v563 = vmul.f32 %v501, 0.25
    %v564 = vmul.f32 %v506, 0.25
    %v565 = vmul.f32 %v511, 0.25
    %v566 = vmul.f32 %v516, 0.25
    %v567 = vmul.f32 %v521, 0.25
    %v568 = vmul.f32 %v526, 0.25
    %v569 = vmul.f32 %v531, 0.25
    %v570 = vmul.f32 %v536, 0.25
    %v571 = vmul.f32 %v541, 0.25
    %v572 = vmul.f32 %v546, 0.25
    %v573 = vmul.f32 %v551, 0.25
    %v574 = vmul.f32 %v556, 0.25
    %v575 = vld [vmem:[%s11] sm:$0x1]
    %vm576 = vcmp.eq.f32.partialorder %v575, 0.0
    %v577 = vsel %vm576, 1, 0
    %v578 = vlaneseq
    %v579 = vshrl.u32 %v578, 7
    %v580 = vsub.s32 0, %v579
    %v581 = vrot.slane %v577, %v580
    %vm582 = vcmp.eq.s32.totalorder %v581, 1
    %v583 = vsel %vm582, -1e+09, %v559
    %v584 = vsel %vm582, -1e+09, %v560
    %v585 = vsel %vm582, -1e+09, %v561
    %v586 = vsel %vm582, -1e+09, %v562
    %v587 = vsel %vm582, -1e+09, %v563
    %v588 = vsel %vm582, -1e+09, %v564
    %v589 = vsel %vm582, -1e+09, %v565
    %v590 = vsel %vm582, -1e+09, %v566
    %v591 = vsel %vm582, -1e+09, %v567
    %v592 = vsel %vm582, -1e+09, %v568
    %v593 = vsel %vm582, -1e+09, %v569
    %v594 = vsel %vm582, -1e+09, %v570
    %v595 = vsel %vm582, -1e+09, %v571
    %v596 = vsel %vm582, -1e+09, %v572
    %v597 = vsel %vm582, -1e+09, %v573
    %v598 = vsel %vm582, -1e+09, %v574
    %vm599 = vcmask 523264
    %v600 = vsel %vm599, %v583, -inf
    %601 = vmax.xlane.f32.xlu0 %v600
    %v602 = vpop.xlane.xlu0 %601
    %v603 = vsel %vm599, %v584, -inf
    %604 = vmax.xlane.f32.xlu0 %v603
    %v605 = vpop.xlane.xlu0 %604
    %v606 = vsel %vm599, %v585, -inf
    %607 = vmax.xlane.f32.xlu0 %v606
    %v608 = vpop.xlane.xlu0 %607
    %v609 = vsel %vm599, %v586, -inf
    %610 = vmax.xlane.f32.xlu0 %v609
    %v611 = vpop.xlane.xlu0 %610
    %v612 = vsel %vm599, %v587, -inf
    %613 = vmax.xlane.f32.xlu0 %v612
    %v614 = vpop.xlane.xlu0 %613
    %v615 = vsel %vm599, %v588, -inf
    %616 = vmax.xlane.f32.xlu0 %v615
    %v617 = vpop.xlane.xlu0 %616
    %v618 = vsel %vm599, %v589, -inf
    %619 = vmax.xlane.f32.xlu0 %v618
    %v620 = vpop.xlane.xlu0 %619
    %v621 = vsel %vm599, %v590, -inf
    %622 = vmax.xlane.f32.xlu0 %v621
    %v623 = vpop.xlane.xlu0 %622
    %v624 = vsel %vm599, %v591, -inf
    %625 = vmax.xlane.f32.xlu0 %v624
    %v626 = vpop.xlane.xlu0 %625
    %v627 = vsel %vm599, %v592, -inf
    %628 = vmax.xlane.f32.xlu0 %v627
    %v629 = vpop.xlane.xlu0 %628
    %v630 = vsel %vm599, %v593, -inf
    %631 = vmax.xlane.f32.xlu0 %v630
    %v632 = vpop.xlane.xlu0 %631
    %v633 = vsel %vm599, %v594, -inf
    %634 = vmax.xlane.f32.xlu0 %v633
    %v635 = vpop.xlane.xlu0 %634
    %v636 = vsel %vm599, %v595, -inf
    %637 = vmax.xlane.f32.xlu0 %v636
    %v638 = vpop.xlane.xlu0 %637
    %v639 = vsel %vm599, %v596, -inf
    %640 = vmax.xlane.f32.xlu0 %v639
    %v641 = vpop.xlane.xlu0 %640
    %v642 = vsel %vm599, %v597, -inf
    %643 = vmax.xlane.f32.xlu0 %v642
    %v644 = vpop.xlane.xlu0 %643
    %v645 = vsel %vm599, %v598, -inf
    %646 = vmax.xlane.f32.xlu0 %v645
    %v647 = vpop.xlane.xlu0 %646
    %v648 = vsub.f32 %v583, %v602
    %v649 = vsub.f32 %v584, %v605
    %v650 = vsub.f32 %v585, %v608
    %v651 = vsub.f32 %v586, %v611
    %v652 = vsub.f32 %v587, %v614
    %v653 = vsub.f32 %v588, %v617
    %v654 = vsub.f32 %v589, %v620
    %v655 = vsub.f32 %v590, %v623
    %v656 = vsub.f32 %v591, %v626
    %v657 = vsub.f32 %v592, %v629
    %v658 = vsub.f32 %v593, %v632
    %v659 = vsub.f32 %v594, %v635
    %v660 = vsub.f32 %v595, %v638
    %v661 = vsub.f32 %v596, %v641
    %v662 = vsub.f32 %v597, %v644
    %v663 = vsub.f32 %v598, %v647
    %v664 = vmul.f32 %v648, 1.442695
    %v665 = vpow.pop %v664
    %v666 = vmul.f32 %v649, 1.442695
    %v667 = vpow.pop %v666
    %v668 = vmul.f32 %v650, 1.442695
    %v669 = vpow.pop %v668
    %v670 = vmul.f32 %v651, 1.442695
    %v671 = vpow.pop %v670
    %v672 = vmul.f32 %v652, 1.442695
    %v673 = vpow.pop %v672
    %v674 = vmul.f32 %v653, 1.442695
    %v675 = vpow.pop %v674
    %v676 = vmul.f32 %v654, 1.442695
    %v677 = vpow.pop %v676
    %v678 = vmul.f32 %v655, 1.442695
    %v679 = vpow.pop %v678
    %v680 = vmul.f32 %v656, 1.442695
    %v681 = vpow.pop %v680
    %v682 = vmul.f32 %v657, 1.442695
    %v683 = vpow.pop %v682
    %v684 = vmul.f32 %v658, 1.442695
    %v685 = vpow.pop %v684
    %v686 = vmul.f32 %v659, 1.442695
    %v687 = vpow.pop %v686
    %v688 = vmul.f32 %v660, 1.442695
    %v689 = vpow.pop %v688
    %v690 = vmul.f32 %v661, 1.442695
    %v691 = vpow.pop %v690
    %v692 = vmul.f32 %v662, 1.442695
    %v693 = vpow.pop %v692
    %v694 = vmul.f32 %v663, 1.442695
    %v695 = vpow.pop %v694
    %v696 = vld [vmem:[%s13] sm:$0xff]
    %v697 = vld [vmem:[%s13 + $0x8] sm:$0xff]
    %v698 = vld [vmem:[%s13 + $0x10] sm:$0xff]
    %v699 = vld [vmem:[%s13 + $0x18] sm:$0xff]
    %v700 = vld [vmem:[%s13 + $0x20] sm:$0xff]
    %v701 = vld [vmem:[%s13 + $0x28] sm:$0xff]
    %v702 = vld [vmem:[%s13 + $0x30] sm:$0xff]
    %v703 = vld [vmem:[%s13 + $0x38] sm:$0xff]
    %v705 = vsel %vm599, %v665, 0
    %v708 = vsel %vm599, %v667, 0
    %v711 = vsel %vm599, %v669, 0
    %v714 = vsel %vm599, %v671, 0
    %v717 = vsel %vm599, %v673, 0
    %v720 = vsel %vm599, %v675, 0
    %v723 = vsel %vm599, %v677, 0
    %v726 = vsel %vm599, %v679, 0
    %v729 = vsel %vm599, %v681, 0
    %v732 = vsel %vm599, %v683, 0
    %v735 = vsel %vm599, %v685, 0
    %v738 = vsel %vm599, %v687, 0
    %v741 = vsel %vm599, %v689, 0
    %v744 = vsel %vm599, %v691, 0
    %v747 = vsel %vm599, %v693, 0
    %v750 = vsel %vm599, %v695, 0
    %752 = vmatprep.subr.mxu0 0.0
    %753 = vmatpush1.msra.mxu0 0.0
    %754 = vmatprep.subr.mxu0 0.0
    %755 = vmatpush1.msra.mxu0 0.0
    %756 = vmatprep.subr.mxu0 0.0
    %757 = vmatpush1.msra.mxu0 0.0
    %758 = vmatprep.subr.mxu0 0.0
    %759 = vmatpush1.msra.mxu0 0.0
    %760 = vmatprep.subr.mxu0 0.0
    %761 = vmatpush1.msra.mxu0 0.0
    %762 = vmatprep.subr.mxu0 0.0
    %763 = vmatpush1.msra.mxu0 0.0
    %764 = vmatprep.subr.mxu0 0.0
    %765 = vmatpush1.msra.mxu0 0.0
    %766 = vmatprep.subr.mxu0 0.0
    %767 = vmatpush1.msra.mxu0 0.0
    %768 = vmatprep.subr.mxu0 0.0
    %769 = vmatpush1.msra.mxu0 %v703
    %770 = vmatprep.subr.mxu0 0.0
    %771 = vmatpush1.msra.mxu0 %v702
    %772 = vmatprep.subr.mxu0 0.0
    %773 = vmatpush1.msra.mxu0 %v701
    %774 = vmatprep.subr.mxu0 0.0
    %775 = vmatpush1.msra.mxu0 %v700
    %776 = vmatprep.subr.mxu0 0.0
    %777 = vmatpush1.msra.mxu0 %v699
    %778 = vmatprep.subr.mxu0 0.0
    %779 = vmatpush1.msra.mxu0 %v698
    %780 = vmatprep.subr.mxu0 0.0
    %781 = vmatpush1.msra.mxu0 %v697
    %782 = vmatprep.subr.mxu0 0.0
    %783 = vmatpush1.msra.mxu0 %v696
    %784 = vmatprep.subr.mxu0 0.0
    %785 = vmatpush2.msra.mxu0 0.0
    %786 = vmatprep.subr.mxu0 0.0
    %787 = vmatpush2.msra.mxu0 0.0
    %788 = vmatprep.subr.mxu0 0.0
    %789 = vmatpush2.msra.mxu0 0.0
    %790 = vmatprep.subr.mxu0 0.0
    %791 = vmatpush2.msra.mxu0 0.0
    %792 = vmatprep.subr.mxu0 0.0
    %793 = vmatpush2.msra.mxu0 0.0
    %794 = vmatprep.subr.mxu0 0.0
    %795 = vmatpush2.msra.mxu0 0.0
    %796 = vmatprep.subr.mxu0 0.0
    %797 = vmatpush2.msra.mxu0 0.0
    %798 = vmatprep.subr.mxu0 0.0
    %799 = vmatpush2.msra.mxu0 0.0
    %800 = vmatprep.subr.mxu0 0.0
    %801 = vmatpush2.msra.mxu0 0.0
    %802 = vmatprep.subr.mxu0 0.0
    %803 = vmatpush2.msra.mxu0 0.0
    %804 = vmatprep.subr.mxu0 0.0
    %805 = vmatpush2.msra.mxu0 0.0
    %806 = vmatprep.subr.mxu0 0.0
    %807 = vmatpush2.msra.mxu0 0.0
    %808 = vmatprep.subr.mxu0 0.0
    %809 = vmatpush2.msra.mxu0 0.0
    %810 = vmatprep.subr.mxu0 0.0
    %811 = vmatpush2.msra.mxu0 0.0
    %812 = vmatprep.subr.mxu0 0.0
    %813 = vmatpush2.msra.mxu0 0.0
    %814 = vmatprep.subr.mxu0 0.0
    %815 = vmatpush2.msra.mxu0 0.0
    %816 = vmatprep.mubr.f32.mxu0 0.0
    %817 = vmatmul.mubr.f32.gmra.mxu0 %v705
    %v818 = vpop.f32.mrf.mxu0
    %v819 = vadd.f32 0.0, %v818
    %v820 = vpop.f32.mrf.mxu0
    %821 = vmatprep.mubr.f32.mxu0 0.0
    %822 = vmatmul.mubr.f32.gmra.mxu0 %v708
    %v823 = vpop.f32.mrf.mxu0
    %v824 = vadd.f32 0.0, %v823
    %v825 = vpop.f32.mrf.mxu0
    %826 = vmatprep.mubr.f32.mxu0 0.0
    %827 = vmatmul.mubr.f32.gmra.mxu0 %v711
    %v828 = vpop.f32.mrf.mxu0
    %v829 = vadd.f32 0.0, %v828
    %v830 = vpop.f32.mrf.mxu0
    %831 = vmatprep.mubr.f32.mxu0 0.0
    %832 = vmatmul.mubr.f32.gmra.mxu0 %v714
    %v833 = vpop.f32.mrf.mxu0
    %v834 = vadd.f32 0.0, %v833
    %v835 = vpop.f32.mrf.mxu0
    %836 = vmatprep.mubr.f32.mxu0 0.0
    %837 = vmatmul.mubr.f32.gmra.mxu0 %v717
    %v838 = vpop.f32.mrf.mxu0
    %v839 = vadd.f32 0.0, %v838
    %v840 = vpop.f32.mrf.mxu0
    %841 = vmatprep.mubr.f32.mxu0 0.0
    %842 = vmatmul.mubr.f32.gmra.mxu0 %v720
    %v843 = vpop.f32.mrf.mxu0
    %v844 = vadd.f32 0.0, %v843
    %v845 = vpop.f32.mrf.mxu0
    %846 = vmatprep.mubr.f32.mxu0 0.0
    %847 = vmatmul.mubr.f32.gmra.mxu0 %v723
    %v848 = vpop.f32.mrf.mxu0
    %v849 = vadd.f32 0.0, %v848
    %v850 = vpop.f32.mrf.mxu0
    %851 = vmatprep.mubr.f32.mxu0 0.0
    %852 = vmatmul.mubr.f32.gmra.mxu0 %v726
    %v853 = vpop.f32.mrf.mxu0
    %v854 = vadd.f32 0.0, %v853
    %v855 = vpop.f32.mrf.mxu0
    %856 = vmatprep.mubr.f32.mxu0 0.0
    %857 = vmatmul.mubr.f32.gmra.mxu0 %v729
    %v858 = vpop.f32.mrf.mxu0
    %v859 = vadd.f32 0.0, %v858
    %v860 = vpop.f32.mrf.mxu0
    %861 = vmatprep.mubr.f32.mxu0 0.0
    %862 = vmatmul.mubr.f32.gmra.mxu0 %v732
    %v863 = vpop.f32.mrf.mxu0
    %v864 = vadd.f32 0.0, %v863
    %v865 = vpop.f32.mrf.mxu0
    %866 = vmatprep.mubr.f32.mxu0 0.0
    %867 = vmatmul.mubr.f32.gmra.mxu0 %v735
    %v868 = vpop.f32.mrf.mxu0
    %v869 = vadd.f32 0.0, %v868
    %v870 = vpop.f32.mrf.mxu0
    %871 = vmatprep.mubr.f32.mxu0 0.0
    %872 = vmatmul.mubr.f32.gmra.mxu0 %v738
    %v873 = vpop.f32.mrf.mxu0
    %v874 = vadd.f32 0.0, %v873
    %v875 = vpop.f32.mrf.mxu0
    %876 = vmatprep.mubr.f32.mxu0 0.0
    %877 = vmatmul.mubr.f32.gmra.mxu0 %v741
    %v878 = vpop.f32.mrf.mxu0
    %v879 = vadd.f32 0.0, %v878
    %v880 = vpop.f32.mrf.mxu0
    %881 = vmatprep.mubr.f32.mxu0 0.0
    %882 = vmatmul.mubr.f32.gmra.mxu0 %v744
    %v883 = vpop.f32.mrf.mxu0
    %v884 = vadd.f32 0.0, %v883
    %v885 = vpop.f32.mrf.mxu0
    %886 = vmatprep.mubr.f32.mxu0 0.0
    %887 = vmatmul.mubr.f32.gmra.mxu0 %v747
    %v888 = vpop.f32.mrf.mxu0
    %v889 = vadd.f32 0.0, %v888
    %v890 = vpop.f32.mrf.mxu0
    %891 = vmatprep.mubr.f32.mxu0 0.0
    %892 = vmatmul.mubr.f32.gmra.mxu0 %v750
    %v893 = vpop.f32.mrf.mxu0
    %v894 = vadd.f32 0.0, %v893
    %v895 = vpop.f32.mrf.mxu0
    %896 = vdwg.mxu0
    %v897 = vld [vmem:[%s9] sm:$0x1]
    %v899 = vlaneseq
    %v900 = vshrl.u32 %v899, 7
    %v901 = vsub.s32 0, %v900
    %v902 = vrot.slane %v897, %v901
    %v904 = vmul.f32 %v665, %v902
    %v905 = vmul.f32 %v667, %v902
    %v906 = vmul.f32 %v669, %v902
    %v907 = vmul.f32 %v671, %v902
    %v908 = vmul.f32 %v673, %v902
    %v909 = vmul.f32 %v675, %v902
    %v910 = vmul.f32 %v677, %v902
    %v911 = vmul.f32 %v679, %v902
    %v912 = vmul.f32 %v681, %v902
    %v913 = vmul.f32 %v683, %v902
    %v914 = vmul.f32 %v685, %v902
    %v915 = vmul.f32 %v687, %v902
    %v916 = vmul.f32 %v689, %v902
    %v917 = vmul.f32 %v691, %v902
    %v918 = vmul.f32 %v693, %v902
    %v919 = vmul.f32 %v695, %v902
    %v921 = vsel %vm599, %v904, 0
    %v924 = vsel %vm599, %v905, 0
    %v927 = vsel %vm599, %v906, 0
    %v930 = vsel %vm599, %v907, 0
    %v933 = vsel %vm599, %v908, 0
    %v936 = vsel %vm599, %v909, 0
    %v939 = vsel %vm599, %v910, 0
    %v942 = vsel %vm599, %v911, 0
    %v945 = vsel %vm599, %v912, 0
    %v948 = vsel %vm599, %v913, 0
    %v951 = vsel %vm599, %v914, 0
    %v954 = vsel %vm599, %v915, 0
    %v957 = vsel %vm599, %v916, 0
    %v960 = vsel %vm599, %v917, 0
    %v963 = vsel %vm599, %v918, 0
    %v966 = vsel %vm599, %v919, 0
    %968 = vmatprep.subr.mxu0 0.0
    %969 = vmatpush1.msra.mxu0 0.0
    %970 = vmatprep.subr.mxu0 0.0
    %971 = vmatpush1.msra.mxu0 0.0
    %972 = vmatprep.subr.mxu0 0.0
    %973 = vmatpush1.msra.mxu0 0.0
    %974 = vmatprep.subr.mxu0 0.0
    %975 = vmatpush1.msra.mxu0 0.0
    %976 = vmatprep.subr.mxu0 0.0
    %977 = vmatpush1.msra.mxu0 0.0
    %978 = vmatprep.subr.mxu0 0.0
    %979 = vmatpush1.msra.mxu0 0.0
    %980 = vmatprep.subr.mxu0 0.0
    %981 = vmatpush1.msra.mxu0 0.0
    %982 = vmatprep.subr.mxu0 0.0
    %983 = vmatpush1.msra.mxu0 0.0
    %984 = vmatprep.subr.mxu0 0.0
    %985 = vmatpush1.msra.mxu0 %v703
    %986 = vmatprep.subr.mxu0 0.0
    %987 = vmatpush1.msra.mxu0 %v702
    %988 = vmatprep.subr.mxu0 0.0
    %989 = vmatpush1.msra.mxu0 %v701
    %990 = vmatprep.subr.mxu0 0.0
    %991 = vmatpush1.msra.mxu0 %v700
    %992 = vmatprep.subr.mxu0 0.0
    %993 = vmatpush1.msra.mxu0 %v699
    %994 = vmatprep.subr.mxu0 0.0
    %995 = vmatpush1.msra.mxu0 %v698
    %996 = vmatprep.subr.mxu0 0.0
    %997 = vmatpush1.msra.mxu0 %v697
    %998 = vmatprep.subr.mxu0 0.0
    %999 = vmatpush1.msra.mxu0 %v696
    %1000 = vmatprep.subr.mxu0 0.0
    %1001 = vmatpush2.msra.mxu0 0.0
    %1002 = vmatprep.subr.mxu0 0.0
    %1003 = vmatpush2.msra.mxu0 0.0
    %1004 = vmatprep.subr.mxu0 0.0
    %1005 = vmatpush2.msra.mxu0 0.0
    %1006 = vmatprep.subr.mxu0 0.0
    %1007 = vmatpush2.msra.mxu0 0.0
    %1008 = vmatprep.subr.mxu0 0.0
    %1009 = vmatpush2.msra.mxu0 0.0
    %1010 = vmatprep.subr.mxu0 0.0
    %1011 = vmatpush2.msra.mxu0 0.0
    %1012 = vmatprep.subr.mxu0 0.0
    %1013 = vmatpush2.msra.mxu0 0.0
    %1014 = vmatprep.subr.mxu0 0.0
    %1015 = vmatpush2.msra.mxu0 0.0
    %1016 = vmatprep.subr.mxu0 0.0
    %1017 = vmatpush2.msra.mxu0 0.0
    %1018 = vmatprep.subr.mxu0 0.0
    %1019 = vmatpush2.msra.mxu0 0.0
    %1020 = vmatprep.subr.mxu0 0.0
    %1021 = vmatpush2.msra.mxu0 0.0
    %1022 = vmatprep.subr.mxu0 0.0
    %1023 = vmatpush2.msra.mxu0 0.0
    %1024 = vmatprep.subr.mxu0 0.0
    %1025 = vmatpush2.msra.mxu0 0.0
    %1026 = vmatprep.subr.mxu0 0.0
    %1027 = vmatpush2.msra.mxu0 0.0
    %1028 = vmatprep.subr.mxu0 0.0
    %1029 = vmatpush2.msra.mxu0 0.0
    %1030 = vmatprep.subr.mxu0 0.0
    %1031 = vmatpush2.msra.mxu0 0.0
    %1032 = vmatprep.mubr.f32.mxu0 0.0
    %1033 = vmatmul.mubr.f32.gmra.mxu0 %v921
    %v1034 = vpop.f32.mrf.mxu0
    %v1035 = vadd.f32 0.0, %v1034
    %v1036 = vpop.f32.mrf.mxu0
    %1037 = vmatprep.mubr.f32.mxu0 0.0
    %1038 = vmatmul.mubr.f32.gmra.mxu0 %v924
    %v1039 = vpop.f32.mrf.mxu0
    %v1040 = vadd.f32 0.0, %v1039
    %v1041 = vpop.f32.mrf.mxu0
    %1042 = vmatprep.mubr.f32.mxu0 0.0
    %1043 = vmatmul.mubr.f32.gmra.mxu0 %v927
    %v1044 = vpop.f32.mrf.mxu0
    %v1045 = vadd.f32 0.0, %v1044
    %v1046 = vpop.f32.mrf.mxu0
    %1047 = vmatprep.mubr.f32.mxu0 0.0
    %1048 = vmatmul.mubr.f32.gmra.mxu0 %v930
    %v1049 = vpop.f32.mrf.mxu0
    %v1050 = vadd.f32 0.0, %v1049
    %v1051 = vpop.f32.mrf.mxu0
    %1052 = vmatprep.mubr.f32.mxu0 0.0
    %1053 = vmatmul.mubr.f32.gmra.mxu0 %v933
    %v1054 = vpop.f32.mrf.mxu0
    %v1055 = vadd.f32 0.0, %v1054
    %v1056 = vpop.f32.mrf.mxu0
    %1057 = vmatprep.mubr.f32.mxu0 0.0
    %1058 = vmatmul.mubr.f32.gmra.mxu0 %v936
    %v1059 = vpop.f32.mrf.mxu0
    %v1060 = vadd.f32 0.0, %v1059
    %v1061 = vpop.f32.mrf.mxu0
    %1062 = vmatprep.mubr.f32.mxu0 0.0
    %1063 = vmatmul.mubr.f32.gmra.mxu0 %v939
    %v1064 = vpop.f32.mrf.mxu0
    %v1065 = vadd.f32 0.0, %v1064
    %v1066 = vpop.f32.mrf.mxu0
    %1067 = vmatprep.mubr.f32.mxu0 0.0
    %1068 = vmatmul.mubr.f32.gmra.mxu0 %v942
    %v1069 = vpop.f32.mrf.mxu0
    %v1070 = vadd.f32 0.0, %v1069
    %v1071 = vpop.f32.mrf.mxu0
    %1072 = vmatprep.mubr.f32.mxu0 0.0
    %1073 = vmatmul.mubr.f32.gmra.mxu0 %v945
    %v1074 = vpop.f32.mrf.mxu0
    %v1075 = vadd.f32 0.0, %v1074
    %v1076 = vpop.f32.mrf.mxu0
    %1077 = vmatprep.mubr.f32.mxu0 0.0
    %1078 = vmatmul.mubr.f32.gmra.mxu0 %v948
    %v1079 = vpop.f32.mrf.mxu0
    %v1080 = vadd.f32 0.0, %v1079
    %v1081 = vpop.f32.mrf.mxu0
    %1082 = vmatprep.mubr.f32.mxu0 0.0
    %1083 = vmatmul.mubr.f32.gmra.mxu0 %v951
    %v1084 = vpop.f32.mrf.mxu0
    %v1085 = vadd.f32 0.0, %v1084
    %v1086 = vpop.f32.mrf.mxu0
    %1087 = vmatprep.mubr.f32.mxu0 0.0
    %1088 = vmatmul.mubr.f32.gmra.mxu0 %v954
    %v1089 = vpop.f32.mrf.mxu0
    %v1090 = vadd.f32 0.0, %v1089
    %v1091 = vpop.f32.mrf.mxu0
    %1092 = vmatprep.mubr.f32.mxu0 0.0
    %1093 = vmatmul.mubr.f32.gmra.mxu0 %v957
    %v1094 = vpop.f32.mrf.mxu0
    %v1095 = vadd.f32 0.0, %v1094
    %v1096 = vpop.f32.mrf.mxu0
    %1097 = vmatprep.mubr.f32.mxu0 0.0
    %1098 = vmatmul.mubr.f32.gmra.mxu0 %v960
    %v1099 = vpop.f32.mrf.mxu0
    %v1100 = vadd.f32 0.0, %v1099
    %v1101 = vpop.f32.mrf.mxu0
    %1102 = vmatprep.mubr.f32.mxu0 0.0
    %1103 = vmatmul.mubr.f32.gmra.mxu0 %v963
    %v1104 = vpop.f32.mrf.mxu0
    %v1105 = vadd.f32 0.0, %v1104
    %v1106 = vpop.f32.mrf.mxu0
    %1107 = vmatprep.mubr.f32.mxu0 0.0
    %1108 = vmatmul.mubr.f32.gmra.mxu0 %v966
    %v1109 = vpop.f32.mrf.mxu0
    %v1110 = vadd.f32 0.0, %v1109
    %v1111 = vpop.f32.mrf.mxu0
    %1112 = vdwg.mxu0
    %v1113 = vsel %vm599, %v897, 0
    %1115 = vmatprep.subr.mxu0 0.0
    %1116 = vmatpush1.msra.mxu0 0.0
    %1117 = vmatprep.subr.mxu0 0.0
    %1118 = vmatpush1.msra.mxu0 0.0
    %1119 = vmatprep.subr.mxu0 0.0
    %1120 = vmatpush1.msra.mxu0 0.0
    %1121 = vmatprep.subr.mxu0 0.0
    %1122 = vmatpush1.msra.mxu0 0.0
    %1123 = vmatprep.subr.mxu0 0.0
    %1124 = vmatpush1.msra.mxu0 0.0
    %1125 = vmatprep.subr.mxu0 0.0
    %1126 = vmatpush1.msra.mxu0 0.0
    %1127 = vmatprep.subr.mxu0 0.0
    %1128 = vmatpush1.msra.mxu0 0.0
    %1129 = vmatprep.subr.mxu0 0.0
    %1130 = vmatpush1.msra.mxu0 0.0
    %1131 = vmatprep.subr.mxu0 0.0
    %1132 = vmatpush1.msra.mxu0 %v703
    %1133 = vmatprep.subr.mxu0 0.0
    %1134 = vmatpush1.msra.mxu0 %v702
    %1135 = vmatprep.subr.mxu0 0.0
    %1136 = vmatpush1.msra.mxu0 %v701
    %1137 = vmatprep.subr.mxu0 0.0
    %1138 = vmatpush1.msra.mxu0 %v700
    %1139 = vmatprep.subr.mxu0 0.0
    %1140 = vmatpush1.msra.mxu0 %v699
    %1141 = vmatprep.subr.mxu0 0.0
    %1142 = vmatpush1.msra.mxu0 %v698
    %1143 = vmatprep.subr.mxu0 0.0
    %1144 = vmatpush1.msra.mxu0 %v697
    %1145 = vmatprep.subr.mxu0 0.0
    %1146 = vmatpush1.msra.mxu0 %v696
    %1147 = vmatprep.subr.mxu0 0.0
    %1148 = vmatpush2.msra.mxu0 0.0
    %1149 = vmatprep.subr.mxu0 0.0
    %1150 = vmatpush2.msra.mxu0 0.0
    %1151 = vmatprep.subr.mxu0 0.0
    %1152 = vmatpush2.msra.mxu0 0.0
    %1153 = vmatprep.subr.mxu0 0.0
    %1154 = vmatpush2.msra.mxu0 0.0
    %1155 = vmatprep.subr.mxu0 0.0
    %1156 = vmatpush2.msra.mxu0 0.0
    %1157 = vmatprep.subr.mxu0 0.0
    %1158 = vmatpush2.msra.mxu0 0.0
    %1159 = vmatprep.subr.mxu0 0.0
    %1160 = vmatpush2.msra.mxu0 0.0
    %1161 = vmatprep.subr.mxu0 0.0
    %1162 = vmatpush2.msra.mxu0 0.0
    %1163 = vmatprep.subr.mxu0 0.0
    %1164 = vmatpush2.msra.mxu0 0.0
    %1165 = vmatprep.subr.mxu0 0.0
    %1166 = vmatpush2.msra.mxu0 0.0
    %1167 = vmatprep.subr.mxu0 0.0
    %1168 = vmatpush2.msra.mxu0 0.0
    %1169 = vmatprep.subr.mxu0 0.0
    %1170 = vmatpush2.msra.mxu0 0.0
    %1171 = vmatprep.subr.mxu0 0.0
    %1172 = vmatpush2.msra.mxu0 0.0
    %1173 = vmatprep.subr.mxu0 0.0
    %1174 = vmatpush2.msra.mxu0 0.0
    %1175 = vmatprep.subr.mxu0 0.0
    %1176 = vmatpush2.msra.mxu0 0.0
    %1177 = vmatprep.subr.mxu0 0.0
    %1178 = vmatpush2.msra.mxu0 0.0
    %1179 = vmatprep.mubr.f32.mxu0 0.0
    %1180 = vmatmul.mubr.f32.gmra.mxu0 %v1113
    %v1181 = vpop.f32.mrf.mxu0
    %v1182 = vadd.f32 0.0, %v1181
    %v1183 = vpop.f32.mrf.mxu0
    %1184 = vdwg.mxu0
    %v1185 = vmul.f32 %v1182, 0.125
    %v1186 = vlaneseq
    %v1187 = vshrl.u32 %v1186, 7
    %v1188 = vsub.s32 0, %v1187
    %v1189 = vrot.slane %v1185, %v1188
    %vm1190 = vcmp.gt.f32.partialorder %v819, 0.0
    %vm1191 = vcmp.gt.f32.partialorder %v824, 0.0
    %vm1192 = vcmp.gt.f32.partialorder %v829, 0.0
    %vm1193 = vcmp.gt.f32.partialorder %v834, 0.0
    %vm1194 = vcmp.gt.f32.partialorder %v839, 0.0
    %vm1195 = vcmp.gt.f32.partialorder %v844, 0.0
    %vm1196 = vcmp.gt.f32.partialorder %v849, 0.0
    %vm1197 = vcmp.gt.f32.partialorder %v854, 0.0
    %vm1198 = vcmp.gt.f32.partialorder %v859, 0.0
    %vm1199 = vcmp.gt.f32.partialorder %v864, 0.0
    %vm1200 = vcmp.gt.f32.partialorder %v869, 0.0
    %vm1201 = vcmp.gt.f32.partialorder %v874, 0.0
    %vm1202 = vcmp.gt.f32.partialorder %v879, 0.0
    %vm1203 = vcmp.gt.f32.partialorder %v884, 0.0
    %vm1204 = vcmp.gt.f32.partialorder %v889, 0.0
    %vm1205 = vcmp.gt.f32.partialorder %v894, 0.0
    %v1206 = vsel %vm1190, %v819, 1.0
    %v1207 = vsel %vm1191, %v824, 1.0
    %v1208 = vsel %vm1192, %v829, 1.0
    %v1209 = vsel %vm1193, %v834, 1.0
    %v1210 = vsel %vm1194, %v839, 1.0
    %v1211 = vsel %vm1195, %v844, 1.0
    %v1212 = vsel %vm1196, %v849, 1.0
    %v1213 = vsel %vm1197, %v854, 1.0
    %v1214 = vsel %vm1198, %v859, 1.0
    %v1215 = vsel %vm1199, %v864, 1.0
    %v1216 = vsel %vm1200, %v869, 1.0
    %v1217 = vsel %vm1201, %v874, 1.0
    %v1218 = vsel %vm1202, %v879, 1.0
    %v1219 = vsel %vm1203, %v884, 1.0
    %v1220 = vsel %vm1204, %v889, 1.0
    %v1221 = vsel %vm1205, %v894, 1.0
    %v1222 = vrcp.pop %v1206
    %v1223 = vmul.f32 %v1035, %v1222
    %v1224 = vrcp.pop %v1207
    %v1225 = vmul.f32 %v1040, %v1224
    %v1226 = vrcp.pop %v1208
    %v1227 = vmul.f32 %v1045, %v1226
    %v1228 = vrcp.pop %v1209
    %v1229 = vmul.f32 %v1050, %v1228
    %v1230 = vrcp.pop %v1210
    %v1231 = vmul.f32 %v1055, %v1230
    %v1232 = vrcp.pop %v1211
    %v1233 = vmul.f32 %v1060, %v1232
    %v1234 = vrcp.pop %v1212
    %v1235 = vmul.f32 %v1065, %v1234
    %v1236 = vrcp.pop %v1213
    %v1237 = vmul.f32 %v1070, %v1236
    %v1238 = vrcp.pop %v1214
    %v1239 = vmul.f32 %v1075, %v1238
    %v1240 = vrcp.pop %v1215
    %v1241 = vmul.f32 %v1080, %v1240
    %v1242 = vrcp.pop %v1216
    %v1243 = vmul.f32 %v1085, %v1242
    %v1244 = vrcp.pop %v1217
    %v1245 = vmul.f32 %v1090, %v1244
    %v1246 = vrcp.pop %v1218
    %v1247 = vmul.f32 %v1095, %v1246
    %v1248 = vrcp.pop %v1219
    %v1249 = vmul.f32 %v1100, %v1248
    %v1250 = vrcp.pop %v1220
    %v1251 = vmul.f32 %v1105, %v1250
    %v1252 = vrcp.pop %v1221
    %v1253 = vmul.f32 %v1110, %v1252
    %v1254 = vsel %vm1190, %v1223, %v1189
    %v1255 = vsel %vm1191, %v1225, %v1189
    %v1256 = vsel %vm1192, %v1227, %v1189
    %v1257 = vsel %vm1193, %v1229, %v1189
    %v1258 = vsel %vm1194, %v1231, %v1189
    %v1259 = vsel %vm1195, %v1233, %v1189
    %v1260 = vsel %vm1196, %v1235, %v1189
    %v1261 = vsel %vm1197, %v1237, %v1189
    %v1262 = vsel %vm1198, %v1239, %v1189
    %v1263 = vsel %vm1199, %v1241, %v1189
    %v1264 = vsel %vm1200, %v1243, %v1189
    %v1265 = vsel %vm1201, %v1245, %v1189
    %v1266 = vsel %vm1202, %v1247, %v1189
    %v1267 = vsel %vm1203, %v1249, %v1189
    %v1268 = vsel %vm1204, %v1251, %v1189
    %v1269 = vsel %vm1205, %v1253, %v1189
    %v1270 = vld [vmem:[#allocation2] sm:$0x1]
    %v1272 = vlaneseq
    %v1273 = vshrl.u32 %v1272, 7
    %v1274 = vsub.s32 0, %v1273
    %v1275 = vrot.slane %v1270, %v1274
    %1276 = vset.pattern.permute.xlu0 0
    %1277 = vperm.xlu0 %1276, %v1275
    %v1278 = vpop.permute.xlu0 %1277
    %v1280 = vmul.f32 %v1254, %v1278
    %v1281 = vmul.f32 %v1255, %v1278
    %v1282 = vmul.f32 %v1256, %v1278
    %v1283 = vmul.f32 %v1257, %v1278
    %v1284 = vmul.f32 %v1258, %v1278
    %v1285 = vmul.f32 %v1259, %v1278
    %v1286 = vmul.f32 %v1260, %v1278
    %v1287 = vmul.f32 %v1261, %v1278
    %v1288 = vmul.f32 %v1262, %v1278
    %v1289 = vmul.f32 %v1263, %v1278
    %v1290 = vmul.f32 %v1264, %v1278
    %v1291 = vmul.f32 %v1265, %v1278
    %v1292 = vmul.f32 %v1266, %v1278
    %v1293 = vmul.f32 %v1267, %v1278
    %v1294 = vmul.f32 %v1268, %v1278
    %v1295 = vmul.f32 %v1269, %v1278
    %vm1296 = vcmask 64512
    %v1297 = vsel %vm1296, %v1280, -inf
    %v1298 = vsel %vm1296, %v1281, -inf
    %v1299 = vsel %vm1296, %v1282, -inf
    %v1300 = vsel %vm1296, %v1283, -inf
    %v1301 = vsel %vm1296, %v1284, -inf
    %v1302 = vmax.f32 %v1297, %v1301
    %v1303 = vsel %vm1296, %v1285, -inf
    %v1304 = vmax.f32 %v1298, %v1303
    %v1305 = vsel %vm1296, %v1286, -inf
    %v1306 = vmax.f32 %v1299, %v1305
    %v1307 = vsel %vm1296, %v1287, -inf
    %v1308 = vmax.f32 %v1300, %v1307
    %v1309 = vsel %vm1296, %v1288, -inf
    %v1310 = vmax.f32 %v1302, %v1309
    %v1311 = vsel %vm1296, %v1289, -inf
    %v1312 = vmax.f32 %v1304, %v1311
    %v1313 = vsel %vm1296, %v1290, -inf
    %v1314 = vmax.f32 %v1306, %v1313
    %v1315 = vsel %vm1296, %v1291, -inf
    %v1316 = vmax.f32 %v1308, %v1315
    %v1317 = vsel %vm1296, %v1292, -inf
    %v1318 = vmax.f32 %v1310, %v1317
    %v1319 = vsel %vm1296, %v1293, -inf
    %v1320 = vmax.f32 %v1312, %v1319
    %v1321 = vsel %vm1296, %v1294, -inf
    %v1322 = vmax.f32 %v1314, %v1321
    %v1323 = vsel %vm1296, %v1295, -inf
    %v1324 = vmax.f32 %v1316, %v1323
    %v1325 = vmax.f32 %v1318, %v1320
    %v1326 = vmax.f32 %v1322, %v1324
    %v1327 = vmax.f32 %v1325, %v1326
    %v1328 = vrot.slane %v1327, 4
    %v1329 = vmax.f32 %v1327, %v1328
    %v1330 = vrot.slane %v1329, 2
    %v1331 = vmax.f32 %v1329, %v1330
    %v1332 = vrot.slane %v1331, 1
    %v1333 = vmax.f32 %v1331, %v1332
    %v1334 = vsub.f32 %v1280, %v1333
    %v1335 = vsub.f32 %v1281, %v1333
    %v1336 = vsub.f32 %v1282, %v1333
    %v1337 = vsub.f32 %v1283, %v1333
    %v1338 = vsub.f32 %v1284, %v1333
    %v1339 = vsub.f32 %v1285, %v1333
    %v1340 = vsub.f32 %v1286, %v1333
    %v1341 = vsub.f32 %v1287, %v1333
    %v1342 = vsub.f32 %v1288, %v1333
    %v1343 = vsub.f32 %v1289, %v1333
    %v1344 = vsub.f32 %v1290, %v1333
    %v1345 = vsub.f32 %v1291, %v1333
    %v1346 = vsub.f32 %v1292, %v1333
    %v1347 = vsub.f32 %v1293, %v1333
    %v1348 = vsub.f32 %v1294, %v1333
    %v1349 = vsub.f32 %v1295, %v1333
    %v1350 = vmul.f32 %v1334, 1.442695
    %v1351 = vpow.pop %v1350
    %v1352 = vmul.f32 %v1335, 1.442695
    %v1353 = vpow.pop %v1352
    %v1354 = vmul.f32 %v1336, 1.442695
    %v1355 = vpow.pop %v1354
    %v1356 = vmul.f32 %v1337, 1.442695
    %v1357 = vpow.pop %v1356
    %v1358 = vmul.f32 %v1338, 1.442695
    %v1359 = vpow.pop %v1358
    %v1360 = vmul.f32 %v1339, 1.442695
    %v1361 = vpow.pop %v1360
    %v1362 = vmul.f32 %v1340, 1.442695
    %v1363 = vpow.pop %v1362
    %v1364 = vmul.f32 %v1341, 1.442695
    %v1365 = vpow.pop %v1364
    %v1366 = vmul.f32 %v1342, 1.442695
    %v1367 = vpow.pop %v1366
    %v1368 = vmul.f32 %v1343, 1.442695
    %v1369 = vpow.pop %v1368
    %v1370 = vmul.f32 %v1344, 1.442695
    %v1371 = vpow.pop %v1370
    %v1372 = vmul.f32 %v1345, 1.442695
    %v1373 = vpow.pop %v1372
    %v1374 = vmul.f32 %v1346, 1.442695
    %v1375 = vpow.pop %v1374
    %v1376 = vmul.f32 %v1347, 1.442695
    %v1377 = vpow.pop %v1376
    %v1378 = vmul.f32 %v1348, 1.442695
    %v1379 = vpow.pop %v1378
    %v1380 = vmul.f32 %v1349, 1.442695
    %v1381 = vpow.pop %v1380
    %v1382 = vmul.f32 %v1351, %v1254
    %v1383 = vmul.f32 %v1353, %v1255
    %v1384 = vmul.f32 %v1355, %v1256
    %v1385 = vmul.f32 %v1357, %v1257
    %v1386 = vmul.f32 %v1359, %v1258
    %v1387 = vmul.f32 %v1361, %v1259
    %v1388 = vmul.f32 %v1363, %v1260
    %v1389 = vmul.f32 %v1365, %v1261
    %v1390 = vmul.f32 %v1367, %v1262
    %v1391 = vmul.f32 %v1369, %v1263
    %v1392 = vmul.f32 %v1371, %v1264
    %v1393 = vmul.f32 %v1373, %v1265
    %v1394 = vmul.f32 %v1375, %v1266
    %v1395 = vmul.f32 %v1377, %v1267
    %v1396 = vmul.f32 %v1379, %v1268
    %v1397 = vmul.f32 %v1381, %v1269
    %1398 = vmatprep.subr.mxu0 0.0
    %1399 = vmatpush1.msra.mxu0 %v1397
    %1400 = vmatprep.subr.mxu0 0.0
    %1401 = vmatpush1.msra.mxu0 %v1396
    %1402 = vmatprep.subr.mxu0 0.0
    %1403 = vmatpush1.msra.mxu0 %v1395
    %1404 = vmatprep.subr.mxu0 0.0
    %1405 = vmatpush1.msra.mxu0 %v1394
    %1406 = vmatprep.subr.mxu0 0.0
    %1407 = vmatpush1.msra.mxu0 %v1393
    %1408 = vmatprep.subr.mxu0 0.0
    %1409 = vmatpush1.msra.mxu0 %v1392
    %1410 = vmatprep.subr.mxu0 0.0
    %1411 = vmatpush1.msra.mxu0 %v1391
    %1412 = vmatprep.subr.mxu0 0.0
    %1413 = vmatpush1.msra.mxu0 %v1390
    %1414 = vmatprep.subr.mxu0 0.0
    %1415 = vmatpush1.msra.mxu0 %v1389
    %1416 = vmatprep.subr.mxu0 0.0
    %1417 = vmatpush1.msra.mxu0 %v1388
    %1418 = vmatprep.subr.mxu0 0.0
    %1419 = vmatpush1.msra.mxu0 %v1387
    %1420 = vmatprep.subr.mxu0 0.0
    %1421 = vmatpush1.msra.mxu0 %v1386
    %1422 = vmatprep.subr.mxu0 0.0
    %1423 = vmatpush1.msra.mxu0 %v1385
    %1424 = vmatprep.subr.mxu0 0.0
    %1425 = vmatpush1.msra.mxu0 %v1384
    %1426 = vmatprep.subr.mxu0 0.0
    %1427 = vmatpush1.msra.mxu0 %v1383
    %1428 = vmatprep.subr.mxu0 0.0
    %1429 = vmatpush1.msra.mxu0 %v1382
    %1430 = vmatprep.subr.mxu0 0.0
    %1431 = vmatpush2.msra.mxu0 0.0
    %1432 = vmatprep.subr.mxu0 0.0
    %1433 = vmatpush2.msra.mxu0 0.0
    %1434 = vmatprep.subr.mxu0 0.0
    %1435 = vmatpush2.msra.mxu0 0.0
    %1436 = vmatprep.subr.mxu0 0.0
    %1437 = vmatpush2.msra.mxu0 0.0
    %1438 = vmatprep.subr.mxu0 0.0
    %1439 = vmatpush2.msra.mxu0 0.0
    %1440 = vmatprep.subr.mxu0 0.0
    %1441 = vmatpush2.msra.mxu0 0.0
    %1442 = vmatprep.subr.mxu0 0.0
    %1443 = vmatpush2.msra.mxu0 0.0
    %1444 = vmatprep.subr.mxu0 0.0
    %1445 = vmatpush2.msra.mxu0 0.0
    %1446 = vmatprep.subr.mxu0 0.0
    %1447 = vmatpush2.msra.mxu0 0.0
    %1448 = vmatprep.subr.mxu0 0.0
    %1449 = vmatpush2.msra.mxu0 0.0
    %1450 = vmatprep.subr.mxu0 0.0
    %1451 = vmatpush2.msra.mxu0 0.0
    %1452 = vmatprep.subr.mxu0 0.0
    %1453 = vmatpush2.msra.mxu0 0.0
    %1454 = vmatprep.subr.mxu0 0.0
    %1455 = vmatpush2.msra.mxu0 0.0
    %1456 = vmatprep.subr.mxu0 0.0
    %1457 = vmatpush2.msra.mxu0 0.0
    %1458 = vmatprep.subr.mxu0 0.0
    %1459 = vmatpush2.msra.mxu0 0.0
    %1460 = vmatprep.subr.mxu0 0.0
    %1461 = vmatpush2.msra.mxu0 0.0
    %1462 = vmatprep.mubr.f32.mxu0 0.0
    %1463 = vmatmul.mubr.f32.gmra.mxu0 1.0
    %v1464 = vpop.f32.mrf.mxu0
    %v1465 = vadd.f32 0.0, %v1464
    %v1466 = vpop.f32.mrf.mxu0
    %1467 = vdwg.mxu0
    %1468 = vmatprep.subr.mxu0 0.0
    %1469 = vmatpush1.msra.mxu0 %v1381
    %1470 = vmatprep.subr.mxu0 0.0
    %1471 = vmatpush1.msra.mxu0 %v1379
    %1472 = vmatprep.subr.mxu0 0.0
    %1473 = vmatpush1.msra.mxu0 %v1377
    %1474 = vmatprep.subr.mxu0 0.0
    %1475 = vmatpush1.msra.mxu0 %v1375
    %1476 = vmatprep.subr.mxu0 0.0
    %1477 = vmatpush1.msra.mxu0 %v1373
    %1478 = vmatprep.subr.mxu0 0.0
    %1479 = vmatpush1.msra.mxu0 %v1371
    %1480 = vmatprep.subr.mxu0 0.0
    %1481 = vmatpush1.msra.mxu0 %v1369
    %1482 = vmatprep.subr.mxu0 0.0
    %1483 = vmatpush1.msra.mxu0 %v1367
    %1484 = vmatprep.subr.mxu0 0.0
    %1485 = vmatpush1.msra.mxu0 %v1365
    %1486 = vmatprep.subr.mxu0 0.0
    %1487 = vmatpush1.msra.mxu0 %v1363
    %1488 = vmatprep.subr.mxu0 0.0
    %1489 = vmatpush1.msra.mxu0 %v1361
    %1490 = vmatprep.subr.mxu0 0.0
    %1491 = vmatpush1.msra.mxu0 %v1359
    %1492 = vmatprep.subr.mxu0 0.0
    %1493 = vmatpush1.msra.mxu0 %v1357
    %1494 = vmatprep.subr.mxu0 0.0
    %1495 = vmatpush1.msra.mxu0 %v1355
    %1496 = vmatprep.subr.mxu0 0.0
    %1497 = vmatpush1.msra.mxu0 %v1353
    %1498 = vmatprep.subr.mxu0 0.0
    %1499 = vmatpush1.msra.mxu0 %v1351
    %1500 = vmatprep.subr.mxu0 0.0
    %1501 = vmatpush2.msra.mxu0 0.0
    %1502 = vmatprep.subr.mxu0 0.0
    %1503 = vmatpush2.msra.mxu0 0.0
    %1504 = vmatprep.subr.mxu0 0.0
    %1505 = vmatpush2.msra.mxu0 0.0
    %1506 = vmatprep.subr.mxu0 0.0
    %1507 = vmatpush2.msra.mxu0 0.0
    %1508 = vmatprep.subr.mxu0 0.0
    %1509 = vmatpush2.msra.mxu0 0.0
    %1510 = vmatprep.subr.mxu0 0.0
    %1511 = vmatpush2.msra.mxu0 0.0
    %1512 = vmatprep.subr.mxu0 0.0
    %1513 = vmatpush2.msra.mxu0 0.0
    %1514 = vmatprep.subr.mxu0 0.0
    %1515 = vmatpush2.msra.mxu0 0.0
    %1516 = vmatprep.subr.mxu0 0.0
    %1517 = vmatpush2.msra.mxu0 0.0
    %1518 = vmatprep.subr.mxu0 0.0
    %1519 = vmatpush2.msra.mxu0 0.0
    %1520 = vmatprep.subr.mxu0 0.0
    %1521 = vmatpush2.msra.mxu0 0.0
    %1522 = vmatprep.subr.mxu0 0.0
    %1523 = vmatpush2.msra.mxu0 0.0
    %1524 = vmatprep.subr.mxu0 0.0
    %1525 = vmatpush2.msra.mxu0 0.0
    %1526 = vmatprep.subr.mxu0 0.0
    %1527 = vmatpush2.msra.mxu0 0.0
    %1528 = vmatprep.subr.mxu0 0.0
    %1529 = vmatpush2.msra.mxu0 0.0
    %1530 = vmatprep.subr.mxu0 0.0
    %1531 = vmatpush2.msra.mxu0 0.0
    %1532 = vmatprep.mubr.f32.mxu0 0.0
    %1533 = vmatmul.mubr.f32.gmra.mxu0 1.0
    %v1534 = vpop.f32.mrf.mxu0
    %v1535 = vadd.f32 0.0, %v1534
    %v1536 = vpop.f32.mrf.mxu0
    %1537 = vdwg.mxu0
    %v1538 = vrcp.pop %v1535
    %v1539 = vmul.f32 %v1465, %v1538
    %v1540 = vld [vmem:[%s21] sm:$0xff]
    %v1541 = vlaneseq
    %v1542 = vshrl.u32 %v1541, 7
    %v1543 = vsub.s32 0, %v1542
    %v1544 = vrot.slane %v1539, %v1543
    %v1545 = vmul.f32 %v1540, %v1544
    %v1546 = vsel %vm1296, %v1545, 0.0
    %1547 = vadd.xlane.f32.xlu0 %v1546
    %v1548 = vpop.xlane.xlu0 %1547
    %v1549 = vld [vmem:[%s17] sm:$0x1]
    %v1551 = vlaneseq
    %v1552 = vshrl.u32 %v1551, 7
    %v1553 = vsub.s32 0, %v1552
    %v1554 = vrot.slane %v1549, %v1553
    %v1556 = vmul.f32 %v1548, %v1554
    %v1557 = vld [vmem:[%s19] sm:$0x1]
    %v1559 = vlaneseq
    %v1560 = vshrl.u32 %v1559, 7
    %v1561 = vsub.s32 0, %v1560
    %v1562 = vrot.slane %v1557, %v1561
    %v1564 = vadd.f32 %v1556, %v1562
    %vm1565 = vcmask 261120
    %1566 = vst.msk [vmem:[#allocation3] sm:$0xff] %vm1565, %v1564
    %v1567 = vld [vmem:[%s23] sm:$0xff]
    %v1568 = vld [vmem:[%s23 + $0x8] sm:$0xff]
    %v1569 = vld [vmem:[%s23 + $0x10] sm:$0xff]
    %v1570 = vld [vmem:[%s23 + $0x18] sm:$0xff]
    %v1572 = vsel %vm1296, %v1567, 0
    %v1575 = vsel %vm1296, %v1568, 0
    %v1578 = vsel %vm1296, %v1569, 0
    %v1581 = vsel %vm1296, %v1570, 0
    %1583 = vmatprep.subr.mxu0 0.0
    %1584 = vmatpush1.msra.mxu0 0.0
    %1585 = vmatprep.subr.mxu0 0.0
    %1586 = vmatpush1.msra.mxu0 0.0
    %1587 = vmatprep.subr.mxu0 0.0
    %1588 = vmatpush1.msra.mxu0 0.0
    %1589 = vmatprep.subr.mxu0 0.0
    %1590 = vmatpush1.msra.mxu0 0.0
    %1591 = vmatprep.subr.mxu0 0.0
    %1592 = vmatpush1.msra.mxu0 0.0
    %1593 = vmatprep.subr.mxu0 0.0
    %1594 = vmatpush1.msra.mxu0 0.0
    %1595 = vmatprep.subr.mxu0 0.0
    %1596 = vmatpush1.msra.mxu0 0.0
    %1597 = vmatprep.subr.mxu0 0.0
    %1598 = vmatpush1.msra.mxu0 0.0
    %1599 = vmatprep.subr.mxu0 0.0
    %1600 = vmatpush1.msra.mxu0 0.0
    %1601 = vmatprep.subr.mxu0 0.0
    %1602 = vmatpush1.msra.mxu0 0.0
    %1603 = vmatprep.subr.mxu0 0.0
    %1604 = vmatpush1.msra.mxu0 0.0
    %1605 = vmatprep.subr.mxu0 0.0
    %1606 = vmatpush1.msra.mxu0 0.0
    %1607 = vmatprep.subr.mxu0 0.0
    %1608 = vmatpush1.msra.mxu0 0.0
    %1609 = vmatprep.subr.mxu0 0.0
    %1610 = vmatpush1.msra.mxu0 0.0
    %1611 = vmatprep.subr.mxu0 0.0
    %1612 = vmatpush1.msra.mxu0 0.0
    %1613 = vmatprep.subr.mxu0 0.0
    %1614 = vmatpush1.msra.mxu0 %v1548
    %1615 = vmatprep.subr.mxu0 0.0
    %1616 = vmatpush2.msra.mxu0 0.0
    %1617 = vmatprep.subr.mxu0 0.0
    %1618 = vmatpush2.msra.mxu0 0.0
    %1619 = vmatprep.subr.mxu0 0.0
    %1620 = vmatpush2.msra.mxu0 0.0
    %1621 = vmatprep.subr.mxu0 0.0
    %1622 = vmatpush2.msra.mxu0 0.0
    %1623 = vmatprep.subr.mxu0 0.0
    %1624 = vmatpush2.msra.mxu0 0.0
    %1625 = vmatprep.subr.mxu0 0.0
    %1626 = vmatpush2.msra.mxu0 0.0
    %1627 = vmatprep.subr.mxu0 0.0
    %1628 = vmatpush2.msra.mxu0 0.0
    %1629 = vmatprep.subr.mxu0 0.0
    %1630 = vmatpush2.msra.mxu0 0.0
    %1631 = vmatprep.subr.mxu0 0.0
    %1632 = vmatpush2.msra.mxu0 0.0
    %1633 = vmatprep.subr.mxu0 0.0
    %1634 = vmatpush2.msra.mxu0 0.0
    %1635 = vmatprep.subr.mxu0 0.0
    %1636 = vmatpush2.msra.mxu0 0.0
    %1637 = vmatprep.subr.mxu0 0.0
    %1638 = vmatpush2.msra.mxu0 0.0
    %1639 = vmatprep.subr.mxu0 0.0
    %1640 = vmatpush2.msra.mxu0 0.0
    %1641 = vmatprep.subr.mxu0 0.0
    %1642 = vmatpush2.msra.mxu0 0.0
    %1643 = vmatprep.subr.mxu0 0.0
    %1644 = vmatpush2.msra.mxu0 0.0
    %1645 = vmatprep.subr.mxu0 0.0
    %1646 = vmatpush2.msra.mxu0 0.0
    %1647 = vmatprep.mubr.f32.mxu0 0.0
    %1648 = vmatmul.mubr.f32.gmra.mxu0 %v1572
    %v1649 = vpop.f32.mrf.mxu0
    %v1650 = vadd.f32 0.0, %v1649
    %v1651 = vpop.f32.mrf.mxu0
    %1652 = vmatprep.mubr.f32.mxu0 0.0
    %1653 = vmatmul.mubr.f32.gmra.mxu0 %v1575
    %v1654 = vpop.f32.mrf.mxu0
    %v1655 = vadd.f32 0.0, %v1654
    %v1656 = vpop.f32.mrf.mxu0
    %1657 = vmatprep.mubr.f32.mxu0 0.0
    %1658 = vmatmul.mubr.f32.gmra.mxu0 %v1578
    %v1659 = vpop.f32.mrf.mxu0
    %v1660 = vadd.f32 0.0, %v1659
    %v1661 = vpop.f32.mrf.mxu0
    %1662 = vmatprep.mubr.f32.mxu0 0.0
    %1663 = vmatmul.mubr.f32.gmra.mxu0 %v1581
    %v1664 = vpop.f32.mrf.mxu0
    %v1665 = vadd.f32 0.0, %v1664
    %v1666 = vpop.f32.mrf.mxu0
    %1667 = vdwg.mxu0
    %v1668 = vld [vmem:[%s25] sm:$0xff]
    %v1669 = vld [vmem:[%s25 + $0x8] sm:$0xff]
    %v1670 = vld [vmem:[%s25 + $0x10] sm:$0xff]
    %v1671 = vld [vmem:[%s25 + $0x18] sm:$0xff]
    %1673 = vset.pattern.permute.xlu0 0
    %1674 = vperm.xlu0 %1673, %v1650
    %v1675 = vpop.permute.xlu0 %1674
    %1678 = vset.pattern.permute.xlu0 0
    %1679 = vperm.xlu0 %1678, %v1655
    %v1680 = vpop.permute.xlu0 %1679
    %1683 = vset.pattern.permute.xlu0 0
    %1684 = vperm.xlu0 %1683, %v1660
    %v1685 = vpop.permute.xlu0 %1684
    %1688 = vset.pattern.permute.xlu0 0
    %1689 = vperm.xlu0 %1688, %v1665
    %v1690 = vpop.permute.xlu0 %1689
    %v1692 = vmul.f32 %v1675, %v1668
    %v1693 = vmul.f32 %v1680, %v1669
    %v1694 = vmul.f32 %v1685, %v1670
    %v1695 = vmul.f32 %v1690, %v1671
    %v1696 = vld [vmem:[%s27] sm:$0xff]
    %v1697 = vld [vmem:[%s27 + $0x8] sm:$0xff]
    %v1698 = vld [vmem:[%s27 + $0x10] sm:$0xff]
    %v1699 = vld [vmem:[%s27 + $0x18] sm:$0xff]
    %v1700 = vadd.f32 %v1692, %v1696
    %v1701 = vadd.f32 %v1693, %v1697
    %v1702 = vadd.f32 %v1694, %v1698
    %v1703 = vadd.f32 %v1695, %v1699
    %v1704 = vld [vmem:[%s29] sm:$0xff]
    %v1705 = vld [vmem:[%s29 + $0x8] sm:$0xff]
    %v1707 = vsel %vm1565, %v1704, 0
    %v1710 = vsel %vm1565, %v1705, 0
    %1712 = vmatprep.subr.mxu0 0.0
    %1713 = vmatpush1.msra.mxu0 0.0
    %1714 = vmatprep.subr.mxu0 0.0
    %1715 = vmatpush1.msra.mxu0 0.0
    %1716 = vmatprep.subr.mxu0 0.0
    %1717 = vmatpush1.msra.mxu0 0.0
    %1718 = vmatprep.subr.mxu0 0.0
    %1719 = vmatpush1.msra.mxu0 0.0
    %1720 = vmatprep.subr.mxu0 0.0
    %1721 = vmatpush1.msra.mxu0 0.0
    %1722 = vmatprep.subr.mxu0 0.0
    %1723 = vmatpush1.msra.mxu0 0.0
    %1724 = vmatprep.subr.mxu0 0.0
    %1725 = vmatpush1.msra.mxu0 0.0
    %1726 = vmatprep.subr.mxu0 0.0
    %1727 = vmatpush1.msra.mxu0 0.0
    %1728 = vmatprep.subr.mxu0 0.0
    %1729 = vmatpush1.msra.mxu0 0.0
    %1730 = vmatprep.subr.mxu0 0.0
    %1731 = vmatpush1.msra.mxu0 0.0
    %1732 = vmatprep.subr.mxu0 0.0
    %1733 = vmatpush1.msra.mxu0 0.0
    %1734 = vmatprep.subr.mxu0 0.0
    %1735 = vmatpush1.msra.mxu0 0.0
    %1736 = vmatprep.subr.mxu0 0.0
    %1737 = vmatpush1.msra.mxu0 %v1703
    %1738 = vmatprep.subr.mxu0 0.0
    %1739 = vmatpush1.msra.mxu0 %v1702
    %1740 = vmatprep.subr.mxu0 0.0
    %1741 = vmatpush1.msra.mxu0 %v1701
    %1742 = vmatprep.subr.mxu0 0.0
    %1743 = vmatpush1.msra.mxu0 %v1700
    %1744 = vmatprep.subr.mxu0 0.0
    %1745 = vmatpush2.msra.mxu0 0.0
    %1746 = vmatprep.subr.mxu0 0.0
    %1747 = vmatpush2.msra.mxu0 0.0
    %1748 = vmatprep.subr.mxu0 0.0
    %1749 = vmatpush2.msra.mxu0 0.0
    %1750 = vmatprep.subr.mxu0 0.0
    %1751 = vmatpush2.msra.mxu0 0.0
    %1752 = vmatprep.subr.mxu0 0.0
    %1753 = vmatpush2.msra.mxu0 0.0
    %1754 = vmatprep.subr.mxu0 0.0
    %1755 = vmatpush2.msra.mxu0 0.0
    %1756 = vmatprep.subr.mxu0 0.0
    %1757 = vmatpush2.msra.mxu0 0.0
    %1758 = vmatprep.subr.mxu0 0.0
    %1759 = vmatpush2.msra.mxu0 0.0
    %1760 = vmatprep.subr.mxu0 0.0
    %1761 = vmatpush2.msra.mxu0 0.0
    %1762 = vmatprep.subr.mxu0 0.0
    %1763 = vmatpush2.msra.mxu0 0.0
    %1764 = vmatprep.subr.mxu0 0.0
    %1765 = vmatpush2.msra.mxu0 0.0
    %1766 = vmatprep.subr.mxu0 0.0
    %1767 = vmatpush2.msra.mxu0 0.0
    %1768 = vmatprep.subr.mxu0 0.0
    %1769 = vmatpush2.msra.mxu0 0.0
    %1770 = vmatprep.subr.mxu0 0.0
    %1771 = vmatpush2.msra.mxu0 0.0
    %1772 = vmatprep.subr.mxu0 0.0
    %1773 = vmatpush2.msra.mxu0 0.0
    %1774 = vmatprep.subr.mxu0 0.0
    %1775 = vmatpush2.msra.mxu0 0.0
    %1776 = vmatprep.mubr.f32.mxu0 0.0
    %1777 = vmatmul.mubr.f32.gmra.mxu0 %v1707
    %v1778 = vpop.f32.mrf.mxu0
    %v1779 = vadd.f32 0.0, %v1778
    %v1780 = vpop.f32.mrf.mxu0
    %1781 = vmatprep.mubr.f32.mxu0 0.0
    %1782 = vmatmul.mubr.f32.gmra.mxu0 %v1710
    %v1783 = vpop.f32.mrf.mxu0
    %v1784 = vadd.f32 0.0, %v1783
    %v1785 = vpop.f32.mrf.mxu0
    %1786 = vdwg.mxu0
    %v1787 = vld [vmem:[%s39] sm:$0xff]
    %v1788 = vld [vmem:[%s41] sm:$0xff]
    %v1789 = vld [vmem:[%s41 + $0x8] sm:$0xff]
    %v1790 = vld [vmem:[%s43] sm:$0xff]
    %v1791 = vld [vmem:[%s43 + $0x8] sm:$0xff]
    %v1792 = vld [vmem:[%s43 + $0x10] sm:$0xff]
    %v1793 = vld [vmem:[%s43 + $0x18] sm:$0xff]
    %v1794 = vld [vmem:[%s43 + $0x20] sm:$0xff]
    %v1795 = vld [vmem:[%s43 + $0x28] sm:$0xff]
    %v1796 = vld [vmem:[%s43 + $0x30] sm:$0xff]
    %v1797 = vld [vmem:[%s43 + $0x38] sm:$0xff]
    %v1798 = vld [vmem:[%s43 + $0x40] sm:$0xff]
    %v1799 = vld [vmem:[%s43 + $0x48] sm:$0xff]
    %v1800 = vld [vmem:[%s43 + $0x50] sm:$0xff]
    %v1801 = vld [vmem:[%s43 + $0x58] sm:$0xff]
    %v1802 = vld [vmem:[%s43 + $0x60] sm:$0xff]
    %v1803 = vld [vmem:[%s43 + $0x68] sm:$0xff]
    %v1804 = vld [vmem:[%s43 + $0x70] sm:$0xff]
    %v1805 = vld [vmem:[%s43 + $0x78] sm:$0xff]
    %v1806 = vld [vmem:[%s45] sm:$0xff]
    %v1807 = vld [vmem:[%s47] sm:$0x1]
    %v1809 = vlaneseq
    %v1810 = vshrl.u32 %v1809, 7
    %v1811 = vsub.s32 0, %v1810
    %v1812 = vrot.slane %v1807, %v1811
    %v1815 = vsel %vm1296, %v1779, 0
    %v1818 = vsel %vm1296, %v1784, 0
    %1820 = vmatprep.subr.mxu0 0.0
    %1821 = vmatpush1.msra.mxu0 0.0
    %1822 = vmatprep.subr.mxu0 0.0
    %1823 = vmatpush1.msra.mxu0 0.0
    %1824 = vmatprep.subr.mxu0 0.0
    %1825 = vmatpush1.msra.mxu0 0.0
    %1826 = vmatprep.subr.mxu0 0.0
    %1827 = vmatpush1.msra.mxu0 0.0
    %1828 = vmatprep.subr.mxu0 0.0
    %1829 = vmatpush1.msra.mxu0 0.0
    %1830 = vmatprep.subr.mxu0 0.0
    %1831 = vmatpush1.msra.mxu0 0.0
    %1832 = vmatprep.subr.mxu0 0.0
    %1833 = vmatpush1.msra.mxu0 0.0
    %1834 = vmatprep.subr.mxu0 0.0
    %1835 = vmatpush1.msra.mxu0 0.0
    %1836 = vmatprep.subr.mxu0 0.0
    %1837 = vmatpush1.msra.mxu0 0.0
    %1838 = vmatprep.subr.mxu0 0.0
    %1839 = vmatpush1.msra.mxu0 0.0
    %1840 = vmatprep.subr.mxu0 0.0
    %1841 = vmatpush1.msra.mxu0 0.0
    %1842 = vmatprep.subr.mxu0 0.0
    %1843 = vmatpush1.msra.mxu0 0.0
    %1844 = vmatprep.subr.mxu0 0.0
    %1845 = vmatpush1.msra.mxu0 0.0
    %1846 = vmatprep.subr.mxu0 0.0
    %1847 = vmatpush1.msra.mxu0 0.0
    %1848 = vmatprep.subr.mxu0 0.0
    %1849 = vmatpush1.msra.mxu0 0.0
    %1850 = vmatprep.subr.mxu0 0.0
    %1851 = vmatpush1.msra.mxu0 %v1806
    %1852 = vmatprep.subr.mxu0 0.0
    %1853 = vmatpush2.msra.mxu0 0.0
    %1854 = vmatprep.subr.mxu0 0.0
    %1855 = vmatpush2.msra.mxu0 0.0
    %1856 = vmatprep.subr.mxu0 0.0
    %1857 = vmatpush2.msra.mxu0 0.0
    %1858 = vmatprep.subr.mxu0 0.0
    %1859 = vmatpush2.msra.mxu0 0.0
    %1860 = vmatprep.subr.mxu0 0.0
    %1861 = vmatpush2.msra.mxu0 0.0
    %1862 = vmatprep.subr.mxu0 0.0
    %1863 = vmatpush2.msra.mxu0 0.0
    %1864 = vmatprep.subr.mxu0 0.0
    %1865 = vmatpush2.msra.mxu0 0.0
    %1866 = vmatprep.subr.mxu0 0.0
    %1867 = vmatpush2.msra.mxu0 0.0
    %1868 = vmatprep.subr.mxu0 0.0
    %1869 = vmatpush2.msra.mxu0 0.0
    %1870 = vmatprep.subr.mxu0 0.0
    %1871 = vmatpush2.msra.mxu0 0.0
    %1872 = vmatprep.subr.mxu0 0.0
    %1873 = vmatpush2.msra.mxu0 0.0
    %1874 = vmatprep.subr.mxu0 0.0
    %1875 = vmatpush2.msra.mxu0 0.0
    %1876 = vmatprep.subr.mxu0 0.0
    %1877 = vmatpush2.msra.mxu0 0.0
    %1878 = vmatprep.subr.mxu0 0.0
    %1879 = vmatpush2.msra.mxu0 0.0
    %1880 = vmatprep.subr.mxu0 0.0
    %1881 = vmatpush2.msra.mxu0 0.0
    %1882 = vmatprep.subr.mxu0 0.0
    %1883 = vmatpush2.msra.mxu0 0.0
    %1884 = vmatprep.mubr.f32.mxu0 0.0
    %1885 = vmatmul.mubr.f32.gmra.mxu0 %v1815
    %v1886 = vpop.f32.mrf.mxu0
    %v1887 = vadd.f32 %v1812, %v1886
    %v1888 = vpop.f32.mrf.mxu0
    %1889 = vmatprep.mubr.f32.mxu0 0.0
    %1890 = vmatmul.mubr.f32.gmra.mxu0 %v1818
    %v1891 = vpop.f32.mrf.mxu0
    %v1892 = vadd.f32 %v1812, %v1891
    %v1893 = vpop.f32.mrf.mxu0
    %1894 = vdwg.mxu0
    %v1896 = vsel %vm1296, %v1887, 0
    %v1899 = vsel %vm1296, %v1892, 0
    %1901 = vmatprep.subr.mxu0 0.0
    %1902 = vmatpush1.msra.mxu0 0.0
    %1903 = vmatprep.subr.mxu0 0.0
    %1904 = vmatpush1.msra.mxu0 0.0
    %1905 = vmatprep.subr.mxu0 0.0
    %1906 = vmatpush1.msra.mxu0 0.0
    %1907 = vmatprep.subr.mxu0 0.0
    %1908 = vmatpush1.msra.mxu0 0.0
    %1909 = vmatprep.subr.mxu0 0.0
    %1910 = vmatpush1.msra.mxu0 0.0
    %1911 = vmatprep.subr.mxu0 0.0
    %1912 = vmatpush1.msra.mxu0 0.0
    %1913 = vmatprep.subr.mxu0 0.0
    %1914 = vmatpush1.msra.mxu0 0.0
    %1915 = vmatprep.subr.mxu0 0.0
    %1916 = vmatpush1.msra.mxu0 0.0
    %1917 = vmatprep.subr.mxu0 0.0
    %1918 = vmatpush1.msra.mxu0 0.0
    %1919 = vmatprep.subr.mxu0 0.0
    %1920 = vmatpush1.msra.mxu0 0.0
    %1921 = vmatprep.subr.mxu0 0.0
    %1922 = vmatpush1.msra.mxu0 0.0
    %1923 = vmatprep.subr.mxu0 0.0
    %1924 = vmatpush1.msra.mxu0 0.0
    %1925 = vmatprep.subr.mxu0 0.0
    %1926 = vmatpush1.msra.mxu0 0.0
    %1927 = vmatprep.subr.mxu0 0.0
    %1928 = vmatpush1.msra.mxu0 0.0
    %1929 = vmatprep.subr.mxu0 0.0
    %1930 = vmatpush1.msra.mxu0 0.0
    %1931 = vmatprep.subr.mxu0 0.0
    %1932 = vmatpush1.msra.mxu0 %v1787
    %1933 = vmatprep.subr.mxu0 0.0
    %1934 = vmatpush2.msra.mxu0 0.0
    %1935 = vmatprep.subr.mxu0 0.0
    %1936 = vmatpush2.msra.mxu0 0.0
    %1937 = vmatprep.subr.mxu0 0.0
    %1938 = vmatpush2.msra.mxu0 0.0
    %1939 = vmatprep.subr.mxu0 0.0
    %1940 = vmatpush2.msra.mxu0 0.0
    %1941 = vmatprep.subr.mxu0 0.0
    %1942 = vmatpush2.msra.mxu0 0.0
    %1943 = vmatprep.subr.mxu0 0.0
    %1944 = vmatpush2.msra.mxu0 0.0
    %1945 = vmatprep.subr.mxu0 0.0
    %1946 = vmatpush2.msra.mxu0 0.0
    %1947 = vmatprep.subr.mxu0 0.0
    %1948 = vmatpush2.msra.mxu0 0.0
    %1949 = vmatprep.subr.mxu0 0.0
    %1950 = vmatpush2.msra.mxu0 0.0
    %1951 = vmatprep.subr.mxu0 0.0
    %1952 = vmatpush2.msra.mxu0 0.0
    %1953 = vmatprep.subr.mxu0 0.0
    %1954 = vmatpush2.msra.mxu0 0.0
    %1955 = vmatprep.subr.mxu0 0.0
    %1956 = vmatpush2.msra.mxu0 0.0
    %1957 = vmatprep.subr.mxu0 0.0
    %1958 = vmatpush2.msra.mxu0 0.0
    %1959 = vmatprep.subr.mxu0 0.0
    %1960 = vmatpush2.msra.mxu0 0.0
    %1961 = vmatprep.subr.mxu0 0.0
    %1962 = vmatpush2.msra.mxu0 0.0
    %1963 = vmatprep.subr.mxu0 0.0
    %1964 = vmatpush2.msra.mxu0 0.0
    %1965 = vmatprep.mubr.f32.mxu0 0.0
    %1966 = vmatmul.mubr.f32.gmra.mxu0 %v1896
    %v1967 = vpop.f32.mrf.mxu0
    %v1968 = vadd.f32 0.0, %v1967
    %v1969 = vpop.f32.mrf.mxu0
    %1970 = vmatprep.mubr.f32.mxu0 0.0
    %1971 = vmatmul.mubr.f32.gmra.mxu0 %v1899
    %v1972 = vpop.f32.mrf.mxu0
    %v1973 = vadd.f32 0.0, %v1972
    %v1974 = vpop.f32.mrf.mxu0
    %1975 = vdwg.mxu0
    %1976 = vrot.lane.b32.xlu0 %v1887, 120
    %v1977 = vpop.permute.xlu0 %1976
    %1978 = vrot.lane.b32.xlu0 %v1892, 120
    %v1979 = vpop.permute.xlu0 %1978
    %v1980 = vsel %vm1296, %v1977, 0
    %v1982 = vsel %vm1296, %v1979, 0
    %1984 = vmatprep.subr.mxu0 0.0
    %1985 = vmatpush1.msra.mxu0 0.0
    %1986 = vmatprep.subr.mxu0 0.0
    %1987 = vmatpush1.msra.mxu0 0.0
    %1988 = vmatprep.subr.mxu0 0.0
    %1989 = vmatpush1.msra.mxu0 0.0
    %1990 = vmatprep.subr.mxu0 0.0
    %1991 = vmatpush1.msra.mxu0 0.0
    %1992 = vmatprep.subr.mxu0 0.0
    %1993 = vmatpush1.msra.mxu0 0.0
    %1994 = vmatprep.subr.mxu0 0.0
    %1995 = vmatpush1.msra.mxu0 0.0
    %1996 = vmatprep.subr.mxu0 0.0
    %1997 = vmatpush1.msra.mxu0 0.0
    %1998 = vmatprep.subr.mxu0 0.0
    %1999 = vmatpush1.msra.mxu0 0.0
    %2000 = vmatprep.subr.mxu0 0.0
    %2001 = vmatpush1.msra.mxu0 0.0
    %2002 = vmatprep.subr.mxu0 0.0
    %2003 = vmatpush1.msra.mxu0 0.0
    %2004 = vmatprep.subr.mxu0 0.0
    %2005 = vmatpush1.msra.mxu0 0.0
    %2006 = vmatprep.subr.mxu0 0.0
    %2007 = vmatpush1.msra.mxu0 0.0
    %2008 = vmatprep.subr.mxu0 0.0
    %2009 = vmatpush1.msra.mxu0 0.0
    %2010 = vmatprep.subr.mxu0 0.0
    %2011 = vmatpush1.msra.mxu0 0.0
    %2012 = vmatprep.subr.mxu0 0.0
    %2013 = vmatpush1.msra.mxu0 0.0
    %2014 = vmatprep.subr.mxu0 0.0
    %2015 = vmatpush1.msra.mxu0 %v1787
    %2016 = vmatprep.subr.mxu0 0.0
    %2017 = vmatpush2.msra.mxu0 0.0
    %2018 = vmatprep.subr.mxu0 0.0
    %2019 = vmatpush2.msra.mxu0 0.0
    %2020 = vmatprep.subr.mxu0 0.0
    %2021 = vmatpush2.msra.mxu0 0.0
    %2022 = vmatprep.subr.mxu0 0.0
    %2023 = vmatpush2.msra.mxu0 0.0
    %2024 = vmatprep.subr.mxu0 0.0
    %2025 = vmatpush2.msra.mxu0 0.0
    %2026 = vmatprep.subr.mxu0 0.0
    %2027 = vmatpush2.msra.mxu0 0.0
    %2028 = vmatprep.subr.mxu0 0.0
    %2029 = vmatpush2.msra.mxu0 0.0
    %2030 = vmatprep.subr.mxu0 0.0
    %2031 = vmatpush2.msra.mxu0 0.0
    %2032 = vmatprep.subr.mxu0 0.0
    %2033 = vmatpush2.msra.mxu0 0.0
    %2034 = vmatprep.subr.mxu0 0.0
    %2035 = vmatpush2.msra.mxu0 0.0
    %2036 = vmatprep.subr.mxu0 0.0
    %2037 = vmatpush2.msra.mxu0 0.0
    %2038 = vmatprep.subr.mxu0 0.0
    %2039 = vmatpush2.msra.mxu0 0.0
    %2040 = vmatprep.subr.mxu0 0.0
    %2041 = vmatpush2.msra.mxu0 0.0
    %2042 = vmatprep.subr.mxu0 0.0
    %2043 = vmatpush2.msra.mxu0 0.0
    %2044 = vmatprep.subr.mxu0 0.0
    %2045 = vmatpush2.msra.mxu0 0.0
    %2046 = vmatprep.subr.mxu0 0.0
    %2047 = vmatpush2.msra.mxu0 0.0
    %2048 = vmatprep.mubr.f32.mxu0 0.0
    %2049 = vmatmul.mubr.f32.gmra.mxu0 %v1980
    %v2050 = vpop.f32.mrf.mxu0
    %v2051 = vadd.f32 0.0, %v2050
    %v2052 = vpop.f32.mrf.mxu0
    %2053 = vmatprep.mubr.f32.mxu0 0.0
    %2054 = vmatmul.mubr.f32.gmra.mxu0 %v1982
    %v2055 = vpop.f32.mrf.mxu0
    %v2056 = vadd.f32 0.0, %v2055
    %v2057 = vpop.f32.mrf.mxu0
    %2058 = vdwg.mxu0
    %v2059 = vmul.f32 %v2051, %v1788
    %v2060 = vmul.f32 %v2056, %v1789
    %v2062 = vsel %vm196, 1.0, 0
    %2064 = vmatprep.subr.mxu0 0.0
    %2065 = vmatpush1.msra.mxu0 0.0
    %2066 = vmatprep.subr.mxu0 0.0
    %2067 = vmatpush1.msra.mxu0 0.0
    %2068 = vmatprep.subr.mxu0 0.0
    %2069 = vmatpush1.msra.mxu0 0.0
    %2070 = vmatprep.subr.mxu0 0.0
    %2071 = vmatpush1.msra.mxu0 0.0
    %2072 = vmatprep.subr.mxu0 0.0
    %2073 = vmatpush1.msra.mxu0 0.0
    %2074 = vmatprep.subr.mxu0 0.0
    %2075 = vmatpush1.msra.mxu0 0.0
    %2076 = vmatprep.subr.mxu0 0.0
    %2077 = vmatpush1.msra.mxu0 0.0
    %2078 = vmatprep.subr.mxu0 0.0
    %2079 = vmatpush1.msra.mxu0 0.0
    %2080 = vmatprep.subr.mxu0 0.0
    %2081 = vmatpush1.msra.mxu0 0.0
    %2082 = vmatprep.subr.mxu0 0.0
    %2083 = vmatpush1.msra.mxu0 0.0
    %2084 = vmatprep.subr.mxu0 0.0
    %2085 = vmatpush1.msra.mxu0 0.0
    %2086 = vmatprep.subr.mxu0 0.0
    %2087 = vmatpush1.msra.mxu0 0.0
    %2088 = vmatprep.subr.mxu0 0.0
    %2089 = vmatpush1.msra.mxu0 0.0
    %2090 = vmatprep.subr.mxu0 0.0
    %2091 = vmatpush1.msra.mxu0 0.0
    %2092 = vmatprep.subr.mxu0 0.0
    %2093 = vmatpush1.msra.mxu0 %v2060
    %2094 = vmatprep.subr.mxu0 0.0
    %2095 = vmatpush1.msra.mxu0 %v2059
    %2096 = vmatprep.subr.mxu0 0.0
    %2097 = vmatpush2.msra.mxu0 0.0
    %2098 = vmatprep.subr.mxu0 0.0
    %2099 = vmatpush2.msra.mxu0 0.0
    %2100 = vmatprep.subr.mxu0 0.0
    %2101 = vmatpush2.msra.mxu0 0.0
    %2102 = vmatprep.subr.mxu0 0.0
    %2103 = vmatpush2.msra.mxu0 0.0
    %2104 = vmatprep.subr.mxu0 0.0
    %2105 = vmatpush2.msra.mxu0 0.0
    %2106 = vmatprep.subr.mxu0 0.0
    %2107 = vmatpush2.msra.mxu0 0.0
    %2108 = vmatprep.subr.mxu0 0.0
    %2109 = vmatpush2.msra.mxu0 0.0
    %2110 = vmatprep.subr.mxu0 0.0
    %2111 = vmatpush2.msra.mxu0 0.0
    %2112 = vmatprep.subr.mxu0 0.0
    %2113 = vmatpush2.msra.mxu0 0.0
    %2114 = vmatprep.subr.mxu0 0.0
    %2115 = vmatpush2.msra.mxu0 0.0
    %2116 = vmatprep.subr.mxu0 0.0
    %2117 = vmatpush2.msra.mxu0 0.0
    %2118 = vmatprep.subr.mxu0 0.0
    %2119 = vmatpush2.msra.mxu0 0.0
    %2120 = vmatprep.subr.mxu0 0.0
    %2121 = vmatpush2.msra.mxu0 0.0
    %2122 = vmatprep.subr.mxu0 0.0
    %2123 = vmatpush2.msra.mxu0 0.0
    %2124 = vmatprep.subr.mxu0 0.0
    %2125 = vmatpush2.msra.mxu0 0.0
    %2126 = vmatprep.subr.mxu0 0.0
    %2127 = vmatpush2.msra.mxu0 0.0
    %2128 = vmatprep.mubr.f32.mxu0 0.0
    %2129 = vmatmul.mubr.f32.gmra.mxu0 %v2062
    %v2130 = vpop.f32.mrf.mxu0
    %v2131 = vadd.f32 0.0, %v2130
    %v2132 = vpop.f32.mrf.mxu0
    %2133 = vdwg.mxu0
    %2134 = vrot.lane.b32.xlu0 %v1887, 112
    %v2135 = vpop.permute.xlu0 %2134
    %2136 = vrot.lane.b32.xlu0 %v1892, 112
    %v2137 = vpop.permute.xlu0 %2136
    %v2138 = vsel %vm1296, %v2135, 0
    %v2140 = vsel %vm1296, %v2137, 0
    %2142 = vmatprep.subr.mxu0 0.0
    %2143 = vmatpush1.msra.mxu0 0.0
    %2144 = vmatprep.subr.mxu0 0.0
    %2145 = vmatpush1.msra.mxu0 0.0
    %2146 = vmatprep.subr.mxu0 0.0
    %2147 = vmatpush1.msra.mxu0 0.0
    %2148 = vmatprep.subr.mxu0 0.0
    %2149 = vmatpush1.msra.mxu0 0.0
    %2150 = vmatprep.subr.mxu0 0.0
    %2151 = vmatpush1.msra.mxu0 0.0
    %2152 = vmatprep.subr.mxu0 0.0
    %2153 = vmatpush1.msra.mxu0 0.0
    %2154 = vmatprep.subr.mxu0 0.0
    %2155 = vmatpush1.msra.mxu0 0.0
    %2156 = vmatprep.subr.mxu0 0.0
    %2157 = vmatpush1.msra.mxu0 0.0
    %2158 = vmatprep.subr.mxu0 0.0
    %2159 = vmatpush1.msra.mxu0 0.0
    %2160 = vmatprep.subr.mxu0 0.0
    %2161 = vmatpush1.msra.mxu0 0.0
    %2162 = vmatprep.subr.mxu0 0.0
    %2163 = vmatpush1.msra.mxu0 0.0
    %2164 = vmatprep.subr.mxu0 0.0
    %2165 = vmatpush1.msra.mxu0 0.0
    %2166 = vmatprep.subr.mxu0 0.0
    %2167 = vmatpush1.msra.mxu0 0.0
    %2168 = vmatprep.subr.mxu0 0.0
    %2169 = vmatpush1.msra.mxu0 0.0
    %2170 = vmatprep.subr.mxu0 0.0
    %2171 = vmatpush1.msra.mxu0 0.0
    %2172 = vmatprep.subr.mxu0 0.0
    %2173 = vmatpush1.msra.mxu0 %v1787
    %2174 = vmatprep.subr.mxu0 0.0
    %2175 = vmatpush2.msra.mxu0 0.0
    %2176 = vmatprep.subr.mxu0 0.0
    %2177 = vmatpush2.msra.mxu0 0.0
    %2178 = vmatprep.subr.mxu0 0.0
    %2179 = vmatpush2.msra.mxu0 0.0
    %2180 = vmatprep.subr.mxu0 0.0
    %2181 = vmatpush2.msra.mxu0 0.0
    %2182 = vmatprep.subr.mxu0 0.0
    %2183 = vmatpush2.msra.mxu0 0.0
    %2184 = vmatprep.subr.mxu0 0.0
    %2185 = vmatpush2.msra.mxu0 0.0
    %2186 = vmatprep.subr.mxu0 0.0
    %2187 = vmatpush2.msra.mxu0 0.0
    %2188 = vmatprep.subr.mxu0 0.0
    %2189 = vmatpush2.msra.mxu0 0.0
    %2190 = vmatprep.subr.mxu0 0.0
    %2191 = vmatpush2.msra.mxu0 0.0
    %2192 = vmatprep.subr.mxu0 0.0
    %2193 = vmatpush2.msra.mxu0 0.0
    %2194 = vmatprep.subr.mxu0 0.0
    %2195 = vmatpush2.msra.mxu0 0.0
    %2196 = vmatprep.subr.mxu0 0.0
    %2197 = vmatpush2.msra.mxu0 0.0
    %2198 = vmatprep.subr.mxu0 0.0
    %2199 = vmatpush2.msra.mxu0 0.0
    %2200 = vmatprep.subr.mxu0 0.0
    %2201 = vmatpush2.msra.mxu0 0.0
    %2202 = vmatprep.subr.mxu0 0.0
    %2203 = vmatpush2.msra.mxu0 0.0
    %2204 = vmatprep.subr.mxu0 0.0
    %2205 = vmatpush2.msra.mxu0 0.0
    %2206 = vmatprep.mubr.f32.mxu0 0.0
    %2207 = vmatmul.mubr.f32.gmra.mxu0 %v2138
    %v2208 = vpop.f32.mrf.mxu0
    %v2209 = vadd.f32 0.0, %v2208
    %v2210 = vpop.f32.mrf.mxu0
    %2211 = vmatprep.mubr.f32.mxu0 0.0
    %2212 = vmatmul.mubr.f32.gmra.mxu0 %v2140
    %v2213 = vpop.f32.mrf.mxu0
    %v2214 = vadd.f32 0.0, %v2213
    %v2215 = vpop.f32.mrf.mxu0
    %2216 = vdwg.mxu0
    %v2217 = vmul.f32 %v2209, %v1788
    %v2218 = vmul.f32 %v2214, %v1789
    %2219 = vmatprep.subr.mxu0 0.0
    %2220 = vmatpush1.msra.mxu0 0.0
    %2221 = vmatprep.subr.mxu0 0.0
    %2222 = vmatpush1.msra.mxu0 0.0
    %2223 = vmatprep.subr.mxu0 0.0
    %2224 = vmatpush1.msra.mxu0 0.0
    %2225 = vmatprep.subr.mxu0 0.0
    %2226 = vmatpush1.msra.mxu0 0.0
    %2227 = vmatprep.subr.mxu0 0.0
    %2228 = vmatpush1.msra.mxu0 0.0
    %2229 = vmatprep.subr.mxu0 0.0
    %2230 = vmatpush1.msra.mxu0 0.0
    %2231 = vmatprep.subr.mxu0 0.0
    %2232 = vmatpush1.msra.mxu0 0.0
    %2233 = vmatprep.subr.mxu0 0.0
    %2234 = vmatpush1.msra.mxu0 0.0
    %2235 = vmatprep.subr.mxu0 0.0
    %2236 = vmatpush1.msra.mxu0 0.0
    %2237 = vmatprep.subr.mxu0 0.0
    %2238 = vmatpush1.msra.mxu0 0.0
    %2239 = vmatprep.subr.mxu0 0.0
    %2240 = vmatpush1.msra.mxu0 0.0
    %2241 = vmatprep.subr.mxu0 0.0
    %2242 = vmatpush1.msra.mxu0 0.0
    %2243 = vmatprep.subr.mxu0 0.0
    %2244 = vmatpush1.msra.mxu0 0.0
    %2245 = vmatprep.subr.mxu0 0.0
    %2246 = vmatpush1.msra.mxu0 0.0
    %2247 = vmatprep.subr.mxu0 0.0
    %2248 = vmatpush1.msra.mxu0 %v2218
    %2249 = vmatprep.subr.mxu0 0.0
    %2250 = vmatpush1.msra.mxu0 %v2217
    %2251 = vmatprep.subr.mxu0 0.0
    %2252 = vmatpush2.msra.mxu0 0.0
    %2253 = vmatprep.subr.mxu0 0.0
    %2254 = vmatpush2.msra.mxu0 0.0
    %2255 = vmatprep.subr.mxu0 0.0
    %2256 = vmatpush2.msra.mxu0 0.0
    %2257 = vmatprep.subr.mxu0 0.0
    %2258 = vmatpush2.msra.mxu0 0.0
    %2259 = vmatprep.subr.mxu0 0.0
    %2260 = vmatpush2.msra.mxu0 0.0
    %2261 = vmatprep.subr.mxu0 0.0
    %2262 = vmatpush2.msra.mxu0 0.0
    %2263 = vmatprep.subr.mxu0 0.0
    %2264 = vmatpush2.msra.mxu0 0.0
    %2265 = vmatprep.subr.mxu0 0.0
    %2266 = vmatpush2.msra.mxu0 0.0
    %2267 = vmatprep.subr.mxu0 0.0
    %2268 = vmatpush2.msra.mxu0 0.0
    %2269 = vmatprep.subr.mxu0 0.0
    %2270 = vmatpush2.msra.mxu0 0.0
    %2271 = vmatprep.subr.mxu0 0.0
    %2272 = vmatpush2.msra.mxu0 0.0
    %2273 = vmatprep.subr.mxu0 0.0
    %2274 = vmatpush2.msra.mxu0 0.0
    %2275 = vmatprep.subr.mxu0 0.0
    %2276 = vmatpush2.msra.mxu0 0.0
    %2277 = vmatprep.subr.mxu0 0.0
    %2278 = vmatpush2.msra.mxu0 0.0
    %2279 = vmatprep.subr.mxu0 0.0
    %2280 = vmatpush2.msra.mxu0 0.0
    %2281 = vmatprep.subr.mxu0 0.0
    %2282 = vmatpush2.msra.mxu0 0.0
    %2283 = vmatprep.mubr.f32.mxu0 0.0
    %2284 = vmatmul.mubr.f32.gmra.mxu0 %v2062
    %v2285 = vpop.f32.mrf.mxu0
    %v2286 = vadd.f32 0.0, %v2285
    %v2287 = vpop.f32.mrf.mxu0
    %2288 = vdwg.mxu0
    %v2289 = vlaneseq
    %v2290 = vshrl.u32 %v2289, 7
    %v2291 = vsub.s32 0, %v2290
    %v2292 = vrot.slane %v2131, %v2291
    %v2293 = vmul.f32 %v1968, %v2292
    %v2294 = vmul.f32 %v1973, %v2292
    %2295 = vmax.xlane.f32.xlu0 %v2293
    %v2296 = vpop.xlane.xlu0 %2295
    %2297 = vmax.xlane.f32.xlu0 %v2294
    %v2298 = vpop.xlane.xlu0 %2297
    %v2299 = vsub.f32 %v2293, %v2296
    %v2300 = vsub.f32 %v2294, %v2298
    %v2301 = vmul.f32 %v2299, 1.442695
    %v2302 = vpow.pop %v2301
    %v2303 = vmul.f32 %v2300, 1.442695
    %v2304 = vpow.pop %v2303
    %2305 = vmatprep.subr.mxu0 0.0
    %2306 = vmatpush1.msra.mxu0 %v1805
    %2307 = vmatprep.subr.mxu0 0.0
    %2308 = vmatpush1.msra.mxu0 %v1804
    %2309 = vmatprep.subr.mxu0 0.0
    %2310 = vmatpush1.msra.mxu0 %v1803
    %2311 = vmatprep.subr.mxu0 0.0
    %2312 = vmatpush1.msra.mxu0 %v1802
    %2313 = vmatprep.subr.mxu0 0.0
    %2314 = vmatpush1.msra.mxu0 %v1801
    %2315 = vmatprep.subr.mxu0 0.0
    %2316 = vmatpush1.msra.mxu0 %v1800
    %2317 = vmatprep.subr.mxu0 0.0
    %2318 = vmatpush1.msra.mxu0 %v1799
    %2319 = vmatprep.subr.mxu0 0.0
    %2320 = vmatpush1.msra.mxu0 %v1798
    %2321 = vmatprep.subr.mxu0 0.0
    %2322 = vmatpush1.msra.mxu0 %v1797
    %2323 = vmatprep.subr.mxu0 0.0
    %2324 = vmatpush1.msra.mxu0 %v1796
    %2325 = vmatprep.subr.mxu0 0.0
    %2326 = vmatpush1.msra.mxu0 %v1795
    %2327 = vmatprep.subr.mxu0 0.0
    %2328 = vmatpush1.msra.mxu0 %v1794
    %2329 = vmatprep.subr.mxu0 0.0
    %2330 = vmatpush1.msra.mxu0 %v1793
    %2331 = vmatprep.subr.mxu0 0.0
    %2332 = vmatpush1.msra.mxu0 %v1792
    %2333 = vmatprep.subr.mxu0 0.0
    %2334 = vmatpush1.msra.mxu0 %v1791
    %2335 = vmatprep.subr.mxu0 0.0
    %2336 = vmatpush1.msra.mxu0 %v1790
    %2337 = vmatprep.subr.mxu0 0.0
    %2338 = vmatpush2.msra.mxu0 0.0
    %2339 = vmatprep.subr.mxu0 0.0
    %2340 = vmatpush2.msra.mxu0 0.0
    %2341 = vmatprep.subr.mxu0 0.0
    %2342 = vmatpush2.msra.mxu0 0.0
    %2343 = vmatprep.subr.mxu0 0.0
    %2344 = vmatpush2.msra.mxu0 0.0
    %2345 = vmatprep.subr.mxu0 0.0
    %2346 = vmatpush2.msra.mxu0 0.0
    %2347 = vmatprep.subr.mxu0 0.0
    %2348 = vmatpush2.msra.mxu0 0.0
    %2349 = vmatprep.subr.mxu0 0.0
    %2350 = vmatpush2.msra.mxu0 0.0
    %2351 = vmatprep.subr.mxu0 0.0
    %2352 = vmatpush2.msra.mxu0 0.0
    %2353 = vmatprep.subr.mxu0 0.0
    %2354 = vmatpush2.msra.mxu0 0.0
    %2355 = vmatprep.subr.mxu0 0.0
    %2356 = vmatpush2.msra.mxu0 0.0
    %2357 = vmatprep.subr.mxu0 0.0
    %2358 = vmatpush2.msra.mxu0 0.0
    %2359 = vmatprep.subr.mxu0 0.0
    %2360 = vmatpush2.msra.mxu0 0.0
    %2361 = vmatprep.subr.mxu0 0.0
    %2362 = vmatpush2.msra.mxu0 0.0
    %2363 = vmatprep.subr.mxu0 0.0
    %2364 = vmatpush2.msra.mxu0 0.0
    %2365 = vmatprep.subr.mxu0 0.0
    %2366 = vmatpush2.msra.mxu0 0.0
    %2367 = vmatprep.subr.mxu0 0.0
    %2368 = vmatpush2.msra.mxu0 0.0
    %2369 = vmatprep.mubr.f32.mxu0 0.0
    %2370 = vmatmul.mubr.f32.gmra.mxu0 %v2302
    %v2371 = vpop.f32.mrf.mxu0
    %v2372 = vadd.f32 0.0, %v2371
    %v2373 = vpop.f32.mrf.mxu0
    %2374 = vmatprep.mubr.f32.mxu0 0.0
    %2375 = vmatmul.mubr.f32.gmra.mxu0 %v2304
    %v2376 = vpop.f32.mrf.mxu0
    %v2377 = vadd.f32 0.0, %v2376
    %v2378 = vpop.f32.mrf.mxu0
    %2379 = vdwg.mxu0
    %v2380 = vlaneseq
    %v2381 = vshrl.u32 %v2380, 7
    %v2382 = vsub.s32 0, %v2381
    %v2383 = vrot.slane %v2286, %v2382
    %v2384 = vmul.f32 %v2302, %v2383
    %v2385 = vmul.f32 %v2304, %v2383
    %2386 = vmatprep.subr.mxu0 0.0
    %2387 = vmatpush1.msra.mxu0 %v1805
    %2388 = vmatprep.subr.mxu0 0.0
    %2389 = vmatpush1.msra.mxu0 %v1804
    %2390 = vmatprep.subr.mxu0 0.0
    %2391 = vmatpush1.msra.mxu0 %v1803
    %2392 = vmatprep.subr.mxu0 0.0
    %2393 = vmatpush1.msra.mxu0 %v1802
    %2394 = vmatprep.subr.mxu0 0.0
    %2395 = vmatpush1.msra.mxu0 %v1801
    %2396 = vmatprep.subr.mxu0 0.0
    %2397 = vmatpush1.msra.mxu0 %v1800
    %2398 = vmatprep.subr.mxu0 0.0
    %2399 = vmatpush1.msra.mxu0 %v1799
    %2400 = vmatprep.subr.mxu0 0.0
    %2401 = vmatpush1.msra.mxu0 %v1798
    %2402 = vmatprep.subr.mxu0 0.0
    %2403 = vmatpush1.msra.mxu0 %v1797
    %2404 = vmatprep.subr.mxu0 0.0
    %2405 = vmatpush1.msra.mxu0 %v1796
    %2406 = vmatprep.subr.mxu0 0.0
    %2407 = vmatpush1.msra.mxu0 %v1795
    %2408 = vmatprep.subr.mxu0 0.0
    %2409 = vmatpush1.msra.mxu0 %v1794
    %2410 = vmatprep.subr.mxu0 0.0
    %2411 = vmatpush1.msra.mxu0 %v1793
    %2412 = vmatprep.subr.mxu0 0.0
    %2413 = vmatpush1.msra.mxu0 %v1792
    %2414 = vmatprep.subr.mxu0 0.0
    %2415 = vmatpush1.msra.mxu0 %v1791
    %2416 = vmatprep.subr.mxu0 0.0
    %2417 = vmatpush1.msra.mxu0 %v1790
    %2418 = vmatprep.subr.mxu0 0.0
    %2419 = vmatpush2.msra.mxu0 0.0
    %2420 = vmatprep.subr.mxu0 0.0
    %2421 = vmatpush2.msra.mxu0 0.0
    %2422 = vmatprep.subr.mxu0 0.0
    %2423 = vmatpush2.msra.mxu0 0.0
    %2424 = vmatprep.subr.mxu0 0.0
    %2425 = vmatpush2.msra.mxu0 0.0
    %2426 = vmatprep.subr.mxu0 0.0
    %2427 = vmatpush2.msra.mxu0 0.0
    %2428 = vmatprep.subr.mxu0 0.0
    %2429 = vmatpush2.msra.mxu0 0.0
    %2430 = vmatprep.subr.mxu0 0.0
    %2431 = vmatpush2.msra.mxu0 0.0
    %2432 = vmatprep.subr.mxu0 0.0
    %2433 = vmatpush2.msra.mxu0 0.0
    %2434 = vmatprep.subr.mxu0 0.0
    %2435 = vmatpush2.msra.mxu0 0.0
    %2436 = vmatprep.subr.mxu0 0.0
    %2437 = vmatpush2.msra.mxu0 0.0
    %2438 = vmatprep.subr.mxu0 0.0
    %2439 = vmatpush2.msra.mxu0 0.0
    %2440 = vmatprep.subr.mxu0 0.0
    %2441 = vmatpush2.msra.mxu0 0.0
    %2442 = vmatprep.subr.mxu0 0.0
    %2443 = vmatpush2.msra.mxu0 0.0
    %2444 = vmatprep.subr.mxu0 0.0
    %2445 = vmatpush2.msra.mxu0 0.0
    %2446 = vmatprep.subr.mxu0 0.0
    %2447 = vmatpush2.msra.mxu0 0.0
    %2448 = vmatprep.subr.mxu0 0.0
    %2449 = vmatpush2.msra.mxu0 0.0
    %2450 = vmatprep.mubr.f32.mxu0 0.0
    %2451 = vmatmul.mubr.f32.gmra.mxu0 %v2384
    %v2452 = vpop.f32.mrf.mxu0
    %v2453 = vadd.f32 0.0, %v2452
    %v2454 = vpop.f32.mrf.mxu0
    %2455 = vmatprep.mubr.f32.mxu0 0.0
    %2456 = vmatmul.mubr.f32.gmra.mxu0 %v2385
    %v2457 = vpop.f32.mrf.mxu0
    %v2458 = vadd.f32 0.0, %v2457
    %v2459 = vpop.f32.mrf.mxu0
    %2460 = vdwg.mxu0
    %v2461 = vrcp.pop %v2372
    %v2462 = vmul.f32 %v2453, %v2461
    %v2463 = vrcp.pop %v2377
    %v2464 = vmul.f32 %v2458, %v2463
    %v2465 = vld [vmem:[%s49] sm:$0xff]
    %v2466 = vld [vmem:[%s51] sm:$0x1]
    %v2468 = vlaneseq
    %v2469 = vshrl.u32 %v2468, 7
    %v2470 = vsub.s32 0, %v2469
    %v2471 = vrot.slane %v2466, %v2470
    %v2474 = vsel %vm1296, %v2462, 0
    %v2477 = vsel %vm1296, %v2464, 0
    %2479 = vmatprep.subr.mxu0 0.0
    %2480 = vmatpush1.msra.mxu0 0.0
    %2481 = vmatprep.subr.mxu0 0.0
    %2482 = vmatpush1.msra.mxu0 0.0
    %2483 = vmatprep.subr.mxu0 0.0
    %2484 = vmatpush1.msra.mxu0 0.0
    %2485 = vmatprep.subr.mxu0 0.0
    %2486 = vmatpush1.msra.mxu0 0.0
    %2487 = vmatprep.subr.mxu0 0.0
    %2488 = vmatpush1.msra.mxu0 0.0
    %2489 = vmatprep.subr.mxu0 0.0
    %2490 = vmatpush1.msra.mxu0 0.0
    %2491 = vmatprep.subr.mxu0 0.0
    %2492 = vmatpush1.msra.mxu0 0.0
    %2493 = vmatprep.subr.mxu0 0.0
    %2494 = vmatpush1.msra.mxu0 0.0
    %2495 = vmatprep.subr.mxu0 0.0
    %2496 = vmatpush1.msra.mxu0 0.0
    %2497 = vmatprep.subr.mxu0 0.0
    %2498 = vmatpush1.msra.mxu0 0.0
    %2499 = vmatprep.subr.mxu0 0.0
    %2500 = vmatpush1.msra.mxu0 0.0
    %2501 = vmatprep.subr.mxu0 0.0
    %2502 = vmatpush1.msra.mxu0 0.0
    %2503 = vmatprep.subr.mxu0 0.0
    %2504 = vmatpush1.msra.mxu0 0.0
    %2505 = vmatprep.subr.mxu0 0.0
    %2506 = vmatpush1.msra.mxu0 0.0
    %2507 = vmatprep.subr.mxu0 0.0
    %2508 = vmatpush1.msra.mxu0 0.0
    %2509 = vmatprep.subr.mxu0 0.0
    %2510 = vmatpush1.msra.mxu0 %v2465
    %2511 = vmatprep.subr.mxu0 0.0
    %2512 = vmatpush2.msra.mxu0 0.0
    %2513 = vmatprep.subr.mxu0 0.0
    %2514 = vmatpush2.msra.mxu0 0.0
    %2515 = vmatprep.subr.mxu0 0.0
    %2516 = vmatpush2.msra.mxu0 0.0
    %2517 = vmatprep.subr.mxu0 0.0
    %2518 = vmatpush2.msra.mxu0 0.0
    %2519 = vmatprep.subr.mxu0 0.0
    %2520 = vmatpush2.msra.mxu0 0.0
    %2521 = vmatprep.subr.mxu0 0.0
    %2522 = vmatpush2.msra.mxu0 0.0
    %2523 = vmatprep.subr.mxu0 0.0
    %2524 = vmatpush2.msra.mxu0 0.0
    %2525 = vmatprep.subr.mxu0 0.0
    %2526 = vmatpush2.msra.mxu0 0.0
    %2527 = vmatprep.subr.mxu0 0.0
    %2528 = vmatpush2.msra.mxu0 0.0
    %2529 = vmatprep.subr.mxu0 0.0
    %2530 = vmatpush2.msra.mxu0 0.0
    %2531 = vmatprep.subr.mxu0 0.0
    %2532 = vmatpush2.msra.mxu0 0.0
    %2533 = vmatprep.subr.mxu0 0.0
    %2534 = vmatpush2.msra.mxu0 0.0
    %2535 = vmatprep.subr.mxu0 0.0
    %2536 = vmatpush2.msra.mxu0 0.0
    %2537 = vmatprep.subr.mxu0 0.0
    %2538 = vmatpush2.msra.mxu0 0.0
    %2539 = vmatprep.subr.mxu0 0.0
    %2540 = vmatpush2.msra.mxu0 0.0
    %2541 = vmatprep.subr.mxu0 0.0
    %2542 = vmatpush2.msra.mxu0 0.0
    %2543 = vmatprep.mubr.f32.mxu0 0.0
    %2544 = vmatmul.mubr.f32.gmra.mxu0 %v2474
    %v2545 = vpop.f32.mrf.mxu0
    %v2546 = vadd.f32 %v2471, %v2545
    %v2547 = vpop.f32.mrf.mxu0
    %2548 = vmatprep.mubr.f32.mxu0 0.0
    %2549 = vmatmul.mubr.f32.gmra.mxu0 %v2477
    %v2550 = vpop.f32.mrf.mxu0
    %v2551 = vadd.f32 %v2471, %v2550
    %v2552 = vpop.f32.mrf.mxu0
    %2553 = vdwg.mxu0
    %v2554 = vadd.f32 %v1779, %v2546
    %v2555 = vadd.f32 %v1784, %v2551
    %v2556 = vld [vmem:[%s53] sm:$0x1]
    %v2557 = vld [vmem:[%s55] sm:$0x1]
    %v2558 = vsel %vm1296, %v2554, 0.0
    %2559 = vadd.xlane.f32.xlu0 %v2558
    %v2560 = vpop.xlane.xlu0 %2559
    %v2561 = vsel %vm1296, %v2555, 0.0
    %2562 = vadd.xlane.f32.xlu0 %v2561
    %v2563 = vpop.xlane.xlu0 %2562
    %v2564 = vrcp.pop 8.0
    %v2565 = vmul.f32 %v2560, %v2564
    %v2566 = vmul.f32 %v2563, %v2564
    %v2567 = vsub.f32 %v2554, %v2565
    %v2568 = vsub.f32 %v2555, %v2566
    %v2569 = vmul.f32 %v2567, %v2567
    %v2570 = vmul.f32 %v2568, %v2568
    %v2571 = vsel %vm1296, %v2569, 0.0
    %2572 = vadd.xlane.f32.xlu0 %v2571
    %v2573 = vpop.xlane.xlu0 %2572
    %v2574 = vsel %vm1296, %v2570, 0.0
    %2575 = vadd.xlane.f32.xlu0 %v2574
    %v2576 = vpop.xlane.xlu0 %2575
    %v2577 = vmul.f32 %v2573, %v2564
    %v2578 = vmul.f32 %v2576, %v2564
    %v2579 = vadd.f32 %v2577, 1e-05
    %v2580 = vadd.f32 %v2578, 1e-05
    %v2581 = vrsqrt.pop %v2579
    %v2582 = vrsqrt.pop %v2580
    %v2583 = vmul.f32 %v2567, %v2581
    %v2584 = vmul.f32 %v2568, %v2582
    %v2586 = vlaneseq
    %v2587 = vshrl.u32 %v2586, 7
    %v2588 = vsub.s32 0, %v2587
    %v2589 = vrot.slane %v2556, %v2588
    %v2591 = vmul.f32 %v2583, %v2589
    %v2592 = vmul.f32 %v2584, %v2589
    %v2594 = vlaneseq
    %v2595 = vshrl.u32 %v2594, 7
    %v2596 = vsub.s32 0, %v2595
    %v2597 = vrot.slane %v2557, %v2596
    %v2599 = vadd.f32 %v2591, %v2597
    %v2600 = vadd.f32 %v2592, %v2597
    %v2601 = vld [vmem:[%s57] sm:$0xff]
    %v2602 = vld [vmem:[%s59] sm:$0x1]
    %v2604 = vlaneseq
    %v2605 = vshrl.u32 %v2604, 7
    %v2606 = vsub.s32 0, %v2605
    %v2607 = vrot.slane %v2602, %v2606
    %v2610 = vsel %vm1296, %v2599, 0
    %v2613 = vsel %vm1296, %v2600, 0
    %2615 = vmatprep.subr.mxu0 0.0
    %2616 = vmatpush1.msra.mxu0 0.0
    %2617 = vmatprep.subr.mxu0 0.0
    %2618 = vmatpush1.msra.mxu0 0.0
    %2619 = vmatprep.subr.mxu0 0.0
    %2620 = vmatpush1.msra.mxu0 0.0
    %2621 = vmatprep.subr.mxu0 0.0
    %2622 = vmatpush1.msra.mxu0 0.0
    %2623 = vmatprep.subr.mxu0 0.0
    %2624 = vmatpush1.msra.mxu0 0.0
    %2625 = vmatprep.subr.mxu0 0.0
    %2626 = vmatpush1.msra.mxu0 0.0
    %2627 = vmatprep.subr.mxu0 0.0
    %2628 = vmatpush1.msra.mxu0 0.0
    %2629 = vmatprep.subr.mxu0 0.0
    %2630 = vmatpush1.msra.mxu0 0.0
    %2631 = vmatprep.subr.mxu0 0.0
    %2632 = vmatpush1.msra.mxu0 0.0
    %2633 = vmatprep.subr.mxu0 0.0
    %2634 = vmatpush1.msra.mxu0 0.0
    %2635 = vmatprep.subr.mxu0 0.0
    %2636 = vmatpush1.msra.mxu0 0.0
    %2637 = vmatprep.subr.mxu0 0.0
    %2638 = vmatpush1.msra.mxu0 0.0
    %2639 = vmatprep.subr.mxu0 0.0
    %2640 = vmatpush1.msra.mxu0 0.0
    %2641 = vmatprep.subr.mxu0 0.0
    %2642 = vmatpush1.msra.mxu0 0.0
    %2643 = vmatprep.subr.mxu0 0.0
    %2644 = vmatpush1.msra.mxu0 0.0
    %2645 = vmatprep.subr.mxu0 0.0
    %2646 = vmatpush1.msra.mxu0 %v2601
    %2647 = vmatprep.subr.mxu0 0.0
    %2648 = vmatpush2.msra.mxu0 0.0
    %2649 = vmatprep.subr.mxu0 0.0
    %2650 = vmatpush2.msra.mxu0 0.0
    %2651 = vmatprep.subr.mxu0 0.0
    %2652 = vmatpush2.msra.mxu0 0.0
    %2653 = vmatprep.subr.mxu0 0.0
    %2654 = vmatpush2.msra.mxu0 0.0
    %2655 = vmatprep.subr.mxu0 0.0
    %2656 = vmatpush2.msra.mxu0 0.0
    %2657 = vmatprep.subr.mxu0 0.0
    %2658 = vmatpush2.msra.mxu0 0.0
    %2659 = vmatprep.subr.mxu0 0.0
    %2660 = vmatpush2.msra.mxu0 0.0
    %2661 = vmatprep.subr.mxu0 0.0
    %2662 = vmatpush2.msra.mxu0 0.0
    %2663 = vmatprep.subr.mxu0 0.0
    %2664 = vmatpush2.msra.mxu0 0.0
    %2665 = vmatprep.subr.mxu0 0.0
    %2666 = vmatpush2.msra.mxu0 0.0
    %2667 = vmatprep.subr.mxu0 0.0
    %2668 = vmatpush2.msra.mxu0 0.0
    %2669 = vmatprep.subr.mxu0 0.0
    %2670 = vmatpush2.msra.mxu0 0.0
    %2671 = vmatprep.subr.mxu0 0.0
    %2672 = vmatpush2.msra.mxu0 0.0
    %2673 = vmatprep.subr.mxu0 0.0
    %2674 = vmatpush2.msra.mxu0 0.0
    %2675 = vmatprep.subr.mxu0 0.0
    %2676 = vmatpush2.msra.mxu0 0.0
    %2677 = vmatprep.subr.mxu0 0.0
    %2678 = vmatpush2.msra.mxu0 0.0
    %2679 = vmatprep.mubr.f32.mxu0 0.0
    %2680 = vmatmul.mubr.f32.gmra.mxu0 %v2610
    %v2681 = vpop.f32.mrf.mxu0
    %v2682 = vadd.f32 %v2607, %v2681
    %v2683 = vpop.f32.mrf.mxu0
    %2684 = vmatprep.mubr.f32.mxu0 0.0
    %2685 = vmatmul.mubr.f32.gmra.mxu0 %v2613
    %v2686 = vpop.f32.mrf.mxu0
    %v2687 = vadd.f32 %v2607, %v2686
    %v2688 = vpop.f32.mrf.mxu0
    %2689 = vdwg.mxu0
    %v2690 = vmul.f32 %v2682, 0.5
    %v2691 = vmul.f32 %v2687, 0.5
    %v2692 = vmul.f32 %v2682, 0.044715
    %v2693 = vmul.f32 %v2687, 0.044715
    %v2694 = vmul.f32 %v2692, %v2682
    %v2695 = vmul.f32 %v2693, %v2687
    %v2696 = vmul.f32 %v2694, %v2682
    %v2697 = vmul.f32 %v2695, %v2687
    %v2698 = vadd.f32 %v2682, %v2696
    %v2699 = vadd.f32 %v2687, %v2697
    %v2700 = vmul.f32 %v2698, 0.7978846
    %v2701 = vmul.f32 %v2699, 0.7978846
    %v2702 = vtanh.pop %v2700
    %v2703 = vtanh.pop %v2701
    %v2704 = vadd.f32 %v2702, 1.0
    %v2705 = vadd.f32 %v2703, 1.0
    %v2706 = vmul.f32 %v2690, %v2704
    %v2707 = vmul.f32 %v2691, %v2705
    %v2708 = vld [vmem:[%s61] sm:$0xff]
    %v2709 = vld [vmem:[%s61 + $0x8] sm:$0xff]
    %v2710 = vld [vmem:[%s61 + $0x10] sm:$0xff]
    %v2711 = vld [vmem:[%s61 + $0x18] sm:$0xff]
    %v2712 = vld [vmem:[%s63] sm:$0x1]
    %v2714 = vlaneseq
    %v2715 = vshrl.u32 %v2714, 7
    %v2716 = vsub.s32 0, %v2715
    %v2717 = vrot.slane %v2712, %v2716
    %v2720 = vsel %vm1565, %v2706, 0
    %v2723 = vsel %vm1565, %v2707, 0
    %2725 = vmatprep.subr.mxu0 0.0
    %2726 = vmatpush1.msra.mxu0 0.0
    %2727 = vmatprep.subr.mxu0 0.0
    %2728 = vmatpush1.msra.mxu0 0.0
    %2729 = vmatprep.subr.mxu0 0.0
    %2730 = vmatpush1.msra.mxu0 0.0
    %2731 = vmatprep.subr.mxu0 0.0
    %2732 = vmatpush1.msra.mxu0 0.0
    %2733 = vmatprep.subr.mxu0 0.0
    %2734 = vmatpush1.msra.mxu0 0.0
    %2735 = vmatprep.subr.mxu0 0.0
    %2736 = vmatpush1.msra.mxu0 0.0
    %2737 = vmatprep.subr.mxu0 0.0
    %2738 = vmatpush1.msra.mxu0 0.0
    %2739 = vmatprep.subr.mxu0 0.0
    %2740 = vmatpush1.msra.mxu0 0.0
    %2741 = vmatprep.subr.mxu0 0.0
    %2742 = vmatpush1.msra.mxu0 0.0
    %2743 = vmatprep.subr.mxu0 0.0
    %2744 = vmatpush1.msra.mxu0 0.0
    %2745 = vmatprep.subr.mxu0 0.0
    %2746 = vmatpush1.msra.mxu0 0.0
    %2747 = vmatprep.subr.mxu0 0.0
    %2748 = vmatpush1.msra.mxu0 0.0
    %2749 = vmatprep.subr.mxu0 0.0
    %2750 = vmatpush1.msra.mxu0 %v2711
    %2751 = vmatprep.subr.mxu0 0.0
    %2752 = vmatpush1.msra.mxu0 %v2710
    %2753 = vmatprep.subr.mxu0 0.0
    %2754 = vmatpush1.msra.mxu0 %v2709
    %2755 = vmatprep.subr.mxu0 0.0
    %2756 = vmatpush1.msra.mxu0 %v2708
    %2757 = vmatprep.subr.mxu0 0.0
    %2758 = vmatpush2.msra.mxu0 0.0
    %2759 = vmatprep.subr.mxu0 0.0
    %2760 = vmatpush2.msra.mxu0 0.0
    %2761 = vmatprep.subr.mxu0 0.0
    %2762 = vmatpush2.msra.mxu0 0.0
    %2763 = vmatprep.subr.mxu0 0.0
    %2764 = vmatpush2.msra.mxu0 0.0
    %2765 = vmatprep.subr.mxu0 0.0
    %2766 = vmatpush2.msra.mxu0 0.0
    %2767 = vmatprep.subr.mxu0 0.0
    %2768 = vmatpush2.msra.mxu0 0.0
    %2769 = vmatprep.subr.mxu0 0.0
    %2770 = vmatpush2.msra.mxu0 0.0
    %2771 = vmatprep.subr.mxu0 0.0
    %2772 = vmatpush2.msra.mxu0 0.0
    %2773 = vmatprep.subr.mxu0 0.0
    %2774 = vmatpush2.msra.mxu0 0.0
    %2775 = vmatprep.subr.mxu0 0.0
    %2776 = vmatpush2.msra.mxu0 0.0
    %2777 = vmatprep.subr.mxu0 0.0
    %2778 = vmatpush2.msra.mxu0 0.0
    %2779 = vmatprep.subr.mxu0 0.0
    %2780 = vmatpush2.msra.mxu0 0.0
    %2781 = vmatprep.subr.mxu0 0.0
    %2782 = vmatpush2.msra.mxu0 0.0
    %2783 = vmatprep.subr.mxu0 0.0
    %2784 = vmatpush2.msra.mxu0 0.0
    %2785 = vmatprep.subr.mxu0 0.0
    %2786 = vmatpush2.msra.mxu0 0.0
    %2787 = vmatprep.subr.mxu0 0.0
    %2788 = vmatpush2.msra.mxu0 0.0
    %2789 = vmatprep.mubr.f32.mxu0 0.0
    %2790 = vmatmul.mubr.f32.gmra.mxu0 %v2720
    %v2791 = vpop.f32.mrf.mxu0
    %v2792 = vadd.f32 %v2717, %v2791
    %v2793 = vpop.f32.mrf.mxu0
    %2794 = vmatprep.mubr.f32.mxu0 0.0
    %2795 = vmatmul.mubr.f32.gmra.mxu0 %v2723
    %v2796 = vpop.f32.mrf.mxu0
    %v2797 = vadd.f32 %v2717, %v2796
    %v2798 = vpop.f32.mrf.mxu0
    %2799 = vdwg.mxu0
    %v2800 = vadd.f32 %v2599, %v2792
    %v2801 = vadd.f32 %v2600, %v2797
    %v2802 = vld [vmem:[%s65] sm:$0x1]
    %v2803 = vld [vmem:[%s67] sm:$0x1]
    %v2804 = vsel %vm1296, %v2800, 0.0
    %2805 = vadd.xlane.f32.xlu0 %v2804
    %v2806 = vpop.xlane.xlu0 %2805
    %v2807 = vsel %vm1296, %v2801, 0.0
    %2808 = vadd.xlane.f32.xlu0 %v2807
    %v2809 = vpop.xlane.xlu0 %2808
    %v2810 = vmul.f32 %v2806, %v2564
    %v2811 = vmul.f32 %v2809, %v2564
    %v2812 = vsub.f32 %v2800, %v2810
    %v2813 = vsub.f32 %v2801, %v2811
    %v2814 = vmul.f32 %v2812, %v2812
    %v2815 = vmul.f32 %v2813, %v2813
    %v2816 = vsel %vm1296, %v2814, 0.0
    %2817 = vadd.xlane.f32.xlu0 %v2816
    %v2818 = vpop.xlane.xlu0 %2817
    %v2819 = vsel %vm1296, %v2815, 0.0
    %2820 = vadd.xlane.f32.xlu0 %v2819
    %v2821 = vpop.xlane.xlu0 %2820
    %v2822 = vmul.f32 %v2818, %v2564
    %v2823 = vmul.f32 %v2821, %v2564
    %v2824 = vadd.f32 %v2822, 1e-05
    %v2825 = vadd.f32 %v2823, 1e-05
    %v2826 = vrsqrt.pop %v2824
    %v2827 = vrsqrt.pop %v2825
    %v2828 = vmul.f32 %v2812, %v2826
    %v2829 = vmul.f32 %v2813, %v2827
    %v2831 = vlaneseq
    %v2832 = vshrl.u32 %v2831, 7
    %v2833 = vsub.s32 0, %v2832
    %v2834 = vrot.slane %v2802, %v2833
    %v2836 = vmul.f32 %v2828, %v2834
    %v2837 = vmul.f32 %v2829, %v2834
    %v2839 = vlaneseq
    %v2840 = vshrl.u32 %v2839, 7
    %v2841 = vsub.s32 0, %v2840
    %v2842 = vrot.slane %v2803, %v2841
    %v2844 = vadd.f32 %v2836, %v2842
    %v2845 = vadd.f32 %v2837, %v2842
    %s2846 = scalar_lea.vmem %s45, 8
    %v2847 = vld [vmem:[%s2846] sm:$0xff]
    %s2848 = scalar_lea.vmem %s47, 1
    %v2849 = vld [vmem:[%s2848] sm:$0x1]
    %v2851 = vlaneseq
    %v2852 = vshrl.u32 %v2851, 7
    %v2853 = vsub.s32 0, %v2852
    %v2854 = vrot.slane %v2849, %v2853
    %v2857 = vsel %vm1296, %v2844, 0
    %v2860 = vsel %vm1296, %v2845, 0
    %2862 = vmatprep.subr.mxu0 0.0
    %2863 = vmatpush1.msra.mxu0 0.0
    %2864 = vmatprep.subr.mxu0 0.0
    %2865 = vmatpush1.msra.mxu0 0.0
    %2866 = vmatprep.subr.mxu0 0.0
    %2867 = vmatpush1.msra.mxu0 0.0
    %2868 = vmatprep.subr.mxu0 0.0
    %2869 = vmatpush1.msra.mxu0 0.0
    %2870 = vmatprep.subr.mxu0 0.0
    %2871 = vmatpush1.msra.mxu0 0.0
    %2872 = vmatprep.subr.mxu0 0.0
    %2873 = vmatpush1.msra.mxu0 0.0
    %2874 = vmatprep.subr.mxu0 0.0
    %2875 = vmatpush1.msra.mxu0 0.0
    %2876 = vmatprep.subr.mxu0 0.0
    %2877 = vmatpush1.msra.mxu0 0.0
    %2878 = vmatprep.subr.mxu0 0.0
    %2879 = vmatpush1.msra.mxu0 0.0
    %2880 = vmatprep.subr.mxu0 0.0
    %2881 = vmatpush1.msra.mxu0 0.0
    %2882 = vmatprep.subr.mxu0 0.0
    %2883 = vmatpush1.msra.mxu0 0.0
    %2884 = vmatprep.subr.mxu0 0.0
    %2885 = vmatpush1.msra.mxu0 0.0
    %2886 = vmatprep.subr.mxu0 0.0
    %2887 = vmatpush1.msra.mxu0 0.0
    %2888 = vmatprep.subr.mxu0 0.0
    %2889 = vmatpush1.msra.mxu0 0.0
    %2890 = vmatprep.subr.mxu0 0.0
    %2891 = vmatpush1.msra.mxu0 0.0
    %2892 = vmatprep.subr.mxu0 0.0
    %2893 = vmatpush1.msra.mxu0 %v2847
    %2894 = vmatprep.subr.mxu0 0.0
    %2895 = vmatpush2.msra.mxu0 0.0
    %2896 = vmatprep.subr.mxu0 0.0
    %2897 = vmatpush2.msra.mxu0 0.0
    %2898 = vmatprep.subr.mxu0 0.0
    %2899 = vmatpush2.msra.mxu0 0.0
    %2900 = vmatprep.subr.mxu0 0.0
    %2901 = vmatpush2.msra.mxu0 0.0
    %2902 = vmatprep.subr.mxu0 0.0
    %2903 = vmatpush2.msra.mxu0 0.0
    %2904 = vmatprep.subr.mxu0 0.0
    %2905 = vmatpush2.msra.mxu0 0.0
    %2906 = vmatprep.subr.mxu0 0.0
    %2907 = vmatpush2.msra.mxu0 0.0
    %2908 = vmatprep.subr.mxu0 0.0
    %2909 = vmatpush2.msra.mxu0 0.0
    %2910 = vmatprep.subr.mxu0 0.0
    %2911 = vmatpush2.msra.mxu0 0.0
    %2912 = vmatprep.subr.mxu0 0.0
    %2913 = vmatpush2.msra.mxu0 0.0
    %2914 = vmatprep.subr.mxu0 0.0
    %2915 = vmatpush2.msra.mxu0 0.0
    %2916 = vmatprep.subr.mxu0 0.0
    %2917 = vmatpush2.msra.mxu0 0.0
    %2918 = vmatprep.subr.mxu0 0.0
    %2919 = vmatpush2.msra.mxu0 0.0
    %2920 = vmatprep.subr.mxu0 0.0
    %2921 = vmatpush2.msra.mxu0 0.0
    %2922 = vmatprep.subr.mxu0 0.0
    %2923 = vmatpush2.msra.mxu0 0.0
    %2924 = vmatprep.subr.mxu0 0.0
    %2925 = vmatpush2.msra.mxu0 0.0
    %2926 = vmatprep.mubr.f32.mxu0 0.0
    %2927 = vmatmul.mubr.f32.gmra.mxu0 %v2857
    %v2928 = vpop.f32.mrf.mxu0
    %v2929 = vadd.f32 %v2854, %v2928
    %v2930 = vpop.f32.mrf.mxu0
    %2931 = vmatprep.mubr.f32.mxu0 0.0
    %2932 = vmatmul.mubr.f32.gmra.mxu0 %v2860
    %v2933 = vpop.f32.mrf.mxu0
    %v2934 = vadd.f32 %v2854, %v2933
    %v2935 = vpop.f32.mrf.mxu0
    %2936 = vdwg.mxu0
    %v2938 = vsel %vm1296, %v2929, 0
    %v2941 = vsel %vm1296, %v2934, 0
    %2943 = vmatprep.subr.mxu0 0.0
    %2944 = vmatpush1.msra.mxu0 0.0
    %2945 = vmatprep.subr.mxu0 0.0
    %2946 = vmatpush1.msra.mxu0 0.0
    %2947 = vmatprep.subr.mxu0 0.0
    %2948 = vmatpush1.msra.mxu0 0.0
    %2949 = vmatprep.subr.mxu0 0.0
    %2950 = vmatpush1.msra.mxu0 0.0
    %2951 = vmatprep.subr.mxu0 0.0
    %2952 = vmatpush1.msra.mxu0 0.0
    %2953 = vmatprep.subr.mxu0 0.0
    %2954 = vmatpush1.msra.mxu0 0.0
    %2955 = vmatprep.subr.mxu0 0.0
    %2956 = vmatpush1.msra.mxu0 0.0
    %2957 = vmatprep.subr.mxu0 0.0
    %2958 = vmatpush1.msra.mxu0 0.0
    %2959 = vmatprep.subr.mxu0 0.0
    %2960 = vmatpush1.msra.mxu0 0.0
    %2961 = vmatprep.subr.mxu0 0.0
    %2962 = vmatpush1.msra.mxu0 0.0
    %2963 = vmatprep.subr.mxu0 0.0
    %2964 = vmatpush1.msra.mxu0 0.0
    %2965 = vmatprep.subr.mxu0 0.0
    %2966 = vmatpush1.msra.mxu0 0.0
    %2967 = vmatprep.subr.mxu0 0.0
    %2968 = vmatpush1.msra.mxu0 0.0
    %2969 = vmatprep.subr.mxu0 0.0
    %2970 = vmatpush1.msra.mxu0 0.0
    %2971 = vmatprep.subr.mxu0 0.0
    %2972 = vmatpush1.msra.mxu0 0.0
    %2973 = vmatprep.subr.mxu0 0.0
    %2974 = vmatpush1.msra.mxu0 %v1787
    %2975 = vmatprep.subr.mxu0 0.0
    %2976 = vmatpush2.msra.mxu0 0.0
    %2977 = vmatprep.subr.mxu0 0.0
    %2978 = vmatpush2.msra.mxu0 0.0
    %2979 = vmatprep.subr.mxu0 0.0
    %2980 = vmatpush2.msra.mxu0 0.0
    %2981 = vmatprep.subr.mxu0 0.0
    %2982 = vmatpush2.msra.mxu0 0.0
    %2983 = vmatprep.subr.mxu0 0.0
    %2984 = vmatpush2.msra.mxu0 0.0
    %2985 = vmatprep.subr.mxu0 0.0
    %2986 = vmatpush2.msra.mxu0 0.0
    %2987 = vmatprep.subr.mxu0 0.0
    %2988 = vmatpush2.msra.mxu0 0.0
    %2989 = vmatprep.subr.mxu0 0.0
    %2990 = vmatpush2.msra.mxu0 0.0
    %2991 = vmatprep.subr.mxu0 0.0
    %2992 = vmatpush2.msra.mxu0 0.0
    %2993 = vmatprep.subr.mxu0 0.0
    %2994 = vmatpush2.msra.mxu0 0.0
    %2995 = vmatprep.subr.mxu0 0.0
    %2996 = vmatpush2.msra.mxu0 0.0
    %2997 = vmatprep.subr.mxu0 0.0
    %2998 = vmatpush2.msra.mxu0 0.0
    %2999 = vmatprep.subr.mxu0 0.0
    %3000 = vmatpush2.msra.mxu0 0.0
    %3001 = vmatprep.subr.mxu0 0.0
    %3002 = vmatpush2.msra.mxu0 0.0
    %3003 = vmatprep.subr.mxu0 0.0
    %3004 = vmatpush2.msra.mxu0 0.0
    %3005 = vmatprep.subr.mxu0 0.0
    %3006 = vmatpush2.msra.mxu0 0.0
    %3007 = vmatprep.mubr.f32.mxu0 0.0
    %3008 = vmatmul.mubr.f32.gmra.mxu0 %v2938
    %v3009 = vpop.f32.mrf.mxu0
    %v3010 = vadd.f32 0.0, %v3009
    %v3011 = vpop.f32.mrf.mxu0
    %3012 = vmatprep.mubr.f32.mxu0 0.0
    %3013 = vmatmul.mubr.f32.gmra.mxu0 %v2941
    %v3014 = vpop.f32.mrf.mxu0
    %v3015 = vadd.f32 0.0, %v3014
    %v3016 = vpop.f32.mrf.mxu0
    %3017 = vdwg.mxu0
    %3018 = vrot.lane.b32.xlu0 %v2929, 120
    %v3019 = vpop.permute.xlu0 %3018
    %3020 = vrot.lane.b32.xlu0 %v2934, 120
    %v3021 = vpop.permute.xlu0 %3020
    %v3022 = vsel %vm1296, %v3019, 0
    %v3024 = vsel %vm1296, %v3021, 0
    %3026 = vmatprep.subr.mxu0 0.0
    %3027 = vmatpush1.msra.mxu0 0.0
    %3028 = vmatprep.subr.mxu0 0.0
    %3029 = vmatpush1.msra.mxu0 0.0
    %3030 = vmatprep.subr.mxu0 0.0
    %3031 = vmatpush1.msra.mxu0 0.0
    %3032 = vmatprep.subr.mxu0 0.0
    %3033 = vmatpush1.msra.mxu0 0.0
    %3034 = vmatprep.subr.mxu0 0.0
    %3035 = vmatpush1.msra.mxu0 0.0
    %3036 = vmatprep.subr.mxu0 0.0
    %3037 = vmatpush1.msra.mxu0 0.0
    %3038 = vmatprep.subr.mxu0 0.0
    %3039 = vmatpush1.msra.mxu0 0.0
    %3040 = vmatprep.subr.mxu0 0.0
    %3041 = vmatpush1.msra.mxu0 0.0
    %3042 = vmatprep.subr.mxu0 0.0
    %3043 = vmatpush1.msra.mxu0 0.0
    %3044 = vmatprep.subr.mxu0 0.0
    %3045 = vmatpush1.msra.mxu0 0.0
    %3046 = vmatprep.subr.mxu0 0.0
    %3047 = vmatpush1.msra.mxu0 0.0
    %3048 = vmatprep.subr.mxu0 0.0
    %3049 = vmatpush1.msra.mxu0 0.0
    %3050 = vmatprep.subr.mxu0 0.0
    %3051 = vmatpush1.msra.mxu0 0.0
    %3052 = vmatprep.subr.mxu0 0.0
    %3053 = vmatpush1.msra.mxu0 0.0
    %3054 = vmatprep.subr.mxu0 0.0
    %3055 = vmatpush1.msra.mxu0 0.0
    %3056 = vmatprep.subr.mxu0 0.0
    %3057 = vmatpush1.msra.mxu0 %v1787
    %3058 = vmatprep.subr.mxu0 0.0
    %3059 = vmatpush2.msra.mxu0 0.0
    %3060 = vmatprep.subr.mxu0 0.0
    %3061 = vmatpush2.msra.mxu0 0.0
    %3062 = vmatprep.subr.mxu0 0.0
    %3063 = vmatpush2.msra.mxu0 0.0
    %3064 = vmatprep.subr.mxu0 0.0
    %3065 = vmatpush2.msra.mxu0 0.0
    %3066 = vmatprep.subr.mxu0 0.0
    %3067 = vmatpush2.msra.mxu0 0.0
    %3068 = vmatprep.subr.mxu0 0.0
    %3069 = vmatpush2.msra.mxu0 0.0
    %3070 = vmatprep.subr.mxu0 0.0
    %3071 = vmatpush2.msra.mxu0 0.0
    %3072 = vmatprep.subr.mxu0 0.0
    %3073 = vmatpush2.msra.mxu0 0.0
    %3074 = vmatprep.subr.mxu0 0.0
    %3075 = vmatpush2.msra.mxu0 0.0
    %3076 = vmatprep.subr.mxu0 0.0
    %3077 = vmatpush2.msra.mxu0 0.0
    %3078 = vmatprep.subr.mxu0 0.0
    %3079 = vmatpush2.msra.mxu0 0.0
    %3080 = vmatprep.subr.mxu0 0.0
    %3081 = vmatpush2.msra.mxu0 0.0
    %3082 = vmatprep.subr.mxu0 0.0
    %3083 = vmatpush2.msra.mxu0 0.0
    %3084 = vmatprep.subr.mxu0 0.0
    %3085 = vmatpush2.msra.mxu0 0.0
    %3086 = vmatprep.subr.mxu0 0.0
    %3087 = vmatpush2.msra.mxu0 0.0
    %3088 = vmatprep.subr.mxu0 0.0
    %3089 = vmatpush2.msra.mxu0 0.0
    %3090 = vmatprep.mubr.f32.mxu0 0.0
    %3091 = vmatmul.mubr.f32.gmra.mxu0 %v3022
    %v3092 = vpop.f32.mrf.mxu0
    %v3093 = vadd.f32 0.0, %v3092
    %v3094 = vpop.f32.mrf.mxu0
    %3095 = vmatprep.mubr.f32.mxu0 0.0
    %3096 = vmatmul.mubr.f32.gmra.mxu0 %v3024
    %v3097 = vpop.f32.mrf.mxu0
    %v3098 = vadd.f32 0.0, %v3097
    %v3099 = vpop.f32.mrf.mxu0
    %3100 = vdwg.mxu0
    %v3101 = vmul.f32 %v3093, %v1788
    %v3102 = vmul.f32 %v3098, %v1789
    %3103 = vmatprep.subr.mxu0 0.0
    %3104 = vmatpush1.msra.mxu0 0.0
    %3105 = vmatprep.subr.mxu0 0.0
    %3106 = vmatpush1.msra.mxu0 0.0
    %3107 = vmatprep.subr.mxu0 0.0
    %3108 = vmatpush1.msra.mxu0 0.0
    %3109 = vmatprep.subr.mxu0 0.0
    %3110 = vmatpush1.msra.mxu0 0.0
    %3111 = vmatprep.subr.mxu0 0.0
    %3112 = vmatpush1.msra.mxu0 0.0
    %3113 = vmatprep.subr.mxu0 0.0
    %3114 = vmatpush1.msra.mxu0 0.0
    %3115 = vmatprep.subr.mxu0 0.0
    %3116 = vmatpush1.msra.mxu0 0.0
    %3117 = vmatprep.subr.mxu0 0.0
    %3118 = vmatpush1.msra.mxu0 0.0
    %3119 = vmatprep.subr.mxu0 0.0
    %3120 = vmatpush1.msra.mxu0 0.0
    %3121 = vmatprep.subr.mxu0 0.0
    %3122 = vmatpush1.msra.mxu0 0.0
    %3123 = vmatprep.subr.mxu0 0.0
    %3124 = vmatpush1.msra.mxu0 0.0
    %3125 = vmatprep.subr.mxu0 0.0
    %3126 = vmatpush1.msra.mxu0 0.0
    %3127 = vmatprep.subr.mxu0 0.0
    %3128 = vmatpush1.msra.mxu0 0.0
    %3129 = vmatprep.subr.mxu0 0.0
    %3130 = vmatpush1.msra.mxu0 0.0
    %3131 = vmatprep.subr.mxu0 0.0
    %3132 = vmatpush1.msra.mxu0 %v3102
    %3133 = vmatprep.subr.mxu0 0.0
    %3134 = vmatpush1.msra.mxu0 %v3101
    %3135 = vmatprep.subr.mxu0 0.0
    %3136 = vmatpush2.msra.mxu0 0.0
    %3137 = vmatprep.subr.mxu0 0.0
    %3138 = vmatpush2.msra.mxu0 0.0
    %3139 = vmatprep.subr.mxu0 0.0
    %3140 = vmatpush2.msra.mxu0 0.0
    %3141 = vmatprep.subr.mxu0 0.0
    %3142 = vmatpush2.msra.mxu0 0.0
    %3143 = vmatprep.subr.mxu0 0.0
    %3144 = vmatpush2.msra.mxu0 0.0
    %3145 = vmatprep.subr.mxu0 0.0
    %3146 = vmatpush2.msra.mxu0 0.0
    %3147 = vmatprep.subr.mxu0 0.0
    %3148 = vmatpush2.msra.mxu0 0.0
    %3149 = vmatprep.subr.mxu0 0.0
    %3150 = vmatpush2.msra.mxu0 0.0
    %3151 = vmatprep.subr.mxu0 0.0
    %3152 = vmatpush2.msra.mxu0 0.0
    %3153 = vmatprep.subr.mxu0 0.0
    %3154 = vmatpush2.msra.mxu0 0.0
    %3155 = vmatprep.subr.mxu0 0.0
    %3156 = vmatpush2.msra.mxu0 0.0
    %3157 = vmatprep.subr.mxu0 0.0
    %3158 = vmatpush2.msra.mxu0 0.0
    %3159 = vmatprep.subr.mxu0 0.0
    %3160 = vmatpush2.msra.mxu0 0.0
    %3161 = vmatprep.subr.mxu0 0.0
    %3162 = vmatpush2.msra.mxu0 0.0
    %3163 = vmatprep.subr.mxu0 0.0
    %3164 = vmatpush2.msra.mxu0 0.0
    %3165 = vmatprep.subr.mxu0 0.0
    %3166 = vmatpush2.msra.mxu0 0.0
    %3167 = vmatprep.mubr.f32.mxu0 0.0
    %3168 = vmatmul.mubr.f32.gmra.mxu0 %v2062
    %v3169 = vpop.f32.mrf.mxu0
    %v3170 = vadd.f32 0.0, %v3169
    %v3171 = vpop.f32.mrf.mxu0
    %3172 = vdwg.mxu0
    %3173 = vrot.lane.b32.xlu0 %v2929, 112
    %v3174 = vpop.permute.xlu0 %3173
    %3175 = vrot.lane.b32.xlu0 %v2934, 112
    %v3176 = vpop.permute.xlu0 %3175
    %v3177 = vsel %vm1296, %v3174, 0
    %v3179 = vsel %vm1296, %v3176, 0
    %3181 = vmatprep.subr.mxu0 0.0
    %3182 = vmatpush1.msra.mxu0 0.0
    %3183 = vmatprep.subr.mxu0 0.0
    %3184 = vmatpush1.msra.mxu0 0.0
    %3185 = vmatprep.subr.mxu0 0.0
    %3186 = vmatpush1.msra.mxu0 0.0
    %3187 = vmatprep.subr.mxu0 0.0
    %3188 = vmatpush1.msra.mxu0 0.0
    %3189 = vmatprep.subr.mxu0 0.0
    %3190 = vmatpush1.msra.mxu0 0.0
    %3191 = vmatprep.subr.mxu0 0.0
    %3192 = vmatpush1.msra.mxu0 0.0
    %3193 = vmatprep.subr.mxu0 0.0
    %3194 = vmatpush1.msra.mxu0 0.0
    %3195 = vmatprep.subr.mxu0 0.0
    %3196 = vmatpush1.msra.mxu0 0.0
    %3197 = vmatprep.subr.mxu0 0.0
    %3198 = vmatpush1.msra.mxu0 0.0
    %3199 = vmatprep.subr.mxu0 0.0
    %3200 = vmatpush1.msra.mxu0 0.0
    %3201 = vmatprep.subr.mxu0 0.0
    %3202 = vmatpush1.msra.mxu0 0.0
    %3203 = vmatprep.subr.mxu0 0.0
    %3204 = vmatpush1.msra.mxu0 0.0
    %3205 = vmatprep.subr.mxu0 0.0
    %3206 = vmatpush1.msra.mxu0 0.0
    %3207 = vmatprep.subr.mxu0 0.0
    %3208 = vmatpush1.msra.mxu0 0.0
    %3209 = vmatprep.subr.mxu0 0.0
    %3210 = vmatpush1.msra.mxu0 0.0
    %3211 = vmatprep.subr.mxu0 0.0
    %3212 = vmatpush1.msra.mxu0 %v1787
    %3213 = vmatprep.subr.mxu0 0.0
    %3214 = vmatpush2.msra.mxu0 0.0
    %3215 = vmatprep.subr.mxu0 0.0
    %3216 = vmatpush2.msra.mxu0 0.0
    %3217 = vmatprep.subr.mxu0 0.0
    %3218 = vmatpush2.msra.mxu0 0.0
    %3219 = vmatprep.subr.mxu0 0.0
    %3220 = vmatpush2.msra.mxu0 0.0
    %3221 = vmatprep.subr.mxu0 0.0
    %3222 = vmatpush2.msra.mxu0 0.0
    %3223 = vmatprep.subr.mxu0 0.0
    %3224 = vmatpush2.msra.mxu0 0.0
    %3225 = vmatprep.subr.mxu0 0.0
    %3226 = vmatpush2.msra.mxu0 0.0
    %3227 = vmatprep.subr.mxu0 0.0
    %3228 = vmatpush2.msra.mxu0 0.0
    %3229 = vmatprep.subr.mxu0 0.0
    %3230 = vmatpush2.msra.mxu0 0.0
    %3231 = vmatprep.subr.mxu0 0.0
    %3232 = vmatpush2.msra.mxu0 0.0
    %3233 = vmatprep.subr.mxu0 0.0
    %3234 = vmatpush2.msra.mxu0 0.0
    %3235 = vmatprep.subr.mxu0 0.0
    %3236 = vmatpush2.msra.mxu0 0.0
    %3237 = vmatprep.subr.mxu0 0.0
    %3238 = vmatpush2.msra.mxu0 0.0
    %3239 = vmatprep.subr.mxu0 0.0
    %3240 = vmatpush2.msra.mxu0 0.0
    %3241 = vmatprep.subr.mxu0 0.0
    %3242 = vmatpush2.msra.mxu0 0.0
    %3243 = vmatprep.subr.mxu0 0.0
    %3244 = vmatpush2.msra.mxu0 0.0
    %3245 = vmatprep.mubr.f32.mxu0 0.0
    %3246 = vmatmul.mubr.f32.gmra.mxu0 %v3177
    %v3247 = vpop.f32.mrf.mxu0
    %v3248 = vadd.f32 0.0, %v3247
    %v3249 = vpop.f32.mrf.mxu0
    %3250 = vmatprep.mubr.f32.mxu0 0.0
    %3251 = vmatmul.mubr.f32.gmra.mxu0 %v3179
    %v3252 = vpop.f32.mrf.mxu0
    %v3253 = vadd.f32 0.0, %v3252
    %v3254 = vpop.f32.mrf.mxu0
    %3255 = vdwg.mxu0
    %v3256 = vmul.f32 %v3248, %v1788
    %v3257 = vmul.f32 %v3253, %v1789
    %3258 = vmatprep.subr.mxu0 0.0
    %3259 = vmatpush1.msra.mxu0 0.0
    %3260 = vmatprep.subr.mxu0 0.0
    %3261 = vmatpush1.msra.mxu0 0.0
    %3262 = vmatprep.subr.mxu0 0.0
    %3263 = vmatpush1.msra.mxu0 0.0
    %3264 = vmatprep.subr.mxu0 0.0
    %3265 = vmatpush1.msra.mxu0 0.0
    %3266 = vmatprep.subr.mxu0 0.0
    %3267 = vmatpush1.msra.mxu0 0.0
    %3268 = vmatprep.subr.mxu0 0.0
    %3269 = vmatpush1.msra.mxu0 0.0
    %3270 = vmatprep.subr.mxu0 0.0
    %3271 = vmatpush1.msra.mxu0 0.0
    %3272 = vmatprep.subr.mxu0 0.0
    %3273 = vmatpush1.msra.mxu0 0.0
    %3274 = vmatprep.subr.mxu0 0.0
    %3275 = vmatpush1.msra.mxu0 0.0
    %3276 = vmatprep.subr.mxu0 0.0
    %3277 = vmatpush1.msra.mxu0 0.0
    %3278 = vmatprep.subr.mxu0 0.0
    %3279 = vmatpush1.msra.mxu0 0.0
    %3280 = vmatprep.subr.mxu0 0.0
    %3281 = vmatpush1.msra.mxu0 0.0
    %3282 = vmatprep.subr.mxu0 0.0
    %3283 = vmatpush1.msra.mxu0 0.0
    %3284 = vmatprep.subr.mxu0 0.0
    %3285 = vmatpush1.msra.mxu0 0.0
    %3286 = vmatprep.subr.mxu0 0.0
    %3287 = vmatpush1.msra.mxu0 %v3257
    %3288 = vmatprep.subr.mxu0 0.0
    %3289 = vmatpush1.msra.mxu0 %v3256
    %3290 = vmatprep.subr.mxu0 0.0
    %3291 = vmatpush2.msra.mxu0 0.0
    %3292 = vmatprep.subr.mxu0 0.0
    %3293 = vmatpush2.msra.mxu0 0.0
    %3294 = vmatprep.subr.mxu0 0.0
    %3295 = vmatpush2.msra.mxu0 0.0
    %3296 = vmatprep.subr.mxu0 0.0
    %3297 = vmatpush2.msra.mxu0 0.0
    %3298 = vmatprep.subr.mxu0 0.0
    %3299 = vmatpush2.msra.mxu0 0.0
    %3300 = vmatprep.subr.mxu0 0.0
    %3301 = vmatpush2.msra.mxu0 0.0
    %3302 = vmatprep.subr.mxu0 0.0
    %3303 = vmatpush2.msra.mxu0 0.0
    %3304 = vmatprep.subr.mxu0 0.0
    %3305 = vmatpush2.msra.mxu0 0.0
    %3306 = vmatprep.subr.mxu0 0.0
    %3307 = vmatpush2.msra.mxu0 0.0
    %3308 = vmatprep.subr.mxu0 0.0
    %3309 = vmatpush2.msra.mxu0 0.0
    %3310 = vmatprep.subr.mxu0 0.0
    %3311 = vmatpush2.msra.mxu0 0.0
    %3312 = vmatprep.subr.mxu0 0.0
    %3313 = vmatpush2.msra.mxu0 0.0
    %3314 = vmatprep.subr.mxu0 0.0
    %3315 = vmatpush2.msra.mxu0 0.0
    %3316 = vmatprep.subr.mxu0 0.0
    %3317 = vmatpush2.msra.mxu0 0.0
    %3318 = vmatprep.subr.mxu0 0.0
    %3319 = vmatpush2.msra.mxu0 0.0
    %3320 = vmatprep.subr.mxu0 0.0
    %3321 = vmatpush2.msra.mxu0 0.0
    %3322 = vmatprep.mubr.f32.mxu0 0.0
    %3323 = vmatmul.mubr.f32.gmra.mxu0 %v2062
    %v3324 = vpop.f32.mrf.mxu0
    %v3325 = vadd.f32 0.0, %v3324
    %v3326 = vpop.f32.mrf.mxu0
    %3327 = vdwg.mxu0
    %v3328 = vlaneseq
    %v3329 = vshrl.u32 %v3328, 7
    %v3330 = vsub.s32 0, %v3329
    %v3331 = vrot.slane %v3170, %v3330
    %v3332 = vmul.f32 %v3010, %v3331
    %v3333 = vmul.f32 %v3015, %v3331
    %3334 = vmax.xlane.f32.xlu0 %v3332
    %v3335 = vpop.xlane.xlu0 %3334
    %3336 = vmax.xlane.f32.xlu0 %v3333
    %v3337 = vpop.xlane.xlu0 %3336
    %v3338 = vsub.f32 %v3332, %v3335
    %v3339 = vsub.f32 %v3333, %v3337
    %v3340 = vmul.f32 %v3338, 1.442695
    %v3341 = vpow.pop %v3340
    %v3342 = vmul.f32 %v3339, 1.442695
    %v3343 = vpow.pop %v3342
    %3344 = vmatprep.subr.mxu0 0.0
    %3345 = vmatpush1.msra.mxu0 %v1805
    %3346 = vmatprep.subr.mxu0 0.0
    %3347 = vmatpush1.msra.mxu0 %v1804
    %3348 = vmatprep.subr.mxu0 0.0
    %3349 = vmatpush1.msra.mxu0 %v1803
    %3350 = vmatprep.subr.mxu0 0.0
    %3351 = vmatpush1.msra.mxu0 %v1802
    %3352 = vmatprep.subr.mxu0 0.0
    %3353 = vmatpush1.msra.mxu0 %v1801
    %3354 = vmatprep.subr.mxu0 0.0
    %3355 = vmatpush1.msra.mxu0 %v1800
    %3356 = vmatprep.subr.mxu0 0.0
    %3357 = vmatpush1.msra.mxu0 %v1799
    %3358 = vmatprep.subr.mxu0 0.0
    %3359 = vmatpush1.msra.mxu0 %v1798
    %3360 = vmatprep.subr.mxu0 0.0
    %3361 = vmatpush1.msra.mxu0 %v1797
    %3362 = vmatprep.subr.mxu0 0.0
    %3363 = vmatpush1.msra.mxu0 %v1796
    %3364 = vmatprep.subr.mxu0 0.0
    %3365 = vmatpush1.msra.mxu0 %v1795
    %3366 = vmatprep.subr.mxu0 0.0
    %3367 = vmatpush1.msra.mxu0 %v1794
    %3368 = vmatprep.subr.mxu0 0.0
    %3369 = vmatpush1.msra.mxu0 %v1793
    %3370 = vmatprep.subr.mxu0 0.0
    %3371 = vmatpush1.msra.mxu0 %v1792
    %3372 = vmatprep.subr.mxu0 0.0
    %3373 = vmatpush1.msra.mxu0 %v1791
    %3374 = vmatprep.subr.mxu0 0.0
    %3375 = vmatpush1.msra.mxu0 %v1790
    %3376 = vmatprep.subr.mxu0 0.0
    %3377 = vmatpush2.msra.mxu0 0.0
    %3378 = vmatprep.subr.mxu0 0.0
    %3379 = vmatpush2.msra.mxu0 0.0
    %3380 = vmatprep.subr.mxu0 0.0
    %3381 = vmatpush2.msra.mxu0 0.0
    %3382 = vmatprep.subr.mxu0 0.0
    %3383 = vmatpush2.msra.mxu0 0.0
    %3384 = vmatprep.subr.mxu0 0.0
    %3385 = vmatpush2.msra.mxu0 0.0
    %3386 = vmatprep.subr.mxu0 0.0
    %3387 = vmatpush2.msra.mxu0 0.0
    %3388 = vmatprep.subr.mxu0 0.0
    %3389 = vmatpush2.msra.mxu0 0.0
    %3390 = vmatprep.subr.mxu0 0.0
    %3391 = vmatpush2.msra.mxu0 0.0
    %3392 = vmatprep.subr.mxu0 0.0
    %3393 = vmatpush2.msra.mxu0 0.0
    %3394 = vmatprep.subr.mxu0 0.0
    %3395 = vmatpush2.msra.mxu0 0.0
    %3396 = vmatprep.subr.mxu0 0.0
    %3397 = vmatpush2.msra.mxu0 0.0
    %3398 = vmatprep.subr.mxu0 0.0
    %3399 = vmatpush2.msra.mxu0 0.0
    %3400 = vmatprep.subr.mxu0 0.0
    %3401 = vmatpush2.msra.mxu0 0.0
    %3402 = vmatprep.subr.mxu0 0.0
    %3403 = vmatpush2.msra.mxu0 0.0
    %3404 = vmatprep.subr.mxu0 0.0
    %3405 = vmatpush2.msra.mxu0 0.0
    %3406 = vmatprep.subr.mxu0 0.0
    %3407 = vmatpush2.msra.mxu0 0.0
    %3408 = vmatprep.mubr.f32.mxu0 0.0
    %3409 = vmatmul.mubr.f32.gmra.mxu0 %v3341
    %v3410 = vpop.f32.mrf.mxu0
    %v3411 = vadd.f32 0.0, %v3410
    %v3412 = vpop.f32.mrf.mxu0
    %3413 = vmatprep.mubr.f32.mxu0 0.0
    %3414 = vmatmul.mubr.f32.gmra.mxu0 %v3343
    %v3415 = vpop.f32.mrf.mxu0
    %v3416 = vadd.f32 0.0, %v3415
    %v3417 = vpop.f32.mrf.mxu0
    %3418 = vdwg.mxu0
    %v3419 = vlaneseq
    %v3420 = vshrl.u32 %v3419, 7
    %v3421 = vsub.s32 0, %v3420
    %v3422 = vrot.slane %v3325, %v3421
    %v3423 = vmul.f32 %v3341, %v3422
    %v3424 = vmul.f32 %v3343, %v3422
    %3425 = vmatprep.subr.mxu0 0.0
    %3426 = vmatpush1.msra.mxu0 %v1805
    %3427 = vmatprep.subr.mxu0 0.0
    %3428 = vmatpush1.msra.mxu0 %v1804
    %3429 = vmatprep.subr.mxu0 0.0
    %3430 = vmatpush1.msra.mxu0 %v1803
    %3431 = vmatprep.subr.mxu0 0.0
    %3432 = vmatpush1.msra.mxu0 %v1802
    %3433 = vmatprep.subr.mxu0 0.0
    %3434 = vmatpush1.msra.mxu0 %v1801
    %3435 = vmatprep.subr.mxu0 0.0
    %3436 = vmatpush1.msra.mxu0 %v1800
    %3437 = vmatprep.subr.mxu0 0.0
    %3438 = vmatpush1.msra.mxu0 %v1799
    %3439 = vmatprep.subr.mxu0 0.0
    %3440 = vmatpush1.msra.mxu0 %v1798
    %3441 = vmatprep.subr.mxu0 0.0
    %3442 = vmatpush1.msra.mxu0 %v1797
    %3443 = vmatprep.subr.mxu0 0.0
    %3444 = vmatpush1.msra.mxu0 %v1796
    %3445 = vmatprep.subr.mxu0 0.0
    %3446 = vmatpush1.msra.mxu0 %v1795
    %3447 = vmatprep.subr.mxu0 0.0
    %3448 = vmatpush1.msra.mxu0 %v1794
    %3449 = vmatprep.subr.mxu0 0.0
    %3450 = vmatpush1.msra.mxu0 %v1793
    %3451 = vmatprep.subr.mxu0 0.0
    %3452 = vmatpush1.msra.mxu0 %v1792
    %3453 = vmatprep.subr.mxu0 0.0
    %3454 = vmatpush1.msra.mxu0 %v1791
    %3455 = vmatprep.subr.mxu0 0.0
    %3456 = vmatpush1.msra.mxu0 %v1790
    %3457 = vmatprep.subr.mxu0 0.0
    %3458 = vmatpush2.msra.mxu0 0.0
    %3459 = vmatprep.subr.mxu0 0.0
    %3460 = vmatpush2.msra.mxu0 0.0
    %3461 = vmatprep.subr.mxu0 0.0
    %3462 = vmatpush2.msra.mxu0 0.0
    %3463 = vmatprep.subr.mxu0 0.0
    %3464 = vmatpush2.msra.mxu0 0.0
    %3465 = vmatprep.subr.mxu0 0.0
    %3466 = vmatpush2.msra.mxu0 0.0
    %3467 = vmatprep.subr.mxu0 0.0
    %3468 = vmatpush2.msra.mxu0 0.0
    %3469 = vmatprep.subr.mxu0 0.0
    %3470 = vmatpush2.msra.mxu0 0.0
    %3471 = vmatprep.subr.mxu0 0.0
    %3472 = vmatpush2.msra.mxu0 0.0
    %3473 = vmatprep.subr.mxu0 0.0
    %3474 = vmatpush2.msra.mxu0 0.0
    %3475 = vmatprep.subr.mxu0 0.0
    %3476 = vmatpush2.msra.mxu0 0.0
    %3477 = vmatprep.subr.mxu0 0.0
    %3478 = vmatpush2.msra.mxu0 0.0
    %3479 = vmatprep.subr.mxu0 0.0
    %3480 = vmatpush2.msra.mxu0 0.0
    %3481 = vmatprep.subr.mxu0 0.0
    %3482 = vmatpush2.msra.mxu0 0.0
    %3483 = vmatprep.subr.mxu0 0.0
    %3484 = vmatpush2.msra.mxu0 0.0
    %3485 = vmatprep.subr.mxu0 0.0
    %3486 = vmatpush2.msra.mxu0 0.0
    %3487 = vmatprep.subr.mxu0 0.0
    %3488 = vmatpush2.msra.mxu0 0.0
    %3489 = vmatprep.mubr.f32.mxu0 0.0
    %3490 = vmatmul.mubr.f32.gmra.mxu0 %v3423
    %v3491 = vpop.f32.mrf.mxu0
    %v3492 = vadd.f32 0.0, %v3491
    %v3493 = vpop.f32.mrf.mxu0
    %3494 = vmatprep.mubr.f32.mxu0 0.0
    %3495 = vmatmul.mubr.f32.gmra.mxu0 %v3424
    %v3496 = vpop.f32.mrf.mxu0
    %v3497 = vadd.f32 0.0, %v3496
    %v3498 = vpop.f32.mrf.mxu0
    %3499 = vdwg.mxu0
    %v3500 = vrcp.pop %v3411
    %v3501 = vmul.f32 %v3492, %v3500
    %v3502 = vrcp.pop %v3416
    %v3503 = vmul.f32 %v3497, %v3502
    %s3504 = scalar_lea.vmem %s49, 8
    %v3505 = vld [vmem:[%s3504] sm:$0xff]
    %s3506 = scalar_lea.vmem %s51, 1
    %v3507 = vld [vmem:[%s3506] sm:$0x1]
    %v3509 = vlaneseq
    %v3510 = vshrl.u32 %v3509, 7
    %v3511 = vsub.s32 0, %v3510
    %v3512 = vrot.slane %v3507, %v3511
    %v3515 = vsel %vm1296, %v3501, 0
    %v3518 = vsel %vm1296, %v3503, 0
    %3520 = vmatprep.subr.mxu0 0.0
    %3521 = vmatpush1.msra.mxu0 0.0
    %3522 = vmatprep.subr.mxu0 0.0
    %3523 = vmatpush1.msra.mxu0 0.0
    %3524 = vmatprep.subr.mxu0 0.0
    %3525 = vmatpush1.msra.mxu0 0.0
    %3526 = vmatprep.subr.mxu0 0.0
    %3527 = vmatpush1.msra.mxu0 0.0
    %3528 = vmatprep.subr.mxu0 0.0
    %3529 = vmatpush1.msra.mxu0 0.0
    %3530 = vmatprep.subr.mxu0 0.0
    %3531 = vmatpush1.msra.mxu0 0.0
    %3532 = vmatprep.subr.mxu0 0.0
    %3533 = vmatpush1.msra.mxu0 0.0
    %3534 = vmatprep.subr.mxu0 0.0
    %3535 = vmatpush1.msra.mxu0 0.0
    %3536 = vmatprep.subr.mxu0 0.0
    %3537 = vmatpush1.msra.mxu0 0.0
    %3538 = vmatprep.subr.mxu0 0.0
    %3539 = vmatpush1.msra.mxu0 0.0
    %3540 = vmatprep.subr.mxu0 0.0
    %3541 = vmatpush1.msra.mxu0 0.0
    %3542 = vmatprep.subr.mxu0 0.0
    %3543 = vmatpush1.msra.mxu0 0.0
    %3544 = vmatprep.subr.mxu0 0.0
    %3545 = vmatpush1.msra.mxu0 0.0
    %3546 = vmatprep.subr.mxu0 0.0
    %3547 = vmatpush1.msra.mxu0 0.0
    %3548 = vmatprep.subr.mxu0 0.0
    %3549 = vmatpush1.msra.mxu0 0.0
    %3550 = vmatprep.subr.mxu0 0.0
    %3551 = vmatpush1.msra.mxu0 %v3505
    %3552 = vmatprep.subr.mxu0 0.0
    %3553 = vmatpush2.msra.mxu0 0.0
    %3554 = vmatprep.subr.mxu0 0.0
    %3555 = vmatpush2.msra.mxu0 0.0
    %3556 = vmatprep.subr.mxu0 0.0
    %3557 = vmatpush2.msra.mxu0 0.0
    %3558 = vmatprep.subr.mxu0 0.0
    %3559 = vmatpush2.msra.mxu0 0.0
    %3560 = vmatprep.subr.mxu0 0.0
    %3561 = vmatpush2.msra.mxu0 0.0
    %3562 = vmatprep.subr.mxu0 0.0
    %3563 = vmatpush2.msra.mxu0 0.0
    %3564 = vmatprep.subr.mxu0 0.0
    %3565 = vmatpush2.msra.mxu0 0.0
    %3566 = vmatprep.subr.mxu0 0.0
    %3567 = vmatpush2.msra.mxu0 0.0
    %3568 = vmatprep.subr.mxu0 0.0
    %3569 = vmatpush2.msra.mxu0 0.0
    %3570 = vmatprep.subr.mxu0 0.0
    %3571 = vmatpush2.msra.mxu0 0.0
    %3572 = vmatprep.subr.mxu0 0.0
    %3573 = vmatpush2.msra.mxu0 0.0
    %3574 = vmatprep.subr.mxu0 0.0
    %3575 = vmatpush2.msra.mxu0 0.0
    %3576 = vmatprep.subr.mxu0 0.0
    %3577 = vmatpush2.msra.mxu0 0.0
    %3578 = vmatprep.subr.mxu0 0.0
    %3579 = vmatpush2.msra.mxu0 0.0
    %3580 = vmatprep.subr.mxu0 0.0
    %3581 = vmatpush2.msra.mxu0 0.0
    %3582 = vmatprep.subr.mxu0 0.0
    %3583 = vmatpush2.msra.mxu0 0.0
    %3584 = vmatprep.mubr.f32.mxu0 0.0
    %3585 = vmatmul.mubr.f32.gmra.mxu0 %v3515
    %v3586 = vpop.f32.mrf.mxu0
    %v3587 = vadd.f32 %v3512, %v3586
    %v3588 = vpop.f32.mrf.mxu0
    %3589 = vmatprep.mubr.f32.mxu0 0.0
    %3590 = vmatmul.mubr.f32.gmra.mxu0 %v3518
    %v3591 = vpop.f32.mrf.mxu0
    %v3592 = vadd.f32 %v3512, %v3591
    %v3593 = vpop.f32.mrf.mxu0
    %3594 = vdwg.mxu0
    %v3595 = vadd.f32 %v2844, %v3587
    %v3596 = vadd.f32 %v2845, %v3592
    %s3597 = scalar_lea.vmem %s53, 1
    %v3598 = vld [vmem:[%s3597] sm:$0x1]
    %s3599 = scalar_lea.vmem %s55, 1
    %v3600 = vld [vmem:[%s3599] sm:$0x1]
    %v3601 = vsel %vm1296, %v3595, 0.0
    %3602 = vadd.xlane.f32.xlu0 %v3601
    %v3603 = vpop.xlane.xlu0 %3602
    %v3604 = vsel %vm1296, %v3596, 0.0
    %3605 = vadd.xlane.f32.xlu0 %v3604
    %v3606 = vpop.xlane.xlu0 %3605
    %v3607 = vmul.f32 %v3603, %v2564
    %v3608 = vmul.f32 %v3606, %v2564
    %v3609 = vsub.f32 %v3595, %v3607
    %v3610 = vsub.f32 %v3596, %v3608
    %v3611 = vmul.f32 %v3609, %v3609
    %v3612 = vmul.f32 %v3610, %v3610
    %v3613 = vsel %vm1296, %v3611, 0.0
    %3614 = vadd.xlane.f32.xlu0 %v3613
    %v3615 = vpop.xlane.xlu0 %3614
    %v3616 = vsel %vm1296, %v3612, 0.0
    %3617 = vadd.xlane.f32.xlu0 %v3616
    %v3618 = vpop.xlane.xlu0 %3617
    %v3619 = vmul.f32 %v3615, %v2564
    %v3620 = vmul.f32 %v3618, %v2564
    %v3621 = vadd.f32 %v3619, 1e-05
    %v3622 = vadd.f32 %v3620, 1e-05
    %v3623 = vrsqrt.pop %v3621
    %v3624 = vrsqrt.pop %v3622
    %v3625 = vmul.f32 %v3609, %v3623
    %v3626 = vmul.f32 %v3610, %v3624
    %v3628 = vlaneseq
    %v3629 = vshrl.u32 %v3628, 7
    %v3630 = vsub.s32 0, %v3629
    %v3631 = vrot.slane %v3598, %v3630
    %v3633 = vmul.f32 %v3625, %v3631
    %v3634 = vmul.f32 %v3626, %v3631
    %v3636 = vlaneseq
    %v3637 = vshrl.u32 %v3636, 7
    %v3638 = vsub.s32 0, %v3637
    %v3639 = vrot.slane %v3600, %v3638
    %v3641 = vadd.f32 %v3633, %v3639
    %v3642 = vadd.f32 %v3634, %v3639
    %s3643 = scalar_lea.vmem %s57, 8
    %v3644 = vld [vmem:[%s3643] sm:$0xff]
    %s3645 = scalar_lea.vmem %s59, 1
    %v3646 = vld [vmem:[%s3645] sm:$0x1]
    %v3648 = vlaneseq
    %v3649 = vshrl.u32 %v3648, 7
    %v3650 = vsub.s32 0, %v3649
    %v3651 = vrot.slane %v3646, %v3650
    %v3654 = vsel %vm1296, %v3641, 0
    %v3657 = vsel %vm1296, %v3642, 0
    %3659 = vmatprep.subr.mxu0 0.0
    %3660 = vmatpush1.msra.mxu0 0.0
    %3661 = vmatprep.subr.mxu0 0.0
    %3662 = vmatpush1.msra.mxu0 0.0
    %3663 = vmatprep.subr.mxu0 0.0
    %3664 = vmatpush1.msra.mxu0 0.0
    %3665 = vmatprep.subr.mxu0 0.0
    %3666 = vmatpush1.msra.mxu0 0.0
    %3667 = vmatprep.subr.mxu0 0.0
    %3668 = vmatpush1.msra.mxu0 0.0
    %3669 = vmatprep.subr.mxu0 0.0
    %3670 = vmatpush1.msra.mxu0 0.0
    %3671 = vmatprep.subr.mxu0 0.0
    %3672 = vmatpush1.msra.mxu0 0.0
    %3673 = vmatprep.subr.mxu0 0.0
    %3674 = vmatpush1.msra.mxu0 0.0
    %3675 = vmatprep.subr.mxu0 0.0
    %3676 = vmatpush1.msra.mxu0 0.0
    %3677 = vmatprep.subr.mxu0 0.0
    %3678 = vmatpush1.msra.mxu0 0.0
    %3679 = vmatprep.subr.mxu0 0.0
    %3680 = vmatpush1.msra.mxu0 0.0
    %3681 = vmatprep.subr.mxu0 0.0
    %3682 = vmatpush1.msra.mxu0 0.0
    %3683 = vmatprep.subr.mxu0 0.0
    %3684 = vmatpush1.msra.mxu0 0.0
    %3685 = vmatprep.subr.mxu0 0.0
    %3686 = vmatpush1.msra.mxu0 0.0
    %3687 = vmatprep.subr.mxu0 0.0
    %3688 = vmatpush1.msra.mxu0 0.0
    %3689 = vmatprep.subr.mxu0 0.0
    %3690 = vmatpush1.msra.mxu0 %v3644
    %3691 = vmatprep.subr.mxu0 0.0
    %3692 = vmatpush2.msra.mxu0 0.0
    %3693 = vmatprep.subr.mxu0 0.0
    %3694 = vmatpush2.msra.mxu0 0.0
    %3695 = vmatprep.subr.mxu0 0.0
    %3696 = vmatpush2.msra.mxu0 0.0
    %3697 = vmatprep.subr.mxu0 0.0
    %3698 = vmatpush2.msra.mxu0 0.0
    %3699 = vmatprep.subr.mxu0 0.0
    %3700 = vmatpush2.msra.mxu0 0.0
    %3701 = vmatprep.subr.mxu0 0.0
    %3702 = vmatpush2.msra.mxu0 0.0
    %3703 = vmatprep.subr.mxu0 0.0
    %3704 = vmatpush2.msra.mxu0 0.0
    %3705 = vmatprep.subr.mxu0 0.0
    %3706 = vmatpush2.msra.mxu0 0.0
    %3707 = vmatprep.subr.mxu0 0.0
    %3708 = vmatpush2.msra.mxu0 0.0
    %3709 = vmatprep.subr.mxu0 0.0
    %3710 = vmatpush2.msra.mxu0 0.0
    %3711 = vmatprep.subr.mxu0 0.0
    %3712 = vmatpush2.msra.mxu0 0.0
    %3713 = vmatprep.subr.mxu0 0.0
    %3714 = vmatpush2.msra.mxu0 0.0
    %3715 = vmatprep.subr.mxu0 0.0
    %3716 = vmatpush2.msra.mxu0 0.0
    %3717 = vmatprep.subr.mxu0 0.0
    %3718 = vmatpush2.msra.mxu0 0.0
    %3719 = vmatprep.subr.mxu0 0.0
    %3720 = vmatpush2.msra.mxu0 0.0
    %3721 = vmatprep.subr.mxu0 0.0
    %3722 = vmatpush2.msra.mxu0 0.0
    %3723 = vmatprep.mubr.f32.mxu0 0.0
    %3724 = vmatmul.mubr.f32.gmra.mxu0 %v3654
    %v3725 = vpop.f32.mrf.mxu0
    %v3726 = vadd.f32 %v3651, %v3725
    %v3727 = vpop.f32.mrf.mxu0
    %3728 = vmatprep.mubr.f32.mxu0 0.0
    %3729 = vmatmul.mubr.f32.gmra.mxu0 %v3657
    %v3730 = vpop.f32.mrf.mxu0
    %v3731 = vadd.f32 %v3651, %v3730
    %v3732 = vpop.f32.mrf.mxu0
    %3733 = vdwg.mxu0
    %v3734 = vmul.f32 %v3726, 0.5
    %v3735 = vmul.f32 %v3731, 0.5
    %v3736 = vmul.f32 %v3726, 0.044715
    %v3737 = vmul.f32 %v3731, 0.044715
    %v3738 = vmul.f32 %v3736, %v3726
    %v3739 = vmul.f32 %v3737, %v3731
    %v3740 = vmul.f32 %v3738, %v3726
    %v3741 = vmul.f32 %v3739, %v3731
    %v3742 = vadd.f32 %v3726, %v3740
    %v3743 = vadd.f32 %v3731, %v3741
    %v3744 = vmul.f32 %v3742, 0.7978846
    %v3745 = vmul.f32 %v3743, 0.7978846
    %v3746 = vtanh.pop %v3744
    %v3747 = vtanh.pop %v3745
    %v3748 = vadd.f32 %v3746, 1.0
    %v3749 = vadd.f32 %v3747, 1.0
    %v3750 = vmul.f32 %v3734, %v3748
    %v3751 = vmul.f32 %v3735, %v3749
    %s3752 = scalar_lea.vmem %s61, 32
    %v3753 = vld [vmem:[%s3752] sm:$0xff]
    %v3754 = vld [vmem:[%s3752 + $0x8] sm:$0xff]
    %v3755 = vld [vmem:[%s3752 + $0x10] sm:$0xff]
    %v3756 = vld [vmem:[%s3752 + $0x18] sm:$0xff]
    %s3757 = scalar_lea.vmem %s63, 1
    %v3758 = vld [vmem:[%s3757] sm:$0x1]
    %v3760 = vlaneseq
    %v3761 = vshrl.u32 %v3760, 7
    %v3762 = vsub.s32 0, %v3761
    %v3763 = vrot.slane %v3758, %v3762
    %v3766 = vsel %vm1565, %v3750, 0
    %v3769 = vsel %vm1565, %v3751, 0
    %3771 = vmatprep.subr.mxu0 0.0
    %3772 = vmatpush1.msra.mxu0 0.0
    %3773 = vmatprep.subr.mxu0 0.0
    %3774 = vmatpush1.msra.mxu0 0.0
    %3775 = vmatprep.subr.mxu0 0.0
    %3776 = vmatpush1.msra.mxu0 0.0
    %3777 = vmatprep.subr.mxu0 0.0
    %3778 = vmatpush1.msra.mxu0 0.0
    %3779 = vmatprep.subr.mxu0 0.0
    %3780 = vmatpush1.msra.mxu0 0.0
    %3781 = vmatprep.subr.mxu0 0.0
    %3782 = vmatpush1.msra.mxu0 0.0
    %3783 = vmatprep.subr.mxu0 0.0
    %3784 = vmatpush1.msra.mxu0 0.0
    %3785 = vmatprep.subr.mxu0 0.0
    %3786 = vmatpush1.msra.mxu0 0.0
    %3787 = vmatprep.subr.mxu0 0.0
    %3788 = vmatpush1.msra.mxu0 0.0
    %3789 = vmatprep.subr.mxu0 0.0
    %3790 = vmatpush1.msra.mxu0 0.0
    %3791 = vmatprep.subr.mxu0 0.0
    %3792 = vmatpush1.msra.mxu0 0.0
    %3793 = vmatprep.subr.mxu0 0.0
    %3794 = vmatpush1.msra.mxu0 0.0
    %3795 = vmatprep.subr.mxu0 0.0
    %3796 = vmatpush1.msra.mxu0 %v3756
    %3797 = vmatprep.subr.mxu0 0.0
    %3798 = vmatpush1.msra.mxu0 %v3755
    %3799 = vmatprep.subr.mxu0 0.0
    %3800 = vmatpush1.msra.mxu0 %v3754
    %3801 = vmatprep.subr.mxu0 0.0
    %3802 = vmatpush1.msra.mxu0 %v3753
    %3803 = vmatprep.subr.mxu0 0.0
    %3804 = vmatpush2.msra.mxu0 0.0
    %3805 = vmatprep.subr.mxu0 0.0
    %3806 = vmatpush2.msra.mxu0 0.0
    %3807 = vmatprep.subr.mxu0 0.0
    %3808 = vmatpush2.msra.mxu0 0.0
    %3809 = vmatprep.subr.mxu0 0.0
    %3810 = vmatpush2.msra.mxu0 0.0
    %3811 = vmatprep.subr.mxu0 0.0
    %3812 = vmatpush2.msra.mxu0 0.0
    %3813 = vmatprep.subr.mxu0 0.0
    %3814 = vmatpush2.msra.mxu0 0.0
    %3815 = vmatprep.subr.mxu0 0.0
    %3816 = vmatpush2.msra.mxu0 0.0
    %3817 = vmatprep.subr.mxu0 0.0
    %3818 = vmatpush2.msra.mxu0 0.0
    %3819 = vmatprep.subr.mxu0 0.0
    %3820 = vmatpush2.msra.mxu0 0.0
    %3821 = vmatprep.subr.mxu0 0.0
    %3822 = vmatpush2.msra.mxu0 0.0
    %3823 = vmatprep.subr.mxu0 0.0
    %3824 = vmatpush2.msra.mxu0 0.0
    %3825 = vmatprep.subr.mxu0 0.0
    %3826 = vmatpush2.msra.mxu0 0.0
    %3827 = vmatprep.subr.mxu0 0.0
    %3828 = vmatpush2.msra.mxu0 0.0
    %3829 = vmatprep.subr.mxu0 0.0
    %3830 = vmatpush2.msra.mxu0 0.0
    %3831 = vmatprep.subr.mxu0 0.0
    %3832 = vmatpush2.msra.mxu0 0.0
    %3833 = vmatprep.subr.mxu0 0.0
    %3834 = vmatpush2.msra.mxu0 0.0
    %3835 = vmatprep.mubr.f32.mxu0 0.0
    %3836 = vmatmul.mubr.f32.gmra.mxu0 %v3766
    %v3837 = vpop.f32.mrf.mxu0
    %v3838 = vadd.f32 %v3763, %v3837
    %v3839 = vpop.f32.mrf.mxu0
    %3840 = vmatprep.mubr.f32.mxu0 0.0
    %3841 = vmatmul.mubr.f32.gmra.mxu0 %v3769
    %v3842 = vpop.f32.mrf.mxu0
    %v3843 = vadd.f32 %v3763, %v3842
    %v3844 = vpop.f32.mrf.mxu0
    %3845 = vdwg.mxu0
    %v3846 = vadd.f32 %v3641, %v3838
    %v3847 = vadd.f32 %v3642, %v3843
    %s3848 = scalar_lea.vmem %s65, 1
    %v3849 = vld [vmem:[%s3848] sm:$0x1]
    %s3850 = scalar_lea.vmem %s67, 1
    %v3851 = vld [vmem:[%s3850] sm:$0x1]
    %v3852 = vsel %vm1296, %v3846, 0.0
    %3853 = vadd.xlane.f32.xlu0 %v3852
    %v3854 = vpop.xlane.xlu0 %3853
    %v3855 = vsel %vm1296, %v3847, 0.0
    %3856 = vadd.xlane.f32.xlu0 %v3855
    %v3857 = vpop.xlane.xlu0 %3856
    %v3858 = vmul.f32 %v3854, %v2564
    %v3859 = vmul.f32 %v3857, %v2564
    %v3860 = vsub.f32 %v3846, %v3858
    %v3861 = vsub.f32 %v3847, %v3859
    %v3862 = vmul.f32 %v3860, %v3860
    %v3863 = vmul.f32 %v3861, %v3861
    %v3864 = vsel %vm1296, %v3862, 0.0
    %3865 = vadd.xlane.f32.xlu0 %v3864
    %v3866 = vpop.xlane.xlu0 %3865
    %v3867 = vsel %vm1296, %v3863, 0.0
    %3868 = vadd.xlane.f32.xlu0 %v3867
    %v3869 = vpop.xlane.xlu0 %3868
    %v3870 = vmul.f32 %v3866, %v2564
    %v3871 = vmul.f32 %v3869, %v2564
    %v3872 = vadd.f32 %v3870, 1e-05
    %v3873 = vadd.f32 %v3871, 1e-05
    %v3874 = vrsqrt.pop %v3872
    %v3875 = vrsqrt.pop %v3873
    %v3876 = vmul.f32 %v3860, %v3874
    %v3877 = vmul.f32 %v3861, %v3875
    %v3879 = vlaneseq
    %v3880 = vshrl.u32 %v3879, 7
    %v3881 = vsub.s32 0, %v3880
    %v3882 = vrot.slane %v3849, %v3881
    %v3884 = vmul.f32 %v3876, %v3882
    %v3885 = vmul.f32 %v3877, %v3882
    %v3887 = vlaneseq
    %v3888 = vshrl.u32 %v3887, 7
    %v3889 = vsub.s32 0, %v3888
    %v3890 = vrot.slane %v3851, %v3889
    %v3892 = vadd.f32 %v3884, %v3890
    %v3893 = vadd.f32 %v3885, %v3890
    %s3894 = scalar_lea.vmem %s45, 16
    %v3895 = vld [vmem:[%s3894] sm:$0xff]
    %s3896 = scalar_lea.vmem %s47, 2
    %v3897 = vld [vmem:[%s3896] sm:$0x1]
    %v3899 = vlaneseq
    %v3900 = vshrl.u32 %v3899, 7
    %v3901 = vsub.s32 0, %v3900
    %v3902 = vrot.slane %v3897, %v3901
    %v3905 = vsel %vm1296, %v3892, 0
    %v3908 = vsel %vm1296, %v3893, 0
    %3910 = vmatprep.subr.mxu0 0.0
    %3911 = vmatpush1.msra.mxu0 0.0
    %3912 = vmatprep.subr.mxu0 0.0
    %3913 = vmatpush1.msra.mxu0 0.0
    %3914 = vmatprep.subr.mxu0 0.0
    %3915 = vmatpush1.msra.mxu0 0.0
    %3916 = vmatprep.subr.mxu0 0.0
    %3917 = vmatpush1.msra.mxu0 0.0
    %3918 = vmatprep.subr.mxu0 0.0
    %3919 = vmatpush1.msra.mxu0 0.0
    %3920 = vmatprep.subr.mxu0 0.0
    %3921 = vmatpush1.msra.mxu0 0.0
    %3922 = vmatprep.subr.mxu0 0.0
    %3923 = vmatpush1.msra.mxu0 0.0
    %3924 = vmatprep.subr.mxu0 0.0
    %3925 = vmatpush1.msra.mxu0 0.0
    %3926 = vmatprep.subr.mxu0 0.0
    %3927 = vmatpush1.msra.mxu0 0.0
    %3928 = vmatprep.subr.mxu0 0.0
    %3929 = vmatpush1.msra.mxu0 0.0
    %3930 = vmatprep.subr.mxu0 0.0
    %3931 = vmatpush1.msra.mxu0 0.0
    %3932 = vmatprep.subr.mxu0 0.0
    %3933 = vmatpush1.msra.mxu0 0.0
    %3934 = vmatprep.subr.mxu0 0.0
    %3935 = vmatpush1.msra.mxu0 0.0
    %3936 = vmatprep.subr.mxu0 0.0
    %3937 = vmatpush1.msra.mxu0 0.0
    %3938 = vmatprep.subr.mxu0 0.0
    %3939 = vmatpush1.msra.mxu0 0.0
    %3940 = vmatprep.subr.mxu0 0.0
    %3941 = vmatpush1.msra.mxu0 %v3895
    %3942 = vmatprep.subr.mxu0 0.0
    %3943 = vmatpush2.msra.mxu0 0.0
    %3944 = vmatprep.subr.mxu0 0.0
    %3945 = vmatpush2.msra.mxu0 0.0
    %3946 = vmatprep.subr.mxu0 0.0
    %3947 = vmatpush2.msra.mxu0 0.0
    %3948 = vmatprep.subr.mxu0 0.0
    %3949 = vmatpush2.msra.mxu0 0.0
    %3950 = vmatprep.subr.mxu0 0.0
    %3951 = vmatpush2.msra.mxu0 0.0
    %3952 = vmatprep.subr.mxu0 0.0
    %3953 = vmatpush2.msra.mxu0 0.0
    %3954 = vmatprep.subr.mxu0 0.0
    %3955 = vmatpush2.msra.mxu0 0.0
    %3956 = vmatprep.subr.mxu0 0.0
    %3957 = vmatpush2.msra.mxu0 0.0
    %3958 = vmatprep.subr.mxu0 0.0
    %3959 = vmatpush2.msra.mxu0 0.0
    %3960 = vmatprep.subr.mxu0 0.0
    %3961 = vmatpush2.msra.mxu0 0.0
    %3962 = vmatprep.subr.mxu0 0.0
    %3963 = vmatpush2.msra.mxu0 0.0
    %3964 = vmatprep.subr.mxu0 0.0
    %3965 = vmatpush2.msra.mxu0 0.0
    %3966 = vmatprep.subr.mxu0 0.0
    %3967 = vmatpush2.msra.mxu0 0.0
    %3968 = vmatprep.subr.mxu0 0.0
    %3969 = vmatpush2.msra.mxu0 0.0
    %3970 = vmatprep.subr.mxu0 0.0
    %3971 = vmatpush2.msra.mxu0 0.0
    %3972 = vmatprep.subr.mxu0 0.0
    %3973 = vmatpush2.msra.mxu0 0.0
    %3974 = vmatprep.mubr.f32.mxu0 0.0
    %3975 = vmatmul.mubr.f32.gmra.mxu0 %v3905
    %v3976 = vpop.f32.mrf.mxu0
    %v3977 = vadd.f32 %v3902, %v3976
    %v3978 = vpop.f32.mrf.mxu0
    %3979 = vmatprep.mubr.f32.mxu0 0.0
    %3980 = vmatmul.mubr.f32.gmra.mxu0 %v3908
    %v3981 = vpop.f32.mrf.mxu0
    %v3982 = vadd.f32 %v3902, %v3981
    %v3983 = vpop.f32.mrf.mxu0
    %3984 = vdwg.mxu0
    %v3986 = vsel %vm1296, %v3977, 0
    %v3989 = vsel %vm1296, %v3982, 0
    %3991 = vmatprep.subr.mxu0 0.0
    %3992 = vmatpush1.msra.mxu0 0.0
    %3993 = vmatprep.subr.mxu0 0.0
    %3994 = vmatpush1.msra.mxu0 0.0
    %3995 = vmatprep.subr.mxu0 0.0
    %3996 = vmatpush1.msra.mxu0 0.0
    %3997 = vmatprep.subr.mxu0 0.0
    %3998 = vmatpush1.msra.mxu0 0.0
    %3999 = vmatprep.subr.mxu0 0.0
    %4000 = vmatpush1.msra.mxu0 0.0
    %4001 = vmatprep.subr.mxu0 0.0
    %4002 = vmatpush1.msra.mxu0 0.0
    %4003 = vmatprep.subr.mxu0 0.0
    %4004 = vmatpush1.msra.mxu0 0.0
    %4005 = vmatprep.subr.mxu0 0.0
    %4006 = vmatpush1.msra.mxu0 0.0
    %4007 = vmatprep.subr.mxu0 0.0
    %4008 = vmatpush1.msra.mxu0 0.0
    %4009 = vmatprep.subr.mxu0 0.0
    %4010 = vmatpush1.msra.mxu0 0.0
    %4011 = vmatprep.subr.mxu0 0.0
    %4012 = vmatpush1.msra.mxu0 0.0
    %4013 = vmatprep.subr.mxu0 0.0
    %4014 = vmatpush1.msra.mxu0 0.0
    %4015 = vmatprep.subr.mxu0 0.0
    %4016 = vmatpush1.msra.mxu0 0.0
    %4017 = vmatprep.subr.mxu0 0.0
    %4018 = vmatpush1.msra.mxu0 0.0
    %4019 = vmatprep.subr.mxu0 0.0
    %4020 = vmatpush1.msra.mxu0 0.0
    %4021 = vmatprep.subr.mxu0 0.0
    %4022 = vmatpush1.msra.mxu0 %v1787
    %4023 = vmatprep.subr.mxu0 0.0
    %4024 = vmatpush2.msra.mxu0 0.0
    %4025 = vmatprep.subr.mxu0 0.0
    %4026 = vmatpush2.msra.mxu0 0.0
    %4027 = vmatprep.subr.mxu0 0.0
    %4028 = vmatpush2.msra.mxu0 0.0
    %4029 = vmatprep.subr.mxu0 0.0
    %4030 = vmatpush2.msra.mxu0 0.0
    %4031 = vmatprep.subr.mxu0 0.0
    %4032 = vmatpush2.msra.mxu0 0.0
    %4033 = vmatprep.subr.mxu0 0.0
    %4034 = vmatpush2.msra.mxu0 0.0
    %4035 = vmatprep.subr.mxu0 0.0
    %4036 = vmatpush2.msra.mxu0 0.0
    %4037 = vmatprep.subr.mxu0 0.0
    %4038 = vmatpush2.msra.mxu0 0.0
    %4039 = vmatprep.subr.mxu0 0.0
    %4040 = vmatpush2.msra.mxu0 0.0
    %4041 = vmatprep.subr.mxu0 0.0
    %4042 = vmatpush2.msra.mxu0 0.0
    %4043 = vmatprep.subr.mxu0 0.0
    %4044 = vmatpush2.msra.mxu0 0.0
    %4045 = vmatprep.subr.mxu0 0.0
    %4046 = vmatpush2.msra.mxu0 0.0
    %4047 = vmatprep.subr.mxu0 0.0
    %4048 = vmatpush2.msra.mxu0 0.0
    %4049 = vmatprep.subr.mxu0 0.0
    %4050 = vmatpush2.msra.mxu0 0.0
    %4051 = vmatprep.subr.mxu0 0.0
    %4052 = vmatpush2.msra.mxu0 0.0
    %4053 = vmatprep.subr.mxu0 0.0
    %4054 = vmatpush2.msra.mxu0 0.0
    %4055 = vmatprep.mubr.f32.mxu0 0.0
    %4056 = vmatmul.mubr.f32.gmra.mxu0 %v3986
    %v4057 = vpop.f32.mrf.mxu0
    %v4058 = vadd.f32 0.0, %v4057
    %v4059 = vpop.f32.mrf.mxu0
    %4060 = vmatprep.mubr.f32.mxu0 0.0
    %4061 = vmatmul.mubr.f32.gmra.mxu0 %v3989
    %v4062 = vpop.f32.mrf.mxu0
    %v4063 = vadd.f32 0.0, %v4062
    %v4064 = vpop.f32.mrf.mxu0
    %4065 = vdwg.mxu0
    %4066 = vrot.lane.b32.xlu0 %v3977, 120
    %v4067 = vpop.permute.xlu0 %4066
    %4068 = vrot.lane.b32.xlu0 %v3982, 120
    %v4069 = vpop.permute.xlu0 %4068
    %v4070 = vsel %vm1296, %v4067, 0
    %v4072 = vsel %vm1296, %v4069, 0
    %4074 = vmatprep.subr.mxu0 0.0
    %4075 = vmatpush1.msra.mxu0 0.0
    %4076 = vmatprep.subr.mxu0 0.0
    %4077 = vmatpush1.msra.mxu0 0.0
    %4078 = vmatprep.subr.mxu0 0.0
    %4079 = vmatpush1.msra.mxu0 0.0
    %4080 = vmatprep.subr.mxu0 0.0
    %4081 = vmatpush1.msra.mxu0 0.0
    %4082 = vmatprep.subr.mxu0 0.0
    %4083 = vmatpush1.msra.mxu0 0.0
    %4084 = vmatprep.subr.mxu0 0.0
    %4085 = vmatpush1.msra.mxu0 0.0
    %4086 = vmatprep.subr.mxu0 0.0
    %4087 = vmatpush1.msra.mxu0 0.0
    %4088 = vmatprep.subr.mxu0 0.0
    %4089 = vmatpush1.msra.mxu0 0.0
    %4090 = vmatprep.subr.mxu0 0.0
    %4091 = vmatpush1.msra.mxu0 0.0
    %4092 = vmatprep.subr.mxu0 0.0
    %4093 = vmatpush1.msra.mxu0 0.0
    %4094 = vmatprep.subr.mxu0 0.0
    %4095 = vmatpush1.msra.mxu0 0.0
    %4096 = vmatprep.subr.mxu0 0.0
    %4097 = vmatpush1.msra.mxu0 0.0
    %4098 = vmatprep.subr.mxu0 0.0
    %4099 = vmatpush1.msra.mxu0 0.0
    %4100 = vmatprep.subr.mxu0 0.0
    %4101 = vmatpush1.msra.mxu0 0.0
    %4102 = vmatprep.subr.mxu0 0.0
    %4103 = vmatpush1.msra.mxu0 0.0
    %4104 = vmatprep.subr.mxu0 0.0
    %4105 = vmatpush1.msra.mxu0 %v1787
    %4106 = vmatprep.subr.mxu0 0.0
    %4107 = vmatpush2.msra.mxu0 0.0
    %4108 = vmatprep.subr.mxu0 0.0
    %4109 = vmatpush2.msra.mxu0 0.0
    %4110 = vmatprep.subr.mxu0 0.0
    %4111 = vmatpush2.msra.mxu0 0.0
    %4112 = vmatprep.subr.mxu0 0.0
    %4113 = vmatpush2.msra.mxu0 0.0
    %4114 = vmatprep.subr.mxu0 0.0
    %4115 = vmatpush2.msra.mxu0 0.0
    %4116 = vmatprep.subr.mxu0 0.0
    %4117 = vmatpush2.msra.mxu0 0.0
    %4118 = vmatprep.subr.mxu0 0.0
    %4119 = vmatpush2.msra.mxu0 0.0
    %4120 = vmatprep.subr.mxu0 0.0
    %4121 = vmatpush2.msra.mxu0 0.0
    %4122 = vmatprep.subr.mxu0 0.0
    %4123 = vmatpush2.msra.mxu0 0.0
    %4124 = vmatprep.subr.mxu0 0.0
    %4125 = vmatpush2.msra.mxu0 0.0
    %4126 = vmatprep.subr.mxu0 0.0
    %4127 = vmatpush2.msra.mxu0 0.0
    %4128 = vmatprep.subr.mxu0 0.0
    %4129 = vmatpush2.msra.mxu0 0.0
    %4130 = vmatprep.subr.mxu0 0.0
    %4131 = vmatpush2.msra.mxu0 0.0
    %4132 = vmatprep.subr.mxu0 0.0
    %4133 = vmatpush2.msra.mxu0 0.0
    %4134 = vmatprep.subr.mxu0 0.0
    %4135 = vmatpush2.msra.mxu0 0.0
    %4136 = vmatprep.subr.mxu0 0.0
    %4137 = vmatpush2.msra.mxu0 0.0
    %4138 = vmatprep.mubr.f32.mxu0 0.0
    %4139 = vmatmul.mubr.f32.gmra.mxu0 %v4070
    %v4140 = vpop.f32.mrf.mxu0
    %v4141 = vadd.f32 0.0, %v4140
    %v4142 = vpop.f32.mrf.mxu0
    %4143 = vmatprep.mubr.f32.mxu0 0.0
    %4144 = vmatmul.mubr.f32.gmra.mxu0 %v4072
    %v4145 = vpop.f32.mrf.mxu0
    %v4146 = vadd.f32 0.0, %v4145
    %v4147 = vpop.f32.mrf.mxu0
    %4148 = vdwg.mxu0
    %v4149 = vmul.f32 %v4141, %v1788
    %v4150 = vmul.f32 %v4146, %v1789
    %4151 = vmatprep.subr.mxu0 0.0
    %4152 = vmatpush1.msra.mxu0 0.0
    %4153 = vmatprep.subr.mxu0 0.0
    %4154 = vmatpush1.msra.mxu0 0.0
    %4155 = vmatprep.subr.mxu0 0.0
    %4156 = vmatpush1.msra.mxu0 0.0
    %4157 = vmatprep.subr.mxu0 0.0
    %4158 = vmatpush1.msra.mxu0 0.0
    %4159 = vmatprep.subr.mxu0 0.0
    %4160 = vmatpush1.msra.mxu0 0.0
    %4161 = vmatprep.subr.mxu0 0.0
    %4162 = vmatpush1.msra.mxu0 0.0
    %4163 = vmatprep.subr.mxu0 0.0
    %4164 = vmatpush1.msra.mxu0 0.0
    %4165 = vmatprep.subr.mxu0 0.0
    %4166 = vmatpush1.msra.mxu0 0.0
    %4167 = vmatprep.subr.mxu0 0.0
    %4168 = vmatpush1.msra.mxu0 0.0
    %4169 = vmatprep.subr.mxu0 0.0
    %4170 = vmatpush1.msra.mxu0 0.0
    %4171 = vmatprep.subr.mxu0 0.0
    %4172 = vmatpush1.msra.mxu0 0.0
    %4173 = vmatprep.subr.mxu0 0.0
    %4174 = vmatpush1.msra.mxu0 0.0
    %4175 = vmatprep.subr.mxu0 0.0
    %4176 = vmatpush1.msra.mxu0 0.0
    %4177 = vmatprep.subr.mxu0 0.0
    %4178 = vmatpush1.msra.mxu0 0.0
    %4179 = vmatprep.subr.mxu0 0.0
    %4180 = vmatpush1.msra.mxu0 %v4150
    %4181 = vmatprep.subr.mxu0 0.0
    %4182 = vmatpush1.msra.mxu0 %v4149
    %4183 = vmatprep.subr.mxu0 0.0
    %4184 = vmatpush2.msra.mxu0 0.0
    %4185 = vmatprep.subr.mxu0 0.0
    %4186 = vmatpush2.msra.mxu0 0.0
    %4187 = vmatprep.subr.mxu0 0.0
    %4188 = vmatpush2.msra.mxu0 0.0
    %4189 = vmatprep.subr.mxu0 0.0
    %4190 = vmatpush2.msra.mxu0 0.0
    %4191 = vmatprep.subr.mxu0 0.0
    %4192 = vmatpush2.msra.mxu0 0.0
    %4193 = vmatprep.subr.mxu0 0.0
    %4194 = vmatpush2.msra.mxu0 0.0
    %4195 = vmatprep.subr.mxu0 0.0
    %4196 = vmatpush2.msra.mxu0 0.0
    %4197 = vmatprep.subr.mxu0 0.0
    %4198 = vmatpush2.msra.mxu0 0.0
    %4199 = vmatprep.subr.mxu0 0.0
    %4200 = vmatpush2.msra.mxu0 0.0
    %4201 = vmatprep.subr.mxu0 0.0
    %4202 = vmatpush2.msra.mxu0 0.0
    %4203 = vmatprep.subr.mxu0 0.0
    %4204 = vmatpush2.msra.mxu0 0.0
    %4205 = vmatprep.subr.mxu0 0.0
    %4206 = vmatpush2.msra.mxu0 0.0
    %4207 = vmatprep.subr.mxu0 0.0
    %4208 = vmatpush2.msra.mxu0 0.0
    %4209 = vmatprep.subr.mxu0 0.0
    %4210 = vmatpush2.msra.mxu0 0.0
    %4211 = vmatprep.subr.mxu0 0.0
    %4212 = vmatpush2.msra.mxu0 0.0
    %4213 = vmatprep.subr.mxu0 0.0
    %4214 = vmatpush2.msra.mxu0 0.0
    %4215 = vmatprep.mubr.f32.mxu0 0.0
    %4216 = vmatmul.mubr.f32.gmra.mxu0 %v2062
    %v4217 = vpop.f32.mrf.mxu0
    %v4218 = vadd.f32 0.0, %v4217
    %v4219 = vpop.f32.mrf.mxu0
    %4220 = vdwg.mxu0
    %4221 = vrot.lane.b32.xlu0 %v3977, 112
    %v4222 = vpop.permute.xlu0 %4221
    %4223 = vrot.lane.b32.xlu0 %v3982, 112
    %v4224 = vpop.permute.xlu0 %4223
    %v4225 = vsel %vm1296, %v4222, 0
    %v4227 = vsel %vm1296, %v4224, 0
    %4229 = vmatprep.subr.mxu0 0.0
    %4230 = vmatpush1.msra.mxu0 0.0
    %4231 = vmatprep.subr.mxu0 0.0
    %4232 = vmatpush1.msra.mxu0 0.0
    %4233 = vmatprep.subr.mxu0 0.0
    %4234 = vmatpush1.msra.mxu0 0.0
    %4235 = vmatprep.subr.mxu0 0.0
    %4236 = vmatpush1.msra.mxu0 0.0
    %4237 = vmatprep.subr.mxu0 0.0
    %4238 = vmatpush1.msra.mxu0 0.0
    %4239 = vmatprep.subr.mxu0 0.0
    %4240 = vmatpush1.msra.mxu0 0.0
    %4241 = vmatprep.subr.mxu0 0.0
    %4242 = vmatpush1.msra.mxu0 0.0
    %4243 = vmatprep.subr.mxu0 0.0
    %4244 = vmatpush1.msra.mxu0 0.0
    %4245 = vmatprep.subr.mxu0 0.0
    %4246 = vmatpush1.msra.mxu0 0.0
    %4247 = vmatprep.subr.mxu0 0.0
    %4248 = vmatpush1.msra.mxu0 0.0
    %4249 = vmatprep.subr.mxu0 0.0
    %4250 = vmatpush1.msra.mxu0 0.0
    %4251 = vmatprep.subr.mxu0 0.0
    %4252 = vmatpush1.msra.mxu0 0.0
    %4253 = vmatprep.subr.mxu0 0.0
    %4254 = vmatpush1.msra.mxu0 0.0
    %4255 = vmatprep.subr.mxu0 0.0
    %4256 = vmatpush1.msra.mxu0 0.0
    %4257 = vmatprep.subr.mxu0 0.0
    %4258 = vmatpush1.msra.mxu0 0.0
    %4259 = vmatprep.subr.mxu0 0.0
    %4260 = vmatpush1.msra.mxu0 %v1787
    %4261 = vmatprep.subr.mxu0 0.0
    %4262 = vmatpush2.msra.mxu0 0.0
    %4263 = vmatprep.subr.mxu0 0.0
    %4264 = vmatpush2.msra.mxu0 0.0
    %4265 = vmatprep.subr.mxu0 0.0
    %4266 = vmatpush2.msra.mxu0 0.0
    %4267 = vmatprep.subr.mxu0 0.0
    %4268 = vmatpush2.msra.mxu0 0.0
    %4269 = vmatprep.subr.mxu0 0.0
    %4270 = vmatpush2.msra.mxu0 0.0
    %4271 = vmatprep.subr.mxu0 0.0
    %4272 = vmatpush2.msra.mxu0 0.0
    %4273 = vmatprep.subr.mxu0 0.0
    %4274 = vmatpush2.msra.mxu0 0.0
    %4275 = vmatprep.subr.mxu0 0.0
    %4276 = vmatpush2.msra.mxu0 0.0
    %4277 = vmatprep.subr.mxu0 0.0
    %4278 = vmatpush2.msra.mxu0 0.0
    %4279 = vmatprep.subr.mxu0 0.0
    %4280 = vmatpush2.msra.mxu0 0.0
    %4281 = vmatprep.subr.mxu0 0.0
    %4282 = vmatpush2.msra.mxu0 0.0
    %4283 = vmatprep.subr.mxu0 0.0
    %4284 = vmatpush2.msra.mxu0 0.0
    %4285 = vmatprep.subr.mxu0 0.0
    %4286 = vmatpush2.msra.mxu0 0.0
    %4287 = vmatprep.subr.mxu0 0.0
    %4288 = vmatpush2.msra.mxu0 0.0
    %4289 = vmatprep.subr.mxu0 0.0
    %4290 = vmatpush2.msra.mxu0 0.0
    %4291 = vmatprep.subr.mxu0 0.0
    %4292 = vmatpush2.msra.mxu0 0.0
    %4293 = vmatprep.mubr.f32.mxu0 0.0
    %4294 = vmatmul.mubr.f32.gmra.mxu0 %v4225
    %v4295 = vpop.f32.mrf.mxu0
    %v4296 = vadd.f32 0.0, %v4295
    %v4297 = vpop.f32.mrf.mxu0
    %4298 = vmatprep.mubr.f32.mxu0 0.0
    %4299 = vmatmul.mubr.f32.gmra.mxu0 %v4227
    %v4300 = vpop.f32.mrf.mxu0
    %v4301 = vadd.f32 0.0, %v4300
    %v4302 = vpop.f32.mrf.mxu0
    %4303 = vdwg.mxu0
    %v4304 = vmul.f32 %v4296, %v1788
    %v4305 = vmul.f32 %v4301, %v1789
    %4306 = vmatprep.subr.mxu0 0.0
    %4307 = vmatpush1.msra.mxu0 0.0
    %4308 = vmatprep.subr.mxu0 0.0
    %4309 = vmatpush1.msra.mxu0 0.0
    %4310 = vmatprep.subr.mxu0 0.0
    %4311 = vmatpush1.msra.mxu0 0.0
    %4312 = vmatprep.subr.mxu0 0.0
    %4313 = vmatpush1.msra.mxu0 0.0
    %4314 = vmatprep.subr.mxu0 0.0
    %4315 = vmatpush1.msra.mxu0 0.0
    %4316 = vmatprep.subr.mxu0 0.0
    %4317 = vmatpush1.msra.mxu0 0.0
    %4318 = vmatprep.subr.mxu0 0.0
    %4319 = vmatpush1.msra.mxu0 0.0
    %4320 = vmatprep.subr.mxu0 0.0
    %4321 = vmatpush1.msra.mxu0 0.0
    %4322 = vmatprep.subr.mxu0 0.0
    %4323 = vmatpush1.msra.mxu0 0.0
    %4324 = vmatprep.subr.mxu0 0.0
    %4325 = vmatpush1.msra.mxu0 0.0
    %4326 = vmatprep.subr.mxu0 0.0
    %4327 = vmatpush1.msra.mxu0 0.0
    %4328 = vmatprep.subr.mxu0 0.0
    %4329 = vmatpush1.msra.mxu0 0.0
    %4330 = vmatprep.subr.mxu0 0.0
    %4331 = vmatpush1.msra.mxu0 0.0
    %4332 = vmatprep.subr.mxu0 0.0
    %4333 = vmatpush1.msra.mxu0 0.0
    %4334 = vmatprep.subr.mxu0 0.0
    %4335 = vmatpush1.msra.mxu0 %v4305
    %4336 = vmatprep.subr.mxu0 0.0
    %4337 = vmatpush1.msra.mxu0 %v4304
    %4338 = vmatprep.subr.mxu0 0.0
    %4339 = vmatpush2.msra.mxu0 0.0
    %4340 = vmatprep.subr.mxu0 0.0
    %4341 = vmatpush2.msra.mxu0 0.0
    %4342 = vmatprep.subr.mxu0 0.0
    %4343 = vmatpush2.msra.mxu0 0.0
    %4344 = vmatprep.subr.mxu0 0.0
    %4345 = vmatpush2.msra.mxu0 0.0
    %4346 = vmatprep.subr.mxu0 0.0
    %4347 = vmatpush2.msra.mxu0 0.0
    %4348 = vmatprep.subr.mxu0 0.0
    %4349 = vmatpush2.msra.mxu0 0.0
    %4350 = vmatprep.subr.mxu0 0.0
    %4351 = vmatpush2.msra.mxu0 0.0
    %4352 = vmatprep.subr.mxu0 0.0
    %4353 = vmatpush2.msra.mxu0 0.0
    %4354 = vmatprep.subr.mxu0 0.0
    %4355 = vmatpush2.msra.mxu0 0.0
    %4356 = vmatprep.subr.mxu0 0.0
    %4357 = vmatpush2.msra.mxu0 0.0
    %4358 = vmatprep.subr.mxu0 0.0
    %4359 = vmatpush2.msra.mxu0 0.0
    %4360 = vmatprep.subr.mxu0 0.0
    %4361 = vmatpush2.msra.mxu0 0.0
    %4362 = vmatprep.subr.mxu0 0.0
    %4363 = vmatpush2.msra.mxu0 0.0
    %4364 = vmatprep.subr.mxu0 0.0
    %4365 = vmatpush2.msra.mxu0 0.0
    %4366 = vmatprep.subr.mxu0 0.0
    %4367 = vmatpush2.msra.mxu0 0.0
    %4368 = vmatprep.subr.mxu0 0.0
    %4369 = vmatpush2.msra.mxu0 0.0
    %4370 = vmatprep.mubr.f32.mxu0 0.0
    %4371 = vmatmul.mubr.f32.gmra.mxu0 %v2062
    %v4372 = vpop.f32.mrf.mxu0
    %v4373 = vadd.f32 0.0, %v4372
    %v4374 = vpop.f32.mrf.mxu0
    %4375 = vdwg.mxu0
    %v4376 = vlaneseq
    %v4377 = vshrl.u32 %v4376, 7
    %v4378 = vsub.s32 0, %v4377
    %v4379 = vrot.slane %v4218, %v4378
    %v4380 = vmul.f32 %v4058, %v4379
    %v4381 = vmul.f32 %v4063, %v4379
    %4382 = vmax.xlane.f32.xlu0 %v4380
    %v4383 = vpop.xlane.xlu0 %4382
    %4384 = vmax.xlane.f32.xlu0 %v4381
    %v4385 = vpop.xlane.xlu0 %4384
    %v4386 = vsub.f32 %v4380, %v4383
    %v4387 = vsub.f32 %v4381, %v4385
    %v4388 = vmul.f32 %v4386, 1.442695
    %v4389 = vpow.pop %v4388
    %v4390 = vmul.f32 %v4387, 1.442695
    %v4391 = vpow.pop %v4390
    %4392 = vmatprep.subr.mxu0 0.0
    %4393 = vmatpush1.msra.mxu0 %v1805
    %4394 = vmatprep.subr.mxu0 0.0
    %4395 = vmatpush1.msra.mxu0 %v1804
    %4396 = vmatprep.subr.mxu0 0.0
    %4397 = vmatpush1.msra.mxu0 %v1803
    %4398 = vmatprep.subr.mxu0 0.0
    %4399 = vmatpush1.msra.mxu0 %v1802
    %4400 = vmatprep.subr.mxu0 0.0
    %4401 = vmatpush1.msra.mxu0 %v1801
    %4402 = vmatprep.subr.mxu0 0.0
    %4403 = vmatpush1.msra.mxu0 %v1800
    %4404 = vmatprep.subr.mxu0 0.0
    %4405 = vmatpush1.msra.mxu0 %v1799
    %4406 = vmatprep.subr.mxu0 0.0
    %4407 = vmatpush1.msra.mxu0 %v1798
    %4408 = vmatprep.subr.mxu0 0.0
    %4409 = vmatpush1.msra.mxu0 %v1797
    %4410 = vmatprep.subr.mxu0 0.0
    %4411 = vmatpush1.msra.mxu0 %v1796
    %4412 = vmatprep.subr.mxu0 0.0
    %4413 = vmatpush1.msra.mxu0 %v1795
    %4414 = vmatprep.subr.mxu0 0.0
    %4415 = vmatpush1.msra.mxu0 %v1794
    %4416 = vmatprep.subr.mxu0 0.0
    %4417 = vmatpush1.msra.mxu0 %v1793
    %4418 = vmatprep.subr.mxu0 0.0
    %4419 = vmatpush1.msra.mxu0 %v1792
    %4420 = vmatprep.subr.mxu0 0.0
    %4421 = vmatpush1.msra.mxu0 %v1791
    %4422 = vmatprep.subr.mxu0 0.0
    %4423 = vmatpush1.msra.mxu0 %v1790
    %4424 = vmatprep.subr.mxu0 0.0
    %4425 = vmatpush2.msra.mxu0 0.0
    %4426 = vmatprep.subr.mxu0 0.0
    %4427 = vmatpush2.msra.mxu0 0.0
    %4428 = vmatprep.subr.mxu0 0.0
    %4429 = vmatpush2.msra.mxu0 0.0
    %4430 = vmatprep.subr.mxu0 0.0
    %4431 = vmatpush2.msra.mxu0 0.0
    %4432 = vmatprep.subr.mxu0 0.0
    %4433 = vmatpush2.msra.mxu0 0.0
    %4434 = vmatprep.subr.mxu0 0.0
    %4435 = vmatpush2.msra.mxu0 0.0
    %4436 = vmatprep.subr.mxu0 0.0
    %4437 = vmatpush2.msra.mxu0 0.0
    %4438 = vmatprep.subr.mxu0 0.0
    %4439 = vmatpush2.msra.mxu0 0.0
    %4440 = vmatprep.subr.mxu0 0.0
    %4441 = vmatpush2.msra.mxu0 0.0
    %4442 = vmatprep.subr.mxu0 0.0
    %4443 = vmatpush2.msra.mxu0 0.0
    %4444 = vmatprep.subr.mxu0 0.0
    %4445 = vmatpush2.msra.mxu0 0.0
    %4446 = vmatprep.subr.mxu0 0.0
    %4447 = vmatpush2.msra.mxu0 0.0
    %4448 = vmatprep.subr.mxu0 0.0
    %4449 = vmatpush2.msra.mxu0 0.0
    %4450 = vmatprep.subr.mxu0 0.0
    %4451 = vmatpush2.msra.mxu0 0.0
    %4452 = vmatprep.subr.mxu0 0.0
    %4453 = vmatpush2.msra.mxu0 0.0
    %4454 = vmatprep.subr.mxu0 0.0
    %4455 = vmatpush2.msra.mxu0 0.0
    %4456 = vmatprep.mubr.f32.mxu0 0.0
    %4457 = vmatmul.mubr.f32.gmra.mxu0 %v4389
    %v4458 = vpop.f32.mrf.mxu0
    %v4459 = vadd.f32 0.0, %v4458
    %v4460 = vpop.f32.mrf.mxu0
    %4461 = vmatprep.mubr.f32.mxu0 0.0
    %4462 = vmatmul.mubr.f32.gmra.mxu0 %v4391
    %v4463 = vpop.f32.mrf.mxu0
    %v4464 = vadd.f32 0.0, %v4463
    %v4465 = vpop.f32.mrf.mxu0
    %4466 = vdwg.mxu0
    %v4467 = vlaneseq
    %v4468 = vshrl.u32 %v4467, 7
    %v4469 = vsub.s32 0, %v4468
    %v4470 = vrot.slane %v4373, %v4469
    %v4471 = vmul.f32 %v4389, %v4470
    %v4472 = vmul.f32 %v4391, %v4470
    %4473 = vmatprep.subr.mxu0 0.0
    %4474 = vmatpush1.msra.mxu0 %v1805
    %4475 = vmatprep.subr.mxu0 0.0
    %4476 = vmatpush1.msra.mxu0 %v1804
    %4477 = vmatprep.subr.mxu0 0.0
    %4478 = vmatpush1.msra.mxu0 %v1803
    %4479 = vmatprep.subr.mxu0 0.0
    %4480 = vmatpush1.msra.mxu0 %v1802
    %4481 = vmatprep.subr.mxu0 0.0
    %4482 = vmatpush1.msra.mxu0 %v1801
    %4483 = vmatprep.subr.mxu0 0.0
    %4484 = vmatpush1.msra.mxu0 %v1800
    %4485 = vmatprep.subr.mxu0 0.0
    %4486 = vmatpush1.msra.mxu0 %v1799
    %4487 = vmatprep.subr.mxu0 0.0
    %4488 = vmatpush1.msra.mxu0 %v1798
    %4489 = vmatprep.subr.mxu0 0.0
    %4490 = vmatpush1.msra.mxu0 %v1797
    %4491 = vmatprep.subr.mxu0 0.0
    %4492 = vmatpush1.msra.mxu0 %v1796
    %4493 = vmatprep.subr.mxu0 0.0
    %4494 = vmatpush1.msra.mxu0 %v1795
    %4495 = vmatprep.subr.mxu0 0.0
    %4496 = vmatpush1.msra.mxu0 %v1794
    %4497 = vmatprep.subr.mxu0 0.0
    %4498 = vmatpush1.msra.mxu0 %v1793
    %4499 = vmatprep.subr.mxu0 0.0
    %4500 = vmatpush1.msra.mxu0 %v1792
    %4501 = vmatprep.subr.mxu0 0.0
    %4502 = vmatpush1.msra.mxu0 %v1791
    %4503 = vmatprep.subr.mxu0 0.0
    %4504 = vmatpush1.msra.mxu0 %v1790
    %4505 = vmatprep.subr.mxu0 0.0
    %4506 = vmatpush2.msra.mxu0 0.0
    %4507 = vmatprep.subr.mxu0 0.0
    %4508 = vmatpush2.msra.mxu0 0.0
    %4509 = vmatprep.subr.mxu0 0.0
    %4510 = vmatpush2.msra.mxu0 0.0
    %4511 = vmatprep.subr.mxu0 0.0
    %4512 = vmatpush2.msra.mxu0 0.0
    %4513 = vmatprep.subr.mxu0 0.0
    %4514 = vmatpush2.msra.mxu0 0.0
    %4515 = vmatprep.subr.mxu0 0.0
    %4516 = vmatpush2.msra.mxu0 0.0
    %4517 = vmatprep.subr.mxu0 0.0
    %4518 = vmatpush2.msra.mxu0 0.0
    %4519 = vmatprep.subr.mxu0 0.0
    %4520 = vmatpush2.msra.mxu0 0.0
    %4521 = vmatprep.subr.mxu0 0.0
    %4522 = vmatpush2.msra.mxu0 0.0
    %4523 = vmatprep.subr.mxu0 0.0
    %4524 = vmatpush2.msra.mxu0 0.0
    %4525 = vmatprep.subr.mxu0 0.0
    %4526 = vmatpush2.msra.mxu0 0.0
    %4527 = vmatprep.subr.mxu0 0.0
    %4528 = vmatpush2.msra.mxu0 0.0
    %4529 = vmatprep.subr.mxu0 0.0
    %4530 = vmatpush2.msra.mxu0 0.0
    %4531 = vmatprep.subr.mxu0 0.0
    %4532 = vmatpush2.msra.mxu0 0.0
    %4533 = vmatprep.subr.mxu0 0.0
    %4534 = vmatpush2.msra.mxu0 0.0
    %4535 = vmatprep.subr.mxu0 0.0
    %4536 = vmatpush2.msra.mxu0 0.0
    %4537 = vmatprep.mubr.f32.mxu0 0.0
    %4538 = vmatmul.mubr.f32.gmra.mxu0 %v4471
    %v4539 = vpop.f32.mrf.mxu0
    %v4540 = vadd.f32 0.0, %v4539
    %v4541 = vpop.f32.mrf.mxu0
    %4542 = vmatprep.mubr.f32.mxu0 0.0
    %4543 = vmatmul.mubr.f32.gmra.mxu0 %v4472
    %v4544 = vpop.f32.mrf.mxu0
    %v4545 = vadd.f32 0.0, %v4544
    %v4546 = vpop.f32.mrf.mxu0
    %4547 = vdwg.mxu0
    %v4548 = vrcp.pop %v4459
    %v4549 = vmul.f32 %v4540, %v4548
    %v4550 = vrcp.pop %v4464
    %v4551 = vmul.f32 %v4545, %v4550
    %s4552 = scalar_lea.vmem %s49, 16
    %v4553 = vld [vmem:[%s4552] sm:$0xff]
    %s4554 = scalar_lea.vmem %s51, 2
    %v4555 = vld [vmem:[%s4554] sm:$0x1]
    %v4557 = vlaneseq
    %v4558 = vshrl.u32 %v4557, 7
    %v4559 = vsub.s32 0, %v4558
    %v4560 = vrot.slane %v4555, %v4559
    %v4563 = vsel %vm1296, %v4549, 0
    %v4566 = vsel %vm1296, %v4551, 0
    %4568 = vmatprep.subr.mxu0 0.0
    %4569 = vmatpush1.msra.mxu0 0.0
    %4570 = vmatprep.subr.mxu0 0.0
    %4571 = vmatpush1.msra.mxu0 0.0
    %4572 = vmatprep.subr.mxu0 0.0
    %4573 = vmatpush1.msra.mxu0 0.0
    %4574 = vmatprep.subr.mxu0 0.0
    %4575 = vmatpush1.msra.mxu0 0.0
    %4576 = vmatprep.subr.mxu0 0.0
    %4577 = vmatpush1.msra.mxu0 0.0
    %4578 = vmatprep.subr.mxu0 0.0
    %4579 = vmatpush1.msra.mxu0 0.0
    %4580 = vmatprep.subr.mxu0 0.0
    %4581 = vmatpush1.msra.mxu0 0.0
    %4582 = vmatprep.subr.mxu0 0.0
    %4583 = vmatpush1.msra.mxu0 0.0
    %4584 = vmatprep.subr.mxu0 0.0
    %4585 = vmatpush1.msra.mxu0 0.0
    %4586 = vmatprep.subr.mxu0 0.0
    %4587 = vmatpush1.msra.mxu0 0.0
    %4588 = vmatprep.subr.mxu0 0.0
    %4589 = vmatpush1.msra.mxu0 0.0
    %4590 = vmatprep.subr.mxu0 0.0
    %4591 = vmatpush1.msra.mxu0 0.0
    %4592 = vmatprep.subr.mxu0 0.0
    %4593 = vmatpush1.msra.mxu0 0.0
    %4594 = vmatprep.subr.mxu0 0.0
    %4595 = vmatpush1.msra.mxu0 0.0
    %4596 = vmatprep.subr.mxu0 0.0
    %4597 = vmatpush1.msra.mxu0 0.0
    %4598 = vmatprep.subr.mxu0 0.0
    %4599 = vmatpush1.msra.mxu0 %v4553
    %4600 = vmatprep.subr.mxu0 0.0
    %4601 = vmatpush2.msra.mxu0 0.0
    %4602 = vmatprep.subr.mxu0 0.0
    %4603 = vmatpush2.msra.mxu0 0.0
    %4604 = vmatprep.subr.mxu0 0.0
    %4605 = vmatpush2.msra.mxu0 0.0
    %4606 = vmatprep.subr.mxu0 0.0
    %4607 = vmatpush2.msra.mxu0 0.0
    %4608 = vmatprep.subr.mxu0 0.0
    %4609 = vmatpush2.msra.mxu0 0.0
    %4610 = vmatprep.subr.mxu0 0.0
    %4611 = vmatpush2.msra.mxu0 0.0
    %4612 = vmatprep.subr.mxu0 0.0
    %4613 = vmatpush2.msra.mxu0 0.0
    %4614 = vmatprep.subr.mxu0 0.0
    %4615 = vmatpush2.msra.mxu0 0.0
    %4616 = vmatprep.subr.mxu0 0.0
    %4617 = vmatpush2.msra.mxu0 0.0
    %4618 = vmatprep.subr.mxu0 0.0
    %4619 = vmatpush2.msra.mxu0 0.0
    %4620 = vmatprep.subr.mxu0 0.0
    %4621 = vmatpush2.msra.mxu0 0.0
    %4622 = vmatprep.subr.mxu0 0.0
    %4623 = vmatpush2.msra.mxu0 0.0
    %4624 = vmatprep.subr.mxu0 0.0
    %4625 = vmatpush2.msra.mxu0 0.0
    %4626 = vmatprep.subr.mxu0 0.0
    %4627 = vmatpush2.msra.mxu0 0.0
    %4628 = vmatprep.subr.mxu0 0.0
    %4629 = vmatpush2.msra.mxu0 0.0
    %4630 = vmatprep.subr.mxu0 0.0
    %4631 = vmatpush2.msra.mxu0 0.0
    %4632 = vmatprep.mubr.f32.mxu0 0.0
    %4633 = vmatmul.mubr.f32.gmra.mxu0 %v4563
    %v4634 = vpop.f32.mrf.mxu0
    %v4635 = vadd.f32 %v4560, %v4634
    %v4636 = vpop.f32.mrf.mxu0
    %4637 = vmatprep.mubr.f32.mxu0 0.0
    %4638 = vmatmul.mubr.f32.gmra.mxu0 %v4566
    %v4639 = vpop.f32.mrf.mxu0
    %v4640 = vadd.f32 %v4560, %v4639
    %v4641 = vpop.f32.mrf.mxu0
    %4642 = vdwg.mxu0
    %v4643 = vadd.f32 %v3892, %v4635
    %v4644 = vadd.f32 %v3893, %v4640
    %s4645 = scalar_lea.vmem %s53, 2
    %v4646 = vld [vmem:[%s4645] sm:$0x1]
    %s4647 = scalar_lea.vmem %s55, 2
    %v4648 = vld [vmem:[%s4647] sm:$0x1]
    %v4649 = vsel %vm1296, %v4643, 0.0
    %4650 = vadd.xlane.f32.xlu0 %v4649
    %v4651 = vpop.xlane.xlu0 %4650
    %v4652 = vsel %vm1296, %v4644, 0.0
    %4653 = vadd.xlane.f32.xlu0 %v4652
    %v4654 = vpop.xlane.xlu0 %4653
    %v4655 = vmul.f32 %v4651, %v2564
    %v4656 = vmul.f32 %v4654, %v2564
    %v4657 = vsub.f32 %v4643, %v4655
    %v4658 = vsub.f32 %v4644, %v4656
    %v4659 = vmul.f32 %v4657, %v4657
    %v4660 = vmul.f32 %v4658, %v4658
    %v4661 = vsel %vm1296, %v4659, 0.0
    %4662 = vadd.xlane.f32.xlu0 %v4661
    %v4663 = vpop.xlane.xlu0 %4662
    %v4664 = vsel %vm1296, %v4660, 0.0
    %4665 = vadd.xlane.f32.xlu0 %v4664
    %v4666 = vpop.xlane.xlu0 %4665
    %v4667 = vmul.f32 %v4663, %v2564
    %v4668 = vmul.f32 %v4666, %v2564
    %v4669 = vadd.f32 %v4667, 1e-05
    %v4670 = vadd.f32 %v4668, 1e-05
    %v4671 = vrsqrt.pop %v4669
    %v4672 = vrsqrt.pop %v4670
    %v4673 = vmul.f32 %v4657, %v4671
    %v4674 = vmul.f32 %v4658, %v4672
    %v4676 = vlaneseq
    %v4677 = vshrl.u32 %v4676, 7
    %v4678 = vsub.s32 0, %v4677
    %v4679 = vrot.slane %v4646, %v4678
    %v4681 = vmul.f32 %v4673, %v4679
    %v4682 = vmul.f32 %v4674, %v4679
    %v4684 = vlaneseq
    %v4685 = vshrl.u32 %v4684, 7
    %v4686 = vsub.s32 0, %v4685
    %v4687 = vrot.slane %v4648, %v4686
    %v4689 = vadd.f32 %v4681, %v4687
    %v4690 = vadd.f32 %v4682, %v4687
    %s4691 = scalar_lea.vmem %s57, 16
    %v4692 = vld [vmem:[%s4691] sm:$0xff]
    %s4693 = scalar_lea.vmem %s59, 2
    %v4694 = vld [vmem:[%s4693] sm:$0x1]
    %v4696 = vlaneseq
    %v4697 = vshrl.u32 %v4696, 7
    %v4698 = vsub.s32 0, %v4697
    %v4699 = vrot.slane %v4694, %v4698
    %v4702 = vsel %vm1296, %v4689, 0
    %v4705 = vsel %vm1296, %v4690, 0
    %4707 = vmatprep.subr.mxu0 0.0
    %4708 = vmatpush1.msra.mxu0 0.0
    %4709 = vmatprep.subr.mxu0 0.0
    %4710 = vmatpush1.msra.mxu0 0.0
    %4711 = vmatprep.subr.mxu0 0.0
    %4712 = vmatpush1.msra.mxu0 0.0
    %4713 = vmatprep.subr.mxu0 0.0
    %4714 = vmatpush1.msra.mxu0 0.0
    %4715 = vmatprep.subr.mxu0 0.0
    %4716 = vmatpush1.msra.mxu0 0.0
    %4717 = vmatprep.subr.mxu0 0.0
    %4718 = vmatpush1.msra.mxu0 0.0
    %4719 = vmatprep.subr.mxu0 0.0
    %4720 = vmatpush1.msra.mxu0 0.0
    %4721 = vmatprep.subr.mxu0 0.0
    %4722 = vmatpush1.msra.mxu0 0.0
    %4723 = vmatprep.subr.mxu0 0.0
    %4724 = vmatpush1.msra.mxu0 0.0
    %4725 = vmatprep.subr.mxu0 0.0
    %4726 = vmatpush1.msra.mxu0 0.0
    %4727 = vmatprep.subr.mxu0 0.0
    %4728 = vmatpush1.msra.mxu0 0.0
    %4729 = vmatprep.subr.mxu0 0.0
    %4730 = vmatpush1.msra.mxu0 0.0
    %4731 = vmatprep.subr.mxu0 0.0
    %4732 = vmatpush1.msra.mxu0 0.0
    %4733 = vmatprep.subr.mxu0 0.0
    %4734 = vmatpush1.msra.mxu0 0.0
    %4735 = vmatprep.subr.mxu0 0.0
    %4736 = vmatpush1.msra.mxu0 0.0
    %4737 = vmatprep.subr.mxu0 0.0
    %4738 = vmatpush1.msra.mxu0 %v4692
    %4739 = vmatprep.subr.mxu0 0.0
    %4740 = vmatpush2.msra.mxu0 0.0
    %4741 = vmatprep.subr.mxu0 0.0
    %4742 = vmatpush2.msra.mxu0 0.0
    %4743 = vmatprep.subr.mxu0 0.0
    %4744 = vmatpush2.msra.mxu0 0.0
    %4745 = vmatprep.subr.mxu0 0.0
    %4746 = vmatpush2.msra.mxu0 0.0
    %4747 = vmatprep.subr.mxu0 0.0
    %4748 = vmatpush2.msra.mxu0 0.0
    %4749 = vmatprep.subr.mxu0 0.0
    %4750 = vmatpush2.msra.mxu0 0.0
    %4751 = vmatprep.subr.mxu0 0.0
    %4752 = vmatpush2.msra.mxu0 0.0
    %4753 = vmatprep.subr.mxu0 0.0
    %4754 = vmatpush2.msra.mxu0 0.0
    %4755 = vmatprep.subr.mxu0 0.0
    %4756 = vmatpush2.msra.mxu0 0.0
    %4757 = vmatprep.subr.mxu0 0.0
    %4758 = vmatpush2.msra.mxu0 0.0
    %4759 = vmatprep.subr.mxu0 0.0
    %4760 = vmatpush2.msra.mxu0 0.0
    %4761 = vmatprep.subr.mxu0 0.0
    %4762 = vmatpush2.msra.mxu0 0.0
    %4763 = vmatprep.subr.mxu0 0.0
    %4764 = vmatpush2.msra.mxu0 0.0
    %4765 = vmatprep.subr.mxu0 0.0
    %4766 = vmatpush2.msra.mxu0 0.0
    %4767 = vmatprep.subr.mxu0 0.0
    %4768 = vmatpush2.msra.mxu0 0.0
    %4769 = vmatprep.subr.mxu0 0.0
    %4770 = vmatpush2.msra.mxu0 0.0
    %4771 = vmatprep.mubr.f32.mxu0 0.0
    %4772 = vmatmul.mubr.f32.gmra.mxu0 %v4702
    %v4773 = vpop.f32.mrf.mxu0
    %v4774 = vadd.f32 %v4699, %v4773
    %v4775 = vpop.f32.mrf.mxu0
    %4776 = vmatprep.mubr.f32.mxu0 0.0
    %4777 = vmatmul.mubr.f32.gmra.mxu0 %v4705
    %v4778 = vpop.f32.mrf.mxu0
    %v4779 = vadd.f32 %v4699, %v4778
    %v4780 = vpop.f32.mrf.mxu0
    %4781 = vdwg.mxu0
    %v4782 = vmul.f32 %v4774, 0.5
    %v4783 = vmul.f32 %v4779, 0.5
    %v4784 = vmul.f32 %v4774, 0.044715
    %v4785 = vmul.f32 %v4779, 0.044715
    %v4786 = vmul.f32 %v4784, %v4774
    %v4787 = vmul.f32 %v4785, %v4779
    %v4788 = vmul.f32 %v4786, %v4774
    %v4789 = vmul.f32 %v4787, %v4779
    %v4790 = vadd.f32 %v4774, %v4788
    %v4791 = vadd.f32 %v4779, %v4789
    %v4792 = vmul.f32 %v4790, 0.7978846
    %v4793 = vmul.f32 %v4791, 0.7978846
    %v4794 = vtanh.pop %v4792
    %v4795 = vtanh.pop %v4793
    %v4796 = vadd.f32 %v4794, 1.0
    %v4797 = vadd.f32 %v4795, 1.0
    %v4798 = vmul.f32 %v4782, %v4796
    %v4799 = vmul.f32 %v4783, %v4797
    %s4800 = scalar_lea.vmem %s61, 64
    %v4801 = vld [vmem:[%s4800] sm:$0xff]
    %v4802 = vld [vmem:[%s4800 + $0x8] sm:$0xff]
    %v4803 = vld [vmem:[%s4800 + $0x10] sm:$0xff]
    %v4804 = vld [vmem:[%s4800 + $0x18] sm:$0xff]
    %s4805 = scalar_lea.vmem %s63, 2
    %v4806 = vld [vmem:[%s4805] sm:$0x1]
    %v4808 = vlaneseq
    %v4809 = vshrl.u32 %v4808, 7
    %v4810 = vsub.s32 0, %v4809
    %v4811 = vrot.slane %v4806, %v4810
    %v4814 = vsel %vm1565, %v4798, 0
    %v4817 = vsel %vm1565, %v4799, 0
    %4819 = vmatprep.subr.mxu0 0.0
    %4820 = vmatpush1.msra.mxu0 0.0
    %4821 = vmatprep.subr.mxu0 0.0
    %4822 = vmatpush1.msra.mxu0 0.0
    %4823 = vmatprep.subr.mxu0 0.0
    %4824 = vmatpush1.msra.mxu0 0.0
    %4825 = vmatprep.subr.mxu0 0.0
    %4826 = vmatpush1.msra.mxu0 0.0
    %4827 = vmatprep.subr.mxu0 0.0
    %4828 = vmatpush1.msra.mxu0 0.0
    %4829 = vmatprep.subr.mxu0 0.0
    %4830 = vmatpush1.msra.mxu0 0.0
    %4831 = vmatprep.subr.mxu0 0.0
    %4832 = vmatpush1.msra.mxu0 0.0
    %4833 = vmatprep.subr.mxu0 0.0
    %4834 = vmatpush1.msra.mxu0 0.0
    %4835 = vmatprep.subr.mxu0 0.0
    %4836 = vmatpush1.msra.mxu0 0.0
    %4837 = vmatprep.subr.mxu0 0.0
    %4838 = vmatpush1.msra.mxu0 0.0
    %4839 = vmatprep.subr.mxu0 0.0
    %4840 = vmatpush1.msra.mxu0 0.0
    %4841 = vmatprep.subr.mxu0 0.0
    %4842 = vmatpush1.msra.mxu0 0.0
    %4843 = vmatprep.subr.mxu0 0.0
    %4844 = vmatpush1.msra.mxu0 %v4804
    %4845 = vmatprep.subr.mxu0 0.0
    %4846 = vmatpush1.msra.mxu0 %v4803
    %4847 = vmatprep.subr.mxu0 0.0
    %4848 = vmatpush1.msra.mxu0 %v4802
    %4849 = vmatprep.subr.mxu0 0.0
    %4850 = vmatpush1.msra.mxu0 %v4801
    %4851 = vmatprep.subr.mxu0 0.0
    %4852 = vmatpush2.msra.mxu0 0.0
    %4853 = vmatprep.subr.mxu0 0.0
    %4854 = vmatpush2.msra.mxu0 0.0
    %4855 = vmatprep.subr.mxu0 0.0
    %4856 = vmatpush2.msra.mxu0 0.0
    %4857 = vmatprep.subr.mxu0 0.0
    %4858 = vmatpush2.msra.mxu0 0.0
    %4859 = vmatprep.subr.mxu0 0.0
    %4860 = vmatpush2.msra.mxu0 0.0
    %4861 = vmatprep.subr.mxu0 0.0
    %4862 = vmatpush2.msra.mxu0 0.0
    %4863 = vmatprep.subr.mxu0 0.0
    %4864 = vmatpush2.msra.mxu0 0.0
    %4865 = vmatprep.subr.mxu0 0.0
    %4866 = vmatpush2.msra.mxu0 0.0
    %4867 = vmatprep.subr.mxu0 0.0
    %4868 = vmatpush2.msra.mxu0 0.0
    %4869 = vmatprep.subr.mxu0 0.0
    %4870 = vmatpush2.msra.mxu0 0.0
    %4871 = vmatprep.subr.mxu0 0.0
    %4872 = vmatpush2.msra.mxu0 0.0
    %4873 = vmatprep.subr.mxu0 0.0
    %4874 = vmatpush2.msra.mxu0 0.0
    %4875 = vmatprep.subr.mxu0 0.0
    %4876 = vmatpush2.msra.mxu0 0.0
    %4877 = vmatprep.subr.mxu0 0.0
    %4878 = vmatpush2.msra.mxu0 0.0
    %4879 = vmatprep.subr.mxu0 0.0
    %4880 = vmatpush2.msra.mxu0 0.0
    %4881 = vmatprep.subr.mxu0 0.0
    %4882 = vmatpush2.msra.mxu0 0.0
    %4883 = vmatprep.mubr.f32.mxu0 0.0
    %4884 = vmatmul.mubr.f32.gmra.mxu0 %v4814
    %v4885 = vpop.f32.mrf.mxu0
    %v4886 = vadd.f32 %v4811, %v4885
    %v4887 = vpop.f32.mrf.mxu0
    %4888 = vmatprep.mubr.f32.mxu0 0.0
    %4889 = vmatmul.mubr.f32.gmra.mxu0 %v4817
    %v4890 = vpop.f32.mrf.mxu0
    %v4891 = vadd.f32 %v4811, %v4890
    %v4892 = vpop.f32.mrf.mxu0
    %4893 = vdwg.mxu0
    %v4894 = vadd.f32 %v4689, %v4886
    %v4895 = vadd.f32 %v4690, %v4891
    %s4896 = scalar_lea.vmem %s65, 2
    %v4897 = vld [vmem:[%s4896] sm:$0x1]
    %s4898 = scalar_lea.vmem %s67, 2
    %v4899 = vld [vmem:[%s4898] sm:$0x1]
    %v4900 = vsel %vm1296, %v4894, 0.0
    %4901 = vadd.xlane.f32.xlu0 %v4900
    %v4902 = vpop.xlane.xlu0 %4901
    %v4903 = vsel %vm1296, %v4895, 0.0
    %4904 = vadd.xlane.f32.xlu0 %v4903
    %v4905 = vpop.xlane.xlu0 %4904
    %v4906 = vmul.f32 %v4902, %v2564
    %v4907 = vmul.f32 %v4905, %v2564
    %v4908 = vsub.f32 %v4894, %v4906
    %v4909 = vsub.f32 %v4895, %v4907
    %v4910 = vmul.f32 %v4908, %v4908
    %v4911 = vmul.f32 %v4909, %v4909
    %v4912 = vsel %vm1296, %v4910, 0.0
    %4913 = vadd.xlane.f32.xlu0 %v4912
    %v4914 = vpop.xlane.xlu0 %4913
    %v4915 = vsel %vm1296, %v4911, 0.0
    %4916 = vadd.xlane.f32.xlu0 %v4915
    %v4917 = vpop.xlane.xlu0 %4916
    %v4918 = vmul.f32 %v4914, %v2564
    %v4919 = vmul.f32 %v4917, %v2564
    %v4920 = vadd.f32 %v4918, 1e-05
    %v4921 = vadd.f32 %v4919, 1e-05
    %v4922 = vrsqrt.pop %v4920
    %v4923 = vrsqrt.pop %v4921
    %v4924 = vmul.f32 %v4908, %v4922
    %v4925 = vmul.f32 %v4909, %v4923
    %v4927 = vlaneseq
    %v4928 = vshrl.u32 %v4927, 7
    %v4929 = vsub.s32 0, %v4928
    %v4930 = vrot.slane %v4897, %v4929
    %v4932 = vmul.f32 %v4924, %v4930
    %v4933 = vmul.f32 %v4925, %v4930
    %v4935 = vlaneseq
    %v4936 = vshrl.u32 %v4935, 7
    %v4937 = vsub.s32 0, %v4936
    %v4938 = vrot.slane %v4899, %v4937
    %v4940 = vadd.f32 %v4932, %v4938
    %v4941 = vadd.f32 %v4933, %v4938
    %s4942 = scalar_lea.vmem %s45, 24
    %v4943 = vld [vmem:[%s4942] sm:$0xff]
    %s4944 = scalar_lea.vmem %s47, 3
    %v4945 = vld [vmem:[%s4944] sm:$0x1]
    %v4947 = vlaneseq
    %v4948 = vshrl.u32 %v4947, 7
    %v4949 = vsub.s32 0, %v4948
    %v4950 = vrot.slane %v4945, %v4949
    %v4953 = vsel %vm1296, %v4940, 0
    %v4956 = vsel %vm1296, %v4941, 0
    %4958 = vmatprep.subr.mxu0 0.0
    %4959 = vmatpush1.msra.mxu0 0.0
    %4960 = vmatprep.subr.mxu0 0.0
    %4961 = vmatpush1.msra.mxu0 0.0
    %4962 = vmatprep.subr.mxu0 0.0
    %4963 = vmatpush1.msra.mxu0 0.0
    %4964 = vmatprep.subr.mxu0 0.0
    %4965 = vmatpush1.msra.mxu0 0.0
    %4966 = vmatprep.subr.mxu0 0.0
    %4967 = vmatpush1.msra.mxu0 0.0
    %4968 = vmatprep.subr.mxu0 0.0
    %4969 = vmatpush1.msra.mxu0 0.0
    %4970 = vmatprep.subr.mxu0 0.0
    %4971 = vmatpush1.msra.mxu0 0.0
    %4972 = vmatprep.subr.mxu0 0.0
    %4973 = vmatpush1.msra.mxu0 0.0
    %4974 = vmatprep.subr.mxu0 0.0
    %4975 = vmatpush1.msra.mxu0 0.0
    %4976 = vmatprep.subr.mxu0 0.0
    %4977 = vmatpush1.msra.mxu0 0.0
    %4978 = vmatprep.subr.mxu0 0.0
    %4979 = vmatpush1.msra.mxu0 0.0
    %4980 = vmatprep.subr.mxu0 0.0
    %4981 = vmatpush1.msra.mxu0 0.0
    %4982 = vmatprep.subr.mxu0 0.0
    %4983 = vmatpush1.msra.mxu0 0.0
    %4984 = vmatprep.subr.mxu0 0.0
    %4985 = vmatpush1.msra.mxu0 0.0
    %4986 = vmatprep.subr.mxu0 0.0
    %4987 = vmatpush1.msra.mxu0 0.0
    %4988 = vmatprep.subr.mxu0 0.0
    %4989 = vmatpush1.msra.mxu0 %v4943
    %4990 = vmatprep.subr.mxu0 0.0
    %4991 = vmatpush2.msra.mxu0 0.0
    %4992 = vmatprep.subr.mxu0 0.0
    %4993 = vmatpush2.msra.mxu0 0.0
    %4994 = vmatprep.subr.mxu0 0.0
    %4995 = vmatpush2.msra.mxu0 0.0
    %4996 = vmatprep.subr.mxu0 0.0
    %4997 = vmatpush2.msra.mxu0 0.0
    %4998 = vmatprep.subr.mxu0 0.0
    %4999 = vmatpush2.msra.mxu0 0.0
    %5000 = vmatprep.subr.mxu0 0.0
    %5001 = vmatpush2.msra.mxu0 0.0
    %5002 = vmatprep.subr.mxu0 0.0
    %5003 = vmatpush2.msra.mxu0 0.0
    %5004 = vmatprep.subr.mxu0 0.0
    %5005 = vmatpush2.msra.mxu0 0.0
    %5006 = vmatprep.subr.mxu0 0.0
    %5007 = vmatpush2.msra.mxu0 0.0
    %5008 = vmatprep.subr.mxu0 0.0
    %5009 = vmatpush2.msra.mxu0 0.0
    %5010 = vmatprep.subr.mxu0 0.0
    %5011 = vmatpush2.msra.mxu0 0.0
    %5012 = vmatprep.subr.mxu0 0.0
    %5013 = vmatpush2.msra.mxu0 0.0
    %5014 = vmatprep.subr.mxu0 0.0
    %5015 = vmatpush2.msra.mxu0 0.0
    %5016 = vmatprep.subr.mxu0 0.0
    %5017 = vmatpush2.msra.mxu0 0.0
    %5018 = vmatprep.subr.mxu0 0.0
    %5019 = vmatpush2.msra.mxu0 0.0
    %5020 = vmatprep.subr.mxu0 0.0
    %5021 = vmatpush2.msra.mxu0 0.0
    %5022 = vmatprep.mubr.f32.mxu0 0.0
    %5023 = vmatmul.mubr.f32.gmra.mxu0 %v4953
    %v5024 = vpop.f32.mrf.mxu0
    %v5025 = vadd.f32 %v4950, %v5024
    %v5026 = vpop.f32.mrf.mxu0
    %5027 = vmatprep.mubr.f32.mxu0 0.0
    %5028 = vmatmul.mubr.f32.gmra.mxu0 %v4956
    %v5029 = vpop.f32.mrf.mxu0
    %v5030 = vadd.f32 %v4950, %v5029
    %v5031 = vpop.f32.mrf.mxu0
    %5032 = vdwg.mxu0
    %v5034 = vsel %vm1296, %v5025, 0
    %v5037 = vsel %vm1296, %v5030, 0
    %5039 = vmatprep.subr.mxu0 0.0
    %5040 = vmatpush1.msra.mxu0 0.0
    %5041 = vmatprep.subr.mxu0 0.0
    %5042 = vmatpush1.msra.mxu0 0.0
    %5043 = vmatprep.subr.mxu0 0.0
    %5044 = vmatpush1.msra.mxu0 0.0
    %5045 = vmatprep.subr.mxu0 0.0
    %5046 = vmatpush1.msra.mxu0 0.0
    %5047 = vmatprep.subr.mxu0 0.0
    %5048 = vmatpush1.msra.mxu0 0.0
    %5049 = vmatprep.subr.mxu0 0.0
    %5050 = vmatpush1.msra.mxu0 0.0
    %5051 = vmatprep.subr.mxu0 0.0
    %5052 = vmatpush1.msra.mxu0 0.0
    %5053 = vmatprep.subr.mxu0 0.0
    %5054 = vmatpush1.msra.mxu0 0.0
    %5055 = vmatprep.subr.mxu0 0.0
    %5056 = vmatpush1.msra.mxu0 0.0
    %5057 = vmatprep.subr.mxu0 0.0
    %5058 = vmatpush1.msra.mxu0 0.0
    %5059 = vmatprep.subr.mxu0 0.0
    %5060 = vmatpush1.msra.mxu0 0.0
    %5061 = vmatprep.subr.mxu0 0.0
    %5062 = vmatpush1.msra.mxu0 0.0
    %5063 = vmatprep.subr.mxu0 0.0
    %5064 = vmatpush1.msra.mxu0 0.0
    %5065 = vmatprep.subr.mxu0 0.0
    %5066 = vmatpush1.msra.mxu0 0.0
    %5067 = vmatprep.subr.mxu0 0.0
    %5068 = vmatpush1.msra.mxu0 0.0
    %5069 = vmatprep.subr.mxu0 0.0
    %5070 = vmatpush1.msra.mxu0 %v1787
    %5071 = vmatprep.subr.mxu0 0.0
    %5072 = vmatpush2.msra.mxu0 0.0
    %5073 = vmatprep.subr.mxu0 0.0
    %5074 = vmatpush2.msra.mxu0 0.0
    %5075 = vmatprep.subr.mxu0 0.0
    %5076 = vmatpush2.msra.mxu0 0.0
    %5077 = vmatprep.subr.mxu0 0.0
    %5078 = vmatpush2.msra.mxu0 0.0
    %5079 = vmatprep.subr.mxu0 0.0
    %5080 = vmatpush2.msra.mxu0 0.0
    %5081 = vmatprep.subr.mxu0 0.0
    %5082 = vmatpush2.msra.mxu0 0.0
    %5083 = vmatprep.subr.mxu0 0.0
    %5084 = vmatpush2.msra.mxu0 0.0
    %5085 = vmatprep.subr.mxu0 0.0
    %5086 = vmatpush2.msra.mxu0 0.0
    %5087 = vmatprep.subr.mxu0 0.0
    %5088 = vmatpush2.msra.mxu0 0.0
    %5089 = vmatprep.subr.mxu0 0.0
    %5090 = vmatpush2.msra.mxu0 0.0
    %5091 = vmatprep.subr.mxu0 0.0
    %5092 = vmatpush2.msra.mxu0 0.0
    %5093 = vmatprep.subr.mxu0 0.0
    %5094 = vmatpush2.msra.mxu0 0.0
    %5095 = vmatprep.subr.mxu0 0.0
    %5096 = vmatpush2.msra.mxu0 0.0
    %5097 = vmatprep.subr.mxu0 0.0
    %5098 = vmatpush2.msra.mxu0 0.0
    %5099 = vmatprep.subr.mxu0 0.0
    %5100 = vmatpush2.msra.mxu0 0.0
    %5101 = vmatprep.subr.mxu0 0.0
    %5102 = vmatpush2.msra.mxu0 0.0
    %5103 = vmatprep.mubr.f32.mxu0 0.0
    %5104 = vmatmul.mubr.f32.gmra.mxu0 %v5034
    %v5105 = vpop.f32.mrf.mxu0
    %v5106 = vadd.f32 0.0, %v5105
    %v5107 = vpop.f32.mrf.mxu0
    %5108 = vmatprep.mubr.f32.mxu0 0.0
    %5109 = vmatmul.mubr.f32.gmra.mxu0 %v5037
    %v5110 = vpop.f32.mrf.mxu0
    %v5111 = vadd.f32 0.0, %v5110
    %v5112 = vpop.f32.mrf.mxu0
    %5113 = vdwg.mxu0
    %5114 = vrot.lane.b32.xlu0 %v5025, 120
    %v5115 = vpop.permute.xlu0 %5114
    %5116 = vrot.lane.b32.xlu0 %v5030, 120
    %v5117 = vpop.permute.xlu0 %5116
    %v5118 = vsel %vm1296, %v5115, 0
    %v5120 = vsel %vm1296, %v5117, 0
    %5122 = vmatprep.subr.mxu0 0.0
    %5123 = vmatpush1.msra.mxu0 0.0
    %5124 = vmatprep.subr.mxu0 0.0
    %5125 = vmatpush1.msra.mxu0 0.0
    %5126 = vmatprep.subr.mxu0 0.0
    %5127 = vmatpush1.msra.mxu0 0.0
    %5128 = vmatprep.subr.mxu0 0.0
    %5129 = vmatpush1.msra.mxu0 0.0
    %5130 = vmatprep.subr.mxu0 0.0
    %5131 = vmatpush1.msra.mxu0 0.0
    %5132 = vmatprep.subr.mxu0 0.0
    %5133 = vmatpush1.msra.mxu0 0.0
    %5134 = vmatprep.subr.mxu0 0.0
    %5135 = vmatpush1.msra.mxu0 0.0
    %5136 = vmatprep.subr.mxu0 0.0
    %5137 = vmatpush1.msra.mxu0 0.0
    %5138 = vmatprep.subr.mxu0 0.0
    %5139 = vmatpush1.msra.mxu0 0.0
    %5140 = vmatprep.subr.mxu0 0.0
    %5141 = vmatpush1.msra.mxu0 0.0
    %5142 = vmatprep.subr.mxu0 0.0
    %5143 = vmatpush1.msra.mxu0 0.0
    %5144 = vmatprep.subr.mxu0 0.0
    %5145 = vmatpush1.msra.mxu0 0.0
    %5146 = vmatprep.subr.mxu0 0.0
    %5147 = vmatpush1.msra.mxu0 0.0
    %5148 = vmatprep.subr.mxu0 0.0
    %5149 = vmatpush1.msra.mxu0 0.0
    %5150 = vmatprep.subr.mxu0 0.0
    %5151 = vmatpush1.msra.mxu0 0.0
    %5152 = vmatprep.subr.mxu0 0.0
    %5153 = vmatpush1.msra.mxu0 %v1787
    %5154 = vmatprep.subr.mxu0 0.0
    %5155 = vmatpush2.msra.mxu0 0.0
    %5156 = vmatprep.subr.mxu0 0.0
    %5157 = vmatpush2.msra.mxu0 0.0
    %5158 = vmatprep.subr.mxu0 0.0
    %5159 = vmatpush2.msra.mxu0 0.0
    %5160 = vmatprep.subr.mxu0 0.0
    %5161 = vmatpush2.msra.mxu0 0.0
    %5162 = vmatprep.subr.mxu0 0.0
    %5163 = vmatpush2.msra.mxu0 0.0
    %5164 = vmatprep.subr.mxu0 0.0
    %5165 = vmatpush2.msra.mxu0 0.0
    %5166 = vmatprep.subr.mxu0 0.0
    %5167 = vmatpush2.msra.mxu0 0.0
    %5168 = vmatprep.subr.mxu0 0.0
    %5169 = vmatpush2.msra.mxu0 0.0
    %5170 = vmatprep.subr.mxu0 0.0
    %5171 = vmatpush2.msra.mxu0 0.0
    %5172 = vmatprep.subr.mxu0 0.0
    %5173 = vmatpush2.msra.mxu0 0.0
    %5174 = vmatprep.subr.mxu0 0.0
    %5175 = vmatpush2.msra.mxu0 0.0
    %5176 = vmatprep.subr.mxu0 0.0
    %5177 = vmatpush2.msra.mxu0 0.0
    %5178 = vmatprep.subr.mxu0 0.0
    %5179 = vmatpush2.msra.mxu0 0.0
    %5180 = vmatprep.subr.mxu0 0.0
    %5181 = vmatpush2.msra.mxu0 0.0
    %5182 = vmatprep.subr.mxu0 0.0
    %5183 = vmatpush2.msra.mxu0 0.0
    %5184 = vmatprep.subr.mxu0 0.0
    %5185 = vmatpush2.msra.mxu0 0.0
    %5186 = vmatprep.mubr.f32.mxu0 0.0
    %5187 = vmatmul.mubr.f32.gmra.mxu0 %v5118
    %v5188 = vpop.f32.mrf.mxu0
    %v5189 = vadd.f32 0.0, %v5188
    %v5190 = vpop.f32.mrf.mxu0
    %5191 = vmatprep.mubr.f32.mxu0 0.0
    %5192 = vmatmul.mubr.f32.gmra.mxu0 %v5120
    %v5193 = vpop.f32.mrf.mxu0
    %v5194 = vadd.f32 0.0, %v5193
    %v5195 = vpop.f32.mrf.mxu0
    %5196 = vdwg.mxu0
    %v5197 = vmul.f32 %v5189, %v1788
    %v5198 = vmul.f32 %v5194, %v1789
    %5199 = vmatprep.subr.mxu0 0.0
    %5200 = vmatpush1.msra.mxu0 0.0
    %5201 = vmatprep.subr.mxu0 0.0
    %5202 = vmatpush1.msra.mxu0 0.0
    %5203 = vmatprep.subr.mxu0 0.0
    %5204 = vmatpush1.msra.mxu0 0.0
    %5205 = vmatprep.subr.mxu0 0.0
    %5206 = vmatpush1.msra.mxu0 0.0
    %5207 = vmatprep.subr.mxu0 0.0
    %5208 = vmatpush1.msra.mxu0 0.0
    %5209 = vmatprep.subr.mxu0 0.0
    %5210 = vmatpush1.msra.mxu0 0.0
    %5211 = vmatprep.subr.mxu0 0.0
    %5212 = vmatpush1.msra.mxu0 0.0
    %5213 = vmatprep.subr.mxu0 0.0
    %5214 = vmatpush1.msra.mxu0 0.0
    %5215 = vmatprep.subr.mxu0 0.0
    %5216 = vmatpush1.msra.mxu0 0.0
    %5217 = vmatprep.subr.mxu0 0.0
    %5218 = vmatpush1.msra.mxu0 0.0
    %5219 = vmatprep.subr.mxu0 0.0
    %5220 = vmatpush1.msra.mxu0 0.0
    %5221 = vmatprep.subr.mxu0 0.0
    %5222 = vmatpush1.msra.mxu0 0.0
    %5223 = vmatprep.subr.mxu0 0.0
    %5224 = vmatpush1.msra.mxu0 0.0
    %5225 = vmatprep.subr.mxu0 0.0
    %5226 = vmatpush1.msra.mxu0 0.0
    %5227 = vmatprep.subr.mxu0 0.0
    %5228 = vmatpush1.msra.mxu0 %v5198
    %5229 = vmatprep.subr.mxu0 0.0
    %5230 = vmatpush1.msra.mxu0 %v5197
    %5231 = vmatprep.subr.mxu0 0.0
    %5232 = vmatpush2.msra.mxu0 0.0
    %5233 = vmatprep.subr.mxu0 0.0
    %5234 = vmatpush2.msra.mxu0 0.0
    %5235 = vmatprep.subr.mxu0 0.0
    %5236 = vmatpush2.msra.mxu0 0.0
    %5237 = vmatprep.subr.mxu0 0.0
    %5238 = vmatpush2.msra.mxu0 0.0
    %5239 = vmatprep.subr.mxu0 0.0
    %5240 = vmatpush2.msra.mxu0 0.0
    %5241 = vmatprep.subr.mxu0 0.0
    %5242 = vmatpush2.msra.mxu0 0.0
    %5243 = vmatprep.subr.mxu0 0.0
    %5244 = vmatpush2.msra.mxu0 0.0
    %5245 = vmatprep.subr.mxu0 0.0
    %5246 = vmatpush2.msra.mxu0 0.0
    %5247 = vmatprep.subr.mxu0 0.0
    %5248 = vmatpush2.msra.mxu0 0.0
    %5249 = vmatprep.subr.mxu0 0.0
    %5250 = vmatpush2.msra.mxu0 0.0
    %5251 = vmatprep.subr.mxu0 0.0
    %5252 = vmatpush2.msra.mxu0 0.0
    %5253 = vmatprep.subr.mxu0 0.0
    %5254 = vmatpush2.msra.mxu0 0.0
    %5255 = vmatprep.subr.mxu0 0.0
    %5256 = vmatpush2.msra.mxu0 0.0
    %5257 = vmatprep.subr.mxu0 0.0
    %5258 = vmatpush2.msra.mxu0 0.0
    %5259 = vmatprep.subr.mxu0 0.0
    %5260 = vmatpush2.msra.mxu0 0.0
    %5261 = vmatprep.subr.mxu0 0.0
    %5262 = vmatpush2.msra.mxu0 0.0
    %5263 = vmatprep.mubr.f32.mxu0 0.0
    %5264 = vmatmul.mubr.f32.gmra.mxu0 %v2062
    %v5265 = vpop.f32.mrf.mxu0
    %v5266 = vadd.f32 0.0, %v5265
    %v5267 = vpop.f32.mrf.mxu0
    %5268 = vdwg.mxu0
    %5269 = vrot.lane.b32.xlu0 %v5025, 112
    %v5270 = vpop.permute.xlu0 %5269
    %5271 = vrot.lane.b32.xlu0 %v5030, 112
    %v5272 = vpop.permute.xlu0 %5271
    %v5273 = vsel %vm1296, %v5270, 0
    %v5275 = vsel %vm1296, %v5272, 0
    %5277 = vmatprep.subr.mxu0 0.0
    %5278 = vmatpush1.msra.mxu0 0.0
    %5279 = vmatprep.subr.mxu0 0.0
    %5280 = vmatpush1.msra.mxu0 0.0
    %5281 = vmatprep.subr.mxu0 0.0
    %5282 = vmatpush1.msra.mxu0 0.0
    %5283 = vmatprep.subr.mxu0 0.0
    %5284 = vmatpush1.msra.mxu0 0.0
    %5285 = vmatprep.subr.mxu0 0.0
    %5286 = vmatpush1.msra.mxu0 0.0
    %5287 = vmatprep.subr.mxu0 0.0
    %5288 = vmatpush1.msra.mxu0 0.0
    %5289 = vmatprep.subr.mxu0 0.0
    %5290 = vmatpush1.msra.mxu0 0.0
    %5291 = vmatprep.subr.mxu0 0.0
    %5292 = vmatpush1.msra.mxu0 0.0
    %5293 = vmatprep.subr.mxu0 0.0
    %5294 = vmatpush1.msra.mxu0 0.0
    %5295 = vmatprep.subr.mxu0 0.0
    %5296 = vmatpush1.msra.mxu0 0.0
    %5297 = vmatprep.subr.mxu0 0.0
    %5298 = vmatpush1.msra.mxu0 0.0
    %5299 = vmatprep.subr.mxu0 0.0
    %5300 = vmatpush1.msra.mxu0 0.0
    %5301 = vmatprep.subr.mxu0 0.0
    %5302 = vmatpush1.msra.mxu0 0.0
    %5303 = vmatprep.subr.mxu0 0.0
    %5304 = vmatpush1.msra.mxu0 0.0
    %5305 = vmatprep.subr.mxu0 0.0
    %5306 = vmatpush1.msra.mxu0 0.0
    %5307 = vmatprep.subr.mxu0 0.0
    %5308 = vmatpush1.msra.mxu0 %v1787
    %5309 = vmatprep.subr.mxu0 0.0
    %5310 = vmatpush2.msra.mxu0 0.0
    %5311 = vmatprep.subr.mxu0 0.0
    %5312 = vmatpush2.msra.mxu0 0.0
    %5313 = vmatprep.subr.mxu0 0.0
    %5314 = vmatpush2.msra.mxu0 0.0
    %5315 = vmatprep.subr.mxu0 0.0
    %5316 = vmatpush2.msra.mxu0 0.0
    %5317 = vmatprep.subr.mxu0 0.0
    %5318 = vmatpush2.msra.mxu0 0.0
    %5319 = vmatprep.subr.mxu0 0.0
    %5320 = vmatpush2.msra.mxu0 0.0
    %5321 = vmatprep.subr.mxu0 0.0
    %5322 = vmatpush2.msra.mxu0 0.0
    %5323 = vmatprep.subr.mxu0 0.0
    %5324 = vmatpush2.msra.mxu0 0.0
    %5325 = vmatprep.subr.mxu0 0.0
    %5326 = vmatpush2.msra.mxu0 0.0
    %5327 = vmatprep.subr.mxu0 0.0
    %5328 = vmatpush2.msra.mxu0 0.0
    %5329 = vmatprep.subr.mxu0 0.0
    %5330 = vmatpush2.msra.mxu0 0.0
    %5331 = vmatprep.subr.mxu0 0.0
    %5332 = vmatpush2.msra.mxu0 0.0
    %5333 = vmatprep.subr.mxu0 0.0
    %5334 = vmatpush2.msra.mxu0 0.0
    %5335 = vmatprep.subr.mxu0 0.0
    %5336 = vmatpush2.msra.mxu0 0.0
    %5337 = vmatprep.subr.mxu0 0.0
    %5338 = vmatpush2.msra.mxu0 0.0
    %5339 = vmatprep.subr.mxu0 0.0
    %5340 = vmatpush2.msra.mxu0 0.0
    %5341 = vmatprep.mubr.f32.mxu0 0.0
    %5342 = vmatmul.mubr.f32.gmra.mxu0 %v5273
    %v5343 = vpop.f32.mrf.mxu0
    %v5344 = vadd.f32 0.0, %v5343
    %v5345 = vpop.f32.mrf.mxu0
    %5346 = vmatprep.mubr.f32.mxu0 0.0
    %5347 = vmatmul.mubr.f32.gmra.mxu0 %v5275
    %v5348 = vpop.f32.mrf.mxu0
    %v5349 = vadd.f32 0.0, %v5348
    %v5350 = vpop.f32.mrf.mxu0
    %5351 = vdwg.mxu0
    %v5352 = vmul.f32 %v5344, %v1788
    %v5353 = vmul.f32 %v5349, %v1789
    %5354 = vmatprep.subr.mxu0 0.0
    %5355 = vmatpush1.msra.mxu0 0.0
    %5356 = vmatprep.subr.mxu0 0.0
    %5357 = vmatpush1.msra.mxu0 0.0
    %5358 = vmatprep.subr.mxu0 0.0
    %5359 = vmatpush1.msra.mxu0 0.0
    %5360 = vmatprep.subr.mxu0 0.0
    %5361 = vmatpush1.msra.mxu0 0.0
    %5362 = vmatprep.subr.mxu0 0.0
    %5363 = vmatpush1.msra.mxu0 0.0
    %5364 = vmatprep.subr.mxu0 0.0
    %5365 = vmatpush1.msra.mxu0 0.0
    %5366 = vmatprep.subr.mxu0 0.0
    %5367 = vmatpush1.msra.mxu0 0.0
    %5368 = vmatprep.subr.mxu0 0.0
    %5369 = vmatpush1.msra.mxu0 0.0
    %5370 = vmatprep.subr.mxu0 0.0
    %5371 = vmatpush1.msra.mxu0 0.0
    %5372 = vmatprep.subr.mxu0 0.0
    %5373 = vmatpush1.msra.mxu0 0.0
    %5374 = vmatprep.subr.mxu0 0.0
    %5375 = vmatpush1.msra.mxu0 0.0
    %5376 = vmatprep.subr.mxu0 0.0
    %5377 = vmatpush1.msra.mxu0 0.0
    %5378 = vmatprep.subr.mxu0 0.0
    %5379 = vmatpush1.msra.mxu0 0.0
    %5380 = vmatprep.subr.mxu0 0.0
    %5381 = vmatpush1.msra.mxu0 0.0
    %5382 = vmatprep.subr.mxu0 0.0
    %5383 = vmatpush1.msra.mxu0 %v5353
    %5384 = vmatprep.subr.mxu0 0.0
    %5385 = vmatpush1.msra.mxu0 %v5352
    %5386 = vmatprep.subr.mxu0 0.0
    %5387 = vmatpush2.msra.mxu0 0.0
    %5388 = vmatprep.subr.mxu0 0.0
    %5389 = vmatpush2.msra.mxu0 0.0
    %5390 = vmatprep.subr.mxu0 0.0
    %5391 = vmatpush2.msra.mxu0 0.0
    %5392 = vmatprep.subr.mxu0 0.0
    %5393 = vmatpush2.msra.mxu0 0.0
    %5394 = vmatprep.subr.mxu0 0.0
    %5395 = vmatpush2.msra.mxu0 0.0
    %5396 = vmatprep.subr.mxu0 0.0
    %5397 = vmatpush2.msra.mxu0 0.0
    %5398 = vmatprep.subr.mxu0 0.0
    %5399 = vmatpush2.msra.mxu0 0.0
    %5400 = vmatprep.subr.mxu0 0.0
    %5401 = vmatpush2.msra.mxu0 0.0
    %5402 = vmatprep.subr.mxu0 0.0
    %5403 = vmatpush2.msra.mxu0 0.0
    %5404 = vmatprep.subr.mxu0 0.0
    %5405 = vmatpush2.msra.mxu0 0.0
    %5406 = vmatprep.subr.mxu0 0.0
    %5407 = vmatpush2.msra.mxu0 0.0
    %5408 = vmatprep.subr.mxu0 0.0
    %5409 = vmatpush2.msra.mxu0 0.0
    %5410 = vmatprep.subr.mxu0 0.0
    %5411 = vmatpush2.msra.mxu0 0.0
    %5412 = vmatprep.subr.mxu0 0.0
    %5413 = vmatpush2.msra.mxu0 0.0
    %5414 = vmatprep.subr.mxu0 0.0
    %5415 = vmatpush2.msra.mxu0 0.0
    %5416 = vmatprep.subr.mxu0 0.0
    %5417 = vmatpush2.msra.mxu0 0.0
    %5418 = vmatprep.mubr.f32.mxu0 0.0
    %5419 = vmatmul.mubr.f32.gmra.mxu0 %v2062
    %v5420 = vpop.f32.mrf.mxu0
    %v5421 = vadd.f32 0.0, %v5420
    %v5422 = vpop.f32.mrf.mxu0
    %5423 = vdwg.mxu0
    %v5424 = vlaneseq
    %v5425 = vshrl.u32 %v5424, 7
    %v5426 = vsub.s32 0, %v5425
    %v5427 = vrot.slane %v5266, %v5426
    %v5428 = vmul.f32 %v5106, %v5427
    %v5429 = vmul.f32 %v5111, %v5427
    %5430 = vmax.xlane.f32.xlu0 %v5428
    %v5431 = vpop.xlane.xlu0 %5430
    %5432 = vmax.xlane.f32.xlu0 %v5429
    %v5433 = vpop.xlane.xlu0 %5432
    %v5434 = vsub.f32 %v5428, %v5431
    %v5435 = vsub.f32 %v5429, %v5433
    %v5436 = vmul.f32 %v5434, 1.442695
    %v5437 = vpow.pop %v5436
    %v5438 = vmul.f32 %v5435, 1.442695
    %v5439 = vpow.pop %v5438
    %5440 = vmatprep.subr.mxu0 0.0
    %5441 = vmatpush1.msra.mxu0 %v1805
    %5442 = vmatprep.subr.mxu0 0.0
    %5443 = vmatpush1.msra.mxu0 %v1804
    %5444 = vmatprep.subr.mxu0 0.0
    %5445 = vmatpush1.msra.mxu0 %v1803
    %5446 = vmatprep.subr.mxu0 0.0
    %5447 = vmatpush1.msra.mxu0 %v1802
    %5448 = vmatprep.subr.mxu0 0.0
    %5449 = vmatpush1.msra.mxu0 %v1801
    %5450 = vmatprep.subr.mxu0 0.0
    %5451 = vmatpush1.msra.mxu0 %v1800
    %5452 = vmatprep.subr.mxu0 0.0
    %5453 = vmatpush1.msra.mxu0 %v1799
    %5454 = vmatprep.subr.mxu0 0.0
    %5455 = vmatpush1.msra.mxu0 %v1798
    %5456 = vmatprep.subr.mxu0 0.0
    %5457 = vmatpush1.msra.mxu0 %v1797
    %5458 = vmatprep.subr.mxu0 0.0
    %5459 = vmatpush1.msra.mxu0 %v1796
    %5460 = vmatprep.subr.mxu0 0.0
    %5461 = vmatpush1.msra.mxu0 %v1795
    %5462 = vmatprep.subr.mxu0 0.0
    %5463 = vmatpush1.msra.mxu0 %v1794
    %5464 = vmatprep.subr.mxu0 0.0
    %5465 = vmatpush1.msra.mxu0 %v1793
    %5466 = vmatprep.subr.mxu0 0.0
    %5467 = vmatpush1.msra.mxu0 %v1792
    %5468 = vmatprep.subr.mxu0 0.0
    %5469 = vmatpush1.msra.mxu0 %v1791
    %5470 = vmatprep.subr.mxu0 0.0
    %5471 = vmatpush1.msra.mxu0 %v1790
    %5472 = vmatprep.subr.mxu0 0.0
    %5473 = vmatpush2.msra.mxu0 0.0
    %5474 = vmatprep.subr.mxu0 0.0
    %5475 = vmatpush2.msra.mxu0 0.0
    %5476 = vmatprep.subr.mxu0 0.0
    %5477 = vmatpush2.msra.mxu0 0.0
    %5478 = vmatprep.subr.mxu0 0.0
    %5479 = vmatpush2.msra.mxu0 0.0
    %5480 = vmatprep.subr.mxu0 0.0
    %5481 = vmatpush2.msra.mxu0 0.0
    %5482 = vmatprep.subr.mxu0 0.0
    %5483 = vmatpush2.msra.mxu0 0.0
    %5484 = vmatprep.subr.mxu0 0.0
    %5485 = vmatpush2.msra.mxu0 0.0
    %5486 = vmatprep.subr.mxu0 0.0
    %5487 = vmatpush2.msra.mxu0 0.0
    %5488 = vmatprep.subr.mxu0 0.0
    %5489 = vmatpush2.msra.mxu0 0.0
    %5490 = vmatprep.subr.mxu0 0.0
    %5491 = vmatpush2.msra.mxu0 0.0
    %5492 = vmatprep.subr.mxu0 0.0
    %5493 = vmatpush2.msra.mxu0 0.0
    %5494 = vmatprep.subr.mxu0 0.0
    %5495 = vmatpush2.msra.mxu0 0.0
    %5496 = vmatprep.subr.mxu0 0.0
    %5497 = vmatpush2.msra.mxu0 0.0
    %5498 = vmatprep.subr.mxu0 0.0
    %5499 = vmatpush2.msra.mxu0 0.0
    %5500 = vmatprep.subr.mxu0 0.0
    %5501 = vmatpush2.msra.mxu0 0.0
    %5502 = vmatprep.subr.mxu0 0.0
    %5503 = vmatpush2.msra.mxu0 0.0
    %5504 = vmatprep.mubr.f32.mxu0 0.0
    %5505 = vmatmul.mubr.f32.gmra.mxu0 %v5437
    %v5506 = vpop.f32.mrf.mxu0
    %v5507 = vadd.f32 0.0, %v5506
    %v5508 = vpop.f32.mrf.mxu0
    %5509 = vmatprep.mubr.f32.mxu0 0.0
    %5510 = vmatmul.mubr.f32.gmra.mxu0 %v5439
    %v5511 = vpop.f32.mrf.mxu0
    %v5512 = vadd.f32 0.0, %v5511
    %v5513 = vpop.f32.mrf.mxu0
    %5514 = vdwg.mxu0
    %v5515 = vlaneseq
    %v5516 = vshrl.u32 %v5515, 7
    %v5517 = vsub.s32 0, %v5516
    %v5518 = vrot.slane %v5421, %v5517
    %v5519 = vmul.f32 %v5437, %v5518
    %v5520 = vmul.f32 %v5439, %v5518
    %5521 = vmatprep.subr.mxu0 0.0
    %5522 = vmatpush1.msra.mxu0 %v1805
    %5523 = vmatprep.subr.mxu0 0.0
    %5524 = vmatpush1.msra.mxu0 %v1804
    %5525 = vmatprep.subr.mxu0 0.0
    %5526 = vmatpush1.msra.mxu0 %v1803
    %5527 = vmatprep.subr.mxu0 0.0
    %5528 = vmatpush1.msra.mxu0 %v1802
    %5529 = vmatprep.subr.mxu0 0.0
    %5530 = vmatpush1.msra.mxu0 %v1801
    %5531 = vmatprep.subr.mxu0 0.0
    %5532 = vmatpush1.msra.mxu0 %v1800
    %5533 = vmatprep.subr.mxu0 0.0
    %5534 = vmatpush1.msra.mxu0 %v1799
    %5535 = vmatprep.subr.mxu0 0.0
    %5536 = vmatpush1.msra.mxu0 %v1798
    %5537 = vmatprep.subr.mxu0 0.0
    %5538 = vmatpush1.msra.mxu0 %v1797
    %5539 = vmatprep.subr.mxu0 0.0
    %5540 = vmatpush1.msra.mxu0 %v1796
    %5541 = vmatprep.subr.mxu0 0.0
    %5542 = vmatpush1.msra.mxu0 %v1795
    %5543 = vmatprep.subr.mxu0 0.0
    %5544 = vmatpush1.msra.mxu0 %v1794
    %5545 = vmatprep.subr.mxu0 0.0
    %5546 = vmatpush1.msra.mxu0 %v1793
    %5547 = vmatprep.subr.mxu0 0.0
    %5548 = vmatpush1.msra.mxu0 %v1792
    %5549 = vmatprep.subr.mxu0 0.0
    %5550 = vmatpush1.msra.mxu0 %v1791
    %5551 = vmatprep.subr.mxu0 0.0
    %5552 = vmatpush1.msra.mxu0 %v1790
    %5553 = vmatprep.subr.mxu0 0.0
    %5554 = vmatpush2.msra.mxu0 0.0
    %5555 = vmatprep.subr.mxu0 0.0
    %5556 = vmatpush2.msra.mxu0 0.0
    %5557 = vmatprep.subr.mxu0 0.0
    %5558 = vmatpush2.msra.mxu0 0.0
    %5559 = vmatprep.subr.mxu0 0.0
    %5560 = vmatpush2.msra.mxu0 0.0
    %5561 = vmatprep.subr.mxu0 0.0
    %5562 = vmatpush2.msra.mxu0 0.0
    %5563 = vmatprep.subr.mxu0 0.0
    %5564 = vmatpush2.msra.mxu0 0.0
    %5565 = vmatprep.subr.mxu0 0.0
    %5566 = vmatpush2.msra.mxu0 0.0
    %5567 = vmatprep.subr.mxu0 0.0
    %5568 = vmatpush2.msra.mxu0 0.0
    %5569 = vmatprep.subr.mxu0 0.0
    %5570 = vmatpush2.msra.mxu0 0.0
    %5571 = vmatprep.subr.mxu0 0.0
    %5572 = vmatpush2.msra.mxu0 0.0
    %5573 = vmatprep.subr.mxu0 0.0
    %5574 = vmatpush2.msra.mxu0 0.0
    %5575 = vmatprep.subr.mxu0 0.0
    %5576 = vmatpush2.msra.mxu0 0.0
    %5577 = vmatprep.subr.mxu0 0.0
    %5578 = vmatpush2.msra.mxu0 0.0
    %5579 = vmatprep.subr.mxu0 0.0
    %5580 = vmatpush2.msra.mxu0 0.0
    %5581 = vmatprep.subr.mxu0 0.0
    %5582 = vmatpush2.msra.mxu0 0.0
    %5583 = vmatprep.subr.mxu0 0.0
    %5584 = vmatpush2.msra.mxu0 0.0
    %5585 = vmatprep.mubr.f32.mxu0 0.0
    %5586 = vmatmul.mubr.f32.gmra.mxu0 %v5519
    %v5587 = vpop.f32.mrf.mxu0
    %v5588 = vadd.f32 0.0, %v5587
    %v5589 = vpop.f32.mrf.mxu0
    %5590 = vmatprep.mubr.f32.mxu0 0.0
    %5591 = vmatmul.mubr.f32.gmra.mxu0 %v5520
    %v5592 = vpop.f32.mrf.mxu0
    %v5593 = vadd.f32 0.0, %v5592
    %v5594 = vpop.f32.mrf.mxu0
    %5595 = vdwg.mxu0
    %v5596 = vrcp.pop %v5507
    %v5597 = vmul.f32 %v5588, %v5596
    %v5598 = vrcp.pop %v5512
    %v5599 = vmul.f32 %v5593, %v5598
    %s5600 = scalar_lea.vmem %s49, 24
    %v5601 = vld [vmem:[%s5600] sm:$0xff]
    %s5602 = scalar_lea.vmem %s51, 3
    %v5603 = vld [vmem:[%s5602] sm:$0x1]
    %v5605 = vlaneseq
    %v5606 = vshrl.u32 %v5605, 7
    %v5607 = vsub.s32 0, %v5606
    %v5608 = vrot.slane %v5603, %v5607
    %v5611 = vsel %vm1296, %v5597, 0
    %v5614 = vsel %vm1296, %v5599, 0
    %5616 = vmatprep.subr.mxu0 0.0
    %5617 = vmatpush1.msra.mxu0 0.0
    %5618 = vmatprep.subr.mxu0 0.0
    %5619 = vmatpush1.msra.mxu0 0.0
    %5620 = vmatprep.subr.mxu0 0.0
    %5621 = vmatpush1.msra.mxu0 0.0
    %5622 = vmatprep.subr.mxu0 0.0
    %5623 = vmatpush1.msra.mxu0 0.0
    %5624 = vmatprep.subr.mxu0 0.0
    %5625 = vmatpush1.msra.mxu0 0.0
    %5626 = vmatprep.subr.mxu0 0.0
    %5627 = vmatpush1.msra.mxu0 0.0
    %5628 = vmatprep.subr.mxu0 0.0
    %5629 = vmatpush1.msra.mxu0 0.0
    %5630 = vmatprep.subr.mxu0 0.0
    %5631 = vmatpush1.msra.mxu0 0.0
    %5632 = vmatprep.subr.mxu0 0.0
    %5633 = vmatpush1.msra.mxu0 0.0
    %5634 = vmatprep.subr.mxu0 0.0
    %5635 = vmatpush1.msra.mxu0 0.0
    %5636 = vmatprep.subr.mxu0 0.0
    %5637 = vmatpush1.msra.mxu0 0.0
    %5638 = vmatprep.subr.mxu0 0.0
    %5639 = vmatpush1.msra.mxu0 0.0
    %5640 = vmatprep.subr.mxu0 0.0
    %5641 = vmatpush1.msra.mxu0 0.0
    %5642 = vmatprep.subr.mxu0 0.0
    %5643 = vmatpush1.msra.mxu0 0.0
    %5644 = vmatprep.subr.mxu0 0.0
    %5645 = vmatpush1.msra.mxu0 0.0
    %5646 = vmatprep.subr.mxu0 0.0
    %5647 = vmatpush1.msra.mxu0 %v5601
    %5648 = vmatprep.subr.mxu0 0.0
    %5649 = vmatpush2.msra.mxu0 0.0
    %5650 = vmatprep.subr.mxu0 0.0
    %5651 = vmatpush2.msra.mxu0 0.0
    %5652 = vmatprep.subr.mxu0 0.0
    %5653 = vmatpush2.msra.mxu0 0.0
    %5654 = vmatprep.subr.mxu0 0.0
    %5655 = vmatpush2.msra.mxu0 0.0
    %5656 = vmatprep.subr.mxu0 0.0
    %5657 = vmatpush2.msra.mxu0 0.0
    %5658 = vmatprep.subr.mxu0 0.0
    %5659 = vmatpush2.msra.mxu0 0.0
    %5660 = vmatprep.subr.mxu0 0.0
    %5661 = vmatpush2.msra.mxu0 0.0
    %5662 = vmatprep.subr.mxu0 0.0
    %5663 = vmatpush2.msra.mxu0 0.0
    %5664 = vmatprep.subr.mxu0 0.0
    %5665 = vmatpush2.msra.mxu0 0.0
    %5666 = vmatprep.subr.mxu0 0.0
    %5667 = vmatpush2.msra.mxu0 0.0
    %5668 = vmatprep.subr.mxu0 0.0
    %5669 = vmatpush2.msra.mxu0 0.0
    %5670 = vmatprep.subr.mxu0 0.0
    %5671 = vmatpush2.msra.mxu0 0.0
    %5672 = vmatprep.subr.mxu0 0.0
    %5673 = vmatpush2.msra.mxu0 0.0
    %5674 = vmatprep.subr.mxu0 0.0
    %5675 = vmatpush2.msra.mxu0 0.0
    %5676 = vmatprep.subr.mxu0 0.0
    %5677 = vmatpush2.msra.mxu0 0.0
    %5678 = vmatprep.subr.mxu0 0.0
    %5679 = vmatpush2.msra.mxu0 0.0
    %5680 = vmatprep.mubr.f32.mxu0 0.0
    %5681 = vmatmul.mubr.f32.gmra.mxu0 %v5611
    %v5682 = vpop.f32.mrf.mxu0
    %v5683 = vadd.f32 %v5608, %v5682
    %v5684 = vpop.f32.mrf.mxu0
    %5685 = vmatprep.mubr.f32.mxu0 0.0
    %5686 = vmatmul.mubr.f32.gmra.mxu0 %v5614
    %v5687 = vpop.f32.mrf.mxu0
    %v5688 = vadd.f32 %v5608, %v5687
    %v5689 = vpop.f32.mrf.mxu0
    %5690 = vdwg.mxu0
    %v5691 = vadd.f32 %v4940, %v5683
    %v5692 = vadd.f32 %v4941, %v5688
    %s5693 = scalar_lea.vmem %s53, 3
    %v5694 = vld [vmem:[%s5693] sm:$0x1]
    %s5695 = scalar_lea.vmem %s55, 3
    %v5696 = vld [vmem:[%s5695] sm:$0x1]
    %v5697 = vsel %vm1296, %v5691, 0.0
    %5698 = vadd.xlane.f32.xlu0 %v5697
    %v5699 = vpop.xlane.xlu0 %5698
    %v5700 = vsel %vm1296, %v5692, 0.0
    %5701 = vadd.xlane.f32.xlu0 %v5700
    %v5702 = vpop.xlane.xlu0 %5701
    %v5703 = vmul.f32 %v5699, %v2564
    %v5704 = vmul.f32 %v5702, %v2564
    %v5705 = vsub.f32 %v5691, %v5703
    %v5706 = vsub.f32 %v5692, %v5704
    %v5707 = vmul.f32 %v5705, %v5705
    %v5708 = vmul.f32 %v5706, %v5706
    %v5709 = vsel %vm1296, %v5707, 0.0
    %5710 = vadd.xlane.f32.xlu0 %v5709
    %v5711 = vpop.xlane.xlu0 %5710
    %v5712 = vsel %vm1296, %v5708, 0.0
    %5713 = vadd.xlane.f32.xlu0 %v5712
    %v5714 = vpop.xlane.xlu0 %5713
    %v5715 = vmul.f32 %v5711, %v2564
    %v5716 = vmul.f32 %v5714, %v2564
    %v5717 = vadd.f32 %v5715, 1e-05
    %v5718 = vadd.f32 %v5716, 1e-05
    %v5719 = vrsqrt.pop %v5717
    %v5720 = vrsqrt.pop %v5718
    %v5721 = vmul.f32 %v5705, %v5719
    %v5722 = vmul.f32 %v5706, %v5720
    %v5724 = vlaneseq
    %v5725 = vshrl.u32 %v5724, 7
    %v5726 = vsub.s32 0, %v5725
    %v5727 = vrot.slane %v5694, %v5726
    %v5729 = vmul.f32 %v5721, %v5727
    %v5730 = vmul.f32 %v5722, %v5727
    %v5732 = vlaneseq
    %v5733 = vshrl.u32 %v5732, 7
    %v5734 = vsub.s32 0, %v5733
    %v5735 = vrot.slane %v5696, %v5734
    %v5737 = vadd.f32 %v5729, %v5735
    %v5738 = vadd.f32 %v5730, %v5735
    %s5739 = scalar_lea.vmem %s57, 24
    %v5740 = vld [vmem:[%s5739] sm:$0xff]
    %s5741 = scalar_lea.vmem %s59, 3
    %v5742 = vld [vmem:[%s5741] sm:$0x1]
    %v5744 = vlaneseq
    %v5745 = vshrl.u32 %v5744, 7
    %v5746 = vsub.s32 0, %v5745
    %v5747 = vrot.slane %v5742, %v5746
    %v5750 = vsel %vm1296, %v5737, 0
    %v5753 = vsel %vm1296, %v5738, 0
    %5755 = vmatprep.subr.mxu0 0.0
    %5756 = vmatpush1.msra.mxu0 0.0
    %5757 = vmatprep.subr.mxu0 0.0
    %5758 = vmatpush1.msra.mxu0 0.0
    %5759 = vmatprep.subr.mxu0 0.0
    %5760 = vmatpush1.msra.mxu0 0.0
    %5761 = vmatprep.subr.mxu0 0.0
    %5762 = vmatpush1.msra.mxu0 0.0
    %5763 = vmatprep.subr.mxu0 0.0
    %5764 = vmatpush1.msra.mxu0 0.0
    %5765 = vmatprep.subr.mxu0 0.0
    %5766 = vmatpush1.msra.mxu0 0.0
    %5767 = vmatprep.subr.mxu0 0.0
    %5768 = vmatpush1.msra.mxu0 0.0
    %5769 = vmatprep.subr.mxu0 0.0
    %5770 = vmatpush1.msra.mxu0 0.0
    %5771 = vmatprep.subr.mxu0 0.0
    %5772 = vmatpush1.msra.mxu0 0.0
    %5773 = vmatprep.subr.mxu0 0.0
    %5774 = vmatpush1.msra.mxu0 0.0
    %5775 = vmatprep.subr.mxu0 0.0
    %5776 = vmatpush1.msra.mxu0 0.0
    %5777 = vmatprep.subr.mxu0 0.0
    %5778 = vmatpush1.msra.mxu0 0.0
    %5779 = vmatprep.subr.mxu0 0.0
    %5780 = vmatpush1.msra.mxu0 0.0
    %5781 = vmatprep.subr.mxu0 0.0
    %5782 = vmatpush1.msra.mxu0 0.0
    %5783 = vmatprep.subr.mxu0 0.0
    %5784 = vmatpush1.msra.mxu0 0.0
    %5785 = vmatprep.subr.mxu0 0.0
    %5786 = vmatpush1.msra.mxu0 %v5740
    %5787 = vmatprep.subr.mxu0 0.0
    %5788 = vmatpush2.msra.mxu0 0.0
    %5789 = vmatprep.subr.mxu0 0.0
    %5790 = vmatpush2.msra.mxu0 0.0
    %5791 = vmatprep.subr.mxu0 0.0
    %5792 = vmatpush2.msra.mxu0 0.0
    %5793 = vmatprep.subr.mxu0 0.0
    %5794 = vmatpush2.msra.mxu0 0.0
    %5795 = vmatprep.subr.mxu0 0.0
    %5796 = vmatpush2.msra.mxu0 0.0
    %5797 = vmatprep.subr.mxu0 0.0
    %5798 = vmatpush2.msra.mxu0 0.0
    %5799 = vmatprep.subr.mxu0 0.0
    %5800 = vmatpush2.msra.mxu0 0.0
    %5801 = vmatprep.subr.mxu0 0.0
    %5802 = vmatpush2.msra.mxu0 0.0
    %5803 = vmatprep.subr.mxu0 0.0
    %5804 = vmatpush2.msra.mxu0 0.0
    %5805 = vmatprep.subr.mxu0 0.0
    %5806 = vmatpush2.msra.mxu0 0.0
    %5807 = vmatprep.subr.mxu0 0.0
    %5808 = vmatpush2.msra.mxu0 0.0
    %5809 = vmatprep.subr.mxu0 0.0
    %5810 = vmatpush2.msra.mxu0 0.0
    %5811 = vmatprep.subr.mxu0 0.0
    %5812 = vmatpush2.msra.mxu0 0.0
    %5813 = vmatprep.subr.mxu0 0.0
    %5814 = vmatpush2.msra.mxu0 0.0
    %5815 = vmatprep.subr.mxu0 0.0
    %5816 = vmatpush2.msra.mxu0 0.0
    %5817 = vmatprep.subr.mxu0 0.0
    %5818 = vmatpush2.msra.mxu0 0.0
    %5819 = vmatprep.mubr.f32.mxu0 0.0
    %5820 = vmatmul.mubr.f32.gmra.mxu0 %v5750
    %v5821 = vpop.f32.mrf.mxu0
    %v5822 = vadd.f32 %v5747, %v5821
    %v5823 = vpop.f32.mrf.mxu0
    %5824 = vmatprep.mubr.f32.mxu0 0.0
    %5825 = vmatmul.mubr.f32.gmra.mxu0 %v5753
    %v5826 = vpop.f32.mrf.mxu0
    %v5827 = vadd.f32 %v5747, %v5826
    %v5828 = vpop.f32.mrf.mxu0
    %5829 = vdwg.mxu0
    %v5830 = vmul.f32 %v5822, 0.5
    %v5831 = vmul.f32 %v5827, 0.5
    %v5832 = vmul.f32 %v5822, 0.044715
    %v5833 = vmul.f32 %v5827, 0.044715
    %v5834 = vmul.f32 %v5832, %v5822
    %v5835 = vmul.f32 %v5833, %v5827
    %v5836 = vmul.f32 %v5834, %v5822
    %v5837 = vmul.f32 %v5835, %v5827
    %v5838 = vadd.f32 %v5822, %v5836
    %v5839 = vadd.f32 %v5827, %v5837
    %v5840 = vmul.f32 %v5838, 0.7978846
    %v5841 = vmul.f32 %v5839, 0.7978846
    %v5842 = vtanh.pop %v5840
    %v5843 = vtanh.pop %v5841
    %v5844 = vadd.f32 %v5842, 1.0
    %v5845 = vadd.f32 %v5843, 1.0
    %v5846 = vmul.f32 %v5830, %v5844
    %v5847 = vmul.f32 %v5831, %v5845
    %s5848 = scalar_lea.vmem %s61, 96
    %v5849 = vld [vmem:[%s5848] sm:$0xff]
    %v5850 = vld [vmem:[%s5848 + $0x8] sm:$0xff]
    %v5851 = vld [vmem:[%s5848 + $0x10] sm:$0xff]
    %v5852 = vld [vmem:[%s5848 + $0x18] sm:$0xff]
    %s5853 = scalar_lea.vmem %s63, 3
    %v5854 = vld [vmem:[%s5853] sm:$0x1]
    %v5856 = vlaneseq
    %v5857 = vshrl.u32 %v5856, 7
    %v5858 = vsub.s32 0, %v5857
    %v5859 = vrot.slane %v5854, %v5858
    %v5862 = vsel %vm1565, %v5846, 0
    %v5865 = vsel %vm1565, %v5847, 0
    %5867 = vmatprep.subr.mxu0 0.0
    %5868 = vmatpush1.msra.mxu0 0.0
    %5869 = vmatprep.subr.mxu0 0.0
    %5870 = vmatpush1.msra.mxu0 0.0
    %5871 = vmatprep.subr.mxu0 0.0
    %5872 = vmatpush1.msra.mxu0 0.0
    %5873 = vmatprep.subr.mxu0 0.0
    %5874 = vmatpush1.msra.mxu0 0.0
    %5875 = vmatprep.subr.mxu0 0.0
    %5876 = vmatpush1.msra.mxu0 0.0
    %5877 = vmatprep.subr.mxu0 0.0
    %5878 = vmatpush1.msra.mxu0 0.0
    %5879 = vmatprep.subr.mxu0 0.0
    %5880 = vmatpush1.msra.mxu0 0.0
    %5881 = vmatprep.subr.mxu0 0.0
    %5882 = vmatpush1.msra.mxu0 0.0
    %5883 = vmatprep.subr.mxu0 0.0
    %5884 = vmatpush1.msra.mxu0 0.0
    %5885 = vmatprep.subr.mxu0 0.0
    %5886 = vmatpush1.msra.mxu0 0.0
    %5887 = vmatprep.subr.mxu0 0.0
    %5888 = vmatpush1.msra.mxu0 0.0
    %5889 = vmatprep.subr.mxu0 0.0
    %5890 = vmatpush1.msra.mxu0 0.0
    %5891 = vmatprep.subr.mxu0 0.0
    %5892 = vmatpush1.msra.mxu0 %v5852
    %5893 = vmatprep.subr.mxu0 0.0
    %5894 = vmatpush1.msra.mxu0 %v5851
    %5895 = vmatprep.subr.mxu0 0.0
    %5896 = vmatpush1.msra.mxu0 %v5850
    %5897 = vmatprep.subr.mxu0 0.0
    %5898 = vmatpush1.msra.mxu0 %v5849
    %5899 = vmatprep.subr.mxu0 0.0
    %5900 = vmatpush2.msra.mxu0 0.0
    %5901 = vmatprep.subr.mxu0 0.0
    %5902 = vmatpush2.msra.mxu0 0.0
    %5903 = vmatprep.subr.mxu0 0.0
    %5904 = vmatpush2.msra.mxu0 0.0
    %5905 = vmatprep.subr.mxu0 0.0
    %5906 = vmatpush2.msra.mxu0 0.0
    %5907 = vmatprep.subr.mxu0 0.0
    %5908 = vmatpush2.msra.mxu0 0.0
    %5909 = vmatprep.subr.mxu0 0.0
    %5910 = vmatpush2.msra.mxu0 0.0
    %5911 = vmatprep.subr.mxu0 0.0
    %5912 = vmatpush2.msra.mxu0 0.0
    %5913 = vmatprep.subr.mxu0 0.0
    %5914 = vmatpush2.msra.mxu0 0.0
    %5915 = vmatprep.subr.mxu0 0.0
    %5916 = vmatpush2.msra.mxu0 0.0
    %5917 = vmatprep.subr.mxu0 0.0
    %5918 = vmatpush2.msra.mxu0 0.0
    %5919 = vmatprep.subr.mxu0 0.0
    %5920 = vmatpush2.msra.mxu0 0.0
    %5921 = vmatprep.subr.mxu0 0.0
    %5922 = vmatpush2.msra.mxu0 0.0
    %5923 = vmatprep.subr.mxu0 0.0
    %5924 = vmatpush2.msra.mxu0 0.0
    %5925 = vmatprep.subr.mxu0 0.0
    %5926 = vmatpush2.msra.mxu0 0.0
    %5927 = vmatprep.subr.mxu0 0.0
    %5928 = vmatpush2.msra.mxu0 0.0
    %5929 = vmatprep.subr.mxu0 0.0
    %5930 = vmatpush2.msra.mxu0 0.0
    %5931 = vmatprep.mubr.f32.mxu0 0.0
    %5932 = vmatmul.mubr.f32.gmra.mxu0 %v5862
    %v5933 = vpop.f32.mrf.mxu0
    %v5934 = vadd.f32 %v5859, %v5933
    %v5935 = vpop.f32.mrf.mxu0
    %5936 = vmatprep.mubr.f32.mxu0 0.0
    %5937 = vmatmul.mubr.f32.gmra.mxu0 %v5865
    %v5938 = vpop.f32.mrf.mxu0
    %v5939 = vadd.f32 %v5859, %v5938
    %v5940 = vpop.f32.mrf.mxu0
    %5941 = vdwg.mxu0
    %v5942 = vadd.f32 %v5737, %v5934
    %v5943 = vadd.f32 %v5738, %v5939
    %s5944 = scalar_lea.vmem %s65, 3
    %v5945 = vld [vmem:[%s5944] sm:$0x1]
    %s5946 = scalar_lea.vmem %s67, 3
    %v5947 = vld [vmem:[%s5946] sm:$0x1]
    %v5948 = vsel %vm1296, %v5942, 0.0
    %5949 = vadd.xlane.f32.xlu0 %v5948
    %v5950 = vpop.xlane.xlu0 %5949
    %v5951 = vsel %vm1296, %v5943, 0.0
    %5952 = vadd.xlane.f32.xlu0 %v5951
    %v5953 = vpop.xlane.xlu0 %5952
    %v5954 = vmul.f32 %v5950, %v2564
    %v5955 = vmul.f32 %v5953, %v2564
    %v5956 = vsub.f32 %v5942, %v5954
    %v5957 = vsub.f32 %v5943, %v5955
    %v5958 = vmul.f32 %v5956, %v5956
    %v5959 = vmul.f32 %v5957, %v5957
    %v5960 = vsel %vm1296, %v5958, 0.0
    %5961 = vadd.xlane.f32.xlu0 %v5960
    %v5962 = vpop.xlane.xlu0 %5961
    %v5963 = vsel %vm1296, %v5959, 0.0
    %5964 = vadd.xlane.f32.xlu0 %v5963
    %v5965 = vpop.xlane.xlu0 %5964
    %v5966 = vmul.f32 %v5962, %v2564
    %v5967 = vmul.f32 %v5965, %v2564
    %v5968 = vadd.f32 %v5966, 1e-05
    %v5969 = vadd.f32 %v5967, 1e-05
    %v5970 = vrsqrt.pop %v5968
    %v5971 = vrsqrt.pop %v5969
    %v5972 = vmul.f32 %v5956, %v5970
    %v5973 = vmul.f32 %v5957, %v5971
    %v5975 = vlaneseq
    %v5976 = vshrl.u32 %v5975, 7
    %v5977 = vsub.s32 0, %v5976
    %v5978 = vrot.slane %v5945, %v5977
    %v5980 = vmul.f32 %v5972, %v5978
    %v5981 = vmul.f32 %v5973, %v5978
    %v5983 = vlaneseq
    %v5984 = vshrl.u32 %v5983, 7
    %v5985 = vsub.s32 0, %v5984
    %v5986 = vrot.slane %v5947, %v5985
    %v5988 = vadd.f32 %v5980, %v5986
    %v5989 = vadd.f32 %v5981, %v5986
    %v5990 = vld [vmem:[%s69] sm:$0xff]
    %v5991 = vld [vmem:[%s71] sm:$0x1]
    %v5993 = vlaneseq
    %v5994 = vshrl.u32 %v5993, 7
    %v5995 = vsub.s32 0, %v5994
    %v5996 = vrot.slane %v5991, %v5995
    %v5999 = vsel %vm1296, %v5988, 0
    %v6002 = vsel %vm1296, %v5989, 0
    %6004 = vmatprep.subr.mxu0 0.0
    %6005 = vmatpush1.msra.mxu0 0.0
    %6006 = vmatprep.subr.mxu0 0.0
    %6007 = vmatpush1.msra.mxu0 0.0
    %6008 = vmatprep.subr.mxu0 0.0
    %6009 = vmatpush1.msra.mxu0 0.0
    %6010 = vmatprep.subr.mxu0 0.0
    %6011 = vmatpush1.msra.mxu0 0.0
    %6012 = vmatprep.subr.mxu0 0.0
    %6013 = vmatpush1.msra.mxu0 0.0
    %6014 = vmatprep.subr.mxu0 0.0
    %6015 = vmatpush1.msra.mxu0 0.0
    %6016 = vmatprep.subr.mxu0 0.0
    %6017 = vmatpush1.msra.mxu0 0.0
    %6018 = vmatprep.subr.mxu0 0.0
    %6019 = vmatpush1.msra.mxu0 0.0
    %6020 = vmatprep.subr.mxu0 0.0
    %6021 = vmatpush1.msra.mxu0 0.0
    %6022 = vmatprep.subr.mxu0 0.0
    %6023 = vmatpush1.msra.mxu0 0.0
    %6024 = vmatprep.subr.mxu0 0.0
    %6025 = vmatpush1.msra.mxu0 0.0
    %6026 = vmatprep.subr.mxu0 0.0
    %6027 = vmatpush1.msra.mxu0 0.0
    %6028 = vmatprep.subr.mxu0 0.0
    %6029 = vmatpush1.msra.mxu0 0.0
    %6030 = vmatprep.subr.mxu0 0.0
    %6031 = vmatpush1.msra.mxu0 0.0
    %6032 = vmatprep.subr.mxu0 0.0
    %6033 = vmatpush1.msra.mxu0 0.0
    %6034 = vmatprep.subr.mxu0 0.0
    %6035 = vmatpush1.msra.mxu0 %v5990
    %6036 = vmatprep.subr.mxu0 0.0
    %6037 = vmatpush2.msra.mxu0 0.0
    %6038 = vmatprep.subr.mxu0 0.0
    %6039 = vmatpush2.msra.mxu0 0.0
    %6040 = vmatprep.subr.mxu0 0.0
    %6041 = vmatpush2.msra.mxu0 0.0
    %6042 = vmatprep.subr.mxu0 0.0
    %6043 = vmatpush2.msra.mxu0 0.0
    %6044 = vmatprep.subr.mxu0 0.0
    %6045 = vmatpush2.msra.mxu0 0.0
    %6046 = vmatprep.subr.mxu0 0.0
    %6047 = vmatpush2.msra.mxu0 0.0
    %6048 = vmatprep.subr.mxu0 0.0
    %6049 = vmatpush2.msra.mxu0 0.0
    %6050 = vmatprep.subr.mxu0 0.0
    %6051 = vmatpush2.msra.mxu0 0.0
    %6052 = vmatprep.subr.mxu0 0.0
    %6053 = vmatpush2.msra.mxu0 0.0
    %6054 = vmatprep.subr.mxu0 0.0
    %6055 = vmatpush2.msra.mxu0 0.0
    %6056 = vmatprep.subr.mxu0 0.0
    %6057 = vmatpush2.msra.mxu0 0.0
    %6058 = vmatprep.subr.mxu0 0.0
    %6059 = vmatpush2.msra.mxu0 0.0
    %6060 = vmatprep.subr.mxu0 0.0
    %6061 = vmatpush2.msra.mxu0 0.0
    %6062 = vmatprep.subr.mxu0 0.0
    %6063 = vmatpush2.msra.mxu0 0.0
    %6064 = vmatprep.subr.mxu0 0.0
    %6065 = vmatpush2.msra.mxu0 0.0
    %6066 = vmatprep.subr.mxu0 0.0
    %6067 = vmatpush2.msra.mxu0 0.0
    %6068 = vmatprep.mubr.f32.mxu0 0.0
    %6069 = vmatmul.mubr.f32.gmra.mxu0 %v5999
    %v6070 = vpop.f32.mrf.mxu0
    %v6071 = vadd.f32 %v5996, %v6070
    %v6072 = vpop.f32.mrf.mxu0
    %6073 = vmatprep.mubr.f32.mxu0 0.0
    %6074 = vmatmul.mubr.f32.gmra.mxu0 %v6002
    %v6075 = vpop.f32.mrf.mxu0
    %v6076 = vadd.f32 %v5996, %v6075
    %v6077 = vpop.f32.mrf.mxu0
    %6078 = vdwg.mxu0
    %v6079 = vmul.f32 %v6071, 0.5
    %v6080 = vmul.f32 %v6076, 0.5
    %v6081 = vmul.f32 %v6071, 0.044715
    %v6082 = vmul.f32 %v6076, 0.044715
    %v6083 = vmul.f32 %v6081, %v6071
    %v6084 = vmul.f32 %v6082, %v6076
    %v6085 = vmul.f32 %v6083, %v6071
    %v6086 = vmul.f32 %v6084, %v6076
    %v6087 = vadd.f32 %v6071, %v6085
    %v6088 = vadd.f32 %v6076, %v6086
    %v6089 = vmul.f32 %v6087, 0.7978846
    %v6090 = vmul.f32 %v6088, 0.7978846
    %v6091 = vtanh.pop %v6089
    %v6092 = vtanh.pop %v6090
    %v6093 = vadd.f32 %v6091, 1.0
    %v6094 = vadd.f32 %v6092, 1.0
    %v6095 = vmul.f32 %v6079, %v6093
    %v6096 = vmul.f32 %v6080, %v6094
    %v6097 = vld [vmem:[%s73] sm:$0xff]
    %v6098 = vld [vmem:[%s73 + $0x8] sm:$0xff]
    %v6099 = vld [vmem:[%s73 + $0x10] sm:$0xff]
    %v6100 = vld [vmem:[%s73 + $0x18] sm:$0xff]
    %v6101 = vld [vmem:[%s75] sm:$0x1]
    %v6103 = vlaneseq
    %v6104 = vshrl.u32 %v6103, 7
    %v6105 = vsub.s32 0, %v6104
    %v6106 = vrot.slane %v6101, %v6105
    %v6109 = vsel %vm1565, %v6095, 0
    %v6112 = vsel %vm1565, %v6096, 0
    %6114 = vmatprep.subr.mxu0 0.0
    %6115 = vmatpush1.msra.mxu0 0.0
    %6116 = vmatprep.subr.mxu0 0.0
    %6117 = vmatpush1.msra.mxu0 0.0
    %6118 = vmatprep.subr.mxu0 0.0
    %6119 = vmatpush1.msra.mxu0 0.0
    %6120 = vmatprep.subr.mxu0 0.0
    %6121 = vmatpush1.msra.mxu0 0.0
    %6122 = vmatprep.subr.mxu0 0.0
    %6123 = vmatpush1.msra.mxu0 0.0
    %6124 = vmatprep.subr.mxu0 0.0
    %6125 = vmatpush1.msra.mxu0 0.0
    %6126 = vmatprep.subr.mxu0 0.0
    %6127 = vmatpush1.msra.mxu0 0.0
    %6128 = vmatprep.subr.mxu0 0.0
    %6129 = vmatpush1.msra.mxu0 0.0
    %6130 = vmatprep.subr.mxu0 0.0
    %6131 = vmatpush1.msra.mxu0 0.0
    %6132 = vmatprep.subr.mxu0 0.0
    %6133 = vmatpush1.msra.mxu0 0.0
    %6134 = vmatprep.subr.mxu0 0.0
    %6135 = vmatpush1.msra.mxu0 0.0
    %6136 = vmatprep.subr.mxu0 0.0
    %6137 = vmatpush1.msra.mxu0 0.0
    %6138 = vmatprep.subr.mxu0 0.0
    %6139 = vmatpush1.msra.mxu0 %v6100
    %6140 = vmatprep.subr.mxu0 0.0
    %6141 = vmatpush1.msra.mxu0 %v6099
    %6142 = vmatprep.subr.mxu0 0.0
    %6143 = vmatpush1.msra.mxu0 %v6098
    %6144 = vmatprep.subr.mxu0 0.0
    %6145 = vmatpush1.msra.mxu0 %v6097
    %6146 = vmatprep.subr.mxu0 0.0
    %6147 = vmatpush2.msra.mxu0 0.0
    %6148 = vmatprep.subr.mxu0 0.0
    %6149 = vmatpush2.msra.mxu0 0.0
    %6150 = vmatprep.subr.mxu0 0.0
    %6151 = vmatpush2.msra.mxu0 0.0
    %6152 = vmatprep.subr.mxu0 0.0
    %6153 = vmatpush2.msra.mxu0 0.0
    %6154 = vmatprep.subr.mxu0 0.0
    %6155 = vmatpush2.msra.mxu0 0.0
    %6156 = vmatprep.subr.mxu0 0.0
    %6157 = vmatpush2.msra.mxu0 0.0
    %6158 = vmatprep.subr.mxu0 0.0
    %6159 = vmatpush2.msra.mxu0 0.0
    %6160 = vmatprep.subr.mxu0 0.0
    %6161 = vmatpush2.msra.mxu0 0.0
    %6162 = vmatprep.subr.mxu0 0.0
    %6163 = vmatpush2.msra.mxu0 0.0
    %6164 = vmatprep.subr.mxu0 0.0
    %6165 = vmatpush2.msra.mxu0 0.0
    %6166 = vmatprep.subr.mxu0 0.0
    %6167 = vmatpush2.msra.mxu0 0.0
    %6168 = vmatprep.subr.mxu0 0.0
    %6169 = vmatpush2.msra.mxu0 0.0
    %6170 = vmatprep.subr.mxu0 0.0
    %6171 = vmatpush2.msra.mxu0 0.0
    %6172 = vmatprep.subr.mxu0 0.0
    %6173 = vmatpush2.msra.mxu0 0.0
    %6174 = vmatprep.subr.mxu0 0.0
    %6175 = vmatpush2.msra.mxu0 0.0
    %6176 = vmatprep.subr.mxu0 0.0
    %6177 = vmatpush2.msra.mxu0 0.0
    %6178 = vmatprep.mubr.f32.mxu0 0.0
    %6179 = vmatmul.mubr.f32.gmra.mxu0 %v6109
    %v6180 = vpop.f32.mrf.mxu0
    %v6181 = vadd.f32 %v6106, %v6180
    %v6182 = vpop.f32.mrf.mxu0
    %6183 = vmatprep.mubr.f32.mxu0 0.0
    %6184 = vmatmul.mubr.f32.gmra.mxu0 %v6112
    %v6185 = vpop.f32.mrf.mxu0
    %v6186 = vadd.f32 %v6106, %v6185
    %v6187 = vpop.f32.mrf.mxu0
    %6188 = vdwg.mxu0
    %v6189 = vld [vmem:[%s31] sm:$0xff]
    %v6191 = vsel %vm196, %v6189, 0
    %6193 = vmatprep.subr.mxu0 0.0
    %6194 = vmatpush1.msra.mxu0 0.0
    %6195 = vmatprep.subr.mxu0 0.0
    %6196 = vmatpush1.msra.mxu0 0.0
    %6197 = vmatprep.subr.mxu0 0.0
    %6198 = vmatpush1.msra.mxu0 0.0
    %6199 = vmatprep.subr.mxu0 0.0
    %6200 = vmatpush1.msra.mxu0 0.0
    %6201 = vmatprep.subr.mxu0 0.0
    %6202 = vmatpush1.msra.mxu0 0.0
    %6203 = vmatprep.subr.mxu0 0.0
    %6204 = vmatpush1.msra.mxu0 0.0
    %6205 = vmatprep.subr.mxu0 0.0
    %6206 = vmatpush1.msra.mxu0 0.0
    %6207 = vmatprep.subr.mxu0 0.0
    %6208 = vmatpush1.msra.mxu0 0.0
    %6209 = vmatprep.subr.mxu0 0.0
    %6210 = vmatpush1.msra.mxu0 0.0
    %6211 = vmatprep.subr.mxu0 0.0
    %6212 = vmatpush1.msra.mxu0 0.0
    %6213 = vmatprep.subr.mxu0 0.0
    %6214 = vmatpush1.msra.mxu0 0.0
    %6215 = vmatprep.subr.mxu0 0.0
    %6216 = vmatpush1.msra.mxu0 0.0
    %6217 = vmatprep.subr.mxu0 0.0
    %6218 = vmatpush1.msra.mxu0 0.0
    %6219 = vmatprep.subr.mxu0 0.0
    %6220 = vmatpush1.msra.mxu0 0.0
    %6221 = vmatprep.subr.mxu0 0.0
    %6222 = vmatpush1.msra.mxu0 %v5989
    %6223 = vmatprep.subr.mxu0 0.0
    %6224 = vmatpush1.msra.mxu0 %v5988
    %6225 = vmatprep.subr.mxu0 0.0
    %6226 = vmatpush2.msra.mxu0 0.0
    %6227 = vmatprep.subr.mxu0 0.0
    %6228 = vmatpush2.msra.mxu0 0.0
    %6229 = vmatprep.subr.mxu0 0.0
    %6230 = vmatpush2.msra.mxu0 0.0
    %6231 = vmatprep.subr.mxu0 0.0
    %6232 = vmatpush2.msra.mxu0 0.0
    %6233 = vmatprep.subr.mxu0 0.0
    %6234 = vmatpush2.msra.mxu0 0.0
    %6235 = vmatprep.subr.mxu0 0.0
    %6236 = vmatpush2.msra.mxu0 0.0
    %6237 = vmatprep.subr.mxu0 0.0
    %6238 = vmatpush2.msra.mxu0 0.0
    %6239 = vmatprep.subr.mxu0 0.0
    %6240 = vmatpush2.msra.mxu0 0.0
    %6241 = vmatprep.subr.mxu0 0.0
    %6242 = vmatpush2.msra.mxu0 0.0
    %6243 = vmatprep.subr.mxu0 0.0
    %6244 = vmatpush2.msra.mxu0 0.0
    %6245 = vmatprep.subr.mxu0 0.0
    %6246 = vmatpush2.msra.mxu0 0.0
    %6247 = vmatprep.subr.mxu0 0.0
    %6248 = vmatpush2.msra.mxu0 0.0
    %6249 = vmatprep.subr.mxu0 0.0
    %6250 = vmatpush2.msra.mxu0 0.0
    %6251 = vmatprep.subr.mxu0 0.0
    %6252 = vmatpush2.msra.mxu0 0.0
    %6253 = vmatprep.subr.mxu0 0.0
    %6254 = vmatpush2.msra.mxu0 0.0
    %6255 = vmatprep.subr.mxu0 0.0
    %6256 = vmatpush2.msra.mxu0 0.0
    %6257 = vmatprep.mubr.f32.mxu0 0.0
    %6258 = vmatmul.mubr.f32.gmra.mxu0 %v6191
    %v6259 = vpop.f32.mrf.mxu0
    %v6260 = vadd.f32 0.0, %v6259
    %v6261 = vpop.f32.mrf.mxu0
    %6262 = vdwg.mxu0
    %v6264 = vsel %vm1296, %v6260, 0
    %6266 = vmatprep.subr.mxu0 0.0
    %6267 = vmatpush1.msra.mxu0 0.0
    %6268 = vmatprep.subr.mxu0 0.0
    %6269 = vmatpush1.msra.mxu0 0.0
    %6270 = vmatprep.subr.mxu0 0.0
    %6271 = vmatpush1.msra.mxu0 0.0
    %6272 = vmatprep.subr.mxu0 0.0
    %6273 = vmatpush1.msra.mxu0 0.0
    %6274 = vmatprep.subr.mxu0 0.0
    %6275 = vmatpush1.msra.mxu0 0.0
    %6276 = vmatprep.subr.mxu0 0.0
    %6277 = vmatpush1.msra.mxu0 0.0
    %6278 = vmatprep.subr.mxu0 0.0
    %6279 = vmatpush1.msra.mxu0 0.0
    %6280 = vmatprep.subr.mxu0 0.0
    %6281 = vmatpush1.msra.mxu0 0.0
    %6282 = vmatprep.subr.mxu0 0.0
    %6283 = vmatpush1.msra.mxu0 0.0
    %6284 = vmatprep.subr.mxu0 0.0
    %6285 = vmatpush1.msra.mxu0 0.0
    %6286 = vmatprep.subr.mxu0 0.0
    %6287 = vmatpush1.msra.mxu0 0.0
    %6288 = vmatprep.subr.mxu0 0.0
    %6289 = vmatpush1.msra.mxu0 0.0
    %6290 = vmatprep.subr.mxu0 0.0
    %6291 = vmatpush1.msra.mxu0 0.0
    %6292 = vmatprep.subr.mxu0 0.0
    %6293 = vmatpush1.msra.mxu0 0.0
    %6294 = vmatprep.subr.mxu0 0.0
    %6295 = vmatpush1.msra.mxu0 0.0
    %6296 = vmatprep.subr.mxu0 0.0
    %6297 = vmatpush1.msra.mxu0 %v5990
    %6298 = vmatprep.subr.mxu0 0.0
    %6299 = vmatpush2.msra.mxu0 0.0
    %6300 = vmatprep.subr.mxu0 0.0
    %6301 = vmatpush2.msra.mxu0 0.0
    %6302 = vmatprep.subr.mxu0 0.0
    %6303 = vmatpush2.msra.mxu0 0.0
    %6304 = vmatprep.subr.mxu0 0.0
    %6305 = vmatpush2.msra.mxu0 0.0
    %6306 = vmatprep.subr.mxu0 0.0
    %6307 = vmatpush2.msra.mxu0 0.0
    %6308 = vmatprep.subr.mxu0 0.0
    %6309 = vmatpush2.msra.mxu0 0.0
    %6310 = vmatprep.subr.mxu0 0.0
    %6311 = vmatpush2.msra.mxu0 0.0
    %6312 = vmatprep.subr.mxu0 0.0
    %6313 = vmatpush2.msra.mxu0 0.0
    %6314 = vmatprep.subr.mxu0 0.0
    %6315 = vmatpush2.msra.mxu0 0.0
    %6316 = vmatprep.subr.mxu0 0.0
    %6317 = vmatpush2.msra.mxu0 0.0
    %6318 = vmatprep.subr.mxu0 0.0
    %6319 = vmatpush2.msra.mxu0 0.0
    %6320 = vmatprep.subr.mxu0 0.0
    %6321 = vmatpush2.msra.mxu0 0.0
    %6322 = vmatprep.subr.mxu0 0.0
    %6323 = vmatpush2.msra.mxu0 0.0
    %6324 = vmatprep.subr.mxu0 0.0
    %6325 = vmatpush2.msra.mxu0 0.0
    %6326 = vmatprep.subr.mxu0 0.0
    %6327 = vmatpush2.msra.mxu0 0.0
    %6328 = vmatprep.subr.mxu0 0.0
    %6329 = vmatpush2.msra.mxu0 0.0
    %6330 = vmatprep.mubr.f32.mxu0 0.0
    %6331 = vmatmul.mubr.f32.gmra.mxu0 %v6264
    %v6332 = vpop.f32.mrf.mxu0
    %v6333 = vadd.f32 %v5996, %v6332
    %v6334 = vpop.f32.mrf.mxu0
    %6335 = vdwg.mxu0
    %v6336 = vmul.f32 %v6333, 0.5
    %v6337 = vmul.f32 %v6333, 0.044715
    %v6338 = vmul.f32 %v6337, %v6333
    %v6339 = vmul.f32 %v6338, %v6333
    %v6340 = vadd.f32 %v6333, %v6339
    %v6341 = vmul.f32 %v6340, 0.7978846
    %v6342 = vtanh.pop %v6341
    %v6343 = vadd.f32 %v6342, 1.0
    %v6344 = vmul.f32 %v6336, %v6343
    %v6346 = vsel %vm1565, %v6344, 0
    %6348 = vmatprep.subr.mxu0 0.0
    %6349 = vmatpush1.msra.mxu0 0.0
    %6350 = vmatprep.subr.mxu0 0.0
    %6351 = vmatpush1.msra.mxu0 0.0
    %6352 = vmatprep.subr.mxu0 0.0
    %6353 = vmatpush1.msra.mxu0 0.0
    %6354 = vmatprep.subr.mxu0 0.0
    %6355 = vmatpush1.msra.mxu0 0.0
    %6356 = vmatprep.subr.mxu0 0.0
    %6357 = vmatpush1.msra.mxu0 0.0
    %6358 = vmatprep.subr.mxu0 0.0
    %6359 = vmatpush1.msra.mxu0 0.0
    %6360 = vmatprep.subr.mxu0 0.0
    %6361 = vmatpush1.msra.mxu0 0.0
    %6362 = vmatprep.subr.mxu0 0.0
    %6363 = vmatpush1.msra.mxu0 0.0
    %6364 = vmatprep.subr.mxu0 0.0
    %6365 = vmatpush1.msra.mxu0 0.0
    %6366 = vmatprep.subr.mxu0 0.0
    %6367 = vmatpush1.msra.mxu0 0.0
    %6368 = vmatprep.subr.mxu0 0.0
    %6369 = vmatpush1.msra.mxu0 0.0
    %6370 = vmatprep.subr.mxu0 0.0
    %6371 = vmatpush1.msra.mxu0 0.0
    %6372 = vmatprep.subr.mxu0 0.0
    %6373 = vmatpush1.msra.mxu0 %v6100
    %6374 = vmatprep.subr.mxu0 0.0
    %6375 = vmatpush1.msra.mxu0 %v6099
    %6376 = vmatprep.subr.mxu0 0.0
    %6377 = vmatpush1.msra.mxu0 %v6098
    %6378 = vmatprep.subr.mxu0 0.0
    %6379 = vmatpush1.msra.mxu0 %v6097
    %6380 = vmatprep.subr.mxu0 0.0
    %6381 = vmatpush2.msra.mxu0 0.0
    %6382 = vmatprep.subr.mxu0 0.0
    %6383 = vmatpush2.msra.mxu0 0.0
    %6384 = vmatprep.subr.mxu0 0.0
    %6385 = vmatpush2.msra.mxu0 0.0
    %6386 = vmatprep.subr.mxu0 0.0
    %6387 = vmatpush2.msra.mxu0 0.0
    %6388 = vmatprep.subr.mxu0 0.0
    %6389 = vmatpush2.msra.mxu0 0.0
    %6390 = vmatprep.subr.mxu0 0.0
    %6391 = vmatpush2.msra.mxu0 0.0
    %6392 = vmatprep.subr.mxu0 0.0
    %6393 = vmatpush2.msra.mxu0 0.0
    %6394 = vmatprep.subr.mxu0 0.0
    %6395 = vmatpush2.msra.mxu0 0.0
    %6396 = vmatprep.subr.mxu0 0.0
    %6397 = vmatpush2.msra.mxu0 0.0
    %6398 = vmatprep.subr.mxu0 0.0
    %6399 = vmatpush2.msra.mxu0 0.0
    %6400 = vmatprep.subr.mxu0 0.0
    %6401 = vmatpush2.msra.mxu0 0.0
    %6402 = vmatprep.subr.mxu0 0.0
    %6403 = vmatpush2.msra.mxu0 0.0
    %6404 = vmatprep.subr.mxu0 0.0
    %6405 = vmatpush2.msra.mxu0 0.0
    %6406 = vmatprep.subr.mxu0 0.0
    %6407 = vmatpush2.msra.mxu0 0.0
    %6408 = vmatprep.subr.mxu0 0.0
    %6409 = vmatpush2.msra.mxu0 0.0
    %6410 = vmatprep.subr.mxu0 0.0
    %6411 = vmatpush2.msra.mxu0 0.0
    %6412 = vmatprep.mubr.f32.mxu0 0.0
    %6413 = vmatmul.mubr.f32.gmra.mxu0 %v6346
    %v6414 = vpop.f32.mrf.mxu0
    %v6415 = vadd.f32 %v6106, %v6414
    %v6416 = vpop.f32.mrf.mxu0
    %6417 = vdwg.mxu0
    %v6418 = vld [vmem:[%s33] sm:$0xff]
    %v6419 = vld [vmem:[%s33 + $0x8] sm:$0xff]
    %v6420 = vld [vmem:[%s33 + $0x10] sm:$0xff]
    %v6421 = vld [vmem:[%s33 + $0x18] sm:$0xff]
    %v6422 = vld [vmem:[%s35] sm:$0xff]
    %v6423 = vld [vmem:[%s35 + $0x8] sm:$0xff]
    %v6424 = vld [vmem:[%s35 + $0x10] sm:$0xff]
    %v6425 = vld [vmem:[%s35 + $0x18] sm:$0xff]
    %v6427 = vsel %vm1296, %v6422, 0
    %v6430 = vsel %vm1296, %v6423, 0
    %v6433 = vsel %vm1296, %v6424, 0
    %v6436 = vsel %vm1296, %v6425, 0
    %6438 = vmatprep.subr.mxu0 0.0
    %6439 = vmatpush1.msra.mxu0 0.0
    %6440 = vmatprep.subr.mxu0 0.0
    %6441 = vmatpush1.msra.mxu0 0.0
    %6442 = vmatprep.subr.mxu0 0.0
    %6443 = vmatpush1.msra.mxu0 0.0
    %6444 = vmatprep.subr.mxu0 0.0
    %6445 = vmatpush1.msra.mxu0 0.0
    %6446 = vmatprep.subr.mxu0 0.0
    %6447 = vmatpush1.msra.mxu0 0.0
    %6448 = vmatprep.subr.mxu0 0.0
    %6449 = vmatpush1.msra.mxu0 0.0
    %6450 = vmatprep.subr.mxu0 0.0
    %6451 = vmatpush1.msra.mxu0 0.0
    %6452 = vmatprep.subr.mxu0 0.0
    %6453 = vmatpush1.msra.mxu0 0.0
    %6454 = vmatprep.subr.mxu0 0.0
    %6455 = vmatpush1.msra.mxu0 0.0
    %6456 = vmatprep.subr.mxu0 0.0
    %6457 = vmatpush1.msra.mxu0 0.0
    %6458 = vmatprep.subr.mxu0 0.0
    %6459 = vmatpush1.msra.mxu0 0.0
    %6460 = vmatprep.subr.mxu0 0.0
    %6461 = vmatpush1.msra.mxu0 0.0
    %6462 = vmatprep.subr.mxu0 0.0
    %6463 = vmatpush1.msra.mxu0 0.0
    %6464 = vmatprep.subr.mxu0 0.0
    %6465 = vmatpush1.msra.mxu0 0.0
    %6466 = vmatprep.subr.mxu0 0.0
    %6467 = vmatpush1.msra.mxu0 0.0
    %6468 = vmatprep.subr.mxu0 0.0
    %6469 = vmatpush1.msra.mxu0 %v6415
    %6470 = vmatprep.subr.mxu0 0.0
    %6471 = vmatpush2.msra.mxu0 0.0
    %6472 = vmatprep.subr.mxu0 0.0
    %6473 = vmatpush2.msra.mxu0 0.0
    %6474 = vmatprep.subr.mxu0 0.0
    %6475 = vmatpush2.msra.mxu0 0.0
    %6476 = vmatprep.subr.mxu0 0.0
    %6477 = vmatpush2.msra.mxu0 0.0
    %6478 = vmatprep.subr.mxu0 0.0
    %6479 = vmatpush2.msra.mxu0 0.0
    %6480 = vmatprep.subr.mxu0 0.0
    %6481 = vmatpush2.msra.mxu0 0.0
    %6482 = vmatprep.subr.mxu0 0.0
    %6483 = vmatpush2.msra.mxu0 0.0
    %6484 = vmatprep.subr.mxu0 0.0
    %6485 = vmatpush2.msra.mxu0 0.0
    %6486 = vmatprep.subr.mxu0 0.0
    %6487 = vmatpush2.msra.mxu0 0.0
    %6488 = vmatprep.subr.mxu0 0.0
    %6489 = vmatpush2.msra.mxu0 0.0
    %6490 = vmatprep.subr.mxu0 0.0
    %6491 = vmatpush2.msra.mxu0 0.0
    %6492 = vmatprep.subr.mxu0 0.0
    %6493 = vmatpush2.msra.mxu0 0.0
    %6494 = vmatprep.subr.mxu0 0.0
    %6495 = vmatpush2.msra.mxu0 0.0
    %6496 = vmatprep.subr.mxu0 0.0
    %6497 = vmatpush2.msra.mxu0 0.0
    %6498 = vmatprep.subr.mxu0 0.0
    %6499 = vmatpush2.msra.mxu0 0.0
    %6500 = vmatprep.subr.mxu0 0.0
    %6501 = vmatpush2.msra.mxu0 0.0
    %6502 = vmatprep.mubr.f32.mxu0 0.0
    %6503 = vmatmul.mubr.f32.gmra.mxu0 %v6427
    %v6504 = vpop.f32.mrf.mxu0
    %v6505 = vadd.f32 0.0, %v6504
    %v6506 = vpop.f32.mrf.mxu0
    %6507 = vmatprep.mubr.f32.mxu0 0.0
    %6508 = vmatmul.mubr.f32.gmra.mxu0 %v6430
    %v6509 = vpop.f32.mrf.mxu0
    %v6510 = vadd.f32 0.0, %v6509
    %v6511 = vpop.f32.mrf.mxu0
    %6512 = vmatprep.mubr.f32.mxu0 0.0
    %6513 = vmatmul.mubr.f32.gmra.mxu0 %v6433
    %v6514 = vpop.f32.mrf.mxu0
    %v6515 = vadd.f32 0.0, %v6514
    %v6516 = vpop.f32.mrf.mxu0
    %6517 = vmatprep.mubr.f32.mxu0 0.0
    %6518 = vmatmul.mubr.f32.gmra.mxu0 %v6436
    %v6519 = vpop.f32.mrf.mxu0
    %v6520 = vadd.f32 0.0, %v6519
    %v6521 = vpop.f32.mrf.mxu0
    %6522 = vdwg.mxu0
    %v6524 = vsel %vm196, %v6418, 0
    %v6527 = vsel %vm196, %v6419, 0
    %v6530 = vsel %vm196, %v6420, 0
    %v6533 = vsel %vm196, %v6421, 0
    %6535 = vmatprep.subr.mxu0 0.0
    %6536 = vmatpush1.msra.mxu0 0.0
    %6537 = vmatprep.subr.mxu0 0.0
    %6538 = vmatpush1.msra.mxu0 0.0
    %6539 = vmatprep.subr.mxu0 0.0
    %6540 = vmatpush1.msra.mxu0 0.0
    %6541 = vmatprep.subr.mxu0 0.0
    %6542 = vmatpush1.msra.mxu0 0.0
    %6543 = vmatprep.subr.mxu0 0.0
    %6544 = vmatpush1.msra.mxu0 0.0
    %6545 = vmatprep.subr.mxu0 0.0
    %6546 = vmatpush1.msra.mxu0 0.0
    %6547 = vmatprep.subr.mxu0 0.0
    %6548 = vmatpush1.msra.mxu0 0.0
    %6549 = vmatprep.subr.mxu0 0.0
    %6550 = vmatpush1.msra.mxu0 0.0
    %6551 = vmatprep.subr.mxu0 0.0
    %6552 = vmatpush1.msra.mxu0 0.0
    %6553 = vmatprep.subr.mxu0 0.0
    %6554 = vmatpush1.msra.mxu0 0.0
    %6555 = vmatprep.subr.mxu0 0.0
    %6556 = vmatpush1.msra.mxu0 0.0
    %6557 = vmatprep.subr.mxu0 0.0
    %6558 = vmatpush1.msra.mxu0 0.0
    %6559 = vmatprep.subr.mxu0 0.0
    %6560 = vmatpush1.msra.mxu0 0.0
    %6561 = vmatprep.subr.mxu0 0.0
    %6562 = vmatpush1.msra.mxu0 0.0
    %6563 = vmatprep.subr.mxu0 0.0
    %6564 = vmatpush1.msra.mxu0 %v6186
    %6565 = vmatprep.subr.mxu0 0.0
    %6566 = vmatpush1.msra.mxu0 %v6181
    %6567 = vmatprep.subr.mxu0 0.0
    %6568 = vmatpush2.msra.mxu0 0.0
    %6569 = vmatprep.subr.mxu0 0.0
    %6570 = vmatpush2.msra.mxu0 0.0
    %6571 = vmatprep.subr.mxu0 0.0
    %6572 = vmatpush2.msra.mxu0 0.0
    %6573 = vmatprep.subr.mxu0 0.0
    %6574 = vmatpush2.msra.mxu0 0.0
    %6575 = vmatprep.subr.mxu0 0.0
    %6576 = vmatpush2.msra.mxu0 0.0
    %6577 = vmatprep.subr.mxu0 0.0
    %6578 = vmatpush2.msra.mxu0 0.0
    %6579 = vmatprep.subr.mxu0 0.0
    %6580 = vmatpush2.msra.mxu0 0.0
    %6581 = vmatprep.subr.mxu0 0.0
    %6582 = vmatpush2.msra.mxu0 0.0
    %6583 = vmatprep.subr.mxu0 0.0
    %6584 = vmatpush2.msra.mxu0 0.0
    %6585 = vmatprep.subr.mxu0 0.0
    %6586 = vmatpush2.msra.mxu0 0.0
    %6587 = vmatprep.subr.mxu0 0.0
    %6588 = vmatpush2.msra.mxu0 0.0
    %6589 = vmatprep.subr.mxu0 0.0
    %6590 = vmatpush2.msra.mxu0 0.0
    %6591 = vmatprep.subr.mxu0 0.0
    %6592 = vmatpush2.msra.mxu0 0.0
    %6593 = vmatprep.subr.mxu0 0.0
    %6594 = vmatpush2.msra.mxu0 0.0
    %6595 = vmatprep.subr.mxu0 0.0
    %6596 = vmatpush2.msra.mxu0 0.0
    %6597 = vmatprep.subr.mxu0 0.0
    %6598 = vmatpush2.msra.mxu0 0.0
    %6599 = vmatprep.mubr.f32.mxu0 0.0
    %6600 = vmatmul.mubr.f32.gmra.mxu0 %v6524
    %v6601 = vpop.f32.mrf.mxu0
    %v6602 = vadd.f32 %v6505, %v6601
    %v6603 = vpop.f32.mrf.mxu0
    %6604 = vmatprep.mubr.f32.mxu0 0.0
    %6605 = vmatmul.mubr.f32.gmra.mxu0 %v6527
    %v6606 = vpop.f32.mrf.mxu0
    %v6607 = vadd.f32 %v6510, %v6606
    %v6608 = vpop.f32.mrf.mxu0
    %6609 = vmatprep.mubr.f32.mxu0 0.0
    %6610 = vmatmul.mubr.f32.gmra.mxu0 %v6530
    %v6611 = vpop.f32.mrf.mxu0
    %v6612 = vadd.f32 %v6515, %v6611
    %v6613 = vpop.f32.mrf.mxu0
    %6614 = vmatprep.mubr.f32.mxu0 0.0
    %6615 = vmatmul.mubr.f32.gmra.mxu0 %v6533
    %v6616 = vpop.f32.mrf.mxu0
    %v6617 = vadd.f32 %v6520, %v6616
    %v6618 = vpop.f32.mrf.mxu0
    %6619 = vdwg.mxu0
    %v6620 = vld [vmem:[%s77] sm:$0xff]
    %v6621 = vld [vmem:[%s77 + $0x8] sm:$0xff]
    %v6622 = vld [vmem:[%s77 + $0x10] sm:$0xff]
    %v6623 = vld [vmem:[%s77 + $0x18] sm:$0xff]
    %v6625 = vsel %vm1296, %v6607, 0
    %6627 = vmatprep.subr.mxu0 0.0
    %6628 = vmatpush1.msra.mxu0 0.0
    %6629 = vmatprep.subr.mxu0 0.0
    %6630 = vmatpush1.msra.mxu0 0.0
    %6631 = vmatprep.subr.mxu0 0.0
    %6632 = vmatpush1.msra.mxu0 0.0
    %6633 = vmatprep.subr.mxu0 0.0
    %6634 = vmatpush1.msra.mxu0 0.0
    %6635 = vmatprep.subr.mxu0 0.0
    %6636 = vmatpush1.msra.mxu0 0.0
    %6637 = vmatprep.subr.mxu0 0.0
    %6638 = vmatpush1.msra.mxu0 0.0
    %6639 = vmatprep.subr.mxu0 0.0
    %6640 = vmatpush1.msra.mxu0 0.0
    %6641 = vmatprep.subr.mxu0 0.0
    %6642 = vmatpush1.msra.mxu0 0.0
    %6643 = vmatprep.subr.mxu0 0.0
    %6644 = vmatpush1.msra.mxu0 0.0
    %6645 = vmatprep.subr.mxu0 0.0
    %6646 = vmatpush1.msra.mxu0 0.0
    %6647 = vmatprep.subr.mxu0 0.0
    %6648 = vmatpush1.msra.mxu0 0.0
    %6649 = vmatprep.subr.mxu0 0.0
    %6650 = vmatpush1.msra.mxu0 0.0
    %6651 = vmatprep.subr.mxu0 0.0
    %6652 = vmatpush1.msra.mxu0 0.0
    %6653 = vmatprep.subr.mxu0 0.0
    %6654 = vmatpush1.msra.mxu0 0.0
    %6655 = vmatprep.subr.mxu0 0.0
    %6656 = vmatpush1.msra.mxu0 0.0
    %6657 = vmatprep.subr.mxu0 0.0
    %6658 = vmatpush1.msra.mxu0 %v6621
    %6659 = vmatprep.subr.mxu0 0.0
    %6660 = vmatpush2.msra.mxu0 0.0
    %6661 = vmatprep.subr.mxu0 0.0
    %6662 = vmatpush2.msra.mxu0 0.0
    %6663 = vmatprep.subr.mxu0 0.0
    %6664 = vmatpush2.msra.mxu0 0.0
    %6665 = vmatprep.subr.mxu0 0.0
    %6666 = vmatpush2.msra.mxu0 0.0
    %6667 = vmatprep.subr.mxu0 0.0
    %6668 = vmatpush2.msra.mxu0 0.0
    %6669 = vmatprep.subr.mxu0 0.0
    %6670 = vmatpush2.msra.mxu0 0.0
    %6671 = vmatprep.subr.mxu0 0.0
    %6672 = vmatpush2.msra.mxu0 0.0
    %6673 = vmatprep.subr.mxu0 0.0
    %6674 = vmatpush2.msra.mxu0 0.0
    %6675 = vmatprep.subr.mxu0 0.0
    %6676 = vmatpush2.msra.mxu0 0.0
    %6677 = vmatprep.subr.mxu0 0.0
    %6678 = vmatpush2.msra.mxu0 0.0
    %6679 = vmatprep.subr.mxu0 0.0
    %6680 = vmatpush2.msra.mxu0 0.0
    %6681 = vmatprep.subr.mxu0 0.0
    %6682 = vmatpush2.msra.mxu0 0.0
    %6683 = vmatprep.subr.mxu0 0.0
    %6684 = vmatpush2.msra.mxu0 0.0
    %6685 = vmatprep.subr.mxu0 0.0
    %6686 = vmatpush2.msra.mxu0 0.0
    %6687 = vmatprep.subr.mxu0 0.0
    %6688 = vmatpush2.msra.mxu0 0.0
    %6689 = vmatprep.subr.mxu0 0.0
    %6690 = vmatpush2.msra.mxu0 0.0
    %6691 = vmatprep.mubr.f32.mxu0 0.0
    %6692 = vmatmul.mubr.f32.gmra.mxu0 %v6625
    %v6693 = vpop.f32.mrf.mxu0
    %v6694 = vadd.f32 0.0, %v6693
    %v6695 = vpop.f32.mrf.mxu0
    %6696 = vdwg.mxu0
    %v6698 = vsel %vm1296, %v6602, 0
    %6700 = vmatprep.subr.mxu0 0.0
    %6701 = vmatpush1.msra.mxu0 0.0
    %6702 = vmatprep.subr.mxu0 0.0
    %6703 = vmatpush1.msra.mxu0 0.0
    %6704 = vmatprep.subr.mxu0 0.0
    %6705 = vmatpush1.msra.mxu0 0.0
    %6706 = vmatprep.subr.mxu0 0.0
    %6707 = vmatpush1.msra.mxu0 0.0
    %6708 = vmatprep.subr.mxu0 0.0
    %6709 = vmatpush1.msra.mxu0 0.0
    %6710 = vmatprep.subr.mxu0 0.0
    %6711 = vmatpush1.msra.mxu0 0.0
    %6712 = vmatprep.subr.mxu0 0.0
    %6713 = vmatpush1.msra.mxu0 0.0
    %6714 = vmatprep.subr.mxu0 0.0
    %6715 = vmatpush1.msra.mxu0 0.0
    %6716 = vmatprep.subr.mxu0 0.0
    %6717 = vmatpush1.msra.mxu0 0.0
    %6718 = vmatprep.subr.mxu0 0.0
    %6719 = vmatpush1.msra.mxu0 0.0
    %6720 = vmatprep.subr.mxu0 0.0
    %6721 = vmatpush1.msra.mxu0 0.0
    %6722 = vmatprep.subr.mxu0 0.0
    %6723 = vmatpush1.msra.mxu0 0.0
    %6724 = vmatprep.subr.mxu0 0.0
    %6725 = vmatpush1.msra.mxu0 0.0
    %6726 = vmatprep.subr.mxu0 0.0
    %6727 = vmatpush1.msra.mxu0 0.0
    %6728 = vmatprep.subr.mxu0 0.0
    %6729 = vmatpush1.msra.mxu0 0.0
    %6730 = vmatprep.subr.mxu0 0.0
    %6731 = vmatpush1.msra.mxu0 %v6620
    %6732 = vmatprep.subr.mxu0 0.0
    %6733 = vmatpush2.msra.mxu0 0.0
    %6734 = vmatprep.subr.mxu0 0.0
    %6735 = vmatpush2.msra.mxu0 0.0
    %6736 = vmatprep.subr.mxu0 0.0
    %6737 = vmatpush2.msra.mxu0 0.0
    %6738 = vmatprep.subr.mxu0 0.0
    %6739 = vmatpush2.msra.mxu0 0.0
    %6740 = vmatprep.subr.mxu0 0.0
    %6741 = vmatpush2.msra.mxu0 0.0
    %6742 = vmatprep.subr.mxu0 0.0
    %6743 = vmatpush2.msra.mxu0 0.0
    %6744 = vmatprep.subr.mxu0 0.0
    %6745 = vmatpush2.msra.mxu0 0.0
    %6746 = vmatprep.subr.mxu0 0.0
    %6747 = vmatpush2.msra.mxu0 0.0
    %6748 = vmatprep.subr.mxu0 0.0
    %6749 = vmatpush2.msra.mxu0 0.0
    %6750 = vmatprep.subr.mxu0 0.0
    %6751 = vmatpush2.msra.mxu0 0.0
    %6752 = vmatprep.subr.mxu0 0.0
    %6753 = vmatpush2.msra.mxu0 0.0
    %6754 = vmatprep.subr.mxu0 0.0
    %6755 = vmatpush2.msra.mxu0 0.0
    %6756 = vmatprep.subr.mxu0 0.0
    %6757 = vmatpush2.msra.mxu0 0.0
    %6758 = vmatprep.subr.mxu0 0.0
    %6759 = vmatpush2.msra.mxu0 0.0
    %6760 = vmatprep.subr.mxu0 0.0
    %6761 = vmatpush2.msra.mxu0 0.0
    %6762 = vmatprep.subr.mxu0 0.0
    %6763 = vmatpush2.msra.mxu0 0.0
    %6764 = vmatprep.mubr.f32.mxu0 0.0
    %6765 = vmatmul.mubr.f32.gmra.mxu0 %v6698
    %v6766 = vpop.f32.mrf.mxu0
    %v6767 = vadd.f32 %v6694, %v6766
    %v6768 = vpop.f32.mrf.mxu0
    %6769 = vdwg.mxu0
    %v6771 = vsel %vm1296, %v6612, 0
    %6773 = vmatprep.subr.mxu0 0.0
    %6774 = vmatpush1.msra.mxu0 0.0
    %6775 = vmatprep.subr.mxu0 0.0
    %6776 = vmatpush1.msra.mxu0 0.0
    %6777 = vmatprep.subr.mxu0 0.0
    %6778 = vmatpush1.msra.mxu0 0.0
    %6779 = vmatprep.subr.mxu0 0.0
    %6780 = vmatpush1.msra.mxu0 0.0
    %6781 = vmatprep.subr.mxu0 0.0
    %6782 = vmatpush1.msra.mxu0 0.0
    %6783 = vmatprep.subr.mxu0 0.0
    %6784 = vmatpush1.msra.mxu0 0.0
    %6785 = vmatprep.subr.mxu0 0.0
    %6786 = vmatpush1.msra.mxu0 0.0
    %6787 = vmatprep.subr.mxu0 0.0
    %6788 = vmatpush1.msra.mxu0 0.0
    %6789 = vmatprep.subr.mxu0 0.0
    %6790 = vmatpush1.msra.mxu0 0.0
    %6791 = vmatprep.subr.mxu0 0.0
    %6792 = vmatpush1.msra.mxu0 0.0
    %6793 = vmatprep.subr.mxu0 0.0
    %6794 = vmatpush1.msra.mxu0 0.0
    %6795 = vmatprep.subr.mxu0 0.0
    %6796 = vmatpush1.msra.mxu0 0.0
    %6797 = vmatprep.subr.mxu0 0.0
    %6798 = vmatpush1.msra.mxu0 0.0
    %6799 = vmatprep.subr.mxu0 0.0
    %6800 = vmatpush1.msra.mxu0 0.0
    %6801 = vmatprep.subr.mxu0 0.0
    %6802 = vmatpush1.msra.mxu0 0.0
    %6803 = vmatprep.subr.mxu0 0.0
    %6804 = vmatpush1.msra.mxu0 %v6622
    %6805 = vmatprep.subr.mxu0 0.0
    %6806 = vmatpush2.msra.mxu0 0.0
    %6807 = vmatprep.subr.mxu0 0.0
    %6808 = vmatpush2.msra.mxu0 0.0
    %6809 = vmatprep.subr.mxu0 0.0
    %6810 = vmatpush2.msra.mxu0 0.0
    %6811 = vmatprep.subr.mxu0 0.0
    %6812 = vmatpush2.msra.mxu0 0.0
    %6813 = vmatprep.subr.mxu0 0.0
    %6814 = vmatpush2.msra.mxu0 0.0
    %6815 = vmatprep.subr.mxu0 0.0
    %6816 = vmatpush2.msra.mxu0 0.0
    %6817 = vmatprep.subr.mxu0 0.0
    %6818 = vmatpush2.msra.mxu0 0.0
    %6819 = vmatprep.subr.mxu0 0.0
    %6820 = vmatpush2.msra.mxu0 0.0
    %6821 = vmatprep.subr.mxu0 0.0
    %6822 = vmatpush2.msra.mxu0 0.0
    %6823 = vmatprep.subr.mxu0 0.0
    %6824 = vmatpush2.msra.mxu0 0.0
    %6825 = vmatprep.subr.mxu0 0.0
    %6826 = vmatpush2.msra.mxu0 0.0
    %6827 = vmatprep.subr.mxu0 0.0
    %6828 = vmatpush2.msra.mxu0 0.0
    %6829 = vmatprep.subr.mxu0 0.0
    %6830 = vmatpush2.msra.mxu0 0.0
    %6831 = vmatprep.subr.mxu0 0.0
    %6832 = vmatpush2.msra.mxu0 0.0
    %6833 = vmatprep.subr.mxu0 0.0
    %6834 = vmatpush2.msra.mxu0 0.0
    %6835 = vmatprep.subr.mxu0 0.0
    %6836 = vmatpush2.msra.mxu0 0.0
    %6837 = vmatprep.mubr.f32.mxu0 0.0
    %6838 = vmatmul.mubr.f32.gmra.mxu0 %v6771
    %v6839 = vpop.f32.mrf.mxu0
    %v6840 = vadd.f32 0.0, %v6839
    %v6841 = vpop.f32.mrf.mxu0
    %6842 = vdwg.mxu0
    %v6843 = vadd.f32 %v6767, %v6840
    %v6845 = vsel %vm1296, %v6617, 0
    %6847 = vmatprep.subr.mxu0 0.0
    %6848 = vmatpush1.msra.mxu0 0.0
    %6849 = vmatprep.subr.mxu0 0.0
    %6850 = vmatpush1.msra.mxu0 0.0
    %6851 = vmatprep.subr.mxu0 0.0
    %6852 = vmatpush1.msra.mxu0 0.0
    %6853 = vmatprep.subr.mxu0 0.0
    %6854 = vmatpush1.msra.mxu0 0.0
    %6855 = vmatprep.subr.mxu0 0.0
    %6856 = vmatpush1.msra.mxu0 0.0
    %6857 = vmatprep.subr.mxu0 0.0
    %6858 = vmatpush1.msra.mxu0 0.0
    %6859 = vmatprep.subr.mxu0 0.0
    %6860 = vmatpush1.msra.mxu0 0.0
    %6861 = vmatprep.subr.mxu0 0.0
    %6862 = vmatpush1.msra.mxu0 0.0
    %6863 = vmatprep.subr.mxu0 0.0
    %6864 = vmatpush1.msra.mxu0 0.0
    %6865 = vmatprep.subr.mxu0 0.0
    %6866 = vmatpush1.msra.mxu0 0.0
    %6867 = vmatprep.subr.mxu0 0.0
    %6868 = vmatpush1.msra.mxu0 0.0
    %6869 = vmatprep.subr.mxu0 0.0
    %6870 = vmatpush1.msra.mxu0 0.0
    %6871 = vmatprep.subr.mxu0 0.0
    %6872 = vmatpush1.msra.mxu0 0.0
    %6873 = vmatprep.subr.mxu0 0.0
    %6874 = vmatpush1.msra.mxu0 0.0
    %6875 = vmatprep.subr.mxu0 0.0
    %6876 = vmatpush1.msra.mxu0 0.0
    %6877 = vmatprep.subr.mxu0 0.0
    %6878 = vmatpush1.msra.mxu0 %v6623
    %6879 = vmatprep.subr.mxu0 0.0
    %6880 = vmatpush2.msra.mxu0 0.0
    %6881 = vmatprep.subr.mxu0 0.0
    %6882 = vmatpush2.msra.mxu0 0.0
    %6883 = vmatprep.subr.mxu0 0.0
    %6884 = vmatpush2.msra.mxu0 0.0
    %6885 = vmatprep.subr.mxu0 0.0
    %6886 = vmatpush2.msra.mxu0 0.0
    %6887 = vmatprep.subr.mxu0 0.0
    %6888 = vmatpush2.msra.mxu0 0.0
    %6889 = vmatprep.subr.mxu0 0.0
    %6890 = vmatpush2.msra.mxu0 0.0
    %6891 = vmatprep.subr.mxu0 0.0
    %6892 = vmatpush2.msra.mxu0 0.0
    %6893 = vmatprep.subr.mxu0 0.0
    %6894 = vmatpush2.msra.mxu0 0.0
    %6895 = vmatprep.subr.mxu0 0.0
    %6896 = vmatpush2.msra.mxu0 0.0
    %6897 = vmatprep.subr.mxu0 0.0
    %6898 = vmatpush2.msra.mxu0 0.0
    %6899 = vmatprep.subr.mxu0 0.0
    %6900 = vmatpush2.msra.mxu0 0.0
    %6901 = vmatprep.subr.mxu0 0.0
    %6902 = vmatpush2.msra.mxu0 0.0
    %6903 = vmatprep.subr.mxu0 0.0
    %6904 = vmatpush2.msra.mxu0 0.0
    %6905 = vmatprep.subr.mxu0 0.0
    %6906 = vmatpush2.msra.mxu0 0.0
    %6907 = vmatprep.subr.mxu0 0.0
    %6908 = vmatpush2.msra.mxu0 0.0
    %6909 = vmatprep.subr.mxu0 0.0
    %6910 = vmatpush2.msra.mxu0 0.0
    %6911 = vmatprep.mubr.f32.mxu0 0.0
    %6912 = vmatmul.mubr.f32.gmra.mxu0 %v6845
    %v6913 = vpop.f32.mrf.mxu0
    %v6914 = vadd.f32 0.0, %v6913
    %v6915 = vpop.f32.mrf.mxu0
    %6916 = vdwg.mxu0
    %v6917 = vadd.f32 %v6843, %v6914
    %v6918 = vld [vmem:[%s79] sm:$0x1]
    %v6920 = vlaneseq
    %v6921 = vshrl.u32 %v6920, 7
    %v6922 = vsub.s32 0, %v6921
    %v6923 = vrot.slane %v6918, %v6922
    %v6925 = vadd.f32 %v6917, %v6923
    %6926 = vst.msk [vmem:[#allocation5] sm:$0xff] %vm1296, %v6925
    %v6927 = vld [vmem:[%s37] sm:$0xff]
    %v6928 = vld [vmem:[%s37 + $0x8] sm:$0xff]
    %v6929 = vld [vmem:[%s37 + $0x10] sm:$0xff]
    %v6930 = vld [vmem:[%s37 + $0x18] sm:$0xff]
    %v6931 = vsub.f32 %v6602, %v1700
    %v6932 = vsub.f32 %v6607, %v1701
    %v6933 = vsub.f32 %v6612, %v1702
    %v6934 = vsub.f32 %v6617, %v1703
    %v6935 = vmul.f32 %v6931, %v6931
    %v6936 = vmul.f32 %v6932, %v6932
    %v6937 = vmul.f32 %v6933, %v6933
    %v6938 = vmul.f32 %v6934, %v6934
    %6940 = vset.pattern.permute.xlu0 0
    %6941 = vperm.xlu0 %6940, %v6927
    %v6942 = vpop.permute.xlu0 %6941
    %6945 = vset.pattern.permute.xlu0 0
    %6946 = vperm.xlu0 %6945, %v6928
    %v6947 = vpop.permute.xlu0 %6946
    %6950 = vset.pattern.permute.xlu0 0
    %6951 = vperm.xlu0 %6950, %v6929
    %v6952 = vpop.permute.xlu0 %6951
    %6955 = vset.pattern.permute.xlu0 0
    %6956 = vperm.xlu0 %6955, %v6930
    %v6957 = vpop.permute.xlu0 %6956
    %v6959 = vmul.f32 %v6942, %v6935
    %v6960 = vmul.f32 %v6947, %v6936
    %v6961 = vmul.f32 %v6952, %v6937
    %v6962 = vmul.f32 %v6957, %v6938
    %v6963 = vsel %vm1296, %v6959, 0.0
    %6964 = vadd.xlane.f32.xlu0 %v6963
    %v6965 = vpop.xlane.xlu0 %6964
    %v6966 = vsel %vm1296, %v6960, 0.0
    %6967 = vadd.xlane.f32.xlu0 %v6966
    %v6968 = vpop.xlane.xlu0 %6967
    %v6969 = vsel %vm1296, %v6961, 0.0
    %6970 = vadd.xlane.f32.xlu0 %v6969
    %v6971 = vpop.xlane.xlu0 %6970
    %v6972 = vsel %vm1296, %v6962, 0.0
    %6973 = vadd.xlane.f32.xlu0 %v6972
    %v6974 = vpop.xlane.xlu0 %6973
    %v6975 = vadd.f32 %v6965, %v6968
    %v6976 = vadd.f32 %v6975, %v6971
    %v6977 = vadd.f32 %v6976, %v6974
    %v6978 = vrot.slane %v6977, 4
    %v6979 = vadd.f32 %v6977, %v6978
    %v6980 = vrot.slane %v6979, 2
    %v6981 = vadd.f32 %v6979, %v6980
    %v6982 = vrot.slane %v6981, 1
    %v6983 = vadd.f32 %v6981, %v6982
    %v6984 = vmul.f32 %v6983, 0.0078125
    %v6985 = vld [vmem:[%s81] sm:$0xff]
    %v6986 = vsub.f32 %v6925, %v6985
    %v6987 = vmul.f32 %v6986, %v6986
    %v6988 = vsel %vm1296, %v6987, 0.0
    %6989 = vadd.xlane.f32.xlu0 %v6988
    %v6990 = vpop.xlane.xlu0 %6989
    %v6991 = vrot.slane %v6990, 4
    %v6992 = vadd.f32 %v6990, %v6991
    %v6993 = vrot.slane %v6992, 2
    %v6994 = vadd.f32 %v6992, %v6993
    %v6995 = vrot.slane %v6994, 1
    %v6996 = vadd.f32 %v6994, %v6995
    %v6997 = vmul.f32 %v6996, 0.015625
    %v6998 = vmul.f32 %v6997, 0.7
    %v6999 = vmul.f32 %v6984, 0.3
    %v7000 = vadd.f32 %v6998, %v6999
    %vm7001 = vcmask 0
    %7002 = vst.msk [vmem:[#allocation7] sm:$0x1] %vm7001, %v7000
    // Predicated region
    $region166: #{gmae_forward.1} parent=1 // pred_check
      _
    $region167: #{gmae_forward.1} parent=1 // pred_check_branch
      %7004 = sbr.rel (0) target = $region169
    $region168: #{gmae_forward.1} parent=1 // pred_region
      %s7006 = ssub.s32 128, 128
      %7007 = vsyncadd [#allocation4], %s7006
      %s7009 = sshll.u32 [#allocation3], 4
      %s7010 = int_to_ptr.vmem [resolvable:$true] %s7009
      %7012 = dma.vmem_to_hbm [thread:$0]  %s7010, 128, %s83, [#allocation4]
    $region169: #{gmae_forward.1} parent=1 // pred_fallthru
      _
    // Predicated region
    $region170: #{gmae_forward.1} parent=1 // pred_check
      _
    $region171: #{gmae_forward.1} parent=1 // pred_check_branch
      %7014 = sbr.rel (0) target = $region173
    $region172: #{gmae_forward.1} parent=1 // pred_region
      %s7016 = ssub.s32 128, 128
      %7017 = vsyncadd [#allocation6], %s7016
      %s7019 = sshll.u32 [#allocation5], 4
      %s7020 = int_to_ptr.vmem [resolvable:$true] %s7019
      %7022 = dma.vmem_to_hbm [thread:$0]  %s7020, 128, %s85, [#allocation6]
    $region173: #{gmae_forward.1} parent=1 // pred_fallthru
      _
    // Predicated region
    $region174: #{gmae_forward.1} parent=1 // pred_check
      _
    $region175: #{gmae_forward.1} parent=1 // pred_check_branch
      %7024 = sbr.rel (0) target = $region177
    $region176: #{gmae_forward.1} parent=1 // pred_region
      %s7026 = ssub.s32 16, 16
      %7027 = vsyncadd [#allocation6], %s7026
      %s7029 = sshll.u32 [#allocation7], 4
      %s7030 = int_to_ptr.vmem [resolvable:$true] %s7029
      %7032 = dma.vmem_to_hbm [thread:$0]  %s7030, 16, %s87, [#allocation6]
    $region177: #{gmae_forward.1} parent=1 // pred_fallthru
      _
    // Predicated region
    $region178: #{gmae_forward.1} parent=1 // pred_check
      _
    $region179: #{gmae_forward.1} parent=1 // pred_check_branch
      %7034 = sbr.rel (0) target = $region181
    $region180: #{gmae_forward.1} parent=1 // pred_region
      %7035 = dma.done [#allocation4], 128
    $region181: #{gmae_forward.1} parent=1 // pred_fallthru
      _
    // Predicated region
    $region182: #{gmae_forward.1} parent=1 // pred_check
      _
    $region183: #{gmae_forward.1} parent=1 // pred_check_branch
      %7037 = sbr.rel (0) target = $region185
    $region184: #{gmae_forward.1} parent=1 // pred_region
      %7038 = dma.done [#allocation6], 128
    $region185: #{gmae_forward.1} parent=1 // pred_fallthru
      _
    // Predicated region
    $region186: #{gmae_forward.1} parent=1 // pred_check
      _
    $region187: #{gmae_forward.1} parent=1 // pred_check_branch
      %7040 = sbr.rel (0) target = $region189
    $region188: #{gmae_forward.1} parent=1 // pred_region
      %7041 = dma.done [#allocation6], 16
    $region189: #{gmae_forward.1} parent=1 // pred_fallthru
      _
    %7042 = vsyncpa [#allocation4], 1
    %7043 = vsyncpa [#allocation6], 1

</llo_original>
